<compile_context>
chip_gen: v7x
topology: tpu7x:2x2x1
jax: 0.10.0
libtpu: 0.0.40
codegen_flags: <defaults>
</compile_context>

<pallas_src>
import functools

import jax
import jax.numpy as jnp
from jax import lax
from jax.experimental import pallas as pl
from jax.experimental.pallas import tpu as pltpu


# ---------------------------------------------------------------------------
# Pass 1: fused conv3+LeakyReLU -> conv5(stride r) -> residual + BN partial sums
# ---------------------------------------------------------------------------
def _fused_conv_kernel(H, W, C_i, C_o, r,
                       x_ref, w3_ref, b3_ref, w5_ref, b5_ref, wr_ref, br_ref,
                       y2_ref, res_ref, stats_ref,
                       xp_ref, y1p_ref):
    Ho, Wo = H // r, W // r

    # ---- in-kernel zero halos.  The interior is stored at column offset 8 so
    # the scratch stores stay sublane-aligned; borders stay zero.
    xp_ref[...] = jnp.zeros_like(xp_ref)
    y1p_ref[...] = jnp.zeros_like(y1p_ref)
    xp_ref[pl.ds(1, H), pl.ds(8, W), :] = x_ref[0]        # x pixel (h,w) -> (h+1, w+8)

    # ---- 3x3 conv, stride 1, pad 1, + bias + LeakyReLU(0.01); y1 stays in VMEM
    xp = xp_ref[...]                                      # (H+2, W+9, C_i)
    acc1 = jnp.zeros((H * W, C_o), jnp.float32)
    for dy in range(3):
        for dx in range(3):
            patch = xp[dy:dy + H, dx + 7:dx + 7 + W, :].reshape(H * W, C_i)
            acc1 += jnp.dot(patch, w3_ref[dy * 3 + dx],
                            preferred_element_type=jnp.float32)
    acc1 += b3_ref[...]
    y1 = jnp.where(acc1 > 0, acc1, 0.01 * acc1)
    # y1 pixel (h,w) -> scratch (h+2, w+8); padded-by-2 grid (a,b) -> (a, b+6)
    y1p_ref[pl.ds(2, H), pl.ds(8, W), :] = y1.reshape(H, W, C_o)

    # ---- 5x5 conv, pad 2, stride r: evaluate only the kept output positions
    # via strided reads from the VMEM-resident padded y1 (no r^2 waste, no HBM).
    acc2 = jnp.zeros((Ho * Wo, C_o), jnp.float32)
    for dy in range(5):
        for dx in range(5):
            patch = y1p_ref[pl.ds(dy, Ho, stride=r),
                            pl.ds(dx + 6, Wo, stride=r), :].reshape(Ho * Wo, C_o)
            acc2 += jnp.dot(patch, w5_ref[dy * 5 + dx],
                            preferred_element_type=jnp.float32)
    y2 = acc2 + b5_ref[...]                               # (Ho*Wo, C_o)

    # ---- residual 1x1 conv, stride r (x tile already resident in VMEM)
    xsub = xp_ref[pl.ds(1, Ho, stride=r), pl.ds(8, Wo, stride=r), :]
    res = jnp.dot(xsub.reshape(Ho * Wo, C_i), wr_ref[...],
                  preferred_element_type=jnp.float32) + br_ref[...]

    # ---- BatchNorm partial statistics for this batch item (two-pass BN)
    stats_ref[0, pl.ds(0, 1), :] = jnp.sum(y2, axis=0, keepdims=True)
    stats_ref[0, pl.ds(1, 1), :] = jnp.sum(y2 * y2, axis=0, keepdims=True)

    y2_ref[0] = y2
    res_ref[0] = res


# ---------------------------------------------------------------------------
# Pass 2: BN finalize + apply + residual add + ReLU (tiled over batch)
# ---------------------------------------------------------------------------
def _bn_apply_kernel(M_total, eps,
                     y2_ref, res_ref, stats_ref, gamma_ref, beta_ref, out_ref):
    tot = jnp.sum(stats_ref[...], axis=0)                  # (2, C_o), reduce over N
    mean = tot[0:1, :] * (1.0 / M_total)                   # (1, C_o)
    var = tot[1:2, :] * (1.0 / M_total) - mean * mean      # biased (training-mode) var
    scale = gamma_ref[...] * lax.rsqrt(var + eps)
    shift = beta_ref[...] - mean * scale
    y = y2_ref[0] * scale + shift + res_ref[0]             # (Ho*Wo, C_o)
    # relu_(); the following F.leaky_relu is a mathematical no-op on >=0 input.
    out_ref[0] = jnp.maximum(y, 0.0)


# ---------------------------------------------------------------------------
# Wrapper
# ---------------------------------------------------------------------------
def down_conv_block(x, params, r):
    """x: (N, H, W, C_i) float32, NHWC. Returns (N, H//r, W//r, C_o) NHWC."""
    N, H, W, C_i = x.shape
    C_o = params["b3"].shape[-1]
    assert H % r == 0 and W % r == 0, "spatial dims must be divisible by stride r"
    Ho, Wo = H // r, W // r
    F = Ho * Wo

    cparams = pltpu.CompilerParams(
        dimension_semantics=("parallel",),
        vmem_limit_bytes=32 * 1024 * 1024,
    )

    y2, res, stats = pl.pallas_call(
        functools.partial(_fused_conv_kernel, H, W, C_i, C_o, r),
        out_shape=(
            jax.ShapeDtypeStruct((N, F, C_o), jnp.float32),   # pre-BN conv5 output
            jax.ShapeDtypeStruct((N, F, C_o), jnp.float32),   # residual branch
            jax.ShapeDtypeStruct((N, 2, C_o), jnp.float32),   # per-item (sum, sum^2)
        ),
        grid=(N,),
        in_specs=[
            pl.BlockSpec((1, H, W, C_i), lambda n: (n, 0, 0, 0)),
            pl.BlockSpec((9, C_i, C_o), lambda n: (0, 0, 0)),
            pl.BlockSpec((1, C_o), lambda n: (0, 0)),
            pl.BlockSpec((25, C_o, C_o), lambda n: (0, 0, 0)),
            pl.BlockSpec((1, C_o), lambda n: (0, 0)),
            pl.BlockSpec((C_i, C_o), lambda n: (0, 0)),
            pl.BlockSpec((1, C_o), lambda n: (0, 0)),
        ],
        out_specs=(
            pl.BlockSpec((1, F, C_o), lambda n: (n, 0, 0)),
            pl.BlockSpec((1, F, C_o), lambda n: (n, 0, 0)),
            pl.BlockSpec((1, 2, C_o), lambda n: (n, 0, 0)),
        ),
        scratch_shapes=[
            pltpu.VMEM((H + 2, W + 9, C_i), jnp.float32),     # zero-padded x tile
            pltpu.VMEM((H + 4, W + 10, C_o), jnp.float32),    # zero-padded y1 tile
        ],
        compiler_params=cparams,
    )(x, params["w3"], params["b3"], params["w5"], params["b5"],
      params["wr"], params["br"])

    out_flat = pl.pallas_call(
        functools.partial(_bn_apply_kernel, N * F, 1e-5),
        out_shape=jax.ShapeDtypeStruct((N, F, C_o), jnp.float32),
        grid=(N,),
        in_specs=[
            pl.BlockSpec((1, F, C_o), lambda n: (n, 0, 0)),
            pl.BlockSpec((1, F, C_o), lambda n: (n, 0, 0)),
            pl.BlockSpec((N, 2, C_o), lambda n: (0, 0, 0)),   # tiny, broadcast to all steps
            pl.BlockSpec((1, C_o), lambda n: (0, 0)),
            pl.BlockSpec((1, C_o), lambda n: (0, 0)),
        ],
        out_specs=pl.BlockSpec((1, F, C_o), lambda n: (n, 0, 0)),
        compiler_params=cparams,
    )(y2, res, stats, params["gamma"], params["beta"])

    return out_flat.reshape(N, Ho, Wo, C_o)


# ---------------------------------------------------------------------------
# Pure-JAX reference (PyTorch semantics, NHWC) for correctness check
# ---------------------------------------------------------------------------
def reference(x, w3_hwio, b3, w5_hwio, b5, wr_hwio, br, gamma, beta, r):
    dn = ("NHWC", "HWIO", "NHWC")
    res = lax.conv_general_dilated(x, wr_hwio, (r, r), "VALID",
                                   dimension_numbers=dn) + br
    y1 = lax.conv_general_dilated(x, w3_hwio, (1, 1), ((1, 1), (1, 1)),
                                  dimension_numbers=dn) + b3
    y1 = jnp.where(y1 > 0, y1, 0.01 * y1)
    y2 = lax.conv_general_dilated(y1, w5_hwio, (r, r), ((2, 2), (2, 2)),
                                  dimension_numbers=dn) + b5
    mean = y2.mean(axis=(0, 1, 2))
    var = ((y2 - mean) ** 2).mean(axis=(0, 1, 2))
    ybn = (y2 - mean) * lax.rsqrt(var + 1e-5) * gamma + beta
    s = jnp.maximum(ybn + res, 0.0)
    return jnp.where(s > 0, s, 0.01 * s)


# ---------------------------------------------------------------------------
if __name__ == "__main__":
    N, C_i, C_o, H, W, r = 2, 4, 8, 16, 16, 2

    key = jax.random.PRNGKey(0)
    ks = jax.random.split(key, 7)

    # PyTorch-style NCHW input, transposed once to NHWC for the kernels.
    x_nchw = jax.random.normal(ks[0], (N, C_i, H, W), jnp.float32)
    x = jnp.transpose(x_nchw, (0, 2, 3, 1))

    # Deterministic synthetic parameters (shapes per the module __init__).
    w3_hwio = 0.1 * jax.random.normal(ks[1], (3, 3, C_i, C_o), jnp.float32)
    b3 = 0.05 * jax.random.normal(ks[2], (C_o,), jnp.float32)
    w5_hwio = 0.1 * jax.random.normal(ks[3], (5, 5, C_o, C_o), jnp.float32)
    b5 = 0.05 * jax.random.normal(ks[4], (C_o,), jnp.float32)
    wr_hwio = 0.1 * jax.random.normal(ks[5], (1, 1, C_i, C_o), jnp.float32)
    br = 0.05 * jax.random.normal(ks[6], (C_o,), jnp.float32)
    gamma = jnp.ones((C_o,), jnp.float32)   # nn.BatchNorm2d default init
    beta = jnp.zeros((C_o,), jnp.float32)

    params = {
        "w3": w3_hwio.reshape(9, C_i, C_o),
        "b3": b3.reshape(1, C_o),
        "w5": w5_hwio.reshape(25, C_o, C_o),
        "b5": b5.reshape(1, C_o),
        "wr": wr_hwio.reshape(C_i, C_o),
        "br": br.reshape(1, C_o),
        "gamma": gamma.reshape(1, C_o),
        "beta": beta.reshape(1, C_o),
    }

    out = jax.block_until_ready(down_conv_block(x, params, r))

    ref = reference(x, w3_hwio, b3, w5_hwio, b5, wr_hwio, br, gamma, beta, r)
    assert out.shape == (N, H // r, W // r, C_o), out.shape
    err = float(jnp.max(jnp.abs(out - ref)))
    assert jnp.allclose(out, ref, atol=5e-4, rtol=5e-4), "max abs diff = %e" % err

    print("KERNEL_OK")
</pallas_src>

<mosaic_0001>
module attributes {stable_mosaic.version = 11 : i64} {
  func.func @_fused_conv_kernel(%arg0: i32, %arg1: memref<1x16x16x4xf32, #tpu.memory_space<vmem>>, %arg2: memref<9x4x8xf32, #tpu.memory_space<vmem>>, %arg3: memref<1x8xf32, #tpu.memory_space<vmem>>, %arg4: memref<25x8x8xf32, #tpu.memory_space<vmem>>, %arg5: memref<1x8xf32, #tpu.memory_space<vmem>>, %arg6: memref<4x8xf32, #tpu.memory_space<vmem>>, %arg7: memref<1x8xf32, #tpu.memory_space<vmem>>, %arg8: memref<1x64x8xf32, #tpu.memory_space<vmem>>, %arg9: memref<1x64x8xf32, #tpu.memory_space<vmem>>, %arg10: memref<1x2x8xf32, #tpu.memory_space<vmem>>, %arg11: memref<18x25x4xf32, #tpu.memory_space<vmem>>, %arg12: memref<20x26x8xf32, #tpu.memory_space<vmem>>) attributes {dimension_semantics = [#tpu.dimension_semantics<parallel>], iteration_bounds = array<i64: 2>, scalar_prefetch = 0 : i64, scratch_operands = 2 : i64, tpu.core_type = #tpu.core_type<tc>, window_params = [{transform_indices = @transform_0, window_bounds = array<i64: 1, 16, 16, 4>}, {pipeline_mode = #tpu.pipeline_mode<synchronous>, transform_indices = @transform_1, window_bounds = array<i64: 9, 4, 8>}, {pipeline_mode = #tpu.pipeline_mode<synchronous>, transform_indices = @transform_2, window_bounds = array<i64: 1, 8>}, {pipeline_mode = #tpu.pipeline_mode<synchronous>, transform_indices = @transform_3, window_bounds = array<i64: 25, 8, 8>}, {pipeline_mode = #tpu.pipeline_mode<synchronous>, transform_indices = @transform_4, window_bounds = array<i64: 1, 8>}, {pipeline_mode = #tpu.pipeline_mode<synchronous>, transform_indices = @transform_5, window_bounds = array<i64: 4, 8>}, {pipeline_mode = #tpu.pipeline_mode<synchronous>, transform_indices = @transform_6, window_bounds = array<i64: 1, 8>}, {transform_indices = @transform_7, window_bounds = array<i64: 1, 64, 8>}, {transform_indices = @transform_8, window_bounds = array<i64: 1, 64, 8>}, {transform_indices = @transform_9, window_bounds = array<i64: 1, 2, 8>}]} {
    %cst = arith.constant 0.000000e+00 : f32
    %0 = vector.broadcast %cst : f32 to vector<18x25x4xf32>
    %c0 = arith.constant 0 : index
    %c0_0 = arith.constant 0 : index
    %c0_1 = arith.constant 0 : index
    %1 = vector.load %arg11[%c0, %c0_0, %c0_1] : memref<18x25x4xf32, #tpu.memory_space<vmem>>, vector<18x25x4xf32>
    tpu.vector_store %arg11[%c0, %c0_0, %c0_1], %0 {strides = array<i32>} : memref<18x25x4xf32, #tpu.memory_space<vmem>>, vector<18x25x4xf32>,
    %cst_2 = arith.constant 0.000000e+00 : f32
    %2 = vector.broadcast %cst_2 : f32 to vector<20x26x8xf32>
    %c0_3 = arith.constant 0 : index
    %c0_4 = arith.constant 0 : index
    %c0_5 = arith.constant 0 : index
    %3 = vector.load %arg12[%c0_3, %c0_4, %c0_5] : memref<20x26x8xf32, #tpu.memory_space<vmem>>, vector<20x26x8xf32>
    tpu.vector_store %arg12[%c0_3, %c0_4, %c0_5], %2 {strides = array<i32>} : memref<20x26x8xf32, #tpu.memory_space<vmem>>, vector<20x26x8xf32>,
    %c0_6 = arith.constant 0 : index
    %c0_7 = arith.constant 0 : index
    %c0_8 = arith.constant 0 : index
    %c0_9 = arith.constant 0 : index
    %4 = vector.load %arg1[%c0_6, %c0_7, %c0_8, %c0_9] : memref<1x16x16x4xf32, #tpu.memory_space<vmem>>, vector<1x16x16x4xf32>
    %5 = vector.shape_cast %4 : vector<1x16x16x4xf32> to vector<16x16x4xf32>
    %c1 = arith.constant 1 : index
    %c8 = arith.constant 8 : index
    %c0_10 = arith.constant 0 : index
    %6 = vector.load %arg11[%c1, %c8, %c0_10] : memref<18x25x4xf32, #tpu.memory_space<vmem>>, vector<16x16x4xf32>
    tpu.vector_store %arg11[%c1, %c8, %c0_10], %5 {strides = array<i32>} : memref<18x25x4xf32, #tpu.memory_space<vmem>>, vector<16x16x4xf32>,
    %c0_11 = arith.constant 0 : index
    %c0_12 = arith.constant 0 : index
    %c0_13 = arith.constant 0 : index
    %7 = vector.load %arg11[%c0_11, %c0_12, %c0_13] : memref<18x25x4xf32, #tpu.memory_space<vmem>>, vector<18x25x4xf32>
    %cst_14 = arith.constant 0.000000e+00 : f32
    %8 = vector.broadcast %cst_14 : f32 to vector<256x8xf32>
    %9 = vector.extract_strided_slice %7 {offsets = [0, 7, 0], sizes = [16, 16, 4], strides = [1, 1, 1]} : vector<18x25x4xf32> to vector<16x16x4xf32>
    %10 = vector.shape_cast %9 : vector<16x16x4xf32> to vector<256x4xf32>
    %c0_15 = arith.constant 0 : index
    %c0_16 = arith.constant 0 : index
    %c0_17 = arith.constant 0 : index
    %11 = vector.load %arg2[%c0_15, %c0_16, %c0_17] : memref<9x4x8xf32, #tpu.memory_space<vmem>>, vector<1x4x8xf32>
    %12 = vector.shape_cast %11 : vector<1x4x8xf32> to vector<4x8xf32>
    %cst_18 = arith.constant dense<0.000000e+00> : vector<256x8xf32>
    %13 = tpu.matmul %10, %12, %cst_18 {dimension_numbers = #tpu.dot_dimension_numbers<[1], [0], [0], [1], [0, 0, 1, 1], [], []>} : vector<256x4xf32>, vector<4x8xf32>, vector<256x8xf32> -> vector<256x8xf32>
    %14 = arith.addf %8, %13 : vector<256x8xf32>
    %15 = vector.extract_strided_slice %7 {offsets = [0, 8, 0], sizes = [16, 16, 4], strides = [1, 1, 1]} : vector<18x25x4xf32> to vector<16x16x4xf32>
    %16 = vector.shape_cast %15 : vector<16x16x4xf32> to vector<256x4xf32>
    %c1_19 = arith.constant 1 : index
    %c0_20 = arith.constant 0 : index
    %c0_21 = arith.constant 0 : index
    %17 = vector.load %arg2[%c1_19, %c0_20, %c0_21] : memref<9x4x8xf32, #tpu.memory_space<vmem>>, vector<1x4x8xf32>
    %18 = vector.shape_cast %17 : vector<1x4x8xf32> to vector<4x8xf32>
    %cst_22 = arith.constant dense<0.000000e+00> : vector<256x8xf32>
    %19 = tpu.matmul %16, %18, %cst_22 {dimension_numbers = #tpu.dot_dimension_numbers<[1], [0], [0], [1], [0, 0, 1, 1], [], []>} : vector<256x4xf32>, vector<4x8xf32>, vector<256x8xf32> -> vector<256x8xf32>
    %20 = arith.addf %14, %19 : vector<256x8xf32>
    %21 = vector.extract_strided_slice %7 {offsets = [0, 9, 0], sizes = [16, 16, 4], strides = [1, 1, 1]} : vector<18x25x4xf32> to vector<16x16x4xf32>
    %22 = vector.shape_cast %21 : vector<16x16x4xf32> to vector<256x4xf32>
    %c2 = arith.constant 2 : index
    %c0_23 = arith.constant 0 : index
    %c0_24 = arith.constant 0 : index
    %23 = vector.load %arg2[%c2, %c0_23, %c0_24] : memref<9x4x8xf32, #tpu.memory_space<vmem>>, vector<1x4x8xf32>
    %24 = vector.shape_cast %23 : vector<1x4x8xf32> to vector<4x8xf32>
    %cst_25 = arith.constant dense<0.000000e+00> : vector<256x8xf32>
    %25 = tpu.matmul %22, %24, %cst_25 {dimension_numbers = #tpu.dot_dimension_numbers<[1], [0], [0], [1], [0, 0, 1, 1], [], []>} : vector<256x4xf32>, vector<4x8xf32>, vector<256x8xf32> -> vector<256x8xf32>
    %26 = arith.addf %20, %25 : vector<256x8xf32>
    %27 = vector.extract_strided_slice %7 {offsets = [1, 7, 0], sizes = [16, 16, 4], strides = [1, 1, 1]} : vector<18x25x4xf32> to vector<16x16x4xf32>
    %28 = vector.shape_cast %27 : vector<16x16x4xf32> to vector<256x4xf32>
    %c3 = arith.constant 3 : index
    %c0_26 = arith.constant 0 : index
    %c0_27 = arith.constant 0 : index
    %29 = vector.load %arg2[%c3, %c0_26, %c0_27] : memref<9x4x8xf32, #tpu.memory_space<vmem>>, vector<1x4x8xf32>
    %30 = vector.shape_cast %29 : vector<1x4x8xf32> to vector<4x8xf32>
    %cst_28 = arith.constant dense<0.000000e+00> : vector<256x8xf32>
    %31 = tpu.matmul %28, %30, %cst_28 {dimension_numbers = #tpu.dot_dimension_numbers<[1], [0], [0], [1], [0, 0, 1, 1], [], []>} : vector<256x4xf32>, vector<4x8xf32>, vector<256x8xf32> -> vector<256x8xf32>
    %32 = arith.addf %26, %31 : vector<256x8xf32>
    %33 = vector.extract_strided_slice %7 {offsets = [1, 8, 0], sizes = [16, 16, 4], strides = [1, 1, 1]} : vector<18x25x4xf32> to vector<16x16x4xf32>
    %34 = vector.shape_cast %33 : vector<16x16x4xf32> to vector<256x4xf32>
    %c4 = arith.constant 4 : index
    %c0_29 = arith.constant 0 : index
    %c0_30 = arith.constant 0 : index
    %35 = vector.load %arg2[%c4, %c0_29, %c0_30] : memref<9x4x8xf32, #tpu.memory_space<vmem>>, vector<1x4x8xf32>
    %36 = vector.shape_cast %35 : vector<1x4x8xf32> to vector<4x8xf32>
    %cst_31 = arith.constant dense<0.000000e+00> : vector<256x8xf32>
    %37 = tpu.matmul %34, %36, %cst_31 {dimension_numbers = #tpu.dot_dimension_numbers<[1], [0], [0], [1], [0, 0, 1, 1], [], []>} : vector<256x4xf32>, vector<4x8xf32>, vector<256x8xf32> -> vector<256x8xf32>
    %38 = arith.addf %32, %37 : vector<256x8xf32>
    %39 = vector.extract_strided_slice %7 {offsets = [1, 9, 0], sizes = [16, 16, 4], strides = [1, 1, 1]} : vector<18x25x4xf32> to vector<16x16x4xf32>
    %40 = vector.shape_cast %39 : vector<16x16x4xf32> to vector<256x4xf32>
    %c5 = arith.constant 5 : index
    %c0_32 = arith.constant 0 : index
    %c0_33 = arith.constant 0 : index
    %41 = vector.load %arg2[%c5, %c0_32, %c0_33] : memref<9x4x8xf32, #tpu.memory_space<vmem>>, vector<1x4x8xf32>
    %42 = vector.shape_cast %41 : vector<1x4x8xf32> to vector<4x8xf32>
    %cst_34 = arith.constant dense<0.000000e+00> : vector<256x8xf32>
    %43 = tpu.matmul %40, %42, %cst_34 {dimension_numbers = #tpu.dot_dimension_numbers<[1], [0], [0], [1], [0, 0, 1, 1], [], []>} : vector<256x4xf32>, vector<4x8xf32>, vector<256x8xf32> -> vector<256x8xf32>
    %44 = arith.addf %38, %43 : vector<256x8xf32>
    %45 = vector.extract_strided_slice %7 {offsets = [2, 7, 0], sizes = [16, 16, 4], strides = [1, 1, 1]} : vector<18x25x4xf32> to vector<16x16x4xf32>
    %46 = vector.shape_cast %45 : vector<16x16x4xf32> to vector<256x4xf32>
    %c6 = arith.constant 6 : index
    %c0_35 = arith.constant 0 : index
    %c0_36 = arith.constant 0 : index
    %47 = vector.load %arg2[%c6, %c0_35, %c0_36] : memref<9x4x8xf32, #tpu.memory_space<vmem>>, vector<1x4x8xf32>
    %48 = vector.shape_cast %47 : vector<1x4x8xf32> to vector<4x8xf32>
    %cst_37 = arith.constant dense<0.000000e+00> : vector<256x8xf32>
    %49 = tpu.matmul %46, %48, %cst_37 {dimension_numbers = #tpu.dot_dimension_numbers<[1], [0], [0], [1], [0, 0, 1, 1], [], []>} : vector<256x4xf32>, vector<4x8xf32>, vector<256x8xf32> -> vector<256x8xf32>
    %50 = arith.addf %44, %49 : vector<256x8xf32>
    %51 = vector.extract_strided_slice %7 {offsets = [2, 8, 0], sizes = [16, 16, 4], strides = [1, 1, 1]} : vector<18x25x4xf32> to vector<16x16x4xf32>
    %52 = vector.shape_cast %51 : vector<16x16x4xf32> to vector<256x4xf32>
    %c7 = arith.constant 7 : index
    %c0_38 = arith.constant 0 : index
    %c0_39 = arith.constant 0 : index
    %53 = vector.load %arg2[%c7, %c0_38, %c0_39] : memref<9x4x8xf32, #tpu.memory_space<vmem>>, vector<1x4x8xf32>
    %54 = vector.shape_cast %53 : vector<1x4x8xf32> to vector<4x8xf32>
    %cst_40 = arith.constant dense<0.000000e+00> : vector<256x8xf32>
    %55 = tpu.matmul %52, %54, %cst_40 {dimension_numbers = #tpu.dot_dimension_numbers<[1], [0], [0], [1], [0, 0, 1, 1], [], []>} : vector<256x4xf32>, vector<4x8xf32>, vector<256x8xf32> -> vector<256x8xf32>
    %56 = arith.addf %50, %55 : vector<256x8xf32>
    %57 = vector.extract_strided_slice %7 {offsets = [2, 9, 0], sizes = [16, 16, 4], strides = [1, 1, 1]} : vector<18x25x4xf32> to vector<16x16x4xf32>
    %58 = vector.shape_cast %57 : vector<16x16x4xf32> to vector<256x4xf32>
    %c8_41 = arith.constant 8 : index
    %c0_42 = arith.constant 0 : index
    %c0_43 = arith.constant 0 : index
    %59 = vector.load %arg2[%c8_41, %c0_42, %c0_43] : memref<9x4x8xf32, #tpu.memory_space<vmem>>, vector<1x4x8xf32>
    %60 = vector.shape_cast %59 : vector<1x4x8xf32> to vector<4x8xf32>
    %cst_44 = arith.constant dense<0.000000e+00> : vector<256x8xf32>
    %61 = tpu.matmul %58, %60, %cst_44 {dimension_numbers = #tpu.dot_dimension_numbers<[1], [0], [0], [1], [0, 0, 1, 1], [], []>} : vector<256x4xf32>, vector<4x8xf32>, vector<256x8xf32> -> vector<256x8xf32>
    %62 = arith.addf %56, %61 : vector<256x8xf32>
    %c0_45 = arith.constant 0 : index
    %c0_46 = arith.constant 0 : index
    %63 = vector.load %arg3[%c0_45, %c0_46] : memref<1x8xf32, #tpu.memory_space<vmem>>, vector<1x8xf32>
    %64 = vector.broadcast %63 : vector<1x8xf32> to vector<256x8xf32>
    %65 = arith.addf %62, %64 : vector<256x8xf32>
    %cst_47 = arith.constant 0.000000e+00 : f32
    %66 = vector.broadcast %cst_47 : f32 to vector<256x8xf32>
    %67 = arith.cmpf ogt, %65, %66 : vector<256x8xf32>
    %cst_48 = arith.constant 0.00999999977 : f32
    %68 = vector.broadcast %cst_48 : f32 to vector<256x8xf32>
    %69 = arith.mulf %68, %65 : vector<256x8xf32>
    %70 = arith.select %67, %65, %69 : vector<256x8xi1>, vector<256x8xf32>
    %71 = vector.shape_cast %70 : vector<256x8xf32> to vector<16x16x8xf32>
    %c2_49 = arith.constant 2 : index
    %c8_50 = arith.constant 8 : index
    %c0_51 = arith.constant 0 : index
    %72 = vector.load %arg12[%c2_49, %c8_50, %c0_51] : memref<20x26x8xf32, #tpu.memory_space<vmem>>, vector<16x16x8xf32>
    tpu.vector_store %arg12[%c2_49, %c8_50, %c0_51], %71 {strides = array<i32>} : memref<20x26x8xf32, #tpu.memory_space<vmem>>, vector<16x16x8xf32>,
    %cst_52 = arith.constant 0.000000e+00 : f32
    %73 = vector.broadcast %cst_52 : f32 to vector<64x8xf32>
    %c0_53 = arith.constant 0 : index
    %c6_54 = arith.constant 6 : index
    %c0_55 = arith.constant 0 : index
    %74 = tpu.strided_load %arg12[%c0_53, %c6_54, %c0_55] {strides = array<i32: 2, 2, 1>} : memref<20x26x8xf32, #tpu.memory_space<vmem>>, vector<8x8x8xf32>
    %75 = vector.shape_cast %74 : vector<8x8x8xf32> to vector<64x8xf32>
    %c0_56 = arith.constant 0 : index
    %c0_57 = arith.constant 0 : index
    %c0_58 = arith.constant 0 : index
    %76 = vector.load %arg4[%c0_56, %c0_57, %c0_58] : memref<25x8x8xf32, #tpu.memory_space<vmem>>, vector<1x8x8xf32>
    %77 = vector.shape_cast %76 : vector<1x8x8xf32> to vector<8x8xf32>
    %cst_59 = arith.constant dense<0.000000e+00> : vector<64x8xf32>
    %78 = tpu.matmul %75, %77, %cst_59 {dimension_numbers = #tpu.dot_dimension_numbers<[1], [0], [0], [1], [0, 0, 1, 1], [], []>} : vector<64x8xf32>, vector<8x8xf32>, vector<64x8xf32> -> vector<64x8xf32>
    %79 = arith.addf %73, %78 : vector<64x8xf32>
    %c0_60 = arith.constant 0 : index
    %c7_61 = arith.constant 7 : index
    %c0_62 = arith.constant 0 : index
    %80 = tpu.strided_load %arg12[%c0_60, %c7_61, %c0_62] {strides = array<i32: 2, 2, 1>} : memref<20x26x8xf32, #tpu.memory_space<vmem>>, vector<8x8x8xf32>
    %81 = vector.shape_cast %80 : vector<8x8x8xf32> to vector<64x8xf32>
    %c1_63 = arith.constant 1 : index
    %c0_64 = arith.constant 0 : index
    %c0_65 = arith.constant 0 : index
    %82 = vector.load %arg4[%c1_63, %c0_64, %c0_65] : memref<25x8x8xf32, #tpu.memory_space<vmem>>, vector<1x8x8xf32>
    %83 = vector.shape_cast %82 : vector<1x8x8xf32> to vector<8x8xf32>
    %cst_66 = arith.constant dense<0.000000e+00> : vector<64x8xf32>
    %84 = tpu.matmul %81, %83, %cst_66 {dimension_numbers = #tpu.dot_dimension_numbers<[1], [0], [0], [1], [0, 0, 1, 1], [], []>} : vector<64x8xf32>, vector<8x8xf32>, vector<64x8xf32> -> vector<64x8xf32>
    %85 = arith.addf %79, %84 : vector<64x8xf32>
    %c0_67 = arith.constant 0 : index
    %c8_68 = arith.constant 8 : index
    %c0_69 = arith.constant 0 : index
    %86 = tpu.strided_load %arg12[%c0_67, %c8_68, %c0_69] {strides = array<i32: 2, 2, 1>} : memref<20x26x8xf32, #tpu.memory_space<vmem>>, vector<8x8x8xf32>
    %87 = vector.shape_cast %86 : vector<8x8x8xf32> to vector<64x8xf32>
    %c2_70 = arith.constant 2 : index
    %c0_71 = arith.constant 0 : index
    %c0_72 = arith.constant 0 : index
    %88 = vector.load %arg4[%c2_70, %c0_71, %c0_72] : memref<25x8x8xf32, #tpu.memory_space<vmem>>, vector<1x8x8xf32>
    %89 = vector.shape_cast %88 : vector<1x8x8xf32> to vector<8x8xf32>
    %cst_73 = arith.constant dense<0.000000e+00> : vector<64x8xf32>
    %90 = tpu.matmul %87, %89, %cst_73 {dimension_numbers = #tpu.dot_dimension_numbers<[1], [0], [0], [1], [0, 0, 1, 1], [], []>} : vector<64x8xf32>, vector<8x8xf32>, vector<64x8xf32> -> vector<64x8xf32>
    %91 = arith.addf %85, %90 : vector<64x8xf32>
    %c0_74 = arith.constant 0 : index
    %c9 = arith.constant 9 : index
    %c0_75 = arith.constant 0 : index
    %92 = tpu.strided_load %arg12[%c0_74, %c9, %c0_75] {strides = array<i32: 2, 2, 1>} : memref<20x26x8xf32, #tpu.memory_space<vmem>>, vector<8x8x8xf32>
    %93 = vector.shape_cast %92 : vector<8x8x8xf32> to vector<64x8xf32>
    %c3_76 = arith.constant 3 : index
    %c0_77 = arith.constant 0 : index
    %c0_78 = arith.constant 0 : index
    %94 = vector.load %arg4[%c3_76, %c0_77, %c0_78] : memref<25x8x8xf32, #tpu.memory_space<vmem>>, vector<1x8x8xf32>
    %95 = vector.shape_cast %94 : vector<1x8x8xf32> to vector<8x8xf32>
    %cst_79 = arith.constant dense<0.000000e+00> : vector<64x8xf32>
    %96 = tpu.matmul %93, %95, %cst_79 {dimension_numbers = #tpu.dot_dimension_numbers<[1], [0], [0], [1], [0, 0, 1, 1], [], []>} : vector<64x8xf32>, vector<8x8xf32>, vector<64x8xf32> -> vector<64x8xf32>
    %97 = arith.addf %91, %96 : vector<64x8xf32>
    %c0_80 = arith.constant 0 : index
    %c10 = arith.constant 10 : index
    %c0_81 = arith.constant 0 : index
    %98 = tpu.strided_load %arg12[%c0_80, %c10, %c0_81] {strides = array<i32: 2, 2, 1>} : memref<20x26x8xf32, #tpu.memory_space<vmem>>, vector<8x8x8xf32>
    %99 = vector.shape_cast %98 : vector<8x8x8xf32> to vector<64x8xf32>
    %c4_82 = arith.constant 4 : index
    %c0_83 = arith.constant 0 : index
    %c0_84 = arith.constant 0 : index
    %100 = vector.load %arg4[%c4_82, %c0_83, %c0_84] : memref<25x8x8xf32, #tpu.memory_space<vmem>>, vector<1x8x8xf32>
    %101 = vector.shape_cast %100 : vector<1x8x8xf32> to vector<8x8xf32>
    %cst_85 = arith.constant dense<0.000000e+00> : vector<64x8xf32>
    %102 = tpu.matmul %99, %101, %cst_85 {dimension_numbers = #tpu.dot_dimension_numbers<[1], [0], [0], [1], [0, 0, 1, 1], [], []>} : vector<64x8xf32>, vector<8x8xf32>, vector<64x8xf32> -> vector<64x8xf32>
    %103 = arith.addf %97, %102 : vector<64x8xf32>
    %c1_86 = arith.constant 1 : index
    %c6_87 = arith.constant 6 : index
    %c0_88 = arith.constant 0 : index
    %104 = tpu.strided_load %arg12[%c1_86, %c6_87, %c0_88] {strides = array<i32: 2, 2, 1>} : memref<20x26x8xf32, #tpu.memory_space<vmem>>, vector<8x8x8xf32>
    %105 = vector.shape_cast %104 : vector<8x8x8xf32> to vector<64x8xf32>
    %c5_89 = arith.constant 5 : index
    %c0_90 = arith.constant 0 : index
    %c0_91 = arith.constant 0 : index
    %106 = vector.load %arg4[%c5_89, %c0_90, %c0_91] : memref<25x8x8xf32, #tpu.memory_space<vmem>>, vector<1x8x8xf32>
    %107 = vector.shape_cast %106 : vector<1x8x8xf32> to vector<8x8xf32>
    %cst_92 = arith.constant dense<0.000000e+00> : vector<64x8xf32>
    %108 = tpu.matmul %105, %107, %cst_92 {dimension_numbers = #tpu.dot_dimension_numbers<[1], [0], [0], [1], [0, 0, 1, 1], [], []>} : vector<64x8xf32>, vector<8x8xf32>, vector<64x8xf32> -> vector<64x8xf32>
    %109 = arith.addf %103, %108 : vector<64x8xf32>
    %c1_93 = arith.constant 1 : index
    %c7_94 = arith.constant 7 : index
    %c0_95 = arith.constant 0 : index
    %110 = tpu.strided_load %arg12[%c1_93, %c7_94, %c0_95] {strides = array<i32: 2, 2, 1>} : memref<20x26x8xf32, #tpu.memory_space<vmem>>, vector<8x8x8xf32>
    %111 = vector.shape_cast %110 : vector<8x8x8xf32> to vector<64x8xf32>
    %c6_96 = arith.constant 6 : index
    %c0_97 = arith.constant 0 : index
    %c0_98 = arith.constant 0 : index
    %112 = vector.load %arg4[%c6_96, %c0_97, %c0_98] : memref<25x8x8xf32, #tpu.memory_space<vmem>>, vector<1x8x8xf32>
    %113 = vector.shape_cast %112 : vector<1x8x8xf32> to vector<8x8xf32>
    %cst_99 = arith.constant dense<0.000000e+00> : vector<64x8xf32>
    %114 = tpu.matmul %111, %113, %cst_99 {dimension_numbers = #tpu.dot_dimension_numbers<[1], [0], [0], [1], [0, 0, 1, 1], [], []>} : vector<64x8xf32>, vector<8x8xf32>, vector<64x8xf32> -> vector<64x8xf32>
    %115 = arith.addf %109, %114 : vector<64x8xf32>
    %c1_100 = arith.constant 1 : index
    %c8_101 = arith.constant 8 : index
    %c0_102 = arith.constant 0 : index
    %116 = tpu.strided_load %arg12[%c1_100, %c8_101, %c0_102] {strides = array<i32: 2, 2, 1>} : memref<20x26x8xf32, #tpu.memory_space<vmem>>, vector<8x8x8xf32>
    %117 = vector.shape_cast %116 : vector<8x8x8xf32> to vector<64x8xf32>
    %c7_103 = arith.constant 7 : index
    %c0_104 = arith.constant 0 : index
    %c0_105 = arith.constant 0 : index
    %118 = vector.load %arg4[%c7_103, %c0_104, %c0_105] : memref<25x8x8xf32, #tpu.memory_space<vmem>>, vector<1x8x8xf32>
    %119 = vector.shape_cast %118 : vector<1x8x8xf32> to vector<8x8xf32>
    %cst_106 = arith.constant dense<0.000000e+00> : vector<64x8xf32>
    %120 = tpu.matmul %117, %119, %cst_106 {dimension_numbers = #tpu.dot_dimension_numbers<[1], [0], [0], [1], [0, 0, 1, 1], [], []>} : vector<64x8xf32>, vector<8x8xf32>, vector<64x8xf32> -> vector<64x8xf32>
    %121 = arith.addf %115, %120 : vector<64x8xf32>
    %c1_107 = arith.constant 1 : index
    %c9_108 = arith.constant 9 : index
    %c0_109 = arith.constant 0 : index
    %122 = tpu.strided_load %arg12[%c1_107, %c9_108, %c0_109] {strides = array<i32: 2, 2, 1>} : memref<20x26x8xf32, #tpu.memory_space<vmem>>, vector<8x8x8xf32>
    %123 = vector.shape_cast %122 : vector<8x8x8xf32> to vector<64x8xf32>
    %c8_110 = arith.constant 8 : index
    %c0_111 = arith.constant 0 : index
    %c0_112 = arith.constant 0 : index
    %124 = vector.load %arg4[%c8_110, %c0_111, %c0_112] : memref<25x8x8xf32, #tpu.memory_space<vmem>>, vector<1x8x8xf32>
    %125 = vector.shape_cast %124 : vector<1x8x8xf32> to vector<8x8xf32>
    %cst_113 = arith.constant dense<0.000000e+00> : vector<64x8xf32>
    %126 = tpu.matmul %123, %125, %cst_113 {dimension_numbers = #tpu.dot_dimension_numbers<[1], [0], [0], [1], [0, 0, 1, 1], [], []>} : vector<64x8xf32>, vector<8x8xf32>, vector<64x8xf32> -> vector<64x8xf32>
    %127 = arith.addf %121, %126 : vector<64x8xf32>
    %c1_114 = arith.constant 1 : index
    %c10_115 = arith.constant 10 : index
    %c0_116 = arith.constant 0 : index
    %128 = tpu.strided_load %arg12[%c1_114, %c10_115, %c0_116] {strides = array<i32: 2, 2, 1>} : memref<20x26x8xf32, #tpu.memory_space<vmem>>, vector<8x8x8xf32>
    %129 = vector.shape_cast %128 : vector<8x8x8xf32> to vector<64x8xf32>
    %c9_117 = arith.constant 9 : index
    %c0_118 = arith.constant 0 : index
    %c0_119 = arith.constant 0 : index
    %130 = vector.load %arg4[%c9_117, %c0_118, %c0_119] : memref<25x8x8xf32, #tpu.memory_space<vmem>>, vector<1x8x8xf32>
    %131 = vector.shape_cast %130 : vector<1x8x8xf32> to vector<8x8xf32>
    %cst_120 = arith.constant dense<0.000000e+00> : vector<64x8xf32>
    %132 = tpu.matmul %129, %131, %cst_120 {dimension_numbers = #tpu.dot_dimension_numbers<[1], [0], [0], [1], [0, 0, 1, 1], [], []>} : vector<64x8xf32>, vector<8x8xf32>, vector<64x8xf32> -> vector<64x8xf32>
    %133 = arith.addf %127, %132 : vector<64x8xf32>
    %c2_121 = arith.constant 2 : index
    %c6_122 = arith.constant 6 : index
    %c0_123 = arith.constant 0 : index
    %134 = tpu.strided_load %arg12[%c2_121, %c6_122, %c0_123] {strides = array<i32: 2, 2, 1>} : memref<20x26x8xf32, #tpu.memory_space<vmem>>, vector<8x8x8xf32>
    %135 = vector.shape_cast %134 : vector<8x8x8xf32> to vector<64x8xf32>
    %c10_124 = arith.constant 10 : index
    %c0_125 = arith.constant 0 : index
    %c0_126 = arith.constant 0 : index
    %136 = vector.load %arg4[%c10_124, %c0_125, %c0_126] : memref<25x8x8xf32, #tpu.memory_space<vmem>>, vector<1x8x8xf32>
    %137 = vector.shape_cast %136 : vector<1x8x8xf32> to vector<8x8xf32>
    %cst_127 = arith.constant dense<0.000000e+00> : vector<64x8xf32>
    %138 = tpu.matmul %135, %137, %cst_127 {dimension_numbers = #tpu.dot_dimension_numbers<[1], [0], [0], [1], [0, 0, 1, 1], [], []>} : vector<64x8xf32>, vector<8x8xf32>, vector<64x8xf32> -> vector<64x8xf32>
    %139 = arith.addf %133, %138 : vector<64x8xf32>
    %c2_128 = arith.constant 2 : index
    %c7_129 = arith.constant 7 : index
    %c0_130 = arith.constant 0 : index
    %140 = tpu.strided_load %arg12[%c2_128, %c7_129, %c0_130] {strides = array<i32: 2, 2, 1>} : memref<20x26x8xf32, #tpu.memory_space<vmem>>, vector<8x8x8xf32>
    %141 = vector.shape_cast %140 : vector<8x8x8xf32> to vector<64x8xf32>
    %c11 = arith.constant 11 : index
    %c0_131 = arith.constant 0 : index
    %c0_132 = arith.constant 0 : index
    %142 = vector.load %arg4[%c11, %c0_131, %c0_132] : memref<25x8x8xf32, #tpu.memory_space<vmem>>, vector<1x8x8xf32>
    %143 = vector.shape_cast %142 : vector<1x8x8xf32> to vector<8x8xf32>
    %cst_133 = arith.constant dense<0.000000e+00> : vector<64x8xf32>
    %144 = tpu.matmul %141, %143, %cst_133 {dimension_numbers = #tpu.dot_dimension_numbers<[1], [0], [0], [1], [0, 0, 1, 1], [], []>} : vector<64x8xf32>, vector<8x8xf32>, vector<64x8xf32> -> vector<64x8xf32>
    %145 = arith.addf %139, %144 : vector<64x8xf32>
    %c2_134 = arith.constant 2 : index
    %c8_135 = arith.constant 8 : index
    %c0_136 = arith.constant 0 : index
    %146 = tpu.strided_load %arg12[%c2_134, %c8_135, %c0_136] {strides = array<i32: 2, 2, 1>} : memref<20x26x8xf32, #tpu.memory_space<vmem>>, vector<8x8x8xf32>
    %147 = vector.shape_cast %146 : vector<8x8x8xf32> to vector<64x8xf32>
    %c12 = arith.constant 12 : index
    %c0_137 = arith.constant 0 : index
    %c0_138 = arith.constant 0 : index
    %148 = vector.load %arg4[%c12, %c0_137, %c0_138] : memref<25x8x8xf32, #tpu.memory_space<vmem>>, vector<1x8x8xf32>
    %149 = vector.shape_cast %148 : vector<1x8x8xf32> to vector<8x8xf32>
    %cst_139 = arith.constant dense<0.000000e+00> : vector<64x8xf32>
    %150 = tpu.matmul %147, %149, %cst_139 {dimension_numbers = #tpu.dot_dimension_numbers<[1], [0], [0], [1], [0, 0, 1, 1], [], []>} : vector<64x8xf32>, vector<8x8xf32>, vector<64x8xf32> -> vector<64x8xf32>
    %151 = arith.addf %145, %150 : vector<64x8xf32>
    %c2_140 = arith.constant 2 : index
    %c9_141 = arith.constant 9 : index
    %c0_142 = arith.constant 0 : index
    %152 = tpu.strided_load %arg12[%c2_140, %c9_141, %c0_142] {strides = array<i32: 2, 2, 1>} : memref<20x26x8xf32, #tpu.memory_space<vmem>>, vector<8x8x8xf32>
    %153 = vector.shape_cast %152 : vector<8x8x8xf32> to vector<64x8xf32>
    %c13 = arith.constant 13 : index
    %c0_143 = arith.constant 0 : index
    %c0_144 = arith.constant 0 : index
    %154 = vector.load %arg4[%c13, %c0_143, %c0_144] : memref<25x8x8xf32, #tpu.memory_space<vmem>>, vector<1x8x8xf32>
    %155 = vector.shape_cast %154 : vector<1x8x8xf32> to vector<8x8xf32>
    %cst_145 = arith.constant dense<0.000000e+00> : vector<64x8xf32>
    %156 = tpu.matmul %153, %155, %cst_145 {dimension_numbers = #tpu.dot_dimension_numbers<[1], [0], [0], [1], [0, 0, 1, 1], [], []>} : vector<64x8xf32>, vector<8x8xf32>, vector<64x8xf32> -> vector<64x8xf32>
    %157 = arith.addf %151, %156 : vector<64x8xf32>
    %c2_146 = arith.constant 2 : index
    %c10_147 = arith.constant 10 : index
    %c0_148 = arith.constant 0 : index
    %158 = tpu.strided_load %arg12[%c2_146, %c10_147, %c0_148] {strides = array<i32: 2, 2, 1>} : memref<20x26x8xf32, #tpu.memory_space<vmem>>, vector<8x8x8xf32>
    %159 = vector.shape_cast %158 : vector<8x8x8xf32> to vector<64x8xf32>
    %c14 = arith.constant 14 : index
    %c0_149 = arith.constant 0 : index
    %c0_150 = arith.constant 0 : index
    %160 = vector.load %arg4[%c14, %c0_149, %c0_150] : memref<25x8x8xf32, #tpu.memory_space<vmem>>, vector<1x8x8xf32>
    %161 = vector.shape_cast %160 : vector<1x8x8xf32> to vector<8x8xf32>
    %cst_151 = arith.constant dense<0.000000e+00> : vector<64x8xf32>
    %162 = tpu.matmul %159, %161, %cst_151 {dimension_numbers = #tpu.dot_dimension_numbers<[1], [0], [0], [1], [0, 0, 1, 1], [], []>} : vector<64x8xf32>, vector<8x8xf32>, vector<64x8xf32> -> vector<64x8xf32>
    %163 = arith.addf %157, %162 : vector<64x8xf32>
    %c3_152 = arith.constant 3 : index
    %c6_153 = arith.constant 6 : index
    %c0_154 = arith.constant 0 : index
    %164 = tpu.strided_load %arg12[%c3_152, %c6_153, %c0_154] {strides = array<i32: 2, 2, 1>} : memref<20x26x8xf32, #tpu.memory_space<vmem>>, vector<8x8x8xf32>
    %165 = vector.shape_cast %164 : vector<8x8x8xf32> to vector<64x8xf32>
    %c15 = arith.constant 15 : index
    %c0_155 = arith.constant 0 : index
    %c0_156 = arith.constant 0 : index
    %166 = vector.load %arg4[%c15, %c0_155, %c0_156] : memref<25x8x8xf32, #tpu.memory_space<vmem>>, vector<1x8x8xf32>
    %167 = vector.shape_cast %166 : vector<1x8x8xf32> to vector<8x8xf32>
    %cst_157 = arith.constant dense<0.000000e+00> : vector<64x8xf32>
    %168 = tpu.matmul %165, %167, %cst_157 {dimension_numbers = #tpu.dot_dimension_numbers<[1], [0], [0], [1], [0, 0, 1, 1], [], []>} : vector<64x8xf32>, vector<8x8xf32>, vector<64x8xf32> -> vector<64x8xf32>
    %169 = arith.addf %163, %168 : vector<64x8xf32>
    %c3_158 = arith.constant 3 : index
    %c7_159 = arith.constant 7 : index
    %c0_160 = arith.constant 0 : index
    %170 = tpu.strided_load %arg12[%c3_158, %c7_159, %c0_160] {strides = array<i32: 2, 2, 1>} : memref<20x26x8xf32, #tpu.memory_space<vmem>>, vector<8x8x8xf32>
    %171 = vector.shape_cast %170 : vector<8x8x8xf32> to vector<64x8xf32>
    %c16 = arith.constant 16 : index
    %c0_161 = arith.constant 0 : index
    %c0_162 = arith.constant 0 : index
    %172 = vector.load %arg4[%c16, %c0_161, %c0_162] : memref<25x8x8xf32, #tpu.memory_space<vmem>>, vector<1x8x8xf32>
    %173 = vector.shape_cast %172 : vector<1x8x8xf32> to vector<8x8xf32>
    %cst_163 = arith.constant dense<0.000000e+00> : vector<64x8xf32>
    %174 = tpu.matmul %171, %173, %cst_163 {dimension_numbers = #tpu.dot_dimension_numbers<[1], [0], [0], [1], [0, 0, 1, 1], [], []>} : vector<64x8xf32>, vector<8x8xf32>, vector<64x8xf32> -> vector<64x8xf32>
    %175 = arith.addf %169, %174 : vector<64x8xf32>
    %c3_164 = arith.constant 3 : index
    %c8_165 = arith.constant 8 : index
    %c0_166 = arith.constant 0 : index
    %176 = tpu.strided_load %arg12[%c3_164, %c8_165, %c0_166] {strides = array<i32: 2, 2, 1>} : memref<20x26x8xf32, #tpu.memory_space<vmem>>, vector<8x8x8xf32>
    %177 = vector.shape_cast %176 : vector<8x8x8xf32> to vector<64x8xf32>
    %c17 = arith.constant 17 : index
    %c0_167 = arith.constant 0 : index
    %c0_168 = arith.constant 0 : index
    %178 = vector.load %arg4[%c17, %c0_167, %c0_168] : memref<25x8x8xf32, #tpu.memory_space<vmem>>, vector<1x8x8xf32>
    %179 = vector.shape_cast %178 : vector<1x8x8xf32> to vector<8x8xf32>
    %cst_169 = arith.constant dense<0.000000e+00> : vector<64x8xf32>
    %180 = tpu.matmul %177, %179, %cst_169 {dimension_numbers = #tpu.dot_dimension_numbers<[1], [0], [0], [1], [0, 0, 1, 1], [], []>} : vector<64x8xf32>, vector<8x8xf32>, vector<64x8xf32> -> vector<64x8xf32>
    %181 = arith.addf %175, %180 : vector<64x8xf32>
    %c3_170 = arith.constant 3 : index
    %c9_171 = arith.constant 9 : index
    %c0_172 = arith.constant 0 : index
    %182 = tpu.strided_load %arg12[%c3_170, %c9_171, %c0_172] {strides = array<i32: 2, 2, 1>} : memref<20x26x8xf32, #tpu.memory_space<vmem>>, vector<8x8x8xf32>
    %183 = vector.shape_cast %182 : vector<8x8x8xf32> to vector<64x8xf32>
    %c18 = arith.constant 18 : index
    %c0_173 = arith.constant 0 : index
    %c0_174 = arith.constant 0 : index
    %184 = vector.load %arg4[%c18, %c0_173, %c0_174] : memref<25x8x8xf32, #tpu.memory_space<vmem>>, vector<1x8x8xf32>
    %185 = vector.shape_cast %184 : vector<1x8x8xf32> to vector<8x8xf32>
    %cst_175 = arith.constant dense<0.000000e+00> : vector<64x8xf32>
    %186 = tpu.matmul %183, %185, %cst_175 {dimension_numbers = #tpu.dot_dimension_numbers<[1], [0], [0], [1], [0, 0, 1, 1], [], []>} : vector<64x8xf32>, vector<8x8xf32>, vector<64x8xf32> -> vector<64x8xf32>
    %187 = arith.addf %181, %186 : vector<64x8xf32>
    %c3_176 = arith.constant 3 : index
    %c10_177 = arith.constant 10 : index
    %c0_178 = arith.constant 0 : index
    %188 = tpu.strided_load %arg12[%c3_176, %c10_177, %c0_178] {strides = array<i32: 2, 2, 1>} : memref<20x26x8xf32, #tpu.memory_space<vmem>>, vector<8x8x8xf32>
    %189 = vector.shape_cast %188 : vector<8x8x8xf32> to vector<64x8xf32>
    %c19 = arith.constant 19 : index
    %c0_179 = arith.constant 0 : index
    %c0_180 = arith.constant 0 : index
    %190 = vector.load %arg4[%c19, %c0_179, %c0_180] : memref<25x8x8xf32, #tpu.memory_space<vmem>>, vector<1x8x8xf32>
    %191 = vector.shape_cast %190 : vector<1x8x8xf32> to vector<8x8xf32>
    %cst_181 = arith.constant dense<0.000000e+00> : vector<64x8xf32>
    %192 = tpu.matmul %189, %191, %cst_181 {dimension_numbers = #tpu.dot_dimension_numbers<[1], [0], [0], [1], [0, 0, 1, 1], [], []>} : vector<64x8xf32>, vector<8x8xf32>, vector<64x8xf32> -> vector<64x8xf32>
    %193 = arith.addf %187, %192 : vector<64x8xf32>
    %c4_182 = arith.constant 4 : index
    %c6_183 = arith.constant 6 : index
    %c0_184 = arith.constant 0 : index
    %194 = tpu.strided_load %arg12[%c4_182, %c6_183, %c0_184] {strides = array<i32: 2, 2, 1>} : memref<20x26x8xf32, #tpu.memory_space<vmem>>, vector<8x8x8xf32>
    %195 = vector.shape_cast %194 : vector<8x8x8xf32> to vector<64x8xf32>
    %c20 = arith.constant 20 : index
    %c0_185 = arith.constant 0 : index
    %c0_186 = arith.constant 0 : index
    %196 = vector.load %arg4[%c20, %c0_185, %c0_186] : memref<25x8x8xf32, #tpu.memory_space<vmem>>, vector<1x8x8xf32>
    %197 = vector.shape_cast %196 : vector<1x8x8xf32> to vector<8x8xf32>
    %cst_187 = arith.constant dense<0.000000e+00> : vector<64x8xf32>
    %198 = tpu.matmul %195, %197, %cst_187 {dimension_numbers = #tpu.dot_dimension_numbers<[1], [0], [0], [1], [0, 0, 1, 1], [], []>} : vector<64x8xf32>, vector<8x8xf32>, vector<64x8xf32> -> vector<64x8xf32>
    %199 = arith.addf %193, %198 : vector<64x8xf32>
    %c4_188 = arith.constant 4 : index
    %c7_189 = arith.constant 7 : index
    %c0_190 = arith.constant 0 : index
    %200 = tpu.strided_load %arg12[%c4_188, %c7_189, %c0_190] {strides = array<i32: 2, 2, 1>} : memref<20x26x8xf32, #tpu.memory_space<vmem>>, vector<8x8x8xf32>
    %201 = vector.shape_cast %200 : vector<8x8x8xf32> to vector<64x8xf32>
    %c21 = arith.constant 21 : index
    %c0_191 = arith.constant 0 : index
    %c0_192 = arith.constant 0 : index
    %202 = vector.load %arg4[%c21, %c0_191, %c0_192] : memref<25x8x8xf32, #tpu.memory_space<vmem>>, vector<1x8x8xf32>
    %203 = vector.shape_cast %202 : vector<1x8x8xf32> to vector<8x8xf32>
    %cst_193 = arith.constant dense<0.000000e+00> : vector<64x8xf32>
    %204 = tpu.matmul %201, %203, %cst_193 {dimension_numbers = #tpu.dot_dimension_numbers<[1], [0], [0], [1], [0, 0, 1, 1], [], []>} : vector<64x8xf32>, vector<8x8xf32>, vector<64x8xf32> -> vector<64x8xf32>
    %205 = arith.addf %199, %204 : vector<64x8xf32>
    %c4_194 = arith.constant 4 : index
    %c8_195 = arith.constant 8 : index
    %c0_196 = arith.constant 0 : index
    %206 = tpu.strided_load %arg12[%c4_194, %c8_195, %c0_196] {strides = array<i32: 2, 2, 1>} : memref<20x26x8xf32, #tpu.memory_space<vmem>>, vector<8x8x8xf32>
    %207 = vector.shape_cast %206 : vector<8x8x8xf32> to vector<64x8xf32>
    %c22 = arith.constant 22 : index
    %c0_197 = arith.constant 0 : index
    %c0_198 = arith.constant 0 : index
    %208 = vector.load %arg4[%c22, %c0_197, %c0_198] : memref<25x8x8xf32, #tpu.memory_space<vmem>>, vector<1x8x8xf32>
    %209 = vector.shape_cast %208 : vector<1x8x8xf32> to vector<8x8xf32>
    %cst_199 = arith.constant dense<0.000000e+00> : vector<64x8xf32>
    %210 = tpu.matmul %207, %209, %cst_199 {dimension_numbers = #tpu.dot_dimension_numbers<[1], [0], [0], [1], [0, 0, 1, 1], [], []>} : vector<64x8xf32>, vector<8x8xf32>, vector<64x8xf32> -> vector<64x8xf32>
    %211 = arith.addf %205, %210 : vector<64x8xf32>
    %c4_200 = arith.constant 4 : index
    %c9_201 = arith.constant 9 : index
    %c0_202 = arith.constant 0 : index
    %212 = tpu.strided_load %arg12[%c4_200, %c9_201, %c0_202] {strides = array<i32: 2, 2, 1>} : memref<20x26x8xf32, #tpu.memory_space<vmem>>, vector<8x8x8xf32>
    %213 = vector.shape_cast %212 : vector<8x8x8xf32> to vector<64x8xf32>
    %c23 = arith.constant 23 : index
    %c0_203 = arith.constant 0 : index
    %c0_204 = arith.constant 0 : index
    %214 = vector.load %arg4[%c23, %c0_203, %c0_204] : memref<25x8x8xf32, #tpu.memory_space<vmem>>, vector<1x8x8xf32>
    %215 = vector.shape_cast %214 : vector<1x8x8xf32> to vector<8x8xf32>
    %cst_205 = arith.constant dense<0.000000e+00> : vector<64x8xf32>
    %216 = tpu.matmul %213, %215, %cst_205 {dimension_numbers = #tpu.dot_dimension_numbers<[1], [0], [0], [1], [0, 0, 1, 1], [], []>} : vector<64x8xf32>, vector<8x8xf32>, vector<64x8xf32> -> vector<64x8xf32>
    %217 = arith.addf %211, %216 : vector<64x8xf32>
    %c4_206 = arith.constant 4 : index
    %c10_207 = arith.constant 10 : index
    %c0_208 = arith.constant 0 : index
    %218 = tpu.strided_load %arg12[%c4_206, %c10_207, %c0_208] {strides = array<i32: 2, 2, 1>} : memref<20x26x8xf32, #tpu.memory_space<vmem>>, vector<8x8x8xf32>
    %219 = vector.shape_cast %218 : vector<8x8x8xf32> to vector<64x8xf32>
    %c24 = arith.constant 24 : index
    %c0_209 = arith.constant 0 : index
    %c0_210 = arith.constant 0 : index
    %220 = vector.load %arg4[%c24, %c0_209, %c0_210] : memref<25x8x8xf32, #tpu.memory_space<vmem>>, vector<1x8x8xf32>
    %221 = vector.shape_cast %220 : vector<1x8x8xf32> to vector<8x8xf32>
    %cst_211 = arith.constant dense<0.000000e+00> : vector<64x8xf32>
    %222 = tpu.matmul %219, %221, %cst_211 {dimension_numbers = #tpu.dot_dimension_numbers<[1], [0], [0], [1], [0, 0, 1, 1], [], []>} : vector<64x8xf32>, vector<8x8xf32>, vector<64x8xf32> -> vector<64x8xf32>
    %223 = arith.addf %217, %222 : vector<64x8xf32>
    %c0_212 = arith.constant 0 : index
    %c0_213 = arith.constant 0 : index
    %224 = vector.load %arg5[%c0_212, %c0_213] : memref<1x8xf32, #tpu.memory_space<vmem>>, vector<1x8xf32>
    %225 = vector.broadcast %224 : vector<1x8xf32> to vector<64x8xf32>
    %226 = arith.addf %223, %225 : vector<64x8xf32>
    %c1_214 = arith.constant 1 : index
    %c8_215 = arith.constant 8 : index
    %c0_216 = arith.constant 0 : index
    %227 = tpu.strided_load %arg11[%c1_214, %c8_215, %c0_216] {strides = array<i32: 2, 2, 1>} : memref<18x25x4xf32, #tpu.memory_space<vmem>>, vector<8x8x4xf32>
    %228 = vector.shape_cast %227 : vector<8x8x4xf32> to vector<64x4xf32>
    %c0_217 = arith.constant 0 : index
    %c0_218 = arith.constant 0 : index
    %229 = vector.load %arg6[%c0_217, %c0_218] : memref<4x8xf32, #tpu.memory_space<vmem>>, vector<4x8xf32>
    %cst_219 = arith.constant dense<0.000000e+00> : vector<64x8xf32>
    %230 = tpu.matmul %228, %229, %cst_219 {dimension_numbers = #tpu.dot_dimension_numbers<[1], [0], [0], [1], [0, 0, 1, 1], [], []>} : vector<64x4xf32>, vector<4x8xf32>, vector<64x8xf32> -> vector<64x8xf32>
    %c0_220 = arith.constant 0 : index
    %c0_221 = arith.constant 0 : index
    %231 = vector.load %arg7[%c0_220, %c0_221] : memref<1x8xf32, #tpu.memory_space<vmem>>, vector<1x8xf32>
    %232 = vector.broadcast %231 : vector<1x8xf32> to vector<64x8xf32>
    %233 = arith.addf %230, %232 : vector<64x8xf32>
    %cst_222 = arith.constant dense<0.000000e+00> : vector<8xf32>
    %234 = vector.multi_reduction <add>, %226, %cst_222 [0] : vector<64x8xf32> to vector<8xf32>
    %235 = vector.shape_cast %234 : vector<8xf32> to vector<1x8xf32>
    %c0_223 = arith.constant 0 : index
    %c0_224 = arith.constant 0 : index
    %c0_225 = arith.constant 0 : index
    %236 = vector.load %arg10[%c0_223, %c0_224, %c0_225] : memref<1x2x8xf32, #tpu.memory_space<vmem>>, vector<1x1x8xf32>
    %237 = vector.shape_cast %236 : vector<1x1x8xf32> to vector<1x8xf32>
    %238 = vector.shape_cast %235 : vector<1x8xf32> to vector<1x1x8xf32>
    tpu.vector_store %arg10[%c0_223, %c0_224, %c0_225], %238 {strides = array<i32>} : memref<1x2x8xf32, #tpu.memory_space<vmem>>, vector<1x1x8xf32>,
    %239 = arith.mulf %226, %226 : vector<64x8xf32>
    %cst_226 = arith.constant dense<0.000000e+00> : vector<8xf32>
    %240 = vector.multi_reduction <add>, %239, %cst_226 [0] : vector<64x8xf32> to vector<8xf32>
    %241 = vector.shape_cast %240 : vector<8xf32> to vector<1x8xf32>
    %c0_227 = arith.constant 0 : index
    %c1_228 = arith.constant 1 : index
    %c0_229 = arith.constant 0 : index
    %242 = vector.load %arg10[%c0_227, %c1_228, %c0_229] : memref<1x2x8xf32, #tpu.memory_space<vmem>>, vector<1x1x8xf32>
    %243 = vector.shape_cast %242 : vector<1x1x8xf32> to vector<1x8xf32>
    %244 = vector.shape_cast %241 : vector<1x8xf32> to vector<1x1x8xf32>
    tpu.vector_store %arg10[%c0_227, %c1_228, %c0_229], %244 {strides = array<i32>} : memref<1x2x8xf32, #tpu.memory_space<vmem>>, vector<1x1x8xf32>,
    %c0_230 = arith.constant 0 : index
    %c0_231 = arith.constant 0 : index
    %c0_232 = arith.constant 0 : index
    %245 = vector.load %arg8[%c0_230, %c0_231, %c0_232] : memref<1x64x8xf32, #tpu.memory_space<vmem>>, vector<1x64x8xf32>
    %246 = vector.shape_cast %245 : vector<1x64x8xf32> to vector<64x8xf32>
    %247 = vector.shape_cast %226 : vector<64x8xf32> to vector<1x64x8xf32>
    tpu.vector_store %arg8[%c0_230, %c0_231, %c0_232], %247 {strides = array<i32>} : memref<1x64x8xf32, #tpu.memory_space<vmem>>, vector<1x64x8xf32>,
    %c0_233 = arith.constant 0 : index
    %c0_234 = arith.constant 0 : index
    %c0_235 = arith.constant 0 : index
    %248 = vector.load %arg9[%c0_233, %c0_234, %c0_235] : memref<1x64x8xf32, #tpu.memory_space<vmem>>, vector<1x64x8xf32>
    %249 = vector.shape_cast %248 : vector<1x64x8xf32> to vector<64x8xf32>
    %250 = vector.shape_cast %233 : vector<64x8xf32> to vector<1x64x8xf32>
    tpu.vector_store %arg9[%c0_233, %c0_234, %c0_235], %250 {strides = array<i32>} : memref<1x64x8xf32, #tpu.memory_space<vmem>>, vector<1x64x8xf32>,
    return
  }
  func.func @transform_0(%arg0: i32) -> (i32, i32, i32, i32) {
    %c0_i32 = arith.constant 0 : i32
    %c0_i32_0 = arith.constant 0 : i32
    %c0_i32_1 = arith.constant 0 : i32
    %c0_i32_2 = arith.constant 0 : i32
    return %arg0, %c0_i32, %c0_i32_0, %c0_i32_1 : i32, i32, i32, i32
  }
  func.func @transform_1(%arg0: i32) -> (i32, i32, i32) {
    %c0_i32 = arith.constant 0 : i32
    %c0_i32_0 = arith.constant 0 : i32
    %c0_i32_1 = arith.constant 0 : i32
    %c0_i32_2 = arith.constant 0 : i32
    return %c0_i32, %c0_i32_0, %c0_i32_1 : i32, i32, i32
  }
  func.func @transform_2(%arg0: i32) -> (i32, i32) {
    %c0_i32 = arith.constant 0 : i32
    %c0_i32_0 = arith.constant 0 : i32
    %c0_i32_1 = arith.constant 0 : i32
    return %c0_i32, %c0_i32_0 : i32, i32
  }
  func.func @transform_3(%arg0: i32) -> (i32, i32, i32) {
    %c0_i32 = arith.constant 0 : i32
    %c0_i32_0 = arith.constant 0 : i32
    %c0_i32_1 = arith.constant 0 : i32
    %c0_i32_2 = arith.constant 0 : i32
    return %c0_i32, %c0_i32_0, %c0_i32_1 : i32, i32, i32
  }
  func.func @transform_4(%arg0: i32) -> (i32, i32) {
    %c0_i32 = arith.constant 0 : i32
    %c0_i32_0 = arith.constant 0 : i32
    %c0_i32_1 = arith.constant 0 : i32
    return %c0_i32, %c0_i32_0 : i32, i32
  }
  func.func @transform_5(%arg0: i32) -> (i32, i32) {
    %c0_i32 = arith.constant 0 : i32
    %c0_i32_0 = arith.constant 0 : i32
    %c0_i32_1 = arith.constant 0 : i32
    return %c0_i32, %c0_i32_0 : i32, i32
  }
  func.func @transform_6(%arg0: i32) -> (i32, i32) {
    %c0_i32 = arith.constant 0 : i32
    %c0_i32_0 = arith.constant 0 : i32
    %c0_i32_1 = arith.constant 0 : i32
    return %c0_i32, %c0_i32_0 : i32, i32
  }
  func.func @transform_7(%arg0: i32) -> (i32, i32, i32) {
    %c0_i32 = arith.constant 0 : i32
    %c0_i32_0 = arith.constant 0 : i32
    %c0_i32_1 = arith.constant 0 : i32
    return %arg0, %c0_i32, %c0_i32_0 : i32, i32, i32
  }
  func.func @transform_8(%arg0: i32) -> (i32, i32, i32) {
    %c0_i32 = arith.constant 0 : i32
    %c0_i32_0 = arith.constant 0 : i32
    %c0_i32_1 = arith.constant 0 : i32
    return %arg0, %c0_i32, %c0_i32_0 : i32, i32, i32
  }
  func.func @transform_9(%arg0: i32) -> (i32, i32, i32) {
    %c0_i32 = arith.constant 0 : i32
    %c0_i32_0 = arith.constant 0 : i32
    %c0_i32_1 = arith.constant 0 : i32
    return %arg0, %c0_i32, %c0_i32_0 : i32, i32, i32
  }
}

</mosaic_0001>

<llo_original>
// kernel: tpu_custom_call.1
$region0: #{tpu_custom_call.1}
  #allocation0 [shape = 'u32[]', space=smem, size = 0x4, offset = 0x4, fixed_abs, tag = 'smem constant byte address 0x4 - core index']
  #allocation1 [shape = 'u32[144,128]{1,0:T(1,128)}', space=vmem, size = 0x12000, scoped, tag = 'internal scratch']
  #allocation2 [shape = 'f32[18,25,4]{2,1,0:T(8,128)}', space=vmem, size = 0x48000, scoped, tag = 'scratch operand']
  #allocation3 [shape = 'f32[20,26,8]{2,1,0:T(8,128)}', space=vmem, size = 0x50000, scoped, tag = 'scratch operand']
  %s0 = inlined_call_operand.vmem [shape: f32[2,16,16,4], index: 0, kind: input, shape index: {}]
  %s1 = inlined_call_operand.vmem [shape: f32[9,4,8], index: 1, kind: input, shape index: {}]
  %s2 = inlined_call_operand.vmem [shape: f32[1,8], index: 2, kind: input, shape index: {}]
  %s3 = inlined_call_operand.vmem [shape: f32[25,8,8], index: 3, kind: input, shape index: {}]
  %s4 = inlined_call_operand.vmem [shape: f32[1,8], index: 4, kind: input, shape index: {}]
  %s5 = inlined_call_operand.vmem [shape: f32[4,8], index: 5, kind: input, shape index: {}]
  %s6 = inlined_call_operand.vmem [shape: f32[1,8], index: 6, kind: input, shape index: {}]
  %s7 = inlined_call_operand.vmem [shape: f32[2,64,8], index: 7, kind: output, shape index: {0}]
  %s8 = inlined_call_operand.vmem [shape: f32[2,64,8], index: 8, kind: output, shape index: {1}]
  %s9 = inlined_call_operand.hbm [shape: f32[2,2,8], index: 9, kind: output, shape index: {2}]
  %10 = xla_tuple %s7, %s8, %s9
  %s11 = sld [smem:[#allocation0]]
  $region77: #{tpu_custom_call.1} parent=0
    _
  %s13 = ssub.s32 1, %s11
  %s14 = scalar_select 0, %s13, %s11
  $region1: #{tpu_custom_call.1} parent=0
    #allocation4 [shape = 'u8[2048]{0}', space=vmem, size = 0x800, scoped, tag = 'output window, operand 2']
    #allocation5 [shape = 's32[2]{0}', space=sflag, size = 0x8, scoped, tag = 'scoped memory for tpu_custom_call.1']
    %15 = vsyncpa [#allocation5], 0
    %s16 = scalar_lea.sflag [#allocation5], 1
    %17 = vsyncpa %s16, 0
    loop: start=0, step=1, limit=4
    $region2: #{tpu_custom_call.1} parent=1 // loop_pre_header
      _
    $region3: #{tpu_custom_call.1} parent=1 // loop_header
      %s19 = sphi 0, %s23
      %p20 = scmp.ge.s32.totalorder %s19, 4
      %s29 = sphi 0, %s31
      %s32 = sphi 0, %s29
      %s33 = sphi 0, %s32
      %s49 = sphi 0, %s33
      %s53 = sphi 0, %s53
      %s55 = sphi 0, %s53
      %s56 = sphi 0, %s55
      %s70 = sphi 0, %s56
      %s74 = sphi 0, %s74
      %s76 = sphi 0, %s74
      %s77 = sphi 0, %s76
      %s91 = sphi 0, %s77
      %s95 = sphi 0, %s95
      %s97 = sphi 0, %s95
      %s98 = sphi 0, %s97
      %s112 = sphi 0, %s98
      %s116 = sphi 0, %s116
      %s118 = sphi 0, %s116
      %s119 = sphi 0, %s118
      %s133 = sphi 0, %s119
      %s137 = sphi 0, %s137
      %s139 = sphi 0, %s137
      %s140 = sphi 0, %s139
      %s154 = sphi 0, %s140
      %s158 = sphi 0, %s158
      %s160 = sphi 0, %s158
      %s161 = sphi 0, %s160
      %s175 = sphi 0, %s161
      %s181 = sphi 0, %s183
      %s184 = sphi 0, %s181
      %s185 = sphi 0, %s184
      %s201 = sphi 0, %s185
      %s207 = sphi 0, %s209
      %s210 = sphi 0, %s207
      %s211 = sphi 0, %s210
      %s227 = sphi 0, %s211
      %s233 = sphi 0, %s235
      %s236 = sphi 0, %s233
      %s237 = sphi 0, %s236
      %s253 = sphi 0, %s237
    $region4: #{tpu_custom_call.1} parent=1 // loop_header_branch
      %22 = sbr.rel (%p20) target = $region8
    $region5: #{tpu_custom_call.1} parent=1 // loop_body
      %s24 = ssub.s32 %s19, 1
      %s25 = ssub.s32 %s19, 2
      %s26 = sadd.s32 %s19, 1
      %s27 = ssub.s32 %s19, %s26
      %p28 = scmp.eq.s32.totalorder %s27, 0
      %s30 = sadd.s32 %s29, 1
      %s31 = scalar_select %p28, %s29, %s30
      %p34 = pneg %p28
      %p35 = scmp.eq.s32.totalorder %s19, 1
      %p36 = por %p34, %p35
      %p37 = scmp.ne.s32.totalorder %s29, %s32
      %p38 = scmp.eq.s32.totalorder %s19, 0
      %p39 = por %p37, %p38
      %p40 = scmp.ne.s32.totalorder %s29, %s32
      %p41 = scmp.eq.s32.totalorder %s24, 1
      %p42 = por %p40, %p41
      %p43 = scmp.ne.s32.totalorder %s32, %s33
      %p44 = scmp.eq.s32.totalorder %s24, 0
      %p45 = por %p43, %p44
      %p46 = scmp.ne.s32.totalorder %s32, %s33
      %p47 = scmp.eq.s32.totalorder %s25, 1
      %p48 = por %p46, %p47
      %p50 = scmp.ne.s32.totalorder %s33, %s49
      %p51 = scmp.eq.s32.totalorder %s25, 0
      %p52 = por %p50, %p51
      %s54 = sadd.s32 %s53, 1
      %p57 = scmp.eq.s32.totalorder %s19, 1
      %p58 = scmp.ne.s32.totalorder %s53, %s55
      %p59 = scmp.eq.s32.totalorder %s19, 0
      %p60 = por %p58, %p59
      %p61 = scmp.ne.s32.totalorder %s53, %s55
      %p62 = scmp.eq.s32.totalorder %s24, 1
      %p63 = por %p61, %p62
      %p64 = scmp.ne.s32.totalorder %s55, %s56
      %p65 = scmp.eq.s32.totalorder %s24, 0
      %p66 = por %p64, %p65
      %p67 = scmp.ne.s32.totalorder %s55, %s56
      %p68 = scmp.eq.s32.totalorder %s25, 1
      %p69 = por %p67, %p68
      %p71 = scmp.ne.s32.totalorder %s56, %s70
      %p72 = scmp.eq.s32.totalorder %s25, 0
      %p73 = por %p71, %p72
      %s75 = sadd.s32 %s74, 1
      %p78 = scmp.eq.s32.totalorder %s19, 1
      %p79 = scmp.ne.s32.totalorder %s74, %s76
      %p80 = scmp.eq.s32.totalorder %s19, 0
      %p81 = por %p79, %p80
      %p82 = scmp.ne.s32.totalorder %s74, %s76
      %p83 = scmp.eq.s32.totalorder %s24, 1
      %p84 = por %p82, %p83
      %p85 = scmp.ne.s32.totalorder %s76, %s77
      %p86 = scmp.eq.s32.totalorder %s24, 0
      %p87 = por %p85, %p86
      %p88 = scmp.ne.s32.totalorder %s76, %s77
      %p89 = scmp.eq.s32.totalorder %s25, 1
      %p90 = por %p88, %p89
      %p92 = scmp.ne.s32.totalorder %s77, %s91
      %p93 = scmp.eq.s32.totalorder %s25, 0
      %p94 = por %p92, %p93
      %s96 = sadd.s32 %s95, 1
      %p99 = scmp.eq.s32.totalorder %s19, 1
      %p100 = scmp.ne.s32.totalorder %s95, %s97
      %p101 = scmp.eq.s32.totalorder %s19, 0
      %p102 = por %p100, %p101
      %p103 = scmp.ne.s32.totalorder %s95, %s97
      %p104 = scmp.eq.s32.totalorder %s24, 1
      %p105 = por %p103, %p104
      %p106 = scmp.ne.s32.totalorder %s97, %s98
      %p107 = scmp.eq.s32.totalorder %s24, 0
      %p108 = por %p106, %p107
      %p109 = scmp.ne.s32.totalorder %s97, %s98
      %p110 = scmp.eq.s32.totalorder %s25, 1
      %p111 = por %p109, %p110
      %p113 = scmp.ne.s32.totalorder %s98, %s112
      %p114 = scmp.eq.s32.totalorder %s25, 0
      %p115 = por %p113, %p114
      %s117 = sadd.s32 %s116, 1
      %p120 = scmp.eq.s32.totalorder %s19, 1
      %p121 = scmp.ne.s32.totalorder %s116, %s118
      %p122 = scmp.eq.s32.totalorder %s19, 0
      %p123 = por %p121, %p122
      %p124 = scmp.ne.s32.totalorder %s116, %s118
      %p125 = scmp.eq.s32.totalorder %s24, 1
      %p126 = por %p124, %p125
      %p127 = scmp.ne.s32.totalorder %s118, %s119
      %p128 = scmp.eq.s32.totalorder %s24, 0
      %p129 = por %p127, %p128
      %p130 = scmp.ne.s32.totalorder %s118, %s119
      %p131 = scmp.eq.s32.totalorder %s25, 1
      %p132 = por %p130, %p131
      %p134 = scmp.ne.s32.totalorder %s119, %s133
      %p135 = scmp.eq.s32.totalorder %s25, 0
      %p136 = por %p134, %p135
      %s138 = sadd.s32 %s137, 1
      %p141 = scmp.eq.s32.totalorder %s19, 1
      %p142 = scmp.ne.s32.totalorder %s137, %s139
      %p143 = scmp.eq.s32.totalorder %s19, 0
      %p144 = por %p142, %p143
      %p145 = scmp.ne.s32.totalorder %s137, %s139
      %p146 = scmp.eq.s32.totalorder %s24, 1
      %p147 = por %p145, %p146
      %p148 = scmp.ne.s32.totalorder %s139, %s140
      %p149 = scmp.eq.s32.totalorder %s24, 0
      %p150 = por %p148, %p149
      %p151 = scmp.ne.s32.totalorder %s139, %s140
      %p152 = scmp.eq.s32.totalorder %s25, 1
      %p153 = por %p151, %p152
      %p155 = scmp.ne.s32.totalorder %s140, %s154
      %p156 = scmp.eq.s32.totalorder %s25, 0
      %p157 = por %p155, %p156
      %s159 = sadd.s32 %s158, 1
      %p162 = scmp.eq.s32.totalorder %s19, 1
      %p163 = scmp.ne.s32.totalorder %s158, %s160
      %p164 = scmp.eq.s32.totalorder %s19, 0
      %p165 = por %p163, %p164
      %p166 = scmp.ne.s32.totalorder %s158, %s160
      %p167 = scmp.eq.s32.totalorder %s24, 1
      %p168 = por %p166, %p167
      %p169 = scmp.ne.s32.totalorder %s160, %s161
      %p170 = scmp.eq.s32.totalorder %s24, 0
      %p171 = por %p169, %p170
      %p172 = scmp.ne.s32.totalorder %s160, %s161
      %p173 = scmp.eq.s32.totalorder %s25, 1
      %p174 = por %p172, %p173
      %p176 = scmp.ne.s32.totalorder %s161, %s175
      %p177 = scmp.eq.s32.totalorder %s25, 0
      %p178 = por %p176, %p177
      %s179 = ssub.s32 %s19, %s26
      %p180 = scmp.eq.s32.totalorder %s179, 0
      %s182 = sadd.s32 %s181, 1
      %s183 = scalar_select %p180, %s181, %s182
      %p186 = pneg %p180
      %p187 = scmp.eq.s32.totalorder %s19, 1
      %p188 = por %p186, %p187
      %p189 = scmp.ne.s32.totalorder %s181, %s184
      %p190 = scmp.eq.s32.totalorder %s19, 0
      %p191 = por %p189, %p190
      %p192 = scmp.ne.s32.totalorder %s181, %s184
      %p193 = scmp.eq.s32.totalorder %s24, 1
      %p194 = por %p192, %p193
      %p195 = scmp.ne.s32.totalorder %s184, %s185
      %p196 = scmp.eq.s32.totalorder %s24, 0
      %p197 = por %p195, %p196
      %p198 = scmp.ne.s32.totalorder %s184, %s185
      %p199 = scmp.eq.s32.totalorder %s25, 1
      %p200 = por %p198, %p199
      %p202 = scmp.ne.s32.totalorder %s185, %s201
      %p203 = scmp.eq.s32.totalorder %s25, 0
      %p204 = por %p202, %p203
      %s205 = ssub.s32 %s19, %s26
      %p206 = scmp.eq.s32.totalorder %s205, 0
      %s208 = sadd.s32 %s207, 1
      %s209 = scalar_select %p206, %s207, %s208
      %p212 = pneg %p206
      %p213 = scmp.eq.s32.totalorder %s19, 1
      %p214 = por %p212, %p213
      %p215 = scmp.ne.s32.totalorder %s207, %s210
      %p216 = scmp.eq.s32.totalorder %s19, 0
      %p217 = por %p215, %p216
      %p218 = scmp.ne.s32.totalorder %s207, %s210
      %p219 = scmp.eq.s32.totalorder %s24, 1
      %p220 = por %p218, %p219
      %p221 = scmp.ne.s32.totalorder %s210, %s211
      %p222 = scmp.eq.s32.totalorder %s24, 0
      %p223 = por %p221, %p222
      %p224 = scmp.ne.s32.totalorder %s210, %s211
      %p225 = scmp.eq.s32.totalorder %s25, 1
      %p226 = por %p224, %p225
      %p228 = scmp.ne.s32.totalorder %s211, %s227
      %p229 = scmp.eq.s32.totalorder %s25, 0
      %p230 = por %p228, %p229
      %s231 = ssub.s32 %s19, %s26
      %p232 = scmp.eq.s32.totalorder %s231, 0
      %s234 = sadd.s32 %s233, 1
      %s235 = scalar_select %p232, %s233, %s234
      %p238 = pneg %p232
      %p239 = scmp.eq.s32.totalorder %s19, 1
      %p240 = por %p238, %p239
      %p241 = scmp.ne.s32.totalorder %s233, %s236
      %p242 = scmp.eq.s32.totalorder %s19, 0
      %p243 = por %p241, %p242
      %p244 = scmp.ne.s32.totalorder %s233, %s236
      %p245 = scmp.eq.s32.totalorder %s24, 1
      %p246 = por %p244, %p245
      %p247 = scmp.ne.s32.totalorder %s236, %s237
      %p248 = scmp.eq.s32.totalorder %s24, 0
      %p249 = por %p247, %p248
      %p250 = scmp.ne.s32.totalorder %s236, %s237
      %p251 = scmp.eq.s32.totalorder %s25, 1
      %p252 = por %p250, %p251
      %p254 = scmp.ne.s32.totalorder %s237, %s253
      %p255 = scmp.eq.s32.totalorder %s25, 0
      %p256 = por %p254, %p255
      %p257 = scmp.le.s32.totalorder 1, %s19
      %p258 = scmp.lt.s32.totalorder %s19, 3
      %p259 = pnand %p257, %p258
      %p260 = pneg %p259
      // Predicated region
      $region9: #{tpu_custom_call.1} parent=5 // pred_check
        _
      $region10: #{tpu_custom_call.1} parent=5 // pred_check_branch
        %262 = sbr.rel (%p259) target = $region12
      $region11: #{tpu_custom_call.1} parent=5 // pred_region
        %s263 = ssub.s32 %s19, 1
        // Predicated region
        $region13: #{tpu_custom_call.1} parent=11 // pred_check
          %p264 = pneg %p66
        $region14: #{tpu_custom_call.1} parent=11 // pred_check_branch
          %266 = sbr.rel (%p264) target = $region16
        $region15: #{tpu_custom_call.1} parent=11 // pred_region
          _
        $region16: #{tpu_custom_call.1} parent=11 // pred_fallthru
          _
        // Predicated region
        $region17: #{tpu_custom_call.1} parent=11 // pred_check
          %p267 = pneg %p87
        $region18: #{tpu_custom_call.1} parent=11 // pred_check_branch
          %269 = sbr.rel (%p267) target = $region20
        $region19: #{tpu_custom_call.1} parent=11 // pred_region
          _
        $region20: #{tpu_custom_call.1} parent=11 // pred_fallthru
          _
        // Predicated region
        $region21: #{tpu_custom_call.1} parent=11 // pred_check
          %p270 = pneg %p108
        $region22: #{tpu_custom_call.1} parent=11 // pred_check_branch
          %272 = sbr.rel (%p270) target = $region24
        $region23: #{tpu_custom_call.1} parent=11 // pred_region
          _
        $region24: #{tpu_custom_call.1} parent=11 // pred_fallthru
          _
        // Predicated region
        $region25: #{tpu_custom_call.1} parent=11 // pred_check
          %p273 = pneg %p129
        $region26: #{tpu_custom_call.1} parent=11 // pred_check_branch
          %275 = sbr.rel (%p273) target = $region28
        $region27: #{tpu_custom_call.1} parent=11 // pred_region
          _
        $region28: #{tpu_custom_call.1} parent=11 // pred_fallthru
          _
        // Predicated region
        $region29: #{tpu_custom_call.1} parent=11 // pred_check
          %p276 = pneg %p150
        $region30: #{tpu_custom_call.1} parent=11 // pred_check_branch
          %278 = sbr.rel (%p276) target = $region32
        $region31: #{tpu_custom_call.1} parent=11 // pred_region
          _
        $region32: #{tpu_custom_call.1} parent=11 // pred_fallthru
          _
        // Predicated region
        $region33: #{tpu_custom_call.1} parent=11 // pred_check
          %p279 = pneg %p171
        $region34: #{tpu_custom_call.1} parent=11 // pred_check_branch
          %281 = sbr.rel (%p279) target = $region36
        $region35: #{tpu_custom_call.1} parent=11 // pred_region
          _
        $region36: #{tpu_custom_call.1} parent=11 // pred_fallthru
          _
      $region12: #{tpu_custom_call.1} parent=5 // pred_fallthru
        _
      %p282 = scmp.lt.s32.totalorder %s19, 2
      // Predicated region
      $region37: #{tpu_custom_call.1} parent=5 // pred_check
        %p283 = pneg %p282
      $region38: #{tpu_custom_call.1} parent=5 // pred_check_branch
        %285 = sbr.rel (%p283) target = $region40
      $region39: #{tpu_custom_call.1} parent=5 // pred_region
        // Predicated region
        $region41: #{tpu_custom_call.1} parent=39 // pred_check
          %p286 = pneg %p39
        $region42: #{tpu_custom_call.1} parent=39 // pred_check_branch
          %288 = sbr.rel (%p286) target = $region44
        $region43: #{tpu_custom_call.1} parent=39 // pred_region
          %p289 = scmp.lt.s32.totalorder %s19, 1
          %s290 = scalar_select %p289, %s19, 1
          %s291 = smul.addr %s290, 32
          %s292 = smul.addr %s291, 8
          %s293 = scalar_lea.vmem %s0, %s292
        $region44: #{tpu_custom_call.1} parent=39 // pred_fallthru
          _
      $region40: #{tpu_custom_call.1} parent=5 // pred_fallthru
        _
      %p294 = scmp.le.s32.totalorder 1, %s19
      %p295 = scmp.lt.s32.totalorder %s19, 3
      %p296 = pnand %p294, %p295
      %p297 = pneg %p296
      // Predicated region
      $region45: #{tpu_custom_call.1} parent=5 // pred_check
        _
      $region46: #{tpu_custom_call.1} parent=5 // pred_check_branch
        %299 = sbr.rel (%p296) target = $region48
      $region47: #{tpu_custom_call.1} parent=5 // pred_region
        %s300 = ssub.s32 %s19, 1
        %p301 = scmp.lt.s32.totalorder %s24, 1
        %s302 = scalar_select %p301, %s24, 1
        %s303 = smul.addr %s302, 32
        %s304 = smul.addr %s303, 8
        %s305 = scalar_lea.vmem %s0, %s304
        %p306 = pneg %p45
        %p307 = pneg %p42
        %p308 = pneg %p66
        %p309 = pneg %p63
        %p310 = pneg %p87
        %p311 = pneg %p84
        %p312 = pneg %p108
        %p313 = pneg %p105
        %p314 = pneg %p129
        %p315 = pneg %p126
        %p316 = pneg %p150
        %p317 = pneg %p147
        %p318 = pneg %p171
        %p319 = pneg %p168
        %p320 = pneg %p197
        %p321 = pneg %p194
        %p322 = scmp.lt.s32.totalorder %s24, 1
        %s323 = scalar_select %p322, %s24, 1
        %s324 = smul.addr %s323, 8
        %s325 = smul.addr %s324, 8
        %s326 = scalar_lea.vmem %s7, %s325
        %p327 = pneg %p223
        %p328 = pneg %p220
        %p329 = scmp.lt.s32.totalorder %s24, 1
        %s330 = scalar_select %p329, %s24, 1
        %s331 = smul.addr %s330, 8
        %s332 = smul.addr %s331, 8
        %s333 = scalar_lea.vmem %s8, %s332
        %p334 = pneg %p249
        %p335 = pneg %p246
        %s336 = sand.u32 %s236, 1
        %s337 = scalar_lea.sflag [#allocation5], %s336
        %s338 = sand.u32 %s236, 1
        %s339 = smul.addr %s338, 2
        %s340 = scalar_lea.vmem [#allocation4], %s339
        %p341 = scmp.lt.s32.totalorder %s24, 1
        %s342 = scalar_select %p341, %s24, 1
        %s343 = smul.addr %s342, 32
        %s344 = smul.addr %s343, 8
        %s345 = scalar_lea.vmem %s0, %s344
        %p346 = scmp.lt.s32.totalorder %s24, 1
        %s347 = scalar_select %p346, %s24, 1
        %s348 = smul.addr %s347, 8
        %s349 = smul.addr %s348, 8
        %s350 = scalar_lea.vmem %s7, %s349
        %p351 = scmp.lt.s32.totalorder %s24, 1
        %s352 = scalar_select %p351, %s24, 1
        %s353 = smul.addr %s352, 8
        %s354 = smul.addr %s353, 8
        %s355 = scalar_lea.vmem %s8, %s354
        %vm356 = vcmask 31744
        %357 = vst.msk [vmem:[#allocation2] sm:$0xff] %vm356, 0.0
        %358 = vst.msk [vmem:[#allocation2 + $0x8] sm:$0xff] %vm356, 0.0
        %359 = vst.msk [vmem:[#allocation2 + $0x10] sm:$0xff] %vm356, 0.0
        %vm360 = vcmask 24576
        %361 = vst.msk [vmem:[#allocation2 + $0x18] sm:$0x1] %vm360, 0.0
        %362 = vst.msk [vmem:[#allocation2 + $0x20] sm:$0xff] %vm356, 0.0
        %363 = vst.msk [vmem:[#allocation2 + $0x28] sm:$0xff] %vm356, 0.0
        %364 = vst.msk [vmem:[#allocation2 + $0x30] sm:$0xff] %vm356, 0.0
        %365 = vst.msk [vmem:[#allocation2 + $0x38] sm:$0x1] %vm360, 0.0
        %366 = vst.msk [vmem:[#allocation2 + $0x40] sm:$0xff] %vm356, 0.0
        %367 = vst.msk [vmem:[#allocation2 + $0x48] sm:$0xff] %vm356, 0.0
        %368 = vst.msk [vmem:[#allocation2 + $0x50] sm:$0xff] %vm356, 0.0
        %369 = vst.msk [vmem:[#allocation2 + $0x58] sm:$0x1] %vm360, 0.0
        %370 = vst.msk [vmem:[#allocation2 + $0x60] sm:$0xff] %vm356, 0.0
        %371 = vst.msk [vmem:[#allocation2 + $0x68] sm:$0xff] %vm356, 0.0
        %372 = vst.msk [vmem:[#allocation2 + $0x70] sm:$0xff] %vm356, 0.0
        %373 = vst.msk [vmem:[#allocation2 + $0x78] sm:$0x1] %vm360, 0.0
        %374 = vst.msk [vmem:[#allocation2 + $0x80] sm:$0xff] %vm356, 0.0
        %375 = vst.msk [vmem:[#allocation2 + $0x88] sm:$0xff] %vm356, 0.0
        %376 = vst.msk [vmem:[#allocation2 + $0x90] sm:$0xff] %vm356, 0.0
        %377 = vst.msk [vmem:[#allocation2 + $0x98] sm:$0x1] %vm360, 0.0
        %378 = vst.msk [vmem:[#allocation2 + $0xa0] sm:$0xff] %vm356, 0.0
        %379 = vst.msk [vmem:[#allocation2 + $0xa8] sm:$0xff] %vm356, 0.0
        %380 = vst.msk [vmem:[#allocation2 + $0xb0] sm:$0xff] %vm356, 0.0
        %381 = vst.msk [vmem:[#allocation2 + $0xb8] sm:$0x1] %vm360, 0.0
        %382 = vst.msk [vmem:[#allocation2 + $0xc0] sm:$0xff] %vm356, 0.0
        %383 = vst.msk [vmem:[#allocation2 + $0xc8] sm:$0xff] %vm356, 0.0
        %384 = vst.msk [vmem:[#allocation2 + $0xd0] sm:$0xff] %vm356, 0.0
        %385 = vst.msk [vmem:[#allocation2 + $0xd8] sm:$0x1] %vm360, 0.0
        %386 = vst.msk [vmem:[#allocation2 + $0xe0] sm:$0xff] %vm356, 0.0
        %387 = vst.msk [vmem:[#allocation2 + $0xe8] sm:$0xff] %vm356, 0.0
        %388 = vst.msk [vmem:[#allocation2 + $0xf0] sm:$0xff] %vm356, 0.0
        %389 = vst.msk [vmem:[#allocation2 + $0xf8] sm:$0x1] %vm360, 0.0
        %390 = vst.msk [vmem:[#allocation2 + $0x100] sm:$0xff] %vm356, 0.0
        %391 = vst.msk [vmem:[#allocation2 + $0x108] sm:$0xff] %vm356, 0.0
        %392 = vst.msk [vmem:[#allocation2 + $0x110] sm:$0xff] %vm356, 0.0
        %393 = vst.msk [vmem:[#allocation2 + $0x118] sm:$0x1] %vm360, 0.0
        %394 = vst.msk [vmem:[#allocation2 + $0x120] sm:$0xff] %vm356, 0.0
        %395 = vst.msk [vmem:[#allocation2 + $0x128] sm:$0xff] %vm356, 0.0
        %396 = vst.msk [vmem:[#allocation2 + $0x130] sm:$0xff] %vm356, 0.0
        %397 = vst.msk [vmem:[#allocation2 + $0x138] sm:$0x1] %vm360, 0.0
        %398 = vst.msk [vmem:[#allocation2 + $0x140] sm:$0xff] %vm356, 0.0
        %399 = vst.msk [vmem:[#allocation2 + $0x148] sm:$0xff] %vm356, 0.0
        %400 = vst.msk [vmem:[#allocation2 + $0x150] sm:$0xff] %vm356, 0.0
        %401 = vst.msk [vmem:[#allocation2 + $0x158] sm:$0x1] %vm360, 0.0
        %402 = vst.msk [vmem:[#allocation2 + $0x160] sm:$0xff] %vm356, 0.0
        %403 = vst.msk [vmem:[#allocation2 + $0x168] sm:$0xff] %vm356, 0.0
        %404 = vst.msk [vmem:[#allocation2 + $0x170] sm:$0xff] %vm356, 0.0
        %405 = vst.msk [vmem:[#allocation2 + $0x178] sm:$0x1] %vm360, 0.0
        %406 = vst.msk [vmem:[#allocation2 + $0x180] sm:$0xff] %vm356, 0.0
        %407 = vst.msk [vmem:[#allocation2 + $0x188] sm:$0xff] %vm356, 0.0
        %408 = vst.msk [vmem:[#allocation2 + $0x190] sm:$0xff] %vm356, 0.0
        %409 = vst.msk [vmem:[#allocation2 + $0x198] sm:$0x1] %vm360, 0.0
        %410 = vst.msk [vmem:[#allocation2 + $0x1a0] sm:$0xff] %vm356, 0.0
        %411 = vst.msk [vmem:[#allocation2 + $0x1a8] sm:$0xff] %vm356, 0.0
        %412 = vst.msk [vmem:[#allocation2 + $0x1b0] sm:$0xff] %vm356, 0.0
        %413 = vst.msk [vmem:[#allocation2 + $0x1b8] sm:$0x1] %vm360, 0.0
        %414 = vst.msk [vmem:[#allocation2 + $0x1c0] sm:$0xff] %vm356, 0.0
        %415 = vst.msk [vmem:[#allocation2 + $0x1c8] sm:$0xff] %vm356, 0.0
        %416 = vst.msk [vmem:[#allocation2 + $0x1d0] sm:$0xff] %vm356, 0.0
        %417 = vst.msk [vmem:[#allocation2 + $0x1d8] sm:$0x1] %vm360, 0.0
        %418 = vst.msk [vmem:[#allocation2 + $0x1e0] sm:$0xff] %vm356, 0.0
        %419 = vst.msk [vmem:[#allocation2 + $0x1e8] sm:$0xff] %vm356, 0.0
        %420 = vst.msk [vmem:[#allocation2 + $0x1f0] sm:$0xff] %vm356, 0.0
        %421 = vst.msk [vmem:[#allocation2 + $0x1f8] sm:$0x1] %vm360, 0.0
        %422 = vst.msk [vmem:[#allocation2 + $0x200] sm:$0xff] %vm356, 0.0
        %423 = vst.msk [vmem:[#allocation2 + $0x208] sm:$0xff] %vm356, 0.0
        %424 = vst.msk [vmem:[#allocation2 + $0x210] sm:$0xff] %vm356, 0.0
        %425 = vst.msk [vmem:[#allocation2 + $0x218] sm:$0x1] %vm360, 0.0
        %426 = vst.msk [vmem:[#allocation2 + $0x220] sm:$0xff] %vm356, 0.0
        %427 = vst.msk [vmem:[#allocation2 + $0x228] sm:$0xff] %vm356, 0.0
        %428 = vst.msk [vmem:[#allocation2 + $0x230] sm:$0xff] %vm356, 0.0
        %429 = vst.msk [vmem:[#allocation2 + $0x238] sm:$0x1] %vm360, 0.0
        %vm430 = vcmask 64512
        %431 = vst.msk [vmem:[#allocation3] sm:$0xff] %vm430, 0.0
        %432 = vst.msk [vmem:[#allocation3 + $0x8] sm:$0xff] %vm430, 0.0
        %433 = vst.msk [vmem:[#allocation3 + $0x10] sm:$0xff] %vm430, 0.0
        %vm434 = vcmask 58368
        %435 = vst.msk [vmem:[#allocation3 + $0x18] sm:$0x3] %vm434, 0.0
        %436 = vst.msk [vmem:[#allocation3 + $0x20] sm:$0xff] %vm430, 0.0
        %437 = vst.msk [vmem:[#allocation3 + $0x28] sm:$0xff] %vm430, 0.0
        %438 = vst.msk [vmem:[#allocation3 + $0x30] sm:$0xff] %vm430, 0.0
        %439 = vst.msk [vmem:[#allocation3 + $0x38] sm:$0x3] %vm434, 0.0
        %440 = vst.msk [vmem:[#allocation3 + $0x40] sm:$0xff] %vm430, 0.0
        %441 = vst.msk [vmem:[#allocation3 + $0x48] sm:$0xff] %vm430, 0.0
        %442 = vst.msk [vmem:[#allocation3 + $0x50] sm:$0xff] %vm430, 0.0
        %443 = vst.msk [vmem:[#allocation3 + $0x58] sm:$0x3] %vm434, 0.0
        %444 = vst.msk [vmem:[#allocation3 + $0x60] sm:$0xff] %vm430, 0.0
        %445 = vst.msk [vmem:[#allocation3 + $0x68] sm:$0xff] %vm430, 0.0
        %446 = vst.msk [vmem:[#allocation3 + $0x70] sm:$0xff] %vm430, 0.0
        %447 = vst.msk [vmem:[#allocation3 + $0x78] sm:$0x3] %vm434, 0.0
        %448 = vst.msk [vmem:[#allocation3 + $0x80] sm:$0xff] %vm430, 0.0
        %449 = vst.msk [vmem:[#allocation3 + $0x88] sm:$0xff] %vm430, 0.0
        %450 = vst.msk [vmem:[#allocation3 + $0x90] sm:$0xff] %vm430, 0.0
        %451 = vst.msk [vmem:[#allocation3 + $0x98] sm:$0x3] %vm434, 0.0
        %452 = vst.msk [vmem:[#allocation3 + $0xa0] sm:$0xff] %vm430, 0.0
        %453 = vst.msk [vmem:[#allocation3 + $0xa8] sm:$0xff] %vm430, 0.0
        %454 = vst.msk [vmem:[#allocation3 + $0xb0] sm:$0xff] %vm430, 0.0
        %455 = vst.msk [vmem:[#allocation3 + $0xb8] sm:$0x3] %vm434, 0.0
        %456 = vst.msk [vmem:[#allocation3 + $0xc0] sm:$0xff] %vm430, 0.0
        %457 = vst.msk [vmem:[#allocation3 + $0xc8] sm:$0xff] %vm430, 0.0
        %458 = vst.msk [vmem:[#allocation3 + $0xd0] sm:$0xff] %vm430, 0.0
        %459 = vst.msk [vmem:[#allocation3 + $0xd8] sm:$0x3] %vm434, 0.0
        %460 = vst.msk [vmem:[#allocation3 + $0xe0] sm:$0xff] %vm430, 0.0
        %461 = vst.msk [vmem:[#allocation3 + $0xe8] sm:$0xff] %vm430, 0.0
        %462 = vst.msk [vmem:[#allocation3 + $0xf0] sm:$0xff] %vm430, 0.0
        %463 = vst.msk [vmem:[#allocation3 + $0xf8] sm:$0x3] %vm434, 0.0
        %464 = vst.msk [vmem:[#allocation3 + $0x100] sm:$0xff] %vm430, 0.0
        %465 = vst.msk [vmem:[#allocation3 + $0x108] sm:$0xff] %vm430, 0.0
        %466 = vst.msk [vmem:[#allocation3 + $0x110] sm:$0xff] %vm430, 0.0
        %467 = vst.msk [vmem:[#allocation3 + $0x118] sm:$0x3] %vm434, 0.0
        %468 = vst.msk [vmem:[#allocation3 + $0x120] sm:$0xff] %vm430, 0.0
        %469 = vst.msk [vmem:[#allocation3 + $0x128] sm:$0xff] %vm430, 0.0
        %470 = vst.msk [vmem:[#allocation3 + $0x130] sm:$0xff] %vm430, 0.0
        %471 = vst.msk [vmem:[#allocation3 + $0x138] sm:$0x3] %vm434, 0.0
        %472 = vst.msk [vmem:[#allocation3 + $0x140] sm:$0xff] %vm430, 0.0
        %473 = vst.msk [vmem:[#allocation3 + $0x148] sm:$0xff] %vm430, 0.0
        %474 = vst.msk [vmem:[#allocation3 + $0x150] sm:$0xff] %vm430, 0.0
        %475 = vst.msk [vmem:[#allocation3 + $0x158] sm:$0x3] %vm434, 0.0
        %476 = vst.msk [vmem:[#allocation3 + $0x160] sm:$0xff] %vm430, 0.0
        %477 = vst.msk [vmem:[#allocation3 + $0x168] sm:$0xff] %vm430, 0.0
        %478 = vst.msk [vmem:[#allocation3 + $0x170] sm:$0xff] %vm430, 0.0
        %479 = vst.msk [vmem:[#allocation3 + $0x178] sm:$0x3] %vm434, 0.0
        %480 = vst.msk [vmem:[#allocation3 + $0x180] sm:$0xff] %vm430, 0.0
        %481 = vst.msk [vmem:[#allocation3 + $0x188] sm:$0xff] %vm430, 0.0
        %482 = vst.msk [vmem:[#allocation3 + $0x190] sm:$0xff] %vm430, 0.0
        %483 = vst.msk [vmem:[#allocation3 + $0x198] sm:$0x3] %vm434, 0.0
        %484 = vst.msk [vmem:[#allocation3 + $0x1a0] sm:$0xff] %vm430, 0.0
        %485 = vst.msk [vmem:[#allocation3 + $0x1a8] sm:$0xff] %vm430, 0.0
        %486 = vst.msk [vmem:[#allocation3 + $0x1b0] sm:$0xff] %vm430, 0.0
        %487 = vst.msk [vmem:[#allocation3 + $0x1b8] sm:$0x3] %vm434, 0.0
        %488 = vst.msk [vmem:[#allocation3 + $0x1c0] sm:$0xff] %vm430, 0.0
        %489 = vst.msk [vmem:[#allocation3 + $0x1c8] sm:$0xff] %vm430, 0.0
        %490 = vst.msk [vmem:[#allocation3 + $0x1d0] sm:$0xff] %vm430, 0.0
        %491 = vst.msk [vmem:[#allocation3 + $0x1d8] sm:$0x3] %vm434, 0.0
        %492 = vst.msk [vmem:[#allocation3 + $0x1e0] sm:$0xff] %vm430, 0.0
        %493 = vst.msk [vmem:[#allocation3 + $0x1e8] sm:$0xff] %vm430, 0.0
        %494 = vst.msk [vmem:[#allocation3 + $0x1f0] sm:$0xff] %vm430, 0.0
        %495 = vst.msk [vmem:[#allocation3 + $0x1f8] sm:$0x3] %vm434, 0.0
        %496 = vst.msk [vmem:[#allocation3 + $0x200] sm:$0xff] %vm430, 0.0
        %497 = vst.msk [vmem:[#allocation3 + $0x208] sm:$0xff] %vm430, 0.0
        %498 = vst.msk [vmem:[#allocation3 + $0x210] sm:$0xff] %vm430, 0.0
        %499 = vst.msk [vmem:[#allocation3 + $0x218] sm:$0x3] %vm434, 0.0
        %500 = vst.msk [vmem:[#allocation3 + $0x220] sm:$0xff] %vm430, 0.0
        %501 = vst.msk [vmem:[#allocation3 + $0x228] sm:$0xff] %vm430, 0.0
        %502 = vst.msk [vmem:[#allocation3 + $0x230] sm:$0xff] %vm430, 0.0
        %503 = vst.msk [vmem:[#allocation3 + $0x238] sm:$0x3] %vm434, 0.0
        %504 = vst.msk [vmem:[#allocation3 + $0x240] sm:$0xff] %vm430, 0.0
        %505 = vst.msk [vmem:[#allocation3 + $0x248] sm:$0xff] %vm430, 0.0
        %506 = vst.msk [vmem:[#allocation3 + $0x250] sm:$0xff] %vm430, 0.0
        %507 = vst.msk [vmem:[#allocation3 + $0x258] sm:$0x3] %vm434, 0.0
        %508 = vst.msk [vmem:[#allocation3 + $0x260] sm:$0xff] %vm430, 0.0
        %509 = vst.msk [vmem:[#allocation3 + $0x268] sm:$0xff] %vm430, 0.0
        %510 = vst.msk [vmem:[#allocation3 + $0x270] sm:$0xff] %vm430, 0.0
        %511 = vst.msk [vmem:[#allocation3 + $0x278] sm:$0x3] %vm434, 0.0
        %v512 = vld [vmem:[%s345] sm:$0xff]
        %v513 = vld [vmem:[%s345 + $0x8] sm:$0xff]
        %v514 = vld [vmem:[%s345 + $0x10] sm:$0xff]
        %v515 = vld [vmem:[%s345 + $0x18] sm:$0xff]
        %v516 = vld [vmem:[%s345 + $0x20] sm:$0xff]
        %v517 = vld [vmem:[%s345 + $0x28] sm:$0xff]
        %v518 = vld [vmem:[%s345 + $0x30] sm:$0xff]
        %v519 = vld [vmem:[%s345 + $0x38] sm:$0xff]
        %v520 = vld [vmem:[%s345 + $0x40] sm:$0xff]
        %v521 = vld [vmem:[%s345 + $0x48] sm:$0xff]
        %v522 = vld [vmem:[%s345 + $0x50] sm:$0xff]
        %v523 = vld [vmem:[%s345 + $0x58] sm:$0xff]
        %v524 = vld [vmem:[%s345 + $0x60] sm:$0xff]
        %v525 = vld [vmem:[%s345 + $0x68] sm:$0xff]
        %v526 = vld [vmem:[%s345 + $0x70] sm:$0xff]
        %v527 = vld [vmem:[%s345 + $0x78] sm:$0xff]
        %v528 = vld [vmem:[%s345 + $0x80] sm:$0xff]
        %v529 = vld [vmem:[%s345 + $0x88] sm:$0xff]
        %v530 = vld [vmem:[%s345 + $0x90] sm:$0xff]
        %v531 = vld [vmem:[%s345 + $0x98] sm:$0xff]
        %v532 = vld [vmem:[%s345 + $0xa0] sm:$0xff]
        %v533 = vld [vmem:[%s345 + $0xa8] sm:$0xff]
        %v534 = vld [vmem:[%s345 + $0xb0] sm:$0xff]
        %v535 = vld [vmem:[%s345 + $0xb8] sm:$0xff]
        %v536 = vld [vmem:[%s345 + $0xc0] sm:$0xff]
        %v537 = vld [vmem:[%s345 + $0xc8] sm:$0xff]
        %v538 = vld [vmem:[%s345 + $0xd0] sm:$0xff]
        %v539 = vld [vmem:[%s345 + $0xd8] sm:$0xff]
        %v540 = vld [vmem:[%s345 + $0xe0] sm:$0xff]
        %v541 = vld [vmem:[%s345 + $0xe8] sm:$0xff]
        %v542 = vld [vmem:[%s345 + $0xf0] sm:$0xff]
        %v543 = vld [vmem:[%s345 + $0xf8] sm:$0xff]
        %s544 = scalar_lea.vmem [#allocation2], 32
        %545 = vst.msk [vmem:[%s544 + $0x8] sm:$0xff] %vm356, %v512
        %546 = vst.msk [vmem:[%s544 + $0x10] sm:$0xff] %vm356, %v513
        %547 = vst.msk [vmem:[%s544 + $0x28] sm:$0xff] %vm356, %v514
        %548 = vst.msk [vmem:[%s544 + $0x30] sm:$0xff] %vm356, %v515
        %549 = vst.msk [vmem:[%s544 + $0x48] sm:$0xff] %vm356, %v516
        %550 = vst.msk [vmem:[%s544 + $0x50] sm:$0xff] %vm356, %v517
        %551 = vst.msk [vmem:[%s544 + $0x68] sm:$0xff] %vm356, %v518
        %552 = vst.msk [vmem:[%s544 + $0x70] sm:$0xff] %vm356, %v519
        %553 = vst.msk [vmem:[%s544 + $0x88] sm:$0xff] %vm356, %v520
        %554 = vst.msk [vmem:[%s544 + $0x90] sm:$0xff] %vm356, %v521
        %555 = vst.msk [vmem:[%s544 + $0xa8] sm:$0xff] %vm356, %v522
        %556 = vst.msk [vmem:[%s544 + $0xb0] sm:$0xff] %vm356, %v523
        %557 = vst.msk [vmem:[%s544 + $0xc8] sm:$0xff] %vm356, %v524
        %558 = vst.msk [vmem:[%s544 + $0xd0] sm:$0xff] %vm356, %v525
        %559 = vst.msk [vmem:[%s544 + $0xe8] sm:$0xff] %vm356, %v526
        %560 = vst.msk [vmem:[%s544 + $0xf0] sm:$0xff] %vm356, %v527
        %561 = vst.msk [vmem:[%s544 + $0x108] sm:$0xff] %vm356, %v528
        %562 = vst.msk [vmem:[%s544 + $0x110] sm:$0xff] %vm356, %v529
        %563 = vst.msk [vmem:[%s544 + $0x128] sm:$0xff] %vm356, %v530
        %564 = vst.msk [vmem:[%s544 + $0x130] sm:$0xff] %vm356, %v531
        %565 = vst.msk [vmem:[%s544 + $0x148] sm:$0xff] %vm356, %v532
        %566 = vst.msk [vmem:[%s544 + $0x150] sm:$0xff] %vm356, %v533
        %567 = vst.msk [vmem:[%s544 + $0x168] sm:$0xff] %vm356, %v534
        %568 = vst.msk [vmem:[%s544 + $0x170] sm:$0xff] %vm356, %v535
        %569 = vst.msk [vmem:[%s544 + $0x188] sm:$0xff] %vm356, %v536
        %570 = vst.msk [vmem:[%s544 + $0x190] sm:$0xff] %vm356, %v537
        %571 = vst.msk [vmem:[%s544 + $0x1a8] sm:$0xff] %vm356, %v538
        %572 = vst.msk [vmem:[%s544 + $0x1b0] sm:$0xff] %vm356, %v539
        %573 = vst.msk [vmem:[%s544 + $0x1c8] sm:$0xff] %vm356, %v540
        %574 = vst.msk [vmem:[%s544 + $0x1d0] sm:$0xff] %vm356, %v541
        %575 = vst.msk [vmem:[%s544 + $0x1e8] sm:$0xff] %vm356, %v542
        %576 = vst.msk [vmem:[%s544 + $0x1f0] sm:$0xff] %vm356, %v543
        %v577 = vld [vmem:[#allocation2] sm:$0xff]
        %v578 = vld [vmem:[#allocation2 + $0x8] sm:$0xff]
        %v579 = vld [vmem:[#allocation2 + $0x10] sm:$0xff]
        %v580 = vld [vmem:[#allocation2 + $0x18] sm:$0x1]
        %v581 = vld [vmem:[#allocation2 + $0x20] sm:$0xff]
        %v582 = vld [vmem:[#allocation2 + $0x28] sm:$0xff]
        %v583 = vld [vmem:[#allocation2 + $0x30] sm:$0xff]
        %v584 = vld [vmem:[#allocation2 + $0x38] sm:$0x1]
        %v585 = vld [vmem:[#allocation2 + $0x40] sm:$0xff]
        %v586 = vld [vmem:[#allocation2 + $0x48] sm:$0xff]
        %v587 = vld [vmem:[#allocation2 + $0x50] sm:$0xff]
        %v588 = vld [vmem:[#allocation2 + $0x58] sm:$0x1]
        %v589 = vld [vmem:[#allocation2 + $0x60] sm:$0xff]
        %v590 = vld [vmem:[#allocation2 + $0x68] sm:$0xff]
        %v591 = vld [vmem:[#allocation2 + $0x70] sm:$0xff]
        %v592 = vld [vmem:[#allocation2 + $0x78] sm:$0x1]
        %v593 = vld [vmem:[#allocation2 + $0x80] sm:$0xff]
        %v594 = vld [vmem:[#allocation2 + $0x88] sm:$0xff]
        %v595 = vld [vmem:[#allocation2 + $0x90] sm:$0xff]
        %v596 = vld [vmem:[#allocation2 + $0x98] sm:$0x1]
        %v597 = vld [vmem:[#allocation2 + $0xa0] sm:$0xff]
        %v598 = vld [vmem:[#allocation2 + $0xa8] sm:$0xff]
        %v599 = vld [vmem:[#allocation2 + $0xb0] sm:$0xff]
        %v600 = vld [vmem:[#allocation2 + $0xb8] sm:$0x1]
        %v601 = vld [vmem:[#allocation2 + $0xc0] sm:$0xff]
        %v602 = vld [vmem:[#allocation2 + $0xc8] sm:$0xff]
        %v603 = vld [vmem:[#allocation2 + $0xd0] sm:$0xff]
        %v604 = vld [vmem:[#allocation2 + $0xd8] sm:$0x1]
        %v605 = vld [vmem:[#allocation2 + $0xe0] sm:$0xff]
        %v606 = vld [vmem:[#allocation2 + $0xe8] sm:$0xff]
        %v607 = vld [vmem:[#allocation2 + $0xf0] sm:$0xff]
        %v608 = vld [vmem:[#allocation2 + $0xf8] sm:$0x1]
        %v609 = vld [vmem:[#allocation2 + $0x100] sm:$0xff]
        %v610 = vld [vmem:[#allocation2 + $0x108] sm:$0xff]
        %v611 = vld [vmem:[#allocation2 + $0x110] sm:$0xff]
        %v612 = vld [vmem:[#allocation2 + $0x118] sm:$0x1]
        %v613 = vld [vmem:[#allocation2 + $0x120] sm:$0xff]
        %v614 = vld [vmem:[#allocation2 + $0x128] sm:$0xff]
        %v615 = vld [vmem:[#allocation2 + $0x130] sm:$0xff]
        %v616 = vld [vmem:[#allocation2 + $0x138] sm:$0x1]
        %v617 = vld [vmem:[#allocation2 + $0x140] sm:$0xff]
        %v618 = vld [vmem:[#allocation2 + $0x148] sm:$0xff]
        %v619 = vld [vmem:[#allocation2 + $0x150] sm:$0xff]
        %v620 = vld [vmem:[#allocation2 + $0x158] sm:$0x1]
        %v621 = vld [vmem:[#allocation2 + $0x160] sm:$0xff]
        %v622 = vld [vmem:[#allocation2 + $0x168] sm:$0xff]
        %v623 = vld [vmem:[#allocation2 + $0x170] sm:$0xff]
        %v624 = vld [vmem:[#allocation2 + $0x178] sm:$0x1]
        %v625 = vld [vmem:[#allocation2 + $0x180] sm:$0xff]
        %v626 = vld [vmem:[#allocation2 + $0x188] sm:$0xff]
        %v627 = vld [vmem:[#allocation2 + $0x190] sm:$0xff]
        %v628 = vld [vmem:[#allocation2 + $0x198] sm:$0x1]
        %v629 = vld [vmem:[#allocation2 + $0x1a0] sm:$0xff]
        %v630 = vld [vmem:[#allocation2 + $0x1a8] sm:$0xff]
        %v631 = vld [vmem:[#allocation2 + $0x1b0] sm:$0xff]
        %v632 = vld [vmem:[#allocation2 + $0x1b8] sm:$0x1]
        %v633 = vld [vmem:[#allocation2 + $0x1c0] sm:$0xff]
        %v634 = vld [vmem:[#allocation2 + $0x1c8] sm:$0xff]
        %v635 = vld [vmem:[#allocation2 + $0x1d0] sm:$0xff]
        %v636 = vld [vmem:[#allocation2 + $0x1d8] sm:$0x1]
        %v637 = vld [vmem:[#allocation2 + $0x1e0] sm:$0xff]
        %v638 = vld [vmem:[#allocation2 + $0x1e8] sm:$0xff]
        %v639 = vld [vmem:[#allocation2 + $0x1f0] sm:$0xff]
        %v640 = vld [vmem:[#allocation2 + $0x1f8] sm:$0x1]
        %v641 = vld [vmem:[#allocation2 + $0x200] sm:$0xff]
        %v642 = vld [vmem:[#allocation2 + $0x208] sm:$0xff]
        %v643 = vld [vmem:[#allocation2 + $0x210] sm:$0xff]
        %v644 = vld [vmem:[#allocation2 + $0x218] sm:$0x1]
        %v645 = vld [vmem:[#allocation2 + $0x220] sm:$0xff]
        %v646 = vld [vmem:[#allocation2 + $0x228] sm:$0xff]
        %v647 = vld [vmem:[#allocation2 + $0x230] sm:$0xff]
        %v648 = vld [vmem:[#allocation2 + $0x238] sm:$0x1]
        %vm697 = vcmask 1040384
        %v698 = vrot.slane %v577, 7
        %v699 = vrot.slane %v578, 7
        %v700 = vsel %vm697, %v698, %v699
        %v701 = vrot.slane %v579, 7
        %v702 = vsel %vm697, %v699, %v701
        %v703 = vrot.slane %v581, 7
        %v704 = vrot.slane %v582, 7
        %v705 = vsel %vm697, %v703, %v704
        %v706 = vrot.slane %v583, 7
        %v707 = vsel %vm697, %v704, %v706
        %v708 = vrot.slane %v585, 7
        %v709 = vrot.slane %v586, 7
        %v710 = vsel %vm697, %v708, %v709
        %v711 = vrot.slane %v587, 7
        %v712 = vsel %vm697, %v709, %v711
        %v713 = vrot.slane %v589, 7
        %v714 = vrot.slane %v590, 7
        %v715 = vsel %vm697, %v713, %v714
        %v716 = vrot.slane %v591, 7
        %v717 = vsel %vm697, %v714, %v716
        %v718 = vrot.slane %v593, 7
        %v719 = vrot.slane %v594, 7
        %v720 = vsel %vm697, %v718, %v719
        %v721 = vrot.slane %v595, 7
        %v722 = vsel %vm697, %v719, %v721
        %v723 = vrot.slane %v597, 7
        %v724 = vrot.slane %v598, 7
        %v725 = vsel %vm697, %v723, %v724
        %v726 = vrot.slane %v599, 7
        %v727 = vsel %vm697, %v724, %v726
        %v728 = vrot.slane %v601, 7
        %v729 = vrot.slane %v602, 7
        %v730 = vsel %vm697, %v728, %v729
        %v731 = vrot.slane %v603, 7
        %v732 = vsel %vm697, %v729, %v731
        %v733 = vrot.slane %v605, 7
        %v734 = vrot.slane %v606, 7
        %v735 = vsel %vm697, %v733, %v734
        %v736 = vrot.slane %v607, 7
        %v737 = vsel %vm697, %v734, %v736
        %v738 = vrot.slane %v609, 7
        %v739 = vrot.slane %v610, 7
        %v740 = vsel %vm697, %v738, %v739
        %v741 = vrot.slane %v611, 7
        %v742 = vsel %vm697, %v739, %v741
        %v743 = vrot.slane %v613, 7
        %v744 = vrot.slane %v614, 7
        %v745 = vsel %vm697, %v743, %v744
        %v746 = vrot.slane %v615, 7
        %v747 = vsel %vm697, %v744, %v746
        %v748 = vrot.slane %v617, 7
        %v749 = vrot.slane %v618, 7
        %v750 = vsel %vm697, %v748, %v749
        %v751 = vrot.slane %v619, 7
        %v752 = vsel %vm697, %v749, %v751
        %v753 = vrot.slane %v621, 7
        %v754 = vrot.slane %v622, 7
        %v755 = vsel %vm697, %v753, %v754
        %v756 = vrot.slane %v623, 7
        %v757 = vsel %vm697, %v754, %v756
        %v758 = vrot.slane %v625, 7
        %v759 = vrot.slane %v626, 7
        %v760 = vsel %vm697, %v758, %v759
        %v761 = vrot.slane %v627, 7
        %v762 = vsel %vm697, %v759, %v761
        %v763 = vrot.slane %v629, 7
        %v764 = vrot.slane %v630, 7
        %v765 = vsel %vm697, %v763, %v764
        %v766 = vrot.slane %v631, 7
        %v767 = vsel %vm697, %v764, %v766
        %v768 = vrot.slane %v633, 7
        %v769 = vrot.slane %v634, 7
        %v770 = vsel %vm697, %v768, %v769
        %v771 = vrot.slane %v635, 7
        %v772 = vsel %vm697, %v769, %v771
        %v773 = vrot.slane %v637, 7
        %v774 = vrot.slane %v638, 7
        %v775 = vsel %vm697, %v773, %v774
        %v776 = vrot.slane %v639, 7
        %v777 = vsel %vm697, %v774, %v776
        %v778 = vld [vmem:[%s1] sm:$0xf]
        %s779 = scalar_lea.vmem %s1, 4
        %v780 = vld [vmem:[%s779] sm:$0xf]
        %v781 = vsel %vm356, %v578, 0
        %v783 = vsel %vm356, %v579, 0
        %v785 = vsel %vm356, %v582, 0
        %v787 = vsel %vm356, %v583, 0
        %v789 = vsel %vm356, %v586, 0
        %v791 = vsel %vm356, %v587, 0
        %v793 = vsel %vm356, %v590, 0
        %v795 = vsel %vm356, %v591, 0
        %v797 = vsel %vm356, %v594, 0
        %v799 = vsel %vm356, %v595, 0
        %v801 = vsel %vm356, %v598, 0
        %v803 = vsel %vm356, %v599, 0
        %v805 = vsel %vm356, %v602, 0
        %v807 = vsel %vm356, %v603, 0
        %v809 = vsel %vm356, %v606, 0
        %v811 = vsel %vm356, %v607, 0
        %v813 = vsel %vm356, %v610, 0
        %v815 = vsel %vm356, %v611, 0
        %v817 = vsel %vm356, %v614, 0
        %v819 = vsel %vm356, %v615, 0
        %v821 = vsel %vm356, %v618, 0
        %v823 = vsel %vm356, %v619, 0
        %v825 = vsel %vm356, %v622, 0
        %v827 = vsel %vm356, %v623, 0
        %v829 = vsel %vm356, %v626, 0
        %v831 = vsel %vm356, %v627, 0
        %v833 = vsel %vm356, %v630, 0
        %v835 = vsel %vm356, %v631, 0
        %v837 = vsel %vm356, %v634, 0
        %v839 = vsel %vm356, %v635, 0
        %v841 = vsel %vm356, %v638, 0
        %v843 = vsel %vm356, %v639, 0
        %vm845 = vcmask 1043456
        %v847 = vsel %vm845, %v780, 0
        %849 = vmatprep.subr.mxu0 0.0
        %850 = vmatpush1.msra.mxu0 %v847
        %851 = vmatprep.subr.mxu0 0.0
        %852 = vmatpush1.msra.mxu0 0.0
        %853 = vmatprep.subr.mxu0 0.0
        %854 = vmatpush1.msra.mxu0 0.0
        %855 = vmatprep.subr.mxu0 0.0
        %856 = vmatpush1.msra.mxu0 0.0
        %857 = vmatprep.subr.mxu0 0.0
        %858 = vmatpush1.msra.mxu0 0.0
        %859 = vmatprep.subr.mxu0 0.0
        %860 = vmatpush1.msra.mxu0 0.0
        %861 = vmatprep.subr.mxu0 0.0
        %862 = vmatpush1.msra.mxu0 0.0
        %863 = vmatprep.subr.mxu0 0.0
        %864 = vmatpush1.msra.mxu0 0.0
        %865 = vmatprep.subr.mxu0 0.0
        %866 = vmatpush1.msra.mxu0 0.0
        %867 = vmatprep.subr.mxu0 0.0
        %868 = vmatpush1.msra.mxu0 0.0
        %869 = vmatprep.subr.mxu0 0.0
        %870 = vmatpush1.msra.mxu0 0.0
        %871 = vmatprep.subr.mxu0 0.0
        %872 = vmatpush1.msra.mxu0 0.0
        %873 = vmatprep.subr.mxu0 0.0
        %874 = vmatpush1.msra.mxu0 0.0
        %875 = vmatprep.subr.mxu0 0.0
        %876 = vmatpush1.msra.mxu0 0.0
        %877 = vmatprep.subr.mxu0 0.0
        %878 = vmatpush1.msra.mxu0 0.0
        %879 = vmatprep.subr.mxu0 0.0
        %880 = vmatpush1.msra.mxu0 0.0
        %881 = vmatprep.subr.mxu0 0.0
        %882 = vmatpush1.msra.mxu0 0.0
        %883 = vmatprep.subr.mxu0 0.0
        %884 = vmatpush1.msra.mxu0 0.0
        %885 = vmatprep.subr.mxu0 0.0
        %886 = vmatpush1.msra.mxu0 0.0
        %887 = vmatprep.subr.mxu0 0.0
        %888 = vmatpush1.msra.mxu0 0.0
        %889 = vmatprep.subr.mxu0 0.0
        %890 = vmatpush1.msra.mxu0 0.0
        %891 = vmatprep.subr.mxu0 0.0
        %892 = vmatpush1.msra.mxu0 0.0
        %893 = vmatprep.subr.mxu0 0.0
        %894 = vmatpush1.msra.mxu0 0.0
        %895 = vmatprep.subr.mxu0 0.0
        %896 = vmatpush1.msra.mxu0 0.0
        %897 = vmatprep.subr.mxu0 0.0
        %898 = vmatpush1.msra.mxu0 0.0
        %899 = vmatprep.subr.mxu0 0.0
        %900 = vmatpush1.msra.mxu0 0.0
        %901 = vmatprep.subr.mxu0 0.0
        %902 = vmatpush1.msra.mxu0 0.0
        %903 = vmatprep.subr.mxu0 0.0
        %904 = vmatpush1.msra.mxu0 0.0
        %905 = vmatprep.subr.mxu0 0.0
        %906 = vmatpush1.msra.mxu0 0.0
        %907 = vmatprep.subr.mxu0 0.0
        %908 = vmatpush1.msra.mxu0 0.0
        %909 = vmatprep.subr.mxu0 0.0
        %910 = vmatpush1.msra.mxu0 0.0
        %911 = vmatprep.subr.mxu0 0.0
        %912 = vmatpush1.msra.mxu0 0.0
        %913 = vmatprep.mubr.f32.mxu0 0.0
        %914 = vmatmul.mubr.f32.gmra.mrb[0].mxu0 %v781
        %v915 = vpop.f32.mrb[0].mxu0
        %v916 = vadd.f32 0.0, %v915
        %v917 = vpop.f32.mrb[0].mxu0
        %918 = vmatprep.mubr.f32.mxu0 0.0
        %919 = vmatmul.mubr.f32.gmra.mrb[0].mxu0 %v783
        %v920 = vpop.f32.mrb[0].mxu0
        %v921 = vadd.f32 0.0, %v920
        %v922 = vpop.f32.mrb[0].mxu0
        %923 = vmatprep.mubr.f32.mxu0 0.0
        %924 = vmatmul.mubr.f32.gmra.mrb[0].mxu0 %v785
        %v925 = vpop.f32.mrb[0].mxu0
        %v926 = vadd.f32 0.0, %v925
        %v927 = vpop.f32.mrb[0].mxu0
        %928 = vmatprep.mubr.f32.mxu0 0.0
        %929 = vmatmul.mubr.f32.gmra.mrb[0].mxu0 %v787
        %v930 = vpop.f32.mrb[0].mxu0
        %v931 = vadd.f32 0.0, %v930
        %v932 = vpop.f32.mrb[0].mxu0
        %933 = vmatprep.mubr.f32.mxu0 0.0
        %934 = vmatmul.mubr.f32.gmra.mrb[0].mxu0 %v789
        %v935 = vpop.f32.mrb[0].mxu0
        %v936 = vadd.f32 0.0, %v935
        %v937 = vpop.f32.mrb[0].mxu0
        %938 = vmatprep.mubr.f32.mxu0 0.0
        %939 = vmatmul.mubr.f32.gmra.mrb[0].mxu0 %v791
        %v940 = vpop.f32.mrb[0].mxu0
        %v941 = vadd.f32 0.0, %v940
        %v942 = vpop.f32.mrb[0].mxu0
        %943 = vmatprep.mubr.f32.mxu0 0.0
        %944 = vmatmul.mubr.f32.gmra.mrb[0].mxu0 %v793
        %v945 = vpop.f32.mrb[0].mxu0
        %v946 = vadd.f32 0.0, %v945
        %v947 = vpop.f32.mrb[0].mxu0
        %948 = vmatprep.mubr.f32.mxu0 0.0
        %949 = vmatmul.mubr.f32.gmra.mrb[0].mxu0 %v795
        %v950 = vpop.f32.mrb[0].mxu0
        %v951 = vadd.f32 0.0, %v950
        %v952 = vpop.f32.mrb[0].mxu0
        %953 = vmatprep.mubr.f32.mxu0 0.0
        %954 = vmatmul.mubr.f32.gmra.mrb[0].mxu0 %v797
        %v955 = vpop.f32.mrb[0].mxu0
        %v956 = vadd.f32 0.0, %v955
        %v957 = vpop.f32.mrb[0].mxu0
        %958 = vmatprep.mubr.f32.mxu0 0.0
        %959 = vmatmul.mubr.f32.gmra.mrb[0].mxu0 %v799
        %v960 = vpop.f32.mrb[0].mxu0
        %v961 = vadd.f32 0.0, %v960
        %v962 = vpop.f32.mrb[0].mxu0
        %963 = vmatprep.mubr.f32.mxu0 0.0
        %964 = vmatmul.mubr.f32.gmra.mrb[0].mxu0 %v801
        %v965 = vpop.f32.mrb[0].mxu0
        %v966 = vadd.f32 0.0, %v965
        %v967 = vpop.f32.mrb[0].mxu0
        %968 = vmatprep.mubr.f32.mxu0 0.0
        %969 = vmatmul.mubr.f32.gmra.mrb[0].mxu0 %v803
        %v970 = vpop.f32.mrb[0].mxu0
        %v971 = vadd.f32 0.0, %v970
        %v972 = vpop.f32.mrb[0].mxu0
        %973 = vmatprep.mubr.f32.mxu0 0.0
        %974 = vmatmul.mubr.f32.gmra.mrb[0].mxu0 %v805
        %v975 = vpop.f32.mrb[0].mxu0
        %v976 = vadd.f32 0.0, %v975
        %v977 = vpop.f32.mrb[0].mxu0
        %978 = vmatprep.mubr.f32.mxu0 0.0
        %979 = vmatmul.mubr.f32.gmra.mrb[0].mxu0 %v807
        %v980 = vpop.f32.mrb[0].mxu0
        %v981 = vadd.f32 0.0, %v980
        %v982 = vpop.f32.mrb[0].mxu0
        %983 = vmatprep.mubr.f32.mxu0 0.0
        %984 = vmatmul.mubr.f32.gmra.mrb[0].mxu0 %v809
        %v985 = vpop.f32.mrb[0].mxu0
        %v986 = vadd.f32 0.0, %v985
        %v987 = vpop.f32.mrb[0].mxu0
        %988 = vmatprep.mubr.f32.mxu0 0.0
        %989 = vmatmul.mubr.f32.gmra.mrb[0].mxu0 %v811
        %v990 = vpop.f32.mrb[0].mxu0
        %v991 = vadd.f32 0.0, %v990
        %v992 = vpop.f32.mrb[0].mxu0
        %993 = vmatprep.mubr.f32.mxu0 0.0
        %994 = vmatmul.mubr.f32.gmra.mrb[0].mxu0 %v813
        %v995 = vpop.f32.mrb[0].mxu0
        %v996 = vadd.f32 0.0, %v995
        %v997 = vpop.f32.mrb[0].mxu0
        %998 = vmatprep.mubr.f32.mxu0 0.0
        %999 = vmatmul.mubr.f32.gmra.mrb[0].mxu0 %v815
        %v1000 = vpop.f32.mrb[0].mxu0
        %v1001 = vadd.f32 0.0, %v1000
        %v1002 = vpop.f32.mrb[0].mxu0
        %1003 = vmatprep.mubr.f32.mxu0 0.0
        %1004 = vmatmul.mubr.f32.gmra.mrb[0].mxu0 %v817
        %v1005 = vpop.f32.mrb[0].mxu0
        %v1006 = vadd.f32 0.0, %v1005
        %v1007 = vpop.f32.mrb[0].mxu0
        %1008 = vmatprep.mubr.f32.mxu0 0.0
        %1009 = vmatmul.mubr.f32.gmra.mrb[0].mxu0 %v819
        %v1010 = vpop.f32.mrb[0].mxu0
        %v1011 = vadd.f32 0.0, %v1010
        %v1012 = vpop.f32.mrb[0].mxu0
        %1013 = vmatprep.mubr.f32.mxu0 0.0
        %1014 = vmatmul.mubr.f32.gmra.mrb[0].mxu0 %v821
        %v1015 = vpop.f32.mrb[0].mxu0
        %v1016 = vadd.f32 0.0, %v1015
        %v1017 = vpop.f32.mrb[0].mxu0
        %1018 = vmatprep.mubr.f32.mxu0 0.0
        %1019 = vmatmul.mubr.f32.gmra.mrb[0].mxu0 %v823
        %v1020 = vpop.f32.mrb[0].mxu0
        %v1021 = vadd.f32 0.0, %v1020
        %v1022 = vpop.f32.mrb[0].mxu0
        %1023 = vmatprep.mubr.f32.mxu0 0.0
        %1024 = vmatmul.mubr.f32.gmra.mrb[0].mxu0 %v825
        %v1025 = vpop.f32.mrb[0].mxu0
        %v1026 = vadd.f32 0.0, %v1025
        %v1027 = vpop.f32.mrb[0].mxu0
        %1028 = vmatprep.mubr.f32.mxu0 0.0
        %1029 = vmatmul.mubr.f32.gmra.mrb[0].mxu0 %v827
        %v1030 = vpop.f32.mrb[0].mxu0
        %v1031 = vadd.f32 0.0, %v1030
        %v1032 = vpop.f32.mrb[0].mxu0
        %1033 = vmatprep.mubr.f32.mxu0 0.0
        %1034 = vmatmul.mubr.f32.gmra.mrb[0].mxu0 %v829
        %v1035 = vpop.f32.mrb[0].mxu0
        %v1036 = vadd.f32 0.0, %v1035
        %v1037 = vpop.f32.mrb[0].mxu0
        %1038 = vmatprep.mubr.f32.mxu0 0.0
        %1039 = vmatmul.mubr.f32.gmra.mrb[0].mxu0 %v831
        %v1040 = vpop.f32.mrb[0].mxu0
        %v1041 = vadd.f32 0.0, %v1040
        %v1042 = vpop.f32.mrb[0].mxu0
        %1043 = vmatprep.mubr.f32.mxu0 0.0
        %1044 = vmatmul.mubr.f32.gmra.mrb[0].mxu0 %v833
        %v1045 = vpop.f32.mrb[0].mxu0
        %v1046 = vadd.f32 0.0, %v1045
        %v1047 = vpop.f32.mrb[0].mxu0
        %1048 = vmatprep.mubr.f32.mxu0 0.0
        %1049 = vmatmul.mubr.f32.gmra.mrb[0].mxu0 %v835
        %v1050 = vpop.f32.mrb[0].mxu0
        %v1051 = vadd.f32 0.0, %v1050
        %v1052 = vpop.f32.mrb[0].mxu0
        %1053 = vmatprep.mubr.f32.mxu0 0.0
        %1054 = vmatmul.mubr.f32.gmra.mrb[0].mxu0 %v837
        %v1055 = vpop.f32.mrb[0].mxu0
        %v1056 = vadd.f32 0.0, %v1055
        %v1057 = vpop.f32.mrb[0].mxu0
        %1058 = vmatprep.mubr.f32.mxu0 0.0
        %1059 = vmatmul.mubr.f32.gmra.mrb[0].mxu0 %v839
        %v1060 = vpop.f32.mrb[0].mxu0
        %v1061 = vadd.f32 0.0, %v1060
        %v1062 = vpop.f32.mrb[0].mxu0
        %1063 = vmatprep.mubr.f32.mxu0 0.0
        %1064 = vmatmul.mubr.f32.gmra.mrb[0].mxu0 %v841
        %v1065 = vpop.f32.mrb[0].mxu0
        %v1066 = vadd.f32 0.0, %v1065
        %v1067 = vpop.f32.mrb[0].mxu0
        %1068 = vmatprep.mubr.f32.mxu0 0.0
        %1069 = vmatmul.mubr.f32.gmra.mrb[0].mxu0 %v843
        %v1070 = vpop.f32.mrb[0].mxu0
        %v1071 = vadd.f32 0.0, %v1070
        %v1072 = vpop.f32.mrb[0].mxu0
        %1073 = vdwg.mxu0
        %v1074 = vsel %vm356, %v700, 0
        %v1076 = vsel %vm356, %v702, 0
        %v1078 = vsel %vm356, %v705, 0
        %v1080 = vsel %vm356, %v707, 0
        %v1082 = vsel %vm356, %v710, 0
        %v1084 = vsel %vm356, %v712, 0
        %v1086 = vsel %vm356, %v715, 0
        %v1088 = vsel %vm356, %v717, 0
        %v1090 = vsel %vm356, %v720, 0
        %v1092 = vsel %vm356, %v722, 0
        %v1094 = vsel %vm356, %v725, 0
        %v1096 = vsel %vm356, %v727, 0
        %v1098 = vsel %vm356, %v730, 0
        %v1100 = vsel %vm356, %v732, 0
        %v1102 = vsel %vm356, %v735, 0
        %v1104 = vsel %vm356, %v737, 0
        %v1106 = vsel %vm356, %v740, 0
        %v1108 = vsel %vm356, %v742, 0
        %v1110 = vsel %vm356, %v745, 0
        %v1112 = vsel %vm356, %v747, 0
        %v1114 = vsel %vm356, %v750, 0
        %v1116 = vsel %vm356, %v752, 0
        %v1118 = vsel %vm356, %v755, 0
        %v1120 = vsel %vm356, %v757, 0
        %v1122 = vsel %vm356, %v760, 0
        %v1124 = vsel %vm356, %v762, 0
        %v1126 = vsel %vm356, %v765, 0
        %v1128 = vsel %vm356, %v767, 0
        %v1130 = vsel %vm356, %v770, 0
        %v1132 = vsel %vm356, %v772, 0
        %v1134 = vsel %vm356, %v775, 0
        %v1136 = vsel %vm356, %v777, 0
        %v1139 = vsel %vm845, %v778, 0
        %1141 = vmatprep.subr.mxu0 0.0
        %1142 = vmatpush1.msra.mxu0 %v1139
        %1143 = vmatprep.subr.mxu0 0.0
        %1144 = vmatpush1.msra.mxu0 0.0
        %1145 = vmatprep.subr.mxu0 0.0
        %1146 = vmatpush1.msra.mxu0 0.0
        %1147 = vmatprep.subr.mxu0 0.0
        %1148 = vmatpush1.msra.mxu0 0.0
        %1149 = vmatprep.subr.mxu0 0.0
        %1150 = vmatpush1.msra.mxu0 0.0
        %1151 = vmatprep.subr.mxu0 0.0
        %1152 = vmatpush1.msra.mxu0 0.0
        %1153 = vmatprep.subr.mxu0 0.0
        %1154 = vmatpush1.msra.mxu0 0.0
        %1155 = vmatprep.subr.mxu0 0.0
        %1156 = vmatpush1.msra.mxu0 0.0
        %1157 = vmatprep.subr.mxu0 0.0
        %1158 = vmatpush1.msra.mxu0 0.0
        %1159 = vmatprep.subr.mxu0 0.0
        %1160 = vmatpush1.msra.mxu0 0.0
        %1161 = vmatprep.subr.mxu0 0.0
        %1162 = vmatpush1.msra.mxu0 0.0
        %1163 = vmatprep.subr.mxu0 0.0
        %1164 = vmatpush1.msra.mxu0 0.0
        %1165 = vmatprep.subr.mxu0 0.0
        %1166 = vmatpush1.msra.mxu0 0.0
        %1167 = vmatprep.subr.mxu0 0.0
        %1168 = vmatpush1.msra.mxu0 0.0
        %1169 = vmatprep.subr.mxu0 0.0
        %1170 = vmatpush1.msra.mxu0 0.0
        %1171 = vmatprep.subr.mxu0 0.0
        %1172 = vmatpush1.msra.mxu0 0.0
        %1173 = vmatprep.subr.mxu0 0.0
        %1174 = vmatpush1.msra.mxu0 0.0
        %1175 = vmatprep.subr.mxu0 0.0
        %1176 = vmatpush1.msra.mxu0 0.0
        %1177 = vmatprep.subr.mxu0 0.0
        %1178 = vmatpush1.msra.mxu0 0.0
        %1179 = vmatprep.subr.mxu0 0.0
        %1180 = vmatpush1.msra.mxu0 0.0
        %1181 = vmatprep.subr.mxu0 0.0
        %1182 = vmatpush1.msra.mxu0 0.0
        %1183 = vmatprep.subr.mxu0 0.0
        %1184 = vmatpush1.msra.mxu0 0.0
        %1185 = vmatprep.subr.mxu0 0.0
        %1186 = vmatpush1.msra.mxu0 0.0
        %1187 = vmatprep.subr.mxu0 0.0
        %1188 = vmatpush1.msra.mxu0 0.0
        %1189 = vmatprep.subr.mxu0 0.0
        %1190 = vmatpush1.msra.mxu0 0.0
        %1191 = vmatprep.subr.mxu0 0.0
        %1192 = vmatpush1.msra.mxu0 0.0
        %1193 = vmatprep.subr.mxu0 0.0
        %1194 = vmatpush1.msra.mxu0 0.0
        %1195 = vmatprep.subr.mxu0 0.0
        %1196 = vmatpush1.msra.mxu0 0.0
        %1197 = vmatprep.subr.mxu0 0.0
        %1198 = vmatpush1.msra.mxu0 0.0
        %1199 = vmatprep.subr.mxu0 0.0
        %1200 = vmatpush1.msra.mxu0 0.0
        %1201 = vmatprep.subr.mxu0 0.0
        %1202 = vmatpush1.msra.mxu0 0.0
        %1203 = vmatprep.subr.mxu0 0.0
        %1204 = vmatpush1.msra.mxu0 0.0
        %1205 = vmatprep.mubr.f32.mxu0 0.0
        %1206 = vmatmul.mubr.f32.gmra.mrb[0].mxu0 %v1074
        %v1207 = vpop.f32.mrb[0].mxu0
        %v1208 = vadd.f32 %v916, %v1207
        %v1209 = vpop.f32.mrb[0].mxu0
        %1210 = vmatprep.mubr.f32.mxu0 0.0
        %1211 = vmatmul.mubr.f32.gmra.mrb[0].mxu0 %v1076
        %v1212 = vpop.f32.mrb[0].mxu0
        %v1213 = vadd.f32 %v921, %v1212
        %v1214 = vpop.f32.mrb[0].mxu0
        %1215 = vmatprep.mubr.f32.mxu0 0.0
        %1216 = vmatmul.mubr.f32.gmra.mrb[0].mxu0 %v1078
        %v1217 = vpop.f32.mrb[0].mxu0
        %v1218 = vadd.f32 %v926, %v1217
        %v1219 = vpop.f32.mrb[0].mxu0
        %1220 = vmatprep.mubr.f32.mxu0 0.0
        %1221 = vmatmul.mubr.f32.gmra.mrb[0].mxu0 %v1080
        %v1222 = vpop.f32.mrb[0].mxu0
        %v1223 = vadd.f32 %v931, %v1222
        %v1224 = vpop.f32.mrb[0].mxu0
        %1225 = vmatprep.mubr.f32.mxu0 0.0
        %1226 = vmatmul.mubr.f32.gmra.mrb[0].mxu0 %v1082
        %v1227 = vpop.f32.mrb[0].mxu0
        %v1228 = vadd.f32 %v936, %v1227
        %v1229 = vpop.f32.mrb[0].mxu0
        %1230 = vmatprep.mubr.f32.mxu0 0.0
        %1231 = vmatmul.mubr.f32.gmra.mrb[0].mxu0 %v1084
        %v1232 = vpop.f32.mrb[0].mxu0
        %v1233 = vadd.f32 %v941, %v1232
        %v1234 = vpop.f32.mrb[0].mxu0
        %1235 = vmatprep.mubr.f32.mxu0 0.0
        %1236 = vmatmul.mubr.f32.gmra.mrb[0].mxu0 %v1086
        %v1237 = vpop.f32.mrb[0].mxu0
        %v1238 = vadd.f32 %v946, %v1237
        %v1239 = vpop.f32.mrb[0].mxu0
        %1240 = vmatprep.mubr.f32.mxu0 0.0
        %1241 = vmatmul.mubr.f32.gmra.mrb[0].mxu0 %v1088
        %v1242 = vpop.f32.mrb[0].mxu0
        %v1243 = vadd.f32 %v951, %v1242
        %v1244 = vpop.f32.mrb[0].mxu0
        %1245 = vmatprep.mubr.f32.mxu0 0.0
        %1246 = vmatmul.mubr.f32.gmra.mrb[0].mxu0 %v1090
        %v1247 = vpop.f32.mrb[0].mxu0
        %v1248 = vadd.f32 %v956, %v1247
        %v1249 = vpop.f32.mrb[0].mxu0
        %1250 = vmatprep.mubr.f32.mxu0 0.0
        %1251 = vmatmul.mubr.f32.gmra.mrb[0].mxu0 %v1092
        %v1252 = vpop.f32.mrb[0].mxu0
        %v1253 = vadd.f32 %v961, %v1252
        %v1254 = vpop.f32.mrb[0].mxu0
        %1255 = vmatprep.mubr.f32.mxu0 0.0
        %1256 = vmatmul.mubr.f32.gmra.mrb[0].mxu0 %v1094
        %v1257 = vpop.f32.mrb[0].mxu0
        %v1258 = vadd.f32 %v966, %v1257
        %v1259 = vpop.f32.mrb[0].mxu0
        %1260 = vmatprep.mubr.f32.mxu0 0.0
        %1261 = vmatmul.mubr.f32.gmra.mrb[0].mxu0 %v1096
        %v1262 = vpop.f32.mrb[0].mxu0
        %v1263 = vadd.f32 %v971, %v1262
        %v1264 = vpop.f32.mrb[0].mxu0
        %1265 = vmatprep.mubr.f32.mxu0 0.0
        %1266 = vmatmul.mubr.f32.gmra.mrb[0].mxu0 %v1098
        %v1267 = vpop.f32.mrb[0].mxu0
        %v1268 = vadd.f32 %v976, %v1267
        %v1269 = vpop.f32.mrb[0].mxu0
        %1270 = vmatprep.mubr.f32.mxu0 0.0
        %1271 = vmatmul.mubr.f32.gmra.mrb[0].mxu0 %v1100
        %v1272 = vpop.f32.mrb[0].mxu0
        %v1273 = vadd.f32 %v981, %v1272
        %v1274 = vpop.f32.mrb[0].mxu0
        %1275 = vmatprep.mubr.f32.mxu0 0.0
        %1276 = vmatmul.mubr.f32.gmra.mrb[0].mxu0 %v1102
        %v1277 = vpop.f32.mrb[0].mxu0
        %v1278 = vadd.f32 %v986, %v1277
        %v1279 = vpop.f32.mrb[0].mxu0
        %1280 = vmatprep.mubr.f32.mxu0 0.0
        %1281 = vmatmul.mubr.f32.gmra.mrb[0].mxu0 %v1104
        %v1282 = vpop.f32.mrb[0].mxu0
        %v1283 = vadd.f32 %v991, %v1282
        %v1284 = vpop.f32.mrb[0].mxu0
        %1285 = vmatprep.mubr.f32.mxu0 0.0
        %1286 = vmatmul.mubr.f32.gmra.mrb[0].mxu0 %v1106
        %v1287 = vpop.f32.mrb[0].mxu0
        %v1288 = vadd.f32 %v996, %v1287
        %v1289 = vpop.f32.mrb[0].mxu0
        %1290 = vmatprep.mubr.f32.mxu0 0.0
        %1291 = vmatmul.mubr.f32.gmra.mrb[0].mxu0 %v1108
        %v1292 = vpop.f32.mrb[0].mxu0
        %v1293 = vadd.f32 %v1001, %v1292
        %v1294 = vpop.f32.mrb[0].mxu0
        %1295 = vmatprep.mubr.f32.mxu0 0.0
        %1296 = vmatmul.mubr.f32.gmra.mrb[0].mxu0 %v1110
        %v1297 = vpop.f32.mrb[0].mxu0
        %v1298 = vadd.f32 %v1006, %v1297
        %v1299 = vpop.f32.mrb[0].mxu0
        %1300 = vmatprep.mubr.f32.mxu0 0.0
        %1301 = vmatmul.mubr.f32.gmra.mrb[0].mxu0 %v1112
        %v1302 = vpop.f32.mrb[0].mxu0
        %v1303 = vadd.f32 %v1011, %v1302
        %v1304 = vpop.f32.mrb[0].mxu0
        %1305 = vmatprep.mubr.f32.mxu0 0.0
        %1306 = vmatmul.mubr.f32.gmra.mrb[0].mxu0 %v1114
        %v1307 = vpop.f32.mrb[0].mxu0
        %v1308 = vadd.f32 %v1016, %v1307
        %v1309 = vpop.f32.mrb[0].mxu0
        %1310 = vmatprep.mubr.f32.mxu0 0.0
        %1311 = vmatmul.mubr.f32.gmra.mrb[0].mxu0 %v1116
        %v1312 = vpop.f32.mrb[0].mxu0
        %v1313 = vadd.f32 %v1021, %v1312
        %v1314 = vpop.f32.mrb[0].mxu0
        %1315 = vmatprep.mubr.f32.mxu0 0.0
        %1316 = vmatmul.mubr.f32.gmra.mrb[0].mxu0 %v1118
        %v1317 = vpop.f32.mrb[0].mxu0
        %v1318 = vadd.f32 %v1026, %v1317
        %v1319 = vpop.f32.mrb[0].mxu0
        %1320 = vmatprep.mubr.f32.mxu0 0.0
        %1321 = vmatmul.mubr.f32.gmra.mrb[0].mxu0 %v1120
        %v1322 = vpop.f32.mrb[0].mxu0
        %v1323 = vadd.f32 %v1031, %v1322
        %v1324 = vpop.f32.mrb[0].mxu0
        %1325 = vmatprep.mubr.f32.mxu0 0.0
        %1326 = vmatmul.mubr.f32.gmra.mrb[0].mxu0 %v1122
        %v1327 = vpop.f32.mrb[0].mxu0
        %v1328 = vadd.f32 %v1036, %v1327
        %v1329 = vpop.f32.mrb[0].mxu0
        %1330 = vmatprep.mubr.f32.mxu0 0.0
        %1331 = vmatmul.mubr.f32.gmra.mrb[0].mxu0 %v1124
        %v1332 = vpop.f32.mrb[0].mxu0
        %v1333 = vadd.f32 %v1041, %v1332
        %v1334 = vpop.f32.mrb[0].mxu0
        %1335 = vmatprep.mubr.f32.mxu0 0.0
        %1336 = vmatmul.mubr.f32.gmra.mrb[0].mxu0 %v1126
        %v1337 = vpop.f32.mrb[0].mxu0
        %v1338 = vadd.f32 %v1046, %v1337
        %v1339 = vpop.f32.mrb[0].mxu0
        %1340 = vmatprep.mubr.f32.mxu0 0.0
        %1341 = vmatmul.mubr.f32.gmra.mrb[0].mxu0 %v1128
        %v1342 = vpop.f32.mrb[0].mxu0
        %v1343 = vadd.f32 %v1051, %v1342
        %v1344 = vpop.f32.mrb[0].mxu0
        %1345 = vmatprep.mubr.f32.mxu0 0.0
        %1346 = vmatmul.mubr.f32.gmra.mrb[0].mxu0 %v1130
        %v1347 = vpop.f32.mrb[0].mxu0
        %v1348 = vadd.f32 %v1056, %v1347
        %v1349 = vpop.f32.mrb[0].mxu0
        %1350 = vmatprep.mubr.f32.mxu0 0.0
        %1351 = vmatmul.mubr.f32.gmra.mrb[0].mxu0 %v1132
        %v1352 = vpop.f32.mrb[0].mxu0
        %v1353 = vadd.f32 %v1061, %v1352
        %v1354 = vpop.f32.mrb[0].mxu0
        %1355 = vmatprep.mubr.f32.mxu0 0.0
        %1356 = vmatmul.mubr.f32.gmra.mrb[0].mxu0 %v1134
        %v1357 = vpop.f32.mrb[0].mxu0
        %v1358 = vadd.f32 %v1066, %v1357
        %v1359 = vpop.f32.mrb[0].mxu0
        %1360 = vmatprep.mubr.f32.mxu0 0.0
        %1361 = vmatmul.mubr.f32.gmra.mrb[0].mxu0 %v1136
        %v1362 = vpop.f32.mrb[0].mxu0
        %v1363 = vadd.f32 %v1071, %v1362
        %v1364 = vpop.f32.mrb[0].mxu0
        %1365 = vdwg.mxu0
        %vm1382 = vcmask 1046528
        %v1383 = vrot.slane %v578, 1
        %v1384 = vrot.slane %v579, 1
        %v1385 = vsel %vm1382, %v1383, %v1384
        %v1386 = vrot.slane %v580, 1
        %v1387 = vsel %vm1382, %v1384, %v1386
        %v1388 = vrot.slane %v582, 1
        %v1389 = vrot.slane %v583, 1
        %v1390 = vsel %vm1382, %v1388, %v1389
        %v1391 = vrot.slane %v584, 1
        %v1392 = vsel %vm1382, %v1389, %v1391
        %v1393 = vrot.slane %v586, 1
        %v1394 = vrot.slane %v587, 1
        %v1395 = vsel %vm1382, %v1393, %v1394
        %v1396 = vrot.slane %v588, 1
        %v1397 = vsel %vm1382, %v1394, %v1396
        %v1398 = vrot.slane %v590, 1
        %v1399 = vrot.slane %v591, 1
        %v1400 = vsel %vm1382, %v1398, %v1399
        %v1401 = vrot.slane %v592, 1
        %v1402 = vsel %vm1382, %v1399, %v1401
        %v1403 = vrot.slane %v594, 1
        %v1404 = vrot.slane %v595, 1
        %v1405 = vsel %vm1382, %v1403, %v1404
        %v1406 = vrot.slane %v596, 1
        %v1407 = vsel %vm1382, %v1404, %v1406
        %v1408 = vrot.slane %v598, 1
        %v1409 = vrot.slane %v599, 1
        %v1410 = vsel %vm1382, %v1408, %v1409
        %v1411 = vrot.slane %v600, 1
        %v1412 = vsel %vm1382, %v1409, %v1411
        %v1413 = vrot.slane %v602, 1
        %v1414 = vrot.slane %v603, 1
        %v1415 = vsel %vm1382, %v1413, %v1414
        %v1416 = vrot.slane %v604, 1
        %v1417 = vsel %vm1382, %v1414, %v1416
        %v1418 = vrot.slane %v606, 1
        %v1419 = vrot.slane %v607, 1
        %v1420 = vsel %vm1382, %v1418, %v1419
        %v1421 = vrot.slane %v608, 1
        %v1422 = vsel %vm1382, %v1419, %v1421
        %v1423 = vrot.slane %v610, 1
        %v1424 = vrot.slane %v611, 1
        %v1425 = vsel %vm1382, %v1423, %v1424
        %v1426 = vrot.slane %v612, 1
        %v1427 = vsel %vm1382, %v1424, %v1426
        %v1428 = vrot.slane %v614, 1
        %v1429 = vrot.slane %v615, 1
        %v1430 = vsel %vm1382, %v1428, %v1429
        %v1431 = vrot.slane %v616, 1
        %v1432 = vsel %vm1382, %v1429, %v1431
        %v1433 = vrot.slane %v618, 1
        %v1434 = vrot.slane %v619, 1
        %v1435 = vsel %vm1382, %v1433, %v1434
        %v1436 = vrot.slane %v620, 1
        %v1437 = vsel %vm1382, %v1434, %v1436
        %v1438 = vrot.slane %v622, 1
        %v1439 = vrot.slane %v623, 1
        %v1440 = vsel %vm1382, %v1438, %v1439
        %v1441 = vrot.slane %v624, 1
        %v1442 = vsel %vm1382, %v1439, %v1441
        %v1443 = vrot.slane %v626, 1
        %v1444 = vrot.slane %v627, 1
        %v1445 = vsel %vm1382, %v1443, %v1444
        %v1446 = vrot.slane %v628, 1
        %v1447 = vsel %vm1382, %v1444, %v1446
        %v1448 = vrot.slane %v630, 1
        %v1449 = vrot.slane %v631, 1
        %v1450 = vsel %vm1382, %v1448, %v1449
        %v1451 = vrot.slane %v632, 1
        %v1452 = vsel %vm1382, %v1449, %v1451
        %v1453 = vrot.slane %v634, 1
        %v1454 = vrot.slane %v635, 1
        %v1455 = vsel %vm1382, %v1453, %v1454
        %v1456 = vrot.slane %v636, 1
        %v1457 = vsel %vm1382, %v1454, %v1456
        %v1458 = vrot.slane %v638, 1
        %v1459 = vrot.slane %v639, 1
        %v1460 = vsel %vm1382, %v1458, %v1459
        %v1461 = vrot.slane %v640, 1
        %v1462 = vsel %vm1382, %v1459, %v1461
        %s1463 = scalar_lea.vmem %s1, 8
        %v1464 = vld [vmem:[%s1463] sm:$0xf]
        %v1465 = vsel %vm356, %v1385, 0
        %v1467 = vsel %vm356, %v1387, 0
        %v1469 = vsel %vm356, %v1390, 0
        %v1471 = vsel %vm356, %v1392, 0
        %v1473 = vsel %vm356, %v1395, 0
        %v1475 = vsel %vm356, %v1397, 0
        %v1477 = vsel %vm356, %v1400, 0
        %v1479 = vsel %vm356, %v1402, 0
        %v1481 = vsel %vm356, %v1405, 0
        %v1483 = vsel %vm356, %v1407, 0
        %v1485 = vsel %vm356, %v1410, 0
        %v1487 = vsel %vm356, %v1412, 0
        %v1489 = vsel %vm356, %v1415, 0
        %v1491 = vsel %vm356, %v1417, 0
        %v1493 = vsel %vm356, %v1420, 0
        %v1495 = vsel %vm356, %v1422, 0
        %v1497 = vsel %vm356, %v1425, 0
        %v1499 = vsel %vm356, %v1427, 0
        %v1501 = vsel %vm356, %v1430, 0
        %v1503 = vsel %vm356, %v1432, 0
        %v1505 = vsel %vm356, %v1435, 0
        %v1507 = vsel %vm356, %v1437, 0
        %v1509 = vsel %vm356, %v1440, 0
        %v1511 = vsel %vm356, %v1442, 0
        %v1513 = vsel %vm356, %v1445, 0
        %v1515 = vsel %vm356, %v1447, 0
        %v1517 = vsel %vm356, %v1450, 0
        %v1519 = vsel %vm356, %v1452, 0
        %v1521 = vsel %vm356, %v1455, 0
        %v1523 = vsel %vm356, %v1457, 0
        %v1525 = vsel %vm356, %v1460, 0
        %v1527 = vsel %vm356, %v1462, 0
        %v1530 = vsel %vm845, %v1464, 0
        %1532 = vmatprep.subr.mxu0 0.0
        %1533 = vmatpush1.msra.mxu0 %v1530
        %1534 = vmatprep.subr.mxu0 0.0
        %1535 = vmatpush1.msra.mxu0 0.0
        %1536 = vmatprep.subr.mxu0 0.0
        %1537 = vmatpush1.msra.mxu0 0.0
        %1538 = vmatprep.subr.mxu0 0.0
        %1539 = vmatpush1.msra.mxu0 0.0
        %1540 = vmatprep.subr.mxu0 0.0
        %1541 = vmatpush1.msra.mxu0 0.0
        %1542 = vmatprep.subr.mxu0 0.0
        %1543 = vmatpush1.msra.mxu0 0.0
        %1544 = vmatprep.subr.mxu0 0.0
        %1545 = vmatpush1.msra.mxu0 0.0
        %1546 = vmatprep.subr.mxu0 0.0
        %1547 = vmatpush1.msra.mxu0 0.0
        %1548 = vmatprep.subr.mxu0 0.0
        %1549 = vmatpush1.msra.mxu0 0.0
        %1550 = vmatprep.subr.mxu0 0.0
        %1551 = vmatpush1.msra.mxu0 0.0
        %1552 = vmatprep.subr.mxu0 0.0
        %1553 = vmatpush1.msra.mxu0 0.0
        %1554 = vmatprep.subr.mxu0 0.0
        %1555 = vmatpush1.msra.mxu0 0.0
        %1556 = vmatprep.subr.mxu0 0.0
        %1557 = vmatpush1.msra.mxu0 0.0
        %1558 = vmatprep.subr.mxu0 0.0
        %1559 = vmatpush1.msra.mxu0 0.0
        %1560 = vmatprep.subr.mxu0 0.0
        %1561 = vmatpush1.msra.mxu0 0.0
        %1562 = vmatprep.subr.mxu0 0.0
        %1563 = vmatpush1.msra.mxu0 0.0
        %1564 = vmatprep.subr.mxu0 0.0
        %1565 = vmatpush1.msra.mxu0 0.0
        %1566 = vmatprep.subr.mxu0 0.0
        %1567 = vmatpush1.msra.mxu0 0.0
        %1568 = vmatprep.subr.mxu0 0.0
        %1569 = vmatpush1.msra.mxu0 0.0
        %1570 = vmatprep.subr.mxu0 0.0
        %1571 = vmatpush1.msra.mxu0 0.0
        %1572 = vmatprep.subr.mxu0 0.0
        %1573 = vmatpush1.msra.mxu0 0.0
        %1574 = vmatprep.subr.mxu0 0.0
        %1575 = vmatpush1.msra.mxu0 0.0
        %1576 = vmatprep.subr.mxu0 0.0
        %1577 = vmatpush1.msra.mxu0 0.0
        %1578 = vmatprep.subr.mxu0 0.0
        %1579 = vmatpush1.msra.mxu0 0.0
        %1580 = vmatprep.subr.mxu0 0.0
        %1581 = vmatpush1.msra.mxu0 0.0
        %1582 = vmatprep.subr.mxu0 0.0
        %1583 = vmatpush1.msra.mxu0 0.0
        %1584 = vmatprep.subr.mxu0 0.0
        %1585 = vmatpush1.msra.mxu0 0.0
        %1586 = vmatprep.subr.mxu0 0.0
        %1587 = vmatpush1.msra.mxu0 0.0
        %1588 = vmatprep.subr.mxu0 0.0
        %1589 = vmatpush1.msra.mxu0 0.0
        %1590 = vmatprep.subr.mxu0 0.0
        %1591 = vmatpush1.msra.mxu0 0.0
        %1592 = vmatprep.subr.mxu0 0.0
        %1593 = vmatpush1.msra.mxu0 0.0
        %1594 = vmatprep.subr.mxu0 0.0
        %1595 = vmatpush1.msra.mxu0 0.0
        %1596 = vmatprep.mubr.f32.mxu0 0.0
        %1597 = vmatmul.mubr.f32.gmra.mrb[0].mxu0 %v1465
        %v1598 = vpop.f32.mrb[0].mxu0
        %v1599 = vadd.f32 0.0, %v1598
        %v1600 = vpop.f32.mrb[0].mxu0
        %1601 = vmatprep.mubr.f32.mxu0 0.0
        %1602 = vmatmul.mubr.f32.gmra.mrb[0].mxu0 %v1467
        %v1603 = vpop.f32.mrb[0].mxu0
        %v1604 = vadd.f32 0.0, %v1603
        %v1605 = vpop.f32.mrb[0].mxu0
        %1606 = vmatprep.mubr.f32.mxu0 0.0
        %1607 = vmatmul.mubr.f32.gmra.mrb[0].mxu0 %v1469
        %v1608 = vpop.f32.mrb[0].mxu0
        %v1609 = vadd.f32 0.0, %v1608
        %v1610 = vpop.f32.mrb[0].mxu0
        %1611 = vmatprep.mubr.f32.mxu0 0.0
        %1612 = vmatmul.mubr.f32.gmra.mrb[0].mxu0 %v1471
        %v1613 = vpop.f32.mrb[0].mxu0
        %v1614 = vadd.f32 0.0, %v1613
        %v1615 = vpop.f32.mrb[0].mxu0
        %1616 = vmatprep.mubr.f32.mxu0 0.0
        %1617 = vmatmul.mubr.f32.gmra.mrb[0].mxu0 %v1473
        %v1618 = vpop.f32.mrb[0].mxu0
        %v1619 = vadd.f32 0.0, %v1618
        %v1620 = vpop.f32.mrb[0].mxu0
        %1621 = vmatprep.mubr.f32.mxu0 0.0
        %1622 = vmatmul.mubr.f32.gmra.mrb[0].mxu0 %v1475
        %v1623 = vpop.f32.mrb[0].mxu0
        %v1624 = vadd.f32 0.0, %v1623
        %v1625 = vpop.f32.mrb[0].mxu0
        %1626 = vmatprep.mubr.f32.mxu0 0.0
        %1627 = vmatmul.mubr.f32.gmra.mrb[0].mxu0 %v1477
        %v1628 = vpop.f32.mrb[0].mxu0
        %v1629 = vadd.f32 0.0, %v1628
        %v1630 = vpop.f32.mrb[0].mxu0
        %1631 = vmatprep.mubr.f32.mxu0 0.0
        %1632 = vmatmul.mubr.f32.gmra.mrb[0].mxu0 %v1479
        %v1633 = vpop.f32.mrb[0].mxu0
        %v1634 = vadd.f32 0.0, %v1633
        %v1635 = vpop.f32.mrb[0].mxu0
        %1636 = vmatprep.mubr.f32.mxu0 0.0
        %1637 = vmatmul.mubr.f32.gmra.mrb[0].mxu0 %v1481
        %v1638 = vpop.f32.mrb[0].mxu0
        %v1639 = vadd.f32 0.0, %v1638
        %v1640 = vpop.f32.mrb[0].mxu0
        %1641 = vmatprep.mubr.f32.mxu0 0.0
        %1642 = vmatmul.mubr.f32.gmra.mrb[0].mxu0 %v1483
        %v1643 = vpop.f32.mrb[0].mxu0
        %v1644 = vadd.f32 0.0, %v1643
        %v1645 = vpop.f32.mrb[0].mxu0
        %1646 = vmatprep.mubr.f32.mxu0 0.0
        %1647 = vmatmul.mubr.f32.gmra.mrb[0].mxu0 %v1485
        %v1648 = vpop.f32.mrb[0].mxu0
        %v1649 = vadd.f32 0.0, %v1648
        %v1650 = vpop.f32.mrb[0].mxu0
        %1651 = vmatprep.mubr.f32.mxu0 0.0
        %1652 = vmatmul.mubr.f32.gmra.mrb[0].mxu0 %v1487
        %v1653 = vpop.f32.mrb[0].mxu0
        %v1654 = vadd.f32 0.0, %v1653
        %v1655 = vpop.f32.mrb[0].mxu0
        %1656 = vmatprep.mubr.f32.mxu0 0.0
        %1657 = vmatmul.mubr.f32.gmra.mrb[0].mxu0 %v1489
        %v1658 = vpop.f32.mrb[0].mxu0
        %v1659 = vadd.f32 0.0, %v1658
        %v1660 = vpop.f32.mrb[0].mxu0
        %1661 = vmatprep.mubr.f32.mxu0 0.0
        %1662 = vmatmul.mubr.f32.gmra.mrb[0].mxu0 %v1491
        %v1663 = vpop.f32.mrb[0].mxu0
        %v1664 = vadd.f32 0.0, %v1663
        %v1665 = vpop.f32.mrb[0].mxu0
        %1666 = vmatprep.mubr.f32.mxu0 0.0
        %1667 = vmatmul.mubr.f32.gmra.mrb[0].mxu0 %v1493
        %v1668 = vpop.f32.mrb[0].mxu0
        %v1669 = vadd.f32 0.0, %v1668
        %v1670 = vpop.f32.mrb[0].mxu0
        %1671 = vmatprep.mubr.f32.mxu0 0.0
        %1672 = vmatmul.mubr.f32.gmra.mrb[0].mxu0 %v1495
        %v1673 = vpop.f32.mrb[0].mxu0
        %v1674 = vadd.f32 0.0, %v1673
        %v1675 = vpop.f32.mrb[0].mxu0
        %1676 = vmatprep.mubr.f32.mxu0 0.0
        %1677 = vmatmul.mubr.f32.gmra.mrb[0].mxu0 %v1497
        %v1678 = vpop.f32.mrb[0].mxu0
        %v1679 = vadd.f32 0.0, %v1678
        %v1680 = vpop.f32.mrb[0].mxu0
        %1681 = vmatprep.mubr.f32.mxu0 0.0
        %1682 = vmatmul.mubr.f32.gmra.mrb[0].mxu0 %v1499
        %v1683 = vpop.f32.mrb[0].mxu0
        %v1684 = vadd.f32 0.0, %v1683
        %v1685 = vpop.f32.mrb[0].mxu0
        %1686 = vmatprep.mubr.f32.mxu0 0.0
        %1687 = vmatmul.mubr.f32.gmra.mrb[0].mxu0 %v1501
        %v1688 = vpop.f32.mrb[0].mxu0
        %v1689 = vadd.f32 0.0, %v1688
        %v1690 = vpop.f32.mrb[0].mxu0
        %1691 = vmatprep.mubr.f32.mxu0 0.0
        %1692 = vmatmul.mubr.f32.gmra.mrb[0].mxu0 %v1503
        %v1693 = vpop.f32.mrb[0].mxu0
        %v1694 = vadd.f32 0.0, %v1693
        %v1695 = vpop.f32.mrb[0].mxu0
        %1696 = vmatprep.mubr.f32.mxu0 0.0
        %1697 = vmatmul.mubr.f32.gmra.mrb[0].mxu0 %v1505
        %v1698 = vpop.f32.mrb[0].mxu0
        %v1699 = vadd.f32 0.0, %v1698
        %v1700 = vpop.f32.mrb[0].mxu0
        %1701 = vmatprep.mubr.f32.mxu0 0.0
        %1702 = vmatmul.mubr.f32.gmra.mrb[0].mxu0 %v1507
        %v1703 = vpop.f32.mrb[0].mxu0
        %v1704 = vadd.f32 0.0, %v1703
        %v1705 = vpop.f32.mrb[0].mxu0
        %1706 = vmatprep.mubr.f32.mxu0 0.0
        %1707 = vmatmul.mubr.f32.gmra.mrb[0].mxu0 %v1509
        %v1708 = vpop.f32.mrb[0].mxu0
        %v1709 = vadd.f32 0.0, %v1708
        %v1710 = vpop.f32.mrb[0].mxu0
        %1711 = vmatprep.mubr.f32.mxu0 0.0
        %1712 = vmatmul.mubr.f32.gmra.mrb[0].mxu0 %v1511
        %v1713 = vpop.f32.mrb[0].mxu0
        %v1714 = vadd.f32 0.0, %v1713
        %v1715 = vpop.f32.mrb[0].mxu0
        %1716 = vmatprep.mubr.f32.mxu0 0.0
        %1717 = vmatmul.mubr.f32.gmra.mrb[0].mxu0 %v1513
        %v1718 = vpop.f32.mrb[0].mxu0
        %v1719 = vadd.f32 0.0, %v1718
        %v1720 = vpop.f32.mrb[0].mxu0
        %1721 = vmatprep.mubr.f32.mxu0 0.0
        %1722 = vmatmul.mubr.f32.gmra.mrb[0].mxu0 %v1515
        %v1723 = vpop.f32.mrb[0].mxu0
        %v1724 = vadd.f32 0.0, %v1723
        %v1725 = vpop.f32.mrb[0].mxu0
        %1726 = vmatprep.mubr.f32.mxu0 0.0
        %1727 = vmatmul.mubr.f32.gmra.mrb[0].mxu0 %v1517
        %v1728 = vpop.f32.mrb[0].mxu0
        %v1729 = vadd.f32 0.0, %v1728
        %v1730 = vpop.f32.mrb[0].mxu0
        %1731 = vmatprep.mubr.f32.mxu0 0.0
        %1732 = vmatmul.mubr.f32.gmra.mrb[0].mxu0 %v1519
        %v1733 = vpop.f32.mrb[0].mxu0
        %v1734 = vadd.f32 0.0, %v1733
        %v1735 = vpop.f32.mrb[0].mxu0
        %1736 = vmatprep.mubr.f32.mxu0 0.0
        %1737 = vmatmul.mubr.f32.gmra.mrb[0].mxu0 %v1521
        %v1738 = vpop.f32.mrb[0].mxu0
        %v1739 = vadd.f32 0.0, %v1738
        %v1740 = vpop.f32.mrb[0].mxu0
        %1741 = vmatprep.mubr.f32.mxu0 0.0
        %1742 = vmatmul.mubr.f32.gmra.mrb[0].mxu0 %v1523
        %v1743 = vpop.f32.mrb[0].mxu0
        %v1744 = vadd.f32 0.0, %v1743
        %v1745 = vpop.f32.mrb[0].mxu0
        %1746 = vmatprep.mubr.f32.mxu0 0.0
        %1747 = vmatmul.mubr.f32.gmra.mrb[0].mxu0 %v1525
        %v1748 = vpop.f32.mrb[0].mxu0
        %v1749 = vadd.f32 0.0, %v1748
        %v1750 = vpop.f32.mrb[0].mxu0
        %1751 = vmatprep.mubr.f32.mxu0 0.0
        %1752 = vmatmul.mubr.f32.gmra.mrb[0].mxu0 %v1527
        %v1753 = vpop.f32.mrb[0].mxu0
        %v1754 = vadd.f32 0.0, %v1753
        %v1755 = vpop.f32.mrb[0].mxu0
        %1756 = vdwg.mxu0
        %v1757 = vadd.f32 %v1208, %v1599
        %v1758 = vadd.f32 %v1213, %v1604
        %v1759 = vadd.f32 %v1218, %v1609
        %v1760 = vadd.f32 %v1223, %v1614
        %v1761 = vadd.f32 %v1228, %v1619
        %v1762 = vadd.f32 %v1233, %v1624
        %v1763 = vadd.f32 %v1238, %v1629
        %v1764 = vadd.f32 %v1243, %v1634
        %v1765 = vadd.f32 %v1248, %v1639
        %v1766 = vadd.f32 %v1253, %v1644
        %v1767 = vadd.f32 %v1258, %v1649
        %v1768 = vadd.f32 %v1263, %v1654
        %v1769 = vadd.f32 %v1268, %v1659
        %v1770 = vadd.f32 %v1273, %v1664
        %v1771 = vadd.f32 %v1278, %v1669
        %v1772 = vadd.f32 %v1283, %v1674
        %v1773 = vadd.f32 %v1288, %v1679
        %v1774 = vadd.f32 %v1293, %v1684
        %v1775 = vadd.f32 %v1298, %v1689
        %v1776 = vadd.f32 %v1303, %v1694
        %v1777 = vadd.f32 %v1308, %v1699
        %v1778 = vadd.f32 %v1313, %v1704
        %v1779 = vadd.f32 %v1318, %v1709
        %v1780 = vadd.f32 %v1323, %v1714
        %v1781 = vadd.f32 %v1328, %v1719
        %v1782 = vadd.f32 %v1333, %v1724
        %v1783 = vadd.f32 %v1338, %v1729
        %v1784 = vadd.f32 %v1343, %v1734
        %v1785 = vadd.f32 %v1348, %v1739
        %v1786 = vadd.f32 %v1353, %v1744
        %v1787 = vadd.f32 %v1358, %v1749
        %v1788 = vadd.f32 %v1363, %v1754
        %v1792 = vrot.slane %v641, 7
        %v1793 = vrot.slane %v642, 7
        %v1794 = vsel %vm697, %v1792, %v1793
        %v1795 = vrot.slane %v643, 7
        %v1796 = vsel %vm697, %v1793, %v1795
        %s1797 = scalar_lea.vmem %s1, 12
        %v1798 = vld [vmem:[%s1797] sm:$0xf]
        %v1799 = vsel %vm356, %v1794, 0
        %v1801 = vsel %vm356, %v1796, 0
        %v1804 = vsel %vm845, %v1798, 0
        %1806 = vmatprep.subr.mxu0 0.0
        %1807 = vmatpush1.msra.mxu0 %v1804
        %1808 = vmatprep.subr.mxu0 0.0
        %1809 = vmatpush1.msra.mxu0 0.0
        %1810 = vmatprep.subr.mxu0 0.0
        %1811 = vmatpush1.msra.mxu0 0.0
        %1812 = vmatprep.subr.mxu0 0.0
        %1813 = vmatpush1.msra.mxu0 0.0
        %1814 = vmatprep.subr.mxu0 0.0
        %1815 = vmatpush1.msra.mxu0 0.0
        %1816 = vmatprep.subr.mxu0 0.0
        %1817 = vmatpush1.msra.mxu0 0.0
        %1818 = vmatprep.subr.mxu0 0.0
        %1819 = vmatpush1.msra.mxu0 0.0
        %1820 = vmatprep.subr.mxu0 0.0
        %1821 = vmatpush1.msra.mxu0 0.0
        %1822 = vmatprep.subr.mxu0 0.0
        %1823 = vmatpush1.msra.mxu0 0.0
        %1824 = vmatprep.subr.mxu0 0.0
        %1825 = vmatpush1.msra.mxu0 0.0
        %1826 = vmatprep.subr.mxu0 0.0
        %1827 = vmatpush1.msra.mxu0 0.0
        %1828 = vmatprep.subr.mxu0 0.0
        %1829 = vmatpush1.msra.mxu0 0.0
        %1830 = vmatprep.subr.mxu0 0.0
        %1831 = vmatpush1.msra.mxu0 0.0
        %1832 = vmatprep.subr.mxu0 0.0
        %1833 = vmatpush1.msra.mxu0 0.0
        %1834 = vmatprep.subr.mxu0 0.0
        %1835 = vmatpush1.msra.mxu0 0.0
        %1836 = vmatprep.subr.mxu0 0.0
        %1837 = vmatpush1.msra.mxu0 0.0
        %1838 = vmatprep.subr.mxu0 0.0
        %1839 = vmatpush1.msra.mxu0 0.0
        %1840 = vmatprep.subr.mxu0 0.0
        %1841 = vmatpush1.msra.mxu0 0.0
        %1842 = vmatprep.subr.mxu0 0.0
        %1843 = vmatpush1.msra.mxu0 0.0
        %1844 = vmatprep.subr.mxu0 0.0
        %1845 = vmatpush1.msra.mxu0 0.0
        %1846 = vmatprep.subr.mxu0 0.0
        %1847 = vmatpush1.msra.mxu0 0.0
        %1848 = vmatprep.subr.mxu0 0.0
        %1849 = vmatpush1.msra.mxu0 0.0
        %1850 = vmatprep.subr.mxu0 0.0
        %1851 = vmatpush1.msra.mxu0 0.0
        %1852 = vmatprep.subr.mxu0 0.0
        %1853 = vmatpush1.msra.mxu0 0.0
        %1854 = vmatprep.subr.mxu0 0.0
        %1855 = vmatpush1.msra.mxu0 0.0
        %1856 = vmatprep.subr.mxu0 0.0
        %1857 = vmatpush1.msra.mxu0 0.0
        %1858 = vmatprep.subr.mxu0 0.0
        %1859 = vmatpush1.msra.mxu0 0.0
        %1860 = vmatprep.subr.mxu0 0.0
        %1861 = vmatpush1.msra.mxu0 0.0
        %1862 = vmatprep.subr.mxu0 0.0
        %1863 = vmatpush1.msra.mxu0 0.0
        %1864 = vmatprep.subr.mxu0 0.0
        %1865 = vmatpush1.msra.mxu0 0.0
        %1866 = vmatprep.subr.mxu0 0.0
        %1867 = vmatpush1.msra.mxu0 0.0
        %1868 = vmatprep.subr.mxu0 0.0
        %1869 = vmatpush1.msra.mxu0 0.0
        %1870 = vmatprep.mubr.f32.mxu0 0.0
        %1871 = vmatmul.mubr.f32.gmra.mrb[0].mxu0 %v1078
        %v1872 = vpop.f32.mrb[0].mxu0
        %v1873 = vadd.f32 0.0, %v1872
        %v1874 = vpop.f32.mrb[0].mxu0
        %1875 = vmatprep.mubr.f32.mxu0 0.0
        %1876 = vmatmul.mubr.f32.gmra.mrb[0].mxu0 %v1080
        %v1877 = vpop.f32.mrb[0].mxu0
        %v1878 = vadd.f32 0.0, %v1877
        %v1879 = vpop.f32.mrb[0].mxu0
        %1880 = vmatprep.mubr.f32.mxu0 0.0
        %1881 = vmatmul.mubr.f32.gmra.mrb[0].mxu0 %v1082
        %v1882 = vpop.f32.mrb[0].mxu0
        %v1883 = vadd.f32 0.0, %v1882
        %v1884 = vpop.f32.mrb[0].mxu0
        %1885 = vmatprep.mubr.f32.mxu0 0.0
        %1886 = vmatmul.mubr.f32.gmra.mrb[0].mxu0 %v1084
        %v1887 = vpop.f32.mrb[0].mxu0
        %v1888 = vadd.f32 0.0, %v1887
        %v1889 = vpop.f32.mrb[0].mxu0
        %1890 = vmatprep.mubr.f32.mxu0 0.0
        %1891 = vmatmul.mubr.f32.gmra.mrb[0].mxu0 %v1086
        %v1892 = vpop.f32.mrb[0].mxu0
        %v1893 = vadd.f32 0.0, %v1892
        %v1894 = vpop.f32.mrb[0].mxu0
        %1895 = vmatprep.mubr.f32.mxu0 0.0
        %1896 = vmatmul.mubr.f32.gmra.mrb[0].mxu0 %v1088
        %v1897 = vpop.f32.mrb[0].mxu0
        %v1898 = vadd.f32 0.0, %v1897
        %v1899 = vpop.f32.mrb[0].mxu0
        %1900 = vmatprep.mubr.f32.mxu0 0.0
        %1901 = vmatmul.mubr.f32.gmra.mrb[0].mxu0 %v1090
        %v1902 = vpop.f32.mrb[0].mxu0
        %v1903 = vadd.f32 0.0, %v1902
        %v1904 = vpop.f32.mrb[0].mxu0
        %1905 = vmatprep.mubr.f32.mxu0 0.0
        %1906 = vmatmul.mubr.f32.gmra.mrb[0].mxu0 %v1092
        %v1907 = vpop.f32.mrb[0].mxu0
        %v1908 = vadd.f32 0.0, %v1907
        %v1909 = vpop.f32.mrb[0].mxu0
        %1910 = vmatprep.mubr.f32.mxu0 0.0
        %1911 = vmatmul.mubr.f32.gmra.mrb[0].mxu0 %v1094
        %v1912 = vpop.f32.mrb[0].mxu0
        %v1913 = vadd.f32 0.0, %v1912
        %v1914 = vpop.f32.mrb[0].mxu0
        %1915 = vmatprep.mubr.f32.mxu0 0.0
        %1916 = vmatmul.mubr.f32.gmra.mrb[0].mxu0 %v1096
        %v1917 = vpop.f32.mrb[0].mxu0
        %v1918 = vadd.f32 0.0, %v1917
        %v1919 = vpop.f32.mrb[0].mxu0
        %1920 = vmatprep.mubr.f32.mxu0 0.0
        %1921 = vmatmul.mubr.f32.gmra.mrb[0].mxu0 %v1098
        %v1922 = vpop.f32.mrb[0].mxu0
        %v1923 = vadd.f32 0.0, %v1922
        %v1924 = vpop.f32.mrb[0].mxu0
        %1925 = vmatprep.mubr.f32.mxu0 0.0
        %1926 = vmatmul.mubr.f32.gmra.mrb[0].mxu0 %v1100
        %v1927 = vpop.f32.mrb[0].mxu0
        %v1928 = vadd.f32 0.0, %v1927
        %v1929 = vpop.f32.mrb[0].mxu0
        %1930 = vmatprep.mubr.f32.mxu0 0.0
        %1931 = vmatmul.mubr.f32.gmra.mrb[0].mxu0 %v1102
        %v1932 = vpop.f32.mrb[0].mxu0
        %v1933 = vadd.f32 0.0, %v1932
        %v1934 = vpop.f32.mrb[0].mxu0
        %1935 = vmatprep.mubr.f32.mxu0 0.0
        %1936 = vmatmul.mubr.f32.gmra.mrb[0].mxu0 %v1104
        %v1937 = vpop.f32.mrb[0].mxu0
        %v1938 = vadd.f32 0.0, %v1937
        %v1939 = vpop.f32.mrb[0].mxu0
        %1940 = vmatprep.mubr.f32.mxu0 0.0
        %1941 = vmatmul.mubr.f32.gmra.mrb[0].mxu0 %v1106
        %v1942 = vpop.f32.mrb[0].mxu0
        %v1943 = vadd.f32 0.0, %v1942
        %v1944 = vpop.f32.mrb[0].mxu0
        %1945 = vmatprep.mubr.f32.mxu0 0.0
        %1946 = vmatmul.mubr.f32.gmra.mrb[0].mxu0 %v1108
        %v1947 = vpop.f32.mrb[0].mxu0
        %v1948 = vadd.f32 0.0, %v1947
        %v1949 = vpop.f32.mrb[0].mxu0
        %1950 = vmatprep.mubr.f32.mxu0 0.0
        %1951 = vmatmul.mubr.f32.gmra.mrb[0].mxu0 %v1110
        %v1952 = vpop.f32.mrb[0].mxu0
        %v1953 = vadd.f32 0.0, %v1952
        %v1954 = vpop.f32.mrb[0].mxu0
        %1955 = vmatprep.mubr.f32.mxu0 0.0
        %1956 = vmatmul.mubr.f32.gmra.mrb[0].mxu0 %v1112
        %v1957 = vpop.f32.mrb[0].mxu0
        %v1958 = vadd.f32 0.0, %v1957
        %v1959 = vpop.f32.mrb[0].mxu0
        %1960 = vmatprep.mubr.f32.mxu0 0.0
        %1961 = vmatmul.mubr.f32.gmra.mrb[0].mxu0 %v1114
        %v1962 = vpop.f32.mrb[0].mxu0
        %v1963 = vadd.f32 0.0, %v1962
        %v1964 = vpop.f32.mrb[0].mxu0
        %1965 = vmatprep.mubr.f32.mxu0 0.0
        %1966 = vmatmul.mubr.f32.gmra.mrb[0].mxu0 %v1116
        %v1967 = vpop.f32.mrb[0].mxu0
        %v1968 = vadd.f32 0.0, %v1967
        %v1969 = vpop.f32.mrb[0].mxu0
        %1970 = vmatprep.mubr.f32.mxu0 0.0
        %1971 = vmatmul.mubr.f32.gmra.mrb[0].mxu0 %v1118
        %v1972 = vpop.f32.mrb[0].mxu0
        %v1973 = vadd.f32 0.0, %v1972
        %v1974 = vpop.f32.mrb[0].mxu0
        %1975 = vmatprep.mubr.f32.mxu0 0.0
        %1976 = vmatmul.mubr.f32.gmra.mrb[0].mxu0 %v1120
        %v1977 = vpop.f32.mrb[0].mxu0
        %v1978 = vadd.f32 0.0, %v1977
        %v1979 = vpop.f32.mrb[0].mxu0
        %1980 = vmatprep.mubr.f32.mxu0 0.0
        %1981 = vmatmul.mubr.f32.gmra.mrb[0].mxu0 %v1122
        %v1982 = vpop.f32.mrb[0].mxu0
        %v1983 = vadd.f32 0.0, %v1982
        %v1984 = vpop.f32.mrb[0].mxu0
        %1985 = vmatprep.mubr.f32.mxu0 0.0
        %1986 = vmatmul.mubr.f32.gmra.mrb[0].mxu0 %v1124
        %v1987 = vpop.f32.mrb[0].mxu0
        %v1988 = vadd.f32 0.0, %v1987
        %v1989 = vpop.f32.mrb[0].mxu0
        %1990 = vmatprep.mubr.f32.mxu0 0.0
        %1991 = vmatmul.mubr.f32.gmra.mrb[0].mxu0 %v1126
        %v1992 = vpop.f32.mrb[0].mxu0
        %v1993 = vadd.f32 0.0, %v1992
        %v1994 = vpop.f32.mrb[0].mxu0
        %1995 = vmatprep.mubr.f32.mxu0 0.0
        %1996 = vmatmul.mubr.f32.gmra.mrb[0].mxu0 %v1128
        %v1997 = vpop.f32.mrb[0].mxu0
        %v1998 = vadd.f32 0.0, %v1997
        %v1999 = vpop.f32.mrb[0].mxu0
        %2000 = vmatprep.mubr.f32.mxu0 0.0
        %2001 = vmatmul.mubr.f32.gmra.mrb[0].mxu0 %v1130
        %v2002 = vpop.f32.mrb[0].mxu0
        %v2003 = vadd.f32 0.0, %v2002
        %v2004 = vpop.f32.mrb[0].mxu0
        %2005 = vmatprep.mubr.f32.mxu0 0.0
        %2006 = vmatmul.mubr.f32.gmra.mrb[0].mxu0 %v1132
        %v2007 = vpop.f32.mrb[0].mxu0
        %v2008 = vadd.f32 0.0, %v2007
        %v2009 = vpop.f32.mrb[0].mxu0
        %2010 = vmatprep.mubr.f32.mxu0 0.0
        %2011 = vmatmul.mubr.f32.gmra.mrb[0].mxu0 %v1134
        %v2012 = vpop.f32.mrb[0].mxu0
        %v2013 = vadd.f32 0.0, %v2012
        %v2014 = vpop.f32.mrb[0].mxu0
        %2015 = vmatprep.mubr.f32.mxu0 0.0
        %2016 = vmatmul.mubr.f32.gmra.mrb[0].mxu0 %v1136
        %v2017 = vpop.f32.mrb[0].mxu0
        %v2018 = vadd.f32 0.0, %v2017
        %v2019 = vpop.f32.mrb[0].mxu0
        %2020 = vmatprep.mubr.f32.mxu0 0.0
        %2021 = vmatmul.mubr.f32.gmra.mrb[0].mxu0 %v1799
        %v2022 = vpop.f32.mrb[0].mxu0
        %v2023 = vadd.f32 0.0, %v2022
        %v2024 = vpop.f32.mrb[0].mxu0
        %2025 = vmatprep.mubr.f32.mxu0 0.0
        %2026 = vmatmul.mubr.f32.gmra.mrb[0].mxu0 %v1801
        %v2027 = vpop.f32.mrb[0].mxu0
        %v2028 = vadd.f32 0.0, %v2027
        %v2029 = vpop.f32.mrb[0].mxu0
        %2030 = vdwg.mxu0
        %v2031 = vadd.f32 %v1757, %v1873
        %v2032 = vadd.f32 %v1758, %v1878
        %v2033 = vadd.f32 %v1759, %v1883
        %v2034 = vadd.f32 %v1760, %v1888
        %v2035 = vadd.f32 %v1761, %v1893
        %v2036 = vadd.f32 %v1762, %v1898
        %v2037 = vadd.f32 %v1763, %v1903
        %v2038 = vadd.f32 %v1764, %v1908
        %v2039 = vadd.f32 %v1765, %v1913
        %v2040 = vadd.f32 %v1766, %v1918
        %v2041 = vadd.f32 %v1767, %v1923
        %v2042 = vadd.f32 %v1768, %v1928
        %v2043 = vadd.f32 %v1769, %v1933
        %v2044 = vadd.f32 %v1770, %v1938
        %v2045 = vadd.f32 %v1771, %v1943
        %v2046 = vadd.f32 %v1772, %v1948
        %v2047 = vadd.f32 %v1773, %v1953
        %v2048 = vadd.f32 %v1774, %v1958
        %v2049 = vadd.f32 %v1775, %v1963
        %v2050 = vadd.f32 %v1776, %v1968
        %v2051 = vadd.f32 %v1777, %v1973
        %v2052 = vadd.f32 %v1778, %v1978
        %v2053 = vadd.f32 %v1779, %v1983
        %v2054 = vadd.f32 %v1780, %v1988
        %v2055 = vadd.f32 %v1781, %v1993
        %v2056 = vadd.f32 %v1782, %v1998
        %v2057 = vadd.f32 %v1783, %v2003
        %v2058 = vadd.f32 %v1784, %v2008
        %v2059 = vadd.f32 %v1785, %v2013
        %v2060 = vadd.f32 %v1786, %v2018
        %v2061 = vadd.f32 %v1787, %v2023
        %v2062 = vadd.f32 %v1788, %v2028
        %s2063 = scalar_lea.vmem %s1, 16
        %v2064 = vld [vmem:[%s2063] sm:$0xf]
        %v2065 = vsel %vm356, %v642, 0
        %v2067 = vsel %vm356, %v643, 0
        %v2070 = vsel %vm845, %v2064, 0
        %2072 = vmatprep.subr.mxu0 0.0
        %2073 = vmatpush1.msra.mxu0 %v2070
        %2074 = vmatprep.subr.mxu0 0.0
        %2075 = vmatpush1.msra.mxu0 0.0
        %2076 = vmatprep.subr.mxu0 0.0
        %2077 = vmatpush1.msra.mxu0 0.0
        %2078 = vmatprep.subr.mxu0 0.0
        %2079 = vmatpush1.msra.mxu0 0.0
        %2080 = vmatprep.subr.mxu0 0.0
        %2081 = vmatpush1.msra.mxu0 0.0
        %2082 = vmatprep.subr.mxu0 0.0
        %2083 = vmatpush1.msra.mxu0 0.0
        %2084 = vmatprep.subr.mxu0 0.0
        %2085 = vmatpush1.msra.mxu0 0.0
        %2086 = vmatprep.subr.mxu0 0.0
        %2087 = vmatpush1.msra.mxu0 0.0
        %2088 = vmatprep.subr.mxu0 0.0
        %2089 = vmatpush1.msra.mxu0 0.0
        %2090 = vmatprep.subr.mxu0 0.0
        %2091 = vmatpush1.msra.mxu0 0.0
        %2092 = vmatprep.subr.mxu0 0.0
        %2093 = vmatpush1.msra.mxu0 0.0
        %2094 = vmatprep.subr.mxu0 0.0
        %2095 = vmatpush1.msra.mxu0 0.0
        %2096 = vmatprep.subr.mxu0 0.0
        %2097 = vmatpush1.msra.mxu0 0.0
        %2098 = vmatprep.subr.mxu0 0.0
        %2099 = vmatpush1.msra.mxu0 0.0
        %2100 = vmatprep.subr.mxu0 0.0
        %2101 = vmatpush1.msra.mxu0 0.0
        %2102 = vmatprep.subr.mxu0 0.0
        %2103 = vmatpush1.msra.mxu0 0.0
        %2104 = vmatprep.subr.mxu0 0.0
        %2105 = vmatpush1.msra.mxu0 0.0
        %2106 = vmatprep.subr.mxu0 0.0
        %2107 = vmatpush1.msra.mxu0 0.0
        %2108 = vmatprep.subr.mxu0 0.0
        %2109 = vmatpush1.msra.mxu0 0.0
        %2110 = vmatprep.subr.mxu0 0.0
        %2111 = vmatpush1.msra.mxu0 0.0
        %2112 = vmatprep.subr.mxu0 0.0
        %2113 = vmatpush1.msra.mxu0 0.0
        %2114 = vmatprep.subr.mxu0 0.0
        %2115 = vmatpush1.msra.mxu0 0.0
        %2116 = vmatprep.subr.mxu0 0.0
        %2117 = vmatpush1.msra.mxu0 0.0
        %2118 = vmatprep.subr.mxu0 0.0
        %2119 = vmatpush1.msra.mxu0 0.0
        %2120 = vmatprep.subr.mxu0 0.0
        %2121 = vmatpush1.msra.mxu0 0.0
        %2122 = vmatprep.subr.mxu0 0.0
        %2123 = vmatpush1.msra.mxu0 0.0
        %2124 = vmatprep.subr.mxu0 0.0
        %2125 = vmatpush1.msra.mxu0 0.0
        %2126 = vmatprep.subr.mxu0 0.0
        %2127 = vmatpush1.msra.mxu0 0.0
        %2128 = vmatprep.subr.mxu0 0.0
        %2129 = vmatpush1.msra.mxu0 0.0
        %2130 = vmatprep.subr.mxu0 0.0
        %2131 = vmatpush1.msra.mxu0 0.0
        %2132 = vmatprep.subr.mxu0 0.0
        %2133 = vmatpush1.msra.mxu0 0.0
        %2134 = vmatprep.subr.mxu0 0.0
        %2135 = vmatpush1.msra.mxu0 0.0
        %2136 = vmatprep.mubr.f32.mxu0 0.0
        %2137 = vmatmul.mubr.f32.gmra.mrb[0].mxu0 %v785
        %v2138 = vpop.f32.mrb[0].mxu0
        %v2139 = vadd.f32 0.0, %v2138
        %v2140 = vpop.f32.mrb[0].mxu0
        %2141 = vmatprep.mubr.f32.mxu0 0.0
        %2142 = vmatmul.mubr.f32.gmra.mrb[0].mxu0 %v787
        %v2143 = vpop.f32.mrb[0].mxu0
        %v2144 = vadd.f32 0.0, %v2143
        %v2145 = vpop.f32.mrb[0].mxu0
        %2146 = vmatprep.mubr.f32.mxu0 0.0
        %2147 = vmatmul.mubr.f32.gmra.mrb[0].mxu0 %v789
        %v2148 = vpop.f32.mrb[0].mxu0
        %v2149 = vadd.f32 0.0, %v2148
        %v2150 = vpop.f32.mrb[0].mxu0
        %2151 = vmatprep.mubr.f32.mxu0 0.0
        %2152 = vmatmul.mubr.f32.gmra.mrb[0].mxu0 %v791
        %v2153 = vpop.f32.mrb[0].mxu0
        %v2154 = vadd.f32 0.0, %v2153
        %v2155 = vpop.f32.mrb[0].mxu0
        %2156 = vmatprep.mubr.f32.mxu0 0.0
        %2157 = vmatmul.mubr.f32.gmra.mrb[0].mxu0 %v793
        %v2158 = vpop.f32.mrb[0].mxu0
        %v2159 = vadd.f32 0.0, %v2158
        %v2160 = vpop.f32.mrb[0].mxu0
        %2161 = vmatprep.mubr.f32.mxu0 0.0
        %2162 = vmatmul.mubr.f32.gmra.mrb[0].mxu0 %v795
        %v2163 = vpop.f32.mrb[0].mxu0
        %v2164 = vadd.f32 0.0, %v2163
        %v2165 = vpop.f32.mrb[0].mxu0
        %2166 = vmatprep.mubr.f32.mxu0 0.0
        %2167 = vmatmul.mubr.f32.gmra.mrb[0].mxu0 %v797
        %v2168 = vpop.f32.mrb[0].mxu0
        %v2169 = vadd.f32 0.0, %v2168
        %v2170 = vpop.f32.mrb[0].mxu0
        %2171 = vmatprep.mubr.f32.mxu0 0.0
        %2172 = vmatmul.mubr.f32.gmra.mrb[0].mxu0 %v799
        %v2173 = vpop.f32.mrb[0].mxu0
        %v2174 = vadd.f32 0.0, %v2173
        %v2175 = vpop.f32.mrb[0].mxu0
        %2176 = vmatprep.mubr.f32.mxu0 0.0
        %2177 = vmatmul.mubr.f32.gmra.mrb[0].mxu0 %v801
        %v2178 = vpop.f32.mrb[0].mxu0
        %v2179 = vadd.f32 0.0, %v2178
        %v2180 = vpop.f32.mrb[0].mxu0
        %2181 = vmatprep.mubr.f32.mxu0 0.0
        %2182 = vmatmul.mubr.f32.gmra.mrb[0].mxu0 %v803
        %v2183 = vpop.f32.mrb[0].mxu0
        %v2184 = vadd.f32 0.0, %v2183
        %v2185 = vpop.f32.mrb[0].mxu0
        %2186 = vmatprep.mubr.f32.mxu0 0.0
        %2187 = vmatmul.mubr.f32.gmra.mrb[0].mxu0 %v805
        %v2188 = vpop.f32.mrb[0].mxu0
        %v2189 = vadd.f32 0.0, %v2188
        %v2190 = vpop.f32.mrb[0].mxu0
        %2191 = vmatprep.mubr.f32.mxu0 0.0
        %2192 = vmatmul.mubr.f32.gmra.mrb[0].mxu0 %v807
        %v2193 = vpop.f32.mrb[0].mxu0
        %v2194 = vadd.f32 0.0, %v2193
        %v2195 = vpop.f32.mrb[0].mxu0
        %2196 = vmatprep.mubr.f32.mxu0 0.0
        %2197 = vmatmul.mubr.f32.gmra.mrb[0].mxu0 %v809
        %v2198 = vpop.f32.mrb[0].mxu0
        %v2199 = vadd.f32 0.0, %v2198
        %v2200 = vpop.f32.mrb[0].mxu0
        %2201 = vmatprep.mubr.f32.mxu0 0.0
        %2202 = vmatmul.mubr.f32.gmra.mrb[0].mxu0 %v811
        %v2203 = vpop.f32.mrb[0].mxu0
        %v2204 = vadd.f32 0.0, %v2203
        %v2205 = vpop.f32.mrb[0].mxu0
        %2206 = vmatprep.mubr.f32.mxu0 0.0
        %2207 = vmatmul.mubr.f32.gmra.mrb[0].mxu0 %v813
        %v2208 = vpop.f32.mrb[0].mxu0
        %v2209 = vadd.f32 0.0, %v2208
        %v2210 = vpop.f32.mrb[0].mxu0
        %2211 = vmatprep.mubr.f32.mxu0 0.0
        %2212 = vmatmul.mubr.f32.gmra.mrb[0].mxu0 %v815
        %v2213 = vpop.f32.mrb[0].mxu0
        %v2214 = vadd.f32 0.0, %v2213
        %v2215 = vpop.f32.mrb[0].mxu0
        %2216 = vmatprep.mubr.f32.mxu0 0.0
        %2217 = vmatmul.mubr.f32.gmra.mrb[0].mxu0 %v817
        %v2218 = vpop.f32.mrb[0].mxu0
        %v2219 = vadd.f32 0.0, %v2218
        %v2220 = vpop.f32.mrb[0].mxu0
        %2221 = vmatprep.mubr.f32.mxu0 0.0
        %2222 = vmatmul.mubr.f32.gmra.mrb[0].mxu0 %v819
        %v2223 = vpop.f32.mrb[0].mxu0
        %v2224 = vadd.f32 0.0, %v2223
        %v2225 = vpop.f32.mrb[0].mxu0
        %2226 = vmatprep.mubr.f32.mxu0 0.0
        %2227 = vmatmul.mubr.f32.gmra.mrb[0].mxu0 %v821
        %v2228 = vpop.f32.mrb[0].mxu0
        %v2229 = vadd.f32 0.0, %v2228
        %v2230 = vpop.f32.mrb[0].mxu0
        %2231 = vmatprep.mubr.f32.mxu0 0.0
        %2232 = vmatmul.mubr.f32.gmra.mrb[0].mxu0 %v823
        %v2233 = vpop.f32.mrb[0].mxu0
        %v2234 = vadd.f32 0.0, %v2233
        %v2235 = vpop.f32.mrb[0].mxu0
        %2236 = vmatprep.mubr.f32.mxu0 0.0
        %2237 = vmatmul.mubr.f32.gmra.mrb[0].mxu0 %v825
        %v2238 = vpop.f32.mrb[0].mxu0
        %v2239 = vadd.f32 0.0, %v2238
        %v2240 = vpop.f32.mrb[0].mxu0
        %2241 = vmatprep.mubr.f32.mxu0 0.0
        %2242 = vmatmul.mubr.f32.gmra.mrb[0].mxu0 %v827
        %v2243 = vpop.f32.mrb[0].mxu0
        %v2244 = vadd.f32 0.0, %v2243
        %v2245 = vpop.f32.mrb[0].mxu0
        %2246 = vmatprep.mubr.f32.mxu0 0.0
        %2247 = vmatmul.mubr.f32.gmra.mrb[0].mxu0 %v829
        %v2248 = vpop.f32.mrb[0].mxu0
        %v2249 = vadd.f32 0.0, %v2248
        %v2250 = vpop.f32.mrb[0].mxu0
        %2251 = vmatprep.mubr.f32.mxu0 0.0
        %2252 = vmatmul.mubr.f32.gmra.mrb[0].mxu0 %v831
        %v2253 = vpop.f32.mrb[0].mxu0
        %v2254 = vadd.f32 0.0, %v2253
        %v2255 = vpop.f32.mrb[0].mxu0
        %2256 = vmatprep.mubr.f32.mxu0 0.0
        %2257 = vmatmul.mubr.f32.gmra.mrb[0].mxu0 %v833
        %v2258 = vpop.f32.mrb[0].mxu0
        %v2259 = vadd.f32 0.0, %v2258
        %v2260 = vpop.f32.mrb[0].mxu0
        %2261 = vmatprep.mubr.f32.mxu0 0.0
        %2262 = vmatmul.mubr.f32.gmra.mrb[0].mxu0 %v835
        %v2263 = vpop.f32.mrb[0].mxu0
        %v2264 = vadd.f32 0.0, %v2263
        %v2265 = vpop.f32.mrb[0].mxu0
        %2266 = vmatprep.mubr.f32.mxu0 0.0
        %2267 = vmatmul.mubr.f32.gmra.mrb[0].mxu0 %v837
        %v2268 = vpop.f32.mrb[0].mxu0
        %v2269 = vadd.f32 0.0, %v2268
        %v2270 = vpop.f32.mrb[0].mxu0
        %2271 = vmatprep.mubr.f32.mxu0 0.0
        %2272 = vmatmul.mubr.f32.gmra.mrb[0].mxu0 %v839
        %v2273 = vpop.f32.mrb[0].mxu0
        %v2274 = vadd.f32 0.0, %v2273
        %v2275 = vpop.f32.mrb[0].mxu0
        %2276 = vmatprep.mubr.f32.mxu0 0.0
        %2277 = vmatmul.mubr.f32.gmra.mrb[0].mxu0 %v841
        %v2278 = vpop.f32.mrb[0].mxu0
        %v2279 = vadd.f32 0.0, %v2278
        %v2280 = vpop.f32.mrb[0].mxu0
        %2281 = vmatprep.mubr.f32.mxu0 0.0
        %2282 = vmatmul.mubr.f32.gmra.mrb[0].mxu0 %v843
        %v2283 = vpop.f32.mrb[0].mxu0
        %v2284 = vadd.f32 0.0, %v2283
        %v2285 = vpop.f32.mrb[0].mxu0
        %2286 = vmatprep.mubr.f32.mxu0 0.0
        %2287 = vmatmul.mubr.f32.gmra.mrb[0].mxu0 %v2065
        %v2288 = vpop.f32.mrb[0].mxu0
        %v2289 = vadd.f32 0.0, %v2288
        %v2290 = vpop.f32.mrb[0].mxu0
        %2291 = vmatprep.mubr.f32.mxu0 0.0
        %2292 = vmatmul.mubr.f32.gmra.mrb[0].mxu0 %v2067
        %v2293 = vpop.f32.mrb[0].mxu0
        %v2294 = vadd.f32 0.0, %v2293
        %v2295 = vpop.f32.mrb[0].mxu0
        %2296 = vdwg.mxu0
        %v2297 = vadd.f32 %v2031, %v2139
        %v2298 = vadd.f32 %v2032, %v2144
        %v2299 = vadd.f32 %v2033, %v2149
        %v2300 = vadd.f32 %v2034, %v2154
        %v2301 = vadd.f32 %v2035, %v2159
        %v2302 = vadd.f32 %v2036, %v2164
        %v2303 = vadd.f32 %v2037, %v2169
        %v2304 = vadd.f32 %v2038, %v2174
        %v2305 = vadd.f32 %v2039, %v2179
        %v2306 = vadd.f32 %v2040, %v2184
        %v2307 = vadd.f32 %v2041, %v2189
        %v2308 = vadd.f32 %v2042, %v2194
        %v2309 = vadd.f32 %v2043, %v2199
        %v2310 = vadd.f32 %v2044, %v2204
        %v2311 = vadd.f32 %v2045, %v2209
        %v2312 = vadd.f32 %v2046, %v2214
        %v2313 = vadd.f32 %v2047, %v2219
        %v2314 = vadd.f32 %v2048, %v2224
        %v2315 = vadd.f32 %v2049, %v2229
        %v2316 = vadd.f32 %v2050, %v2234
        %v2317 = vadd.f32 %v2051, %v2239
        %v2318 = vadd.f32 %v2052, %v2244
        %v2319 = vadd.f32 %v2053, %v2249
        %v2320 = vadd.f32 %v2054, %v2254
        %v2321 = vadd.f32 %v2055, %v2259
        %v2322 = vadd.f32 %v2056, %v2264
        %v2323 = vadd.f32 %v2057, %v2269
        %v2324 = vadd.f32 %v2058, %v2274
        %v2325 = vadd.f32 %v2059, %v2279
        %v2326 = vadd.f32 %v2060, %v2284
        %v2327 = vadd.f32 %v2061, %v2289
        %v2328 = vadd.f32 %v2062, %v2294
        %v2330 = vrot.slane %v642, 1
        %v2331 = vrot.slane %v643, 1
        %v2332 = vsel %vm1382, %v2330, %v2331
        %v2333 = vrot.slane %v644, 1
        %v2334 = vsel %vm1382, %v2331, %v2333
        %s2335 = scalar_lea.vmem %s1, 20
        %v2336 = vld [vmem:[%s2335] sm:$0xf]
        %v2337 = vsel %vm356, %v2332, 0
        %v2339 = vsel %vm356, %v2334, 0
        %v2342 = vsel %vm845, %v2336, 0
        %2344 = vmatprep.subr.mxu0 0.0
        %2345 = vmatpush1.msra.mxu0 %v2342
        %2346 = vmatprep.subr.mxu0 0.0
        %2347 = vmatpush1.msra.mxu0 0.0
        %2348 = vmatprep.subr.mxu0 0.0
        %2349 = vmatpush1.msra.mxu0 0.0
        %2350 = vmatprep.subr.mxu0 0.0
        %2351 = vmatpush1.msra.mxu0 0.0
        %2352 = vmatprep.subr.mxu0 0.0
        %2353 = vmatpush1.msra.mxu0 0.0
        %2354 = vmatprep.subr.mxu0 0.0
        %2355 = vmatpush1.msra.mxu0 0.0
        %2356 = vmatprep.subr.mxu0 0.0
        %2357 = vmatpush1.msra.mxu0 0.0
        %2358 = vmatprep.subr.mxu0 0.0
        %2359 = vmatpush1.msra.mxu0 0.0
        %2360 = vmatprep.subr.mxu0 0.0
        %2361 = vmatpush1.msra.mxu0 0.0
        %2362 = vmatprep.subr.mxu0 0.0
        %2363 = vmatpush1.msra.mxu0 0.0
        %2364 = vmatprep.subr.mxu0 0.0
        %2365 = vmatpush1.msra.mxu0 0.0
        %2366 = vmatprep.subr.mxu0 0.0
        %2367 = vmatpush1.msra.mxu0 0.0
        %2368 = vmatprep.subr.mxu0 0.0
        %2369 = vmatpush1.msra.mxu0 0.0
        %2370 = vmatprep.subr.mxu0 0.0
        %2371 = vmatpush1.msra.mxu0 0.0
        %2372 = vmatprep.subr.mxu0 0.0
        %2373 = vmatpush1.msra.mxu0 0.0
        %2374 = vmatprep.subr.mxu0 0.0
        %2375 = vmatpush1.msra.mxu0 0.0
        %2376 = vmatprep.subr.mxu0 0.0
        %2377 = vmatpush1.msra.mxu0 0.0
        %2378 = vmatprep.subr.mxu0 0.0
        %2379 = vmatpush1.msra.mxu0 0.0
        %2380 = vmatprep.subr.mxu0 0.0
        %2381 = vmatpush1.msra.mxu0 0.0
        %2382 = vmatprep.subr.mxu0 0.0
        %2383 = vmatpush1.msra.mxu0 0.0
        %2384 = vmatprep.subr.mxu0 0.0
        %2385 = vmatpush1.msra.mxu0 0.0
        %2386 = vmatprep.subr.mxu0 0.0
        %2387 = vmatpush1.msra.mxu0 0.0
        %2388 = vmatprep.subr.mxu0 0.0
        %2389 = vmatpush1.msra.mxu0 0.0
        %2390 = vmatprep.subr.mxu0 0.0
        %2391 = vmatpush1.msra.mxu0 0.0
        %2392 = vmatprep.subr.mxu0 0.0
        %2393 = vmatpush1.msra.mxu0 0.0
        %2394 = vmatprep.subr.mxu0 0.0
        %2395 = vmatpush1.msra.mxu0 0.0
        %2396 = vmatprep.subr.mxu0 0.0
        %2397 = vmatpush1.msra.mxu0 0.0
        %2398 = vmatprep.subr.mxu0 0.0
        %2399 = vmatpush1.msra.mxu0 0.0
        %2400 = vmatprep.subr.mxu0 0.0
        %2401 = vmatpush1.msra.mxu0 0.0
        %2402 = vmatprep.subr.mxu0 0.0
        %2403 = vmatpush1.msra.mxu0 0.0
        %2404 = vmatprep.subr.mxu0 0.0
        %2405 = vmatpush1.msra.mxu0 0.0
        %2406 = vmatprep.subr.mxu0 0.0
        %2407 = vmatpush1.msra.mxu0 0.0
        %2408 = vmatprep.mubr.f32.mxu0 0.0
        %2409 = vmatmul.mubr.f32.gmra.mrb[0].mxu0 %v1469
        %v2410 = vpop.f32.mrb[0].mxu0
        %v2411 = vadd.f32 0.0, %v2410
        %v2412 = vpop.f32.mrb[0].mxu0
        %2413 = vmatprep.mubr.f32.mxu0 0.0
        %2414 = vmatmul.mubr.f32.gmra.mrb[0].mxu0 %v1471
        %v2415 = vpop.f32.mrb[0].mxu0
        %v2416 = vadd.f32 0.0, %v2415
        %v2417 = vpop.f32.mrb[0].mxu0
        %2418 = vmatprep.mubr.f32.mxu0 0.0
        %2419 = vmatmul.mubr.f32.gmra.mrb[0].mxu0 %v1473
        %v2420 = vpop.f32.mrb[0].mxu0
        %v2421 = vadd.f32 0.0, %v2420
        %v2422 = vpop.f32.mrb[0].mxu0
        %2423 = vmatprep.mubr.f32.mxu0 0.0
        %2424 = vmatmul.mubr.f32.gmra.mrb[0].mxu0 %v1475
        %v2425 = vpop.f32.mrb[0].mxu0
        %v2426 = vadd.f32 0.0, %v2425
        %v2427 = vpop.f32.mrb[0].mxu0
        %2428 = vmatprep.mubr.f32.mxu0 0.0
        %2429 = vmatmul.mubr.f32.gmra.mrb[0].mxu0 %v1477
        %v2430 = vpop.f32.mrb[0].mxu0
        %v2431 = vadd.f32 0.0, %v2430
        %v2432 = vpop.f32.mrb[0].mxu0
        %2433 = vmatprep.mubr.f32.mxu0 0.0
        %2434 = vmatmul.mubr.f32.gmra.mrb[0].mxu0 %v1479
        %v2435 = vpop.f32.mrb[0].mxu0
        %v2436 = vadd.f32 0.0, %v2435
        %v2437 = vpop.f32.mrb[0].mxu0
        %2438 = vmatprep.mubr.f32.mxu0 0.0
        %2439 = vmatmul.mubr.f32.gmra.mrb[0].mxu0 %v1481
        %v2440 = vpop.f32.mrb[0].mxu0
        %v2441 = vadd.f32 0.0, %v2440
        %v2442 = vpop.f32.mrb[0].mxu0
        %2443 = vmatprep.mubr.f32.mxu0 0.0
        %2444 = vmatmul.mubr.f32.gmra.mrb[0].mxu0 %v1483
        %v2445 = vpop.f32.mrb[0].mxu0
        %v2446 = vadd.f32 0.0, %v2445
        %v2447 = vpop.f32.mrb[0].mxu0
        %2448 = vmatprep.mubr.f32.mxu0 0.0
        %2449 = vmatmul.mubr.f32.gmra.mrb[0].mxu0 %v1485
        %v2450 = vpop.f32.mrb[0].mxu0
        %v2451 = vadd.f32 0.0, %v2450
        %v2452 = vpop.f32.mrb[0].mxu0
        %2453 = vmatprep.mubr.f32.mxu0 0.0
        %2454 = vmatmul.mubr.f32.gmra.mrb[0].mxu0 %v1487
        %v2455 = vpop.f32.mrb[0].mxu0
        %v2456 = vadd.f32 0.0, %v2455
        %v2457 = vpop.f32.mrb[0].mxu0
        %2458 = vmatprep.mubr.f32.mxu0 0.0
        %2459 = vmatmul.mubr.f32.gmra.mrb[0].mxu0 %v1489
        %v2460 = vpop.f32.mrb[0].mxu0
        %v2461 = vadd.f32 0.0, %v2460
        %v2462 = vpop.f32.mrb[0].mxu0
        %2463 = vmatprep.mubr.f32.mxu0 0.0
        %2464 = vmatmul.mubr.f32.gmra.mrb[0].mxu0 %v1491
        %v2465 = vpop.f32.mrb[0].mxu0
        %v2466 = vadd.f32 0.0, %v2465
        %v2467 = vpop.f32.mrb[0].mxu0
        %2468 = vmatprep.mubr.f32.mxu0 0.0
        %2469 = vmatmul.mubr.f32.gmra.mrb[0].mxu0 %v1493
        %v2470 = vpop.f32.mrb[0].mxu0
        %v2471 = vadd.f32 0.0, %v2470
        %v2472 = vpop.f32.mrb[0].mxu0
        %2473 = vmatprep.mubr.f32.mxu0 0.0
        %2474 = vmatmul.mubr.f32.gmra.mrb[0].mxu0 %v1495
        %v2475 = vpop.f32.mrb[0].mxu0
        %v2476 = vadd.f32 0.0, %v2475
        %v2477 = vpop.f32.mrb[0].mxu0
        %2478 = vmatprep.mubr.f32.mxu0 0.0
        %2479 = vmatmul.mubr.f32.gmra.mrb[0].mxu0 %v1497
        %v2480 = vpop.f32.mrb[0].mxu0
        %v2481 = vadd.f32 0.0, %v2480
        %v2482 = vpop.f32.mrb[0].mxu0
        %2483 = vmatprep.mubr.f32.mxu0 0.0
        %2484 = vmatmul.mubr.f32.gmra.mrb[0].mxu0 %v1499
        %v2485 = vpop.f32.mrb[0].mxu0
        %v2486 = vadd.f32 0.0, %v2485
        %v2487 = vpop.f32.mrb[0].mxu0
        %2488 = vmatprep.mubr.f32.mxu0 0.0
        %2489 = vmatmul.mubr.f32.gmra.mrb[0].mxu0 %v1501
        %v2490 = vpop.f32.mrb[0].mxu0
        %v2491 = vadd.f32 0.0, %v2490
        %v2492 = vpop.f32.mrb[0].mxu0
        %2493 = vmatprep.mubr.f32.mxu0 0.0
        %2494 = vmatmul.mubr.f32.gmra.mrb[0].mxu0 %v1503
        %v2495 = vpop.f32.mrb[0].mxu0
        %v2496 = vadd.f32 0.0, %v2495
        %v2497 = vpop.f32.mrb[0].mxu0
        %2498 = vmatprep.mubr.f32.mxu0 0.0
        %2499 = vmatmul.mubr.f32.gmra.mrb[0].mxu0 %v1505
        %v2500 = vpop.f32.mrb[0].mxu0
        %v2501 = vadd.f32 0.0, %v2500
        %v2502 = vpop.f32.mrb[0].mxu0
        %2503 = vmatprep.mubr.f32.mxu0 0.0
        %2504 = vmatmul.mubr.f32.gmra.mrb[0].mxu0 %v1507
        %v2505 = vpop.f32.mrb[0].mxu0
        %v2506 = vadd.f32 0.0, %v2505
        %v2507 = vpop.f32.mrb[0].mxu0
        %2508 = vmatprep.mubr.f32.mxu0 0.0
        %2509 = vmatmul.mubr.f32.gmra.mrb[0].mxu0 %v1509
        %v2510 = vpop.f32.mrb[0].mxu0
        %v2511 = vadd.f32 0.0, %v2510
        %v2512 = vpop.f32.mrb[0].mxu0
        %2513 = vmatprep.mubr.f32.mxu0 0.0
        %2514 = vmatmul.mubr.f32.gmra.mrb[0].mxu0 %v1511
        %v2515 = vpop.f32.mrb[0].mxu0
        %v2516 = vadd.f32 0.0, %v2515
        %v2517 = vpop.f32.mrb[0].mxu0
        %2518 = vmatprep.mubr.f32.mxu0 0.0
        %2519 = vmatmul.mubr.f32.gmra.mrb[0].mxu0 %v1513
        %v2520 = vpop.f32.mrb[0].mxu0
        %v2521 = vadd.f32 0.0, %v2520
        %v2522 = vpop.f32.mrb[0].mxu0
        %2523 = vmatprep.mubr.f32.mxu0 0.0
        %2524 = vmatmul.mubr.f32.gmra.mrb[0].mxu0 %v1515
        %v2525 = vpop.f32.mrb[0].mxu0
        %v2526 = vadd.f32 0.0, %v2525
        %v2527 = vpop.f32.mrb[0].mxu0
        %2528 = vmatprep.mubr.f32.mxu0 0.0
        %2529 = vmatmul.mubr.f32.gmra.mrb[0].mxu0 %v1517
        %v2530 = vpop.f32.mrb[0].mxu0
        %v2531 = vadd.f32 0.0, %v2530
        %v2532 = vpop.f32.mrb[0].mxu0
        %2533 = vmatprep.mubr.f32.mxu0 0.0
        %2534 = vmatmul.mubr.f32.gmra.mrb[0].mxu0 %v1519
        %v2535 = vpop.f32.mrb[0].mxu0
        %v2536 = vadd.f32 0.0, %v2535
        %v2537 = vpop.f32.mrb[0].mxu0
        %2538 = vmatprep.mubr.f32.mxu0 0.0
        %2539 = vmatmul.mubr.f32.gmra.mrb[0].mxu0 %v1521
        %v2540 = vpop.f32.mrb[0].mxu0
        %v2541 = vadd.f32 0.0, %v2540
        %v2542 = vpop.f32.mrb[0].mxu0
        %2543 = vmatprep.mubr.f32.mxu0 0.0
        %2544 = vmatmul.mubr.f32.gmra.mrb[0].mxu0 %v1523
        %v2545 = vpop.f32.mrb[0].mxu0
        %v2546 = vadd.f32 0.0, %v2545
        %v2547 = vpop.f32.mrb[0].mxu0
        %2548 = vmatprep.mubr.f32.mxu0 0.0
        %2549 = vmatmul.mubr.f32.gmra.mrb[0].mxu0 %v1525
        %v2550 = vpop.f32.mrb[0].mxu0
        %v2551 = vadd.f32 0.0, %v2550
        %v2552 = vpop.f32.mrb[0].mxu0
        %2553 = vmatprep.mubr.f32.mxu0 0.0
        %2554 = vmatmul.mubr.f32.gmra.mrb[0].mxu0 %v1527
        %v2555 = vpop.f32.mrb[0].mxu0
        %v2556 = vadd.f32 0.0, %v2555
        %v2557 = vpop.f32.mrb[0].mxu0
        %2558 = vmatprep.mubr.f32.mxu0 0.0
        %2559 = vmatmul.mubr.f32.gmra.mrb[0].mxu0 %v2337
        %v2560 = vpop.f32.mrb[0].mxu0
        %v2561 = vadd.f32 0.0, %v2560
        %v2562 = vpop.f32.mrb[0].mxu0
        %2563 = vmatprep.mubr.f32.mxu0 0.0
        %2564 = vmatmul.mubr.f32.gmra.mrb[0].mxu0 %v2339
        %v2565 = vpop.f32.mrb[0].mxu0
        %v2566 = vadd.f32 0.0, %v2565
        %v2567 = vpop.f32.mrb[0].mxu0
        %2568 = vdwg.mxu0
        %v2569 = vadd.f32 %v2297, %v2411
        %v2570 = vadd.f32 %v2298, %v2416
        %v2571 = vadd.f32 %v2299, %v2421
        %v2572 = vadd.f32 %v2300, %v2426
        %v2573 = vadd.f32 %v2301, %v2431
        %v2574 = vadd.f32 %v2302, %v2436
        %v2575 = vadd.f32 %v2303, %v2441
        %v2576 = vadd.f32 %v2304, %v2446
        %v2577 = vadd.f32 %v2305, %v2451
        %v2578 = vadd.f32 %v2306, %v2456
        %v2579 = vadd.f32 %v2307, %v2461
        %v2580 = vadd.f32 %v2308, %v2466
        %v2581 = vadd.f32 %v2309, %v2471
        %v2582 = vadd.f32 %v2310, %v2476
        %v2583 = vadd.f32 %v2311, %v2481
        %v2584 = vadd.f32 %v2312, %v2486
        %v2585 = vadd.f32 %v2313, %v2491
        %v2586 = vadd.f32 %v2314, %v2496
        %v2587 = vadd.f32 %v2315, %v2501
        %v2588 = vadd.f32 %v2316, %v2506
        %v2589 = vadd.f32 %v2317, %v2511
        %v2590 = vadd.f32 %v2318, %v2516
        %v2591 = vadd.f32 %v2319, %v2521
        %v2592 = vadd.f32 %v2320, %v2526
        %v2593 = vadd.f32 %v2321, %v2531
        %v2594 = vadd.f32 %v2322, %v2536
        %v2595 = vadd.f32 %v2323, %v2541
        %v2596 = vadd.f32 %v2324, %v2546
        %v2597 = vadd.f32 %v2325, %v2551
        %v2598 = vadd.f32 %v2326, %v2556
        %v2599 = vadd.f32 %v2327, %v2561
        %v2600 = vadd.f32 %v2328, %v2566
        %v2604 = vrot.slane %v645, 7
        %v2605 = vrot.slane %v646, 7
        %v2606 = vsel %vm697, %v2604, %v2605
        %v2607 = vrot.slane %v647, 7
        %v2608 = vsel %vm697, %v2605, %v2607
        %s2609 = scalar_lea.vmem %s1, 24
        %v2610 = vld [vmem:[%s2609] sm:$0xf]
        %v2611 = vsel %vm356, %v2606, 0
        %v2613 = vsel %vm356, %v2608, 0
        %v2616 = vsel %vm845, %v2610, 0
        %2618 = vmatprep.subr.mxu0 0.0
        %2619 = vmatpush1.msra.mxu0 %v2616
        %2620 = vmatprep.subr.mxu0 0.0
        %2621 = vmatpush1.msra.mxu0 0.0
        %2622 = vmatprep.subr.mxu0 0.0
        %2623 = vmatpush1.msra.mxu0 0.0
        %2624 = vmatprep.subr.mxu0 0.0
        %2625 = vmatpush1.msra.mxu0 0.0
        %2626 = vmatprep.subr.mxu0 0.0
        %2627 = vmatpush1.msra.mxu0 0.0
        %2628 = vmatprep.subr.mxu0 0.0
        %2629 = vmatpush1.msra.mxu0 0.0
        %2630 = vmatprep.subr.mxu0 0.0
        %2631 = vmatpush1.msra.mxu0 0.0
        %2632 = vmatprep.subr.mxu0 0.0
        %2633 = vmatpush1.msra.mxu0 0.0
        %2634 = vmatprep.subr.mxu0 0.0
        %2635 = vmatpush1.msra.mxu0 0.0
        %2636 = vmatprep.subr.mxu0 0.0
        %2637 = vmatpush1.msra.mxu0 0.0
        %2638 = vmatprep.subr.mxu0 0.0
        %2639 = vmatpush1.msra.mxu0 0.0
        %2640 = vmatprep.subr.mxu0 0.0
        %2641 = vmatpush1.msra.mxu0 0.0
        %2642 = vmatprep.subr.mxu0 0.0
        %2643 = vmatpush1.msra.mxu0 0.0
        %2644 = vmatprep.subr.mxu0 0.0
        %2645 = vmatpush1.msra.mxu0 0.0
        %2646 = vmatprep.subr.mxu0 0.0
        %2647 = vmatpush1.msra.mxu0 0.0
        %2648 = vmatprep.subr.mxu0 0.0
        %2649 = vmatpush1.msra.mxu0 0.0
        %2650 = vmatprep.subr.mxu0 0.0
        %2651 = vmatpush1.msra.mxu0 0.0
        %2652 = vmatprep.subr.mxu0 0.0
        %2653 = vmatpush1.msra.mxu0 0.0
        %2654 = vmatprep.subr.mxu0 0.0
        %2655 = vmatpush1.msra.mxu0 0.0
        %2656 = vmatprep.subr.mxu0 0.0
        %2657 = vmatpush1.msra.mxu0 0.0
        %2658 = vmatprep.subr.mxu0 0.0
        %2659 = vmatpush1.msra.mxu0 0.0
        %2660 = vmatprep.subr.mxu0 0.0
        %2661 = vmatpush1.msra.mxu0 0.0
        %2662 = vmatprep.subr.mxu0 0.0
        %2663 = vmatpush1.msra.mxu0 0.0
        %2664 = vmatprep.subr.mxu0 0.0
        %2665 = vmatpush1.msra.mxu0 0.0
        %2666 = vmatprep.subr.mxu0 0.0
        %2667 = vmatpush1.msra.mxu0 0.0
        %2668 = vmatprep.subr.mxu0 0.0
        %2669 = vmatpush1.msra.mxu0 0.0
        %2670 = vmatprep.subr.mxu0 0.0
        %2671 = vmatpush1.msra.mxu0 0.0
        %2672 = vmatprep.subr.mxu0 0.0
        %2673 = vmatpush1.msra.mxu0 0.0
        %2674 = vmatprep.subr.mxu0 0.0
        %2675 = vmatpush1.msra.mxu0 0.0
        %2676 = vmatprep.subr.mxu0 0.0
        %2677 = vmatpush1.msra.mxu0 0.0
        %2678 = vmatprep.subr.mxu0 0.0
        %2679 = vmatpush1.msra.mxu0 0.0
        %2680 = vmatprep.subr.mxu0 0.0
        %2681 = vmatpush1.msra.mxu0 0.0
        %2682 = vmatprep.mubr.f32.mxu0 0.0
        %2683 = vmatmul.mubr.f32.gmra.mrb[0].mxu0 %v1082
        %v2684 = vpop.f32.mrb[0].mxu0
        %v2685 = vadd.f32 0.0, %v2684
        %v2686 = vpop.f32.mrb[0].mxu0
        %2687 = vmatprep.mubr.f32.mxu0 0.0
        %2688 = vmatmul.mubr.f32.gmra.mrb[0].mxu0 %v1084
        %v2689 = vpop.f32.mrb[0].mxu0
        %v2690 = vadd.f32 0.0, %v2689
        %v2691 = vpop.f32.mrb[0].mxu0
        %2692 = vmatprep.mubr.f32.mxu0 0.0
        %2693 = vmatmul.mubr.f32.gmra.mrb[0].mxu0 %v1086
        %v2694 = vpop.f32.mrb[0].mxu0
        %v2695 = vadd.f32 0.0, %v2694
        %v2696 = vpop.f32.mrb[0].mxu0
        %2697 = vmatprep.mubr.f32.mxu0 0.0
        %2698 = vmatmul.mubr.f32.gmra.mrb[0].mxu0 %v1088
        %v2699 = vpop.f32.mrb[0].mxu0
        %v2700 = vadd.f32 0.0, %v2699
        %v2701 = vpop.f32.mrb[0].mxu0
        %2702 = vmatprep.mubr.f32.mxu0 0.0
        %2703 = vmatmul.mubr.f32.gmra.mrb[0].mxu0 %v1090
        %v2704 = vpop.f32.mrb[0].mxu0
        %v2705 = vadd.f32 0.0, %v2704
        %v2706 = vpop.f32.mrb[0].mxu0
        %2707 = vmatprep.mubr.f32.mxu0 0.0
        %2708 = vmatmul.mubr.f32.gmra.mrb[0].mxu0 %v1092
        %v2709 = vpop.f32.mrb[0].mxu0
        %v2710 = vadd.f32 0.0, %v2709
        %v2711 = vpop.f32.mrb[0].mxu0
        %2712 = vmatprep.mubr.f32.mxu0 0.0
        %2713 = vmatmul.mubr.f32.gmra.mrb[0].mxu0 %v1094
        %v2714 = vpop.f32.mrb[0].mxu0
        %v2715 = vadd.f32 0.0, %v2714
        %v2716 = vpop.f32.mrb[0].mxu0
        %2717 = vmatprep.mubr.f32.mxu0 0.0
        %2718 = vmatmul.mubr.f32.gmra.mrb[0].mxu0 %v1096
        %v2719 = vpop.f32.mrb[0].mxu0
        %v2720 = vadd.f32 0.0, %v2719
        %v2721 = vpop.f32.mrb[0].mxu0
        %2722 = vmatprep.mubr.f32.mxu0 0.0
        %2723 = vmatmul.mubr.f32.gmra.mrb[0].mxu0 %v1098
        %v2724 = vpop.f32.mrb[0].mxu0
        %v2725 = vadd.f32 0.0, %v2724
        %v2726 = vpop.f32.mrb[0].mxu0
        %2727 = vmatprep.mubr.f32.mxu0 0.0
        %2728 = vmatmul.mubr.f32.gmra.mrb[0].mxu0 %v1100
        %v2729 = vpop.f32.mrb[0].mxu0
        %v2730 = vadd.f32 0.0, %v2729
        %v2731 = vpop.f32.mrb[0].mxu0
        %2732 = vmatprep.mubr.f32.mxu0 0.0
        %2733 = vmatmul.mubr.f32.gmra.mrb[0].mxu0 %v1102
        %v2734 = vpop.f32.mrb[0].mxu0
        %v2735 = vadd.f32 0.0, %v2734
        %v2736 = vpop.f32.mrb[0].mxu0
        %2737 = vmatprep.mubr.f32.mxu0 0.0
        %2738 = vmatmul.mubr.f32.gmra.mrb[0].mxu0 %v1104
        %v2739 = vpop.f32.mrb[0].mxu0
        %v2740 = vadd.f32 0.0, %v2739
        %v2741 = vpop.f32.mrb[0].mxu0
        %2742 = vmatprep.mubr.f32.mxu0 0.0
        %2743 = vmatmul.mubr.f32.gmra.mrb[0].mxu0 %v1106
        %v2744 = vpop.f32.mrb[0].mxu0
        %v2745 = vadd.f32 0.0, %v2744
        %v2746 = vpop.f32.mrb[0].mxu0
        %2747 = vmatprep.mubr.f32.mxu0 0.0
        %2748 = vmatmul.mubr.f32.gmra.mrb[0].mxu0 %v1108
        %v2749 = vpop.f32.mrb[0].mxu0
        %v2750 = vadd.f32 0.0, %v2749
        %v2751 = vpop.f32.mrb[0].mxu0
        %2752 = vmatprep.mubr.f32.mxu0 0.0
        %2753 = vmatmul.mubr.f32.gmra.mrb[0].mxu0 %v1110
        %v2754 = vpop.f32.mrb[0].mxu0
        %v2755 = vadd.f32 0.0, %v2754
        %v2756 = vpop.f32.mrb[0].mxu0
        %2757 = vmatprep.mubr.f32.mxu0 0.0
        %2758 = vmatmul.mubr.f32.gmra.mrb[0].mxu0 %v1112
        %v2759 = vpop.f32.mrb[0].mxu0
        %v2760 = vadd.f32 0.0, %v2759
        %v2761 = vpop.f32.mrb[0].mxu0
        %2762 = vmatprep.mubr.f32.mxu0 0.0
        %2763 = vmatmul.mubr.f32.gmra.mrb[0].mxu0 %v1114
        %v2764 = vpop.f32.mrb[0].mxu0
        %v2765 = vadd.f32 0.0, %v2764
        %v2766 = vpop.f32.mrb[0].mxu0
        %2767 = vmatprep.mubr.f32.mxu0 0.0
        %2768 = vmatmul.mubr.f32.gmra.mrb[0].mxu0 %v1116
        %v2769 = vpop.f32.mrb[0].mxu0
        %v2770 = vadd.f32 0.0, %v2769
        %v2771 = vpop.f32.mrb[0].mxu0
        %2772 = vmatprep.mubr.f32.mxu0 0.0
        %2773 = vmatmul.mubr.f32.gmra.mrb[0].mxu0 %v1118
        %v2774 = vpop.f32.mrb[0].mxu0
        %v2775 = vadd.f32 0.0, %v2774
        %v2776 = vpop.f32.mrb[0].mxu0
        %2777 = vmatprep.mubr.f32.mxu0 0.0
        %2778 = vmatmul.mubr.f32.gmra.mrb[0].mxu0 %v1120
        %v2779 = vpop.f32.mrb[0].mxu0
        %v2780 = vadd.f32 0.0, %v2779
        %v2781 = vpop.f32.mrb[0].mxu0
        %2782 = vmatprep.mubr.f32.mxu0 0.0
        %2783 = vmatmul.mubr.f32.gmra.mrb[0].mxu0 %v1122
        %v2784 = vpop.f32.mrb[0].mxu0
        %v2785 = vadd.f32 0.0, %v2784
        %v2786 = vpop.f32.mrb[0].mxu0
        %2787 = vmatprep.mubr.f32.mxu0 0.0
        %2788 = vmatmul.mubr.f32.gmra.mrb[0].mxu0 %v1124
        %v2789 = vpop.f32.mrb[0].mxu0
        %v2790 = vadd.f32 0.0, %v2789
        %v2791 = vpop.f32.mrb[0].mxu0
        %2792 = vmatprep.mubr.f32.mxu0 0.0
        %2793 = vmatmul.mubr.f32.gmra.mrb[0].mxu0 %v1126
        %v2794 = vpop.f32.mrb[0].mxu0
        %v2795 = vadd.f32 0.0, %v2794
        %v2796 = vpop.f32.mrb[0].mxu0
        %2797 = vmatprep.mubr.f32.mxu0 0.0
        %2798 = vmatmul.mubr.f32.gmra.mrb[0].mxu0 %v1128
        %v2799 = vpop.f32.mrb[0].mxu0
        %v2800 = vadd.f32 0.0, %v2799
        %v2801 = vpop.f32.mrb[0].mxu0
        %2802 = vmatprep.mubr.f32.mxu0 0.0
        %2803 = vmatmul.mubr.f32.gmra.mrb[0].mxu0 %v1130
        %v2804 = vpop.f32.mrb[0].mxu0
        %v2805 = vadd.f32 0.0, %v2804
        %v2806 = vpop.f32.mrb[0].mxu0
        %2807 = vmatprep.mubr.f32.mxu0 0.0
        %2808 = vmatmul.mubr.f32.gmra.mrb[0].mxu0 %v1132
        %v2809 = vpop.f32.mrb[0].mxu0
        %v2810 = vadd.f32 0.0, %v2809
        %v2811 = vpop.f32.mrb[0].mxu0
        %2812 = vmatprep.mubr.f32.mxu0 0.0
        %2813 = vmatmul.mubr.f32.gmra.mrb[0].mxu0 %v1134
        %v2814 = vpop.f32.mrb[0].mxu0
        %v2815 = vadd.f32 0.0, %v2814
        %v2816 = vpop.f32.mrb[0].mxu0
        %2817 = vmatprep.mubr.f32.mxu0 0.0
        %2818 = vmatmul.mubr.f32.gmra.mrb[0].mxu0 %v1136
        %v2819 = vpop.f32.mrb[0].mxu0
        %v2820 = vadd.f32 0.0, %v2819
        %v2821 = vpop.f32.mrb[0].mxu0
        %2822 = vmatprep.mubr.f32.mxu0 0.0
        %2823 = vmatmul.mubr.f32.gmra.mrb[0].mxu0 %v1799
        %v2824 = vpop.f32.mrb[0].mxu0
        %v2825 = vadd.f32 0.0, %v2824
        %v2826 = vpop.f32.mrb[0].mxu0
        %2827 = vmatprep.mubr.f32.mxu0 0.0
        %2828 = vmatmul.mubr.f32.gmra.mrb[0].mxu0 %v1801
        %v2829 = vpop.f32.mrb[0].mxu0
        %v2830 = vadd.f32 0.0, %v2829
        %v2831 = vpop.f32.mrb[0].mxu0
        %2832 = vmatprep.mubr.f32.mxu0 0.0
        %2833 = vmatmul.mubr.f32.gmra.mrb[0].mxu0 %v2611
        %v2834 = vpop.f32.mrb[0].mxu0
        %v2835 = vadd.f32 0.0, %v2834
        %v2836 = vpop.f32.mrb[0].mxu0
        %2837 = vmatprep.mubr.f32.mxu0 0.0
        %2838 = vmatmul.mubr.f32.gmra.mrb[0].mxu0 %v2613
        %v2839 = vpop.f32.mrb[0].mxu0
        %v2840 = vadd.f32 0.0, %v2839
        %v2841 = vpop.f32.mrb[0].mxu0
        %2842 = vdwg.mxu0
        %v2843 = vadd.f32 %v2569, %v2685
        %v2844 = vadd.f32 %v2570, %v2690
        %v2845 = vadd.f32 %v2571, %v2695
        %v2846 = vadd.f32 %v2572, %v2700
        %v2847 = vadd.f32 %v2573, %v2705
        %v2848 = vadd.f32 %v2574, %v2710
        %v2849 = vadd.f32 %v2575, %v2715
        %v2850 = vadd.f32 %v2576, %v2720
        %v2851 = vadd.f32 %v2577, %v2725
        %v2852 = vadd.f32 %v2578, %v2730
        %v2853 = vadd.f32 %v2579, %v2735
        %v2854 = vadd.f32 %v2580, %v2740
        %v2855 = vadd.f32 %v2581, %v2745
        %v2856 = vadd.f32 %v2582, %v2750
        %v2857 = vadd.f32 %v2583, %v2755
        %v2858 = vadd.f32 %v2584, %v2760
        %v2859 = vadd.f32 %v2585, %v2765
        %v2860 = vadd.f32 %v2586, %v2770
        %v2861 = vadd.f32 %v2587, %v2775
        %v2862 = vadd.f32 %v2588, %v2780
        %v2863 = vadd.f32 %v2589, %v2785
        %v2864 = vadd.f32 %v2590, %v2790
        %v2865 = vadd.f32 %v2591, %v2795
        %v2866 = vadd.f32 %v2592, %v2800
        %v2867 = vadd.f32 %v2593, %v2805
        %v2868 = vadd.f32 %v2594, %v2810
        %v2869 = vadd.f32 %v2595, %v2815
        %v2870 = vadd.f32 %v2596, %v2820
        %v2871 = vadd.f32 %v2597, %v2825
        %v2872 = vadd.f32 %v2598, %v2830
        %v2873 = vadd.f32 %v2599, %v2835
        %v2874 = vadd.f32 %v2600, %v2840
        %s2875 = scalar_lea.vmem %s1, 28
        %v2876 = vld [vmem:[%s2875] sm:$0xf]
        %v2877 = vsel %vm356, %v646, 0
        %v2879 = vsel %vm356, %v647, 0
        %v2882 = vsel %vm845, %v2876, 0
        %2884 = vmatprep.subr.mxu0 0.0
        %2885 = vmatpush1.msra.mxu0 %v2882
        %2886 = vmatprep.subr.mxu0 0.0
        %2887 = vmatpush1.msra.mxu0 0.0
        %2888 = vmatprep.subr.mxu0 0.0
        %2889 = vmatpush1.msra.mxu0 0.0
        %2890 = vmatprep.subr.mxu0 0.0
        %2891 = vmatpush1.msra.mxu0 0.0
        %2892 = vmatprep.subr.mxu0 0.0
        %2893 = vmatpush1.msra.mxu0 0.0
        %2894 = vmatprep.subr.mxu0 0.0
        %2895 = vmatpush1.msra.mxu0 0.0
        %2896 = vmatprep.subr.mxu0 0.0
        %2897 = vmatpush1.msra.mxu0 0.0
        %2898 = vmatprep.subr.mxu0 0.0
        %2899 = vmatpush1.msra.mxu0 0.0
        %2900 = vmatprep.subr.mxu0 0.0
        %2901 = vmatpush1.msra.mxu0 0.0
        %2902 = vmatprep.subr.mxu0 0.0
        %2903 = vmatpush1.msra.mxu0 0.0
        %2904 = vmatprep.subr.mxu0 0.0
        %2905 = vmatpush1.msra.mxu0 0.0
        %2906 = vmatprep.subr.mxu0 0.0
        %2907 = vmatpush1.msra.mxu0 0.0
        %2908 = vmatprep.subr.mxu0 0.0
        %2909 = vmatpush1.msra.mxu0 0.0
        %2910 = vmatprep.subr.mxu0 0.0
        %2911 = vmatpush1.msra.mxu0 0.0
        %2912 = vmatprep.subr.mxu0 0.0
        %2913 = vmatpush1.msra.mxu0 0.0
        %2914 = vmatprep.subr.mxu0 0.0
        %2915 = vmatpush1.msra.mxu0 0.0
        %2916 = vmatprep.subr.mxu0 0.0
        %2917 = vmatpush1.msra.mxu0 0.0
        %2918 = vmatprep.subr.mxu0 0.0
        %2919 = vmatpush1.msra.mxu0 0.0
        %2920 = vmatprep.subr.mxu0 0.0
        %2921 = vmatpush1.msra.mxu0 0.0
        %2922 = vmatprep.subr.mxu0 0.0
        %2923 = vmatpush1.msra.mxu0 0.0
        %2924 = vmatprep.subr.mxu0 0.0
        %2925 = vmatpush1.msra.mxu0 0.0
        %2926 = vmatprep.subr.mxu0 0.0
        %2927 = vmatpush1.msra.mxu0 0.0
        %2928 = vmatprep.subr.mxu0 0.0
        %2929 = vmatpush1.msra.mxu0 0.0
        %2930 = vmatprep.subr.mxu0 0.0
        %2931 = vmatpush1.msra.mxu0 0.0
        %2932 = vmatprep.subr.mxu0 0.0
        %2933 = vmatpush1.msra.mxu0 0.0
        %2934 = vmatprep.subr.mxu0 0.0
        %2935 = vmatpush1.msra.mxu0 0.0
        %2936 = vmatprep.subr.mxu0 0.0
        %2937 = vmatpush1.msra.mxu0 0.0
        %2938 = vmatprep.subr.mxu0 0.0
        %2939 = vmatpush1.msra.mxu0 0.0
        %2940 = vmatprep.subr.mxu0 0.0
        %2941 = vmatpush1.msra.mxu0 0.0
        %2942 = vmatprep.subr.mxu0 0.0
        %2943 = vmatpush1.msra.mxu0 0.0
        %2944 = vmatprep.subr.mxu0 0.0
        %2945 = vmatpush1.msra.mxu0 0.0
        %2946 = vmatprep.subr.mxu0 0.0
        %2947 = vmatpush1.msra.mxu0 0.0
        %2948 = vmatprep.mubr.f32.mxu0 0.0
        %2949 = vmatmul.mubr.f32.gmra.mrb[0].mxu0 %v789
        %v2950 = vpop.f32.mrb[0].mxu0
        %v2951 = vadd.f32 0.0, %v2950
        %v2952 = vpop.f32.mrb[0].mxu0
        %2953 = vmatprep.mubr.f32.mxu0 0.0
        %2954 = vmatmul.mubr.f32.gmra.mrb[0].mxu0 %v791
        %v2955 = vpop.f32.mrb[0].mxu0
        %v2956 = vadd.f32 0.0, %v2955
        %v2957 = vpop.f32.mrb[0].mxu0
        %2958 = vmatprep.mubr.f32.mxu0 0.0
        %2959 = vmatmul.mubr.f32.gmra.mrb[0].mxu0 %v793
        %v2960 = vpop.f32.mrb[0].mxu0
        %v2961 = vadd.f32 0.0, %v2960
        %v2962 = vpop.f32.mrb[0].mxu0
        %2963 = vmatprep.mubr.f32.mxu0 0.0
        %2964 = vmatmul.mubr.f32.gmra.mrb[0].mxu0 %v795
        %v2965 = vpop.f32.mrb[0].mxu0
        %v2966 = vadd.f32 0.0, %v2965
        %v2967 = vpop.f32.mrb[0].mxu0
        %2968 = vmatprep.mubr.f32.mxu0 0.0
        %2969 = vmatmul.mubr.f32.gmra.mrb[0].mxu0 %v797
        %v2970 = vpop.f32.mrb[0].mxu0
        %v2971 = vadd.f32 0.0, %v2970
        %v2972 = vpop.f32.mrb[0].mxu0
        %2973 = vmatprep.mubr.f32.mxu0 0.0
        %2974 = vmatmul.mubr.f32.gmra.mrb[0].mxu0 %v799
        %v2975 = vpop.f32.mrb[0].mxu0
        %v2976 = vadd.f32 0.0, %v2975
        %v2977 = vpop.f32.mrb[0].mxu0
        %2978 = vmatprep.mubr.f32.mxu0 0.0
        %2979 = vmatmul.mubr.f32.gmra.mrb[0].mxu0 %v801
        %v2980 = vpop.f32.mrb[0].mxu0
        %v2981 = vadd.f32 0.0, %v2980
        %v2982 = vpop.f32.mrb[0].mxu0
        %2983 = vmatprep.mubr.f32.mxu0 0.0
        %2984 = vmatmul.mubr.f32.gmra.mrb[0].mxu0 %v803
        %v2985 = vpop.f32.mrb[0].mxu0
        %v2986 = vadd.f32 0.0, %v2985
        %v2987 = vpop.f32.mrb[0].mxu0
        %2988 = vmatprep.mubr.f32.mxu0 0.0
        %2989 = vmatmul.mubr.f32.gmra.mrb[0].mxu0 %v805
        %v2990 = vpop.f32.mrb[0].mxu0
        %v2991 = vadd.f32 0.0, %v2990
        %v2992 = vpop.f32.mrb[0].mxu0
        %2993 = vmatprep.mubr.f32.mxu0 0.0
        %2994 = vmatmul.mubr.f32.gmra.mrb[0].mxu0 %v807
        %v2995 = vpop.f32.mrb[0].mxu0
        %v2996 = vadd.f32 0.0, %v2995
        %v2997 = vpop.f32.mrb[0].mxu0
        %2998 = vmatprep.mubr.f32.mxu0 0.0
        %2999 = vmatmul.mubr.f32.gmra.mrb[0].mxu0 %v809
        %v3000 = vpop.f32.mrb[0].mxu0
        %v3001 = vadd.f32 0.0, %v3000
        %v3002 = vpop.f32.mrb[0].mxu0
        %3003 = vmatprep.mubr.f32.mxu0 0.0
        %3004 = vmatmul.mubr.f32.gmra.mrb[0].mxu0 %v811
        %v3005 = vpop.f32.mrb[0].mxu0
        %v3006 = vadd.f32 0.0, %v3005
        %v3007 = vpop.f32.mrb[0].mxu0
        %3008 = vmatprep.mubr.f32.mxu0 0.0
        %3009 = vmatmul.mubr.f32.gmra.mrb[0].mxu0 %v813
        %v3010 = vpop.f32.mrb[0].mxu0
        %v3011 = vadd.f32 0.0, %v3010
        %v3012 = vpop.f32.mrb[0].mxu0
        %3013 = vmatprep.mubr.f32.mxu0 0.0
        %3014 = vmatmul.mubr.f32.gmra.mrb[0].mxu0 %v815
        %v3015 = vpop.f32.mrb[0].mxu0
        %v3016 = vadd.f32 0.0, %v3015
        %v3017 = vpop.f32.mrb[0].mxu0
        %3018 = vmatprep.mubr.f32.mxu0 0.0
        %3019 = vmatmul.mubr.f32.gmra.mrb[0].mxu0 %v817
        %v3020 = vpop.f32.mrb[0].mxu0
        %v3021 = vadd.f32 0.0, %v3020
        %v3022 = vpop.f32.mrb[0].mxu0
        %3023 = vmatprep.mubr.f32.mxu0 0.0
        %3024 = vmatmul.mubr.f32.gmra.mrb[0].mxu0 %v819
        %v3025 = vpop.f32.mrb[0].mxu0
        %v3026 = vadd.f32 0.0, %v3025
        %v3027 = vpop.f32.mrb[0].mxu0
        %3028 = vmatprep.mubr.f32.mxu0 0.0
        %3029 = vmatmul.mubr.f32.gmra.mrb[0].mxu0 %v821
        %v3030 = vpop.f32.mrb[0].mxu0
        %v3031 = vadd.f32 0.0, %v3030
        %v3032 = vpop.f32.mrb[0].mxu0
        %3033 = vmatprep.mubr.f32.mxu0 0.0
        %3034 = vmatmul.mubr.f32.gmra.mrb[0].mxu0 %v823
        %v3035 = vpop.f32.mrb[0].mxu0
        %v3036 = vadd.f32 0.0, %v3035
        %v3037 = vpop.f32.mrb[0].mxu0
        %3038 = vmatprep.mubr.f32.mxu0 0.0
        %3039 = vmatmul.mubr.f32.gmra.mrb[0].mxu0 %v825
        %v3040 = vpop.f32.mrb[0].mxu0
        %v3041 = vadd.f32 0.0, %v3040
        %v3042 = vpop.f32.mrb[0].mxu0
        %3043 = vmatprep.mubr.f32.mxu0 0.0
        %3044 = vmatmul.mubr.f32.gmra.mrb[0].mxu0 %v827
        %v3045 = vpop.f32.mrb[0].mxu0
        %v3046 = vadd.f32 0.0, %v3045
        %v3047 = vpop.f32.mrb[0].mxu0
        %3048 = vmatprep.mubr.f32.mxu0 0.0
        %3049 = vmatmul.mubr.f32.gmra.mrb[0].mxu0 %v829
        %v3050 = vpop.f32.mrb[0].mxu0
        %v3051 = vadd.f32 0.0, %v3050
        %v3052 = vpop.f32.mrb[0].mxu0
        %3053 = vmatprep.mubr.f32.mxu0 0.0
        %3054 = vmatmul.mubr.f32.gmra.mrb[0].mxu0 %v831
        %v3055 = vpop.f32.mrb[0].mxu0
        %v3056 = vadd.f32 0.0, %v3055
        %v3057 = vpop.f32.mrb[0].mxu0
        %3058 = vmatprep.mubr.f32.mxu0 0.0
        %3059 = vmatmul.mubr.f32.gmra.mrb[0].mxu0 %v833
        %v3060 = vpop.f32.mrb[0].mxu0
        %v3061 = vadd.f32 0.0, %v3060
        %v3062 = vpop.f32.mrb[0].mxu0
        %3063 = vmatprep.mubr.f32.mxu0 0.0
        %3064 = vmatmul.mubr.f32.gmra.mrb[0].mxu0 %v835
        %v3065 = vpop.f32.mrb[0].mxu0
        %v3066 = vadd.f32 0.0, %v3065
        %v3067 = vpop.f32.mrb[0].mxu0
        %3068 = vmatprep.mubr.f32.mxu0 0.0
        %3069 = vmatmul.mubr.f32.gmra.mrb[0].mxu0 %v837
        %v3070 = vpop.f32.mrb[0].mxu0
        %v3071 = vadd.f32 0.0, %v3070
        %v3072 = vpop.f32.mrb[0].mxu0
        %3073 = vmatprep.mubr.f32.mxu0 0.0
        %3074 = vmatmul.mubr.f32.gmra.mrb[0].mxu0 %v839
        %v3075 = vpop.f32.mrb[0].mxu0
        %v3076 = vadd.f32 0.0, %v3075
        %v3077 = vpop.f32.mrb[0].mxu0
        %3078 = vmatprep.mubr.f32.mxu0 0.0
        %3079 = vmatmul.mubr.f32.gmra.mrb[0].mxu0 %v841
        %v3080 = vpop.f32.mrb[0].mxu0
        %v3081 = vadd.f32 0.0, %v3080
        %v3082 = vpop.f32.mrb[0].mxu0
        %3083 = vmatprep.mubr.f32.mxu0 0.0
        %3084 = vmatmul.mubr.f32.gmra.mrb[0].mxu0 %v843
        %v3085 = vpop.f32.mrb[0].mxu0
        %v3086 = vadd.f32 0.0, %v3085
        %v3087 = vpop.f32.mrb[0].mxu0
        %3088 = vmatprep.mubr.f32.mxu0 0.0
        %3089 = vmatmul.mubr.f32.gmra.mrb[0].mxu0 %v2065
        %v3090 = vpop.f32.mrb[0].mxu0
        %v3091 = vadd.f32 0.0, %v3090
        %v3092 = vpop.f32.mrb[0].mxu0
        %3093 = vmatprep.mubr.f32.mxu0 0.0
        %3094 = vmatmul.mubr.f32.gmra.mrb[0].mxu0 %v2067
        %v3095 = vpop.f32.mrb[0].mxu0
        %v3096 = vadd.f32 0.0, %v3095
        %v3097 = vpop.f32.mrb[0].mxu0
        %3098 = vmatprep.mubr.f32.mxu0 0.0
        %3099 = vmatmul.mubr.f32.gmra.mrb[0].mxu0 %v2877
        %v3100 = vpop.f32.mrb[0].mxu0
        %v3101 = vadd.f32 0.0, %v3100
        %v3102 = vpop.f32.mrb[0].mxu0
        %3103 = vmatprep.mubr.f32.mxu0 0.0
        %3104 = vmatmul.mubr.f32.gmra.mrb[0].mxu0 %v2879
        %v3105 = vpop.f32.mrb[0].mxu0
        %v3106 = vadd.f32 0.0, %v3105
        %v3107 = vpop.f32.mrb[0].mxu0
        %3108 = vdwg.mxu0
        %v3109 = vadd.f32 %v2843, %v2951
        %v3110 = vadd.f32 %v2844, %v2956
        %v3111 = vadd.f32 %v2845, %v2961
        %v3112 = vadd.f32 %v2846, %v2966
        %v3113 = vadd.f32 %v2847, %v2971
        %v3114 = vadd.f32 %v2848, %v2976
        %v3115 = vadd.f32 %v2849, %v2981
        %v3116 = vadd.f32 %v2850, %v2986
        %v3117 = vadd.f32 %v2851, %v2991
        %v3118 = vadd.f32 %v2852, %v2996
        %v3119 = vadd.f32 %v2853, %v3001
        %v3120 = vadd.f32 %v2854, %v3006
        %v3121 = vadd.f32 %v2855, %v3011
        %v3122 = vadd.f32 %v2856, %v3016
        %v3123 = vadd.f32 %v2857, %v3021
        %v3124 = vadd.f32 %v2858, %v3026
        %v3125 = vadd.f32 %v2859, %v3031
        %v3126 = vadd.f32 %v2860, %v3036
        %v3127 = vadd.f32 %v2861, %v3041
        %v3128 = vadd.f32 %v2862, %v3046
        %v3129 = vadd.f32 %v2863, %v3051
        %v3130 = vadd.f32 %v2864, %v3056
        %v3131 = vadd.f32 %v2865, %v3061
        %v3132 = vadd.f32 %v2866, %v3066
        %v3133 = vadd.f32 %v2867, %v3071
        %v3134 = vadd.f32 %v2868, %v3076
        %v3135 = vadd.f32 %v2869, %v3081
        %v3136 = vadd.f32 %v2870, %v3086
        %v3137 = vadd.f32 %v2871, %v3091
        %v3138 = vadd.f32 %v2872, %v3096
        %v3139 = vadd.f32 %v2873, %v3101
        %v3140 = vadd.f32 %v2874, %v3106
        %v3142 = vrot.slane %v646, 1
        %v3143 = vrot.slane %v647, 1
        %v3144 = vsel %vm1382, %v3142, %v3143
        %v3145 = vrot.slane %v648, 1
        %v3146 = vsel %vm1382, %v3143, %v3145
        %s3147 = scalar_lea.vmem %s1, 32
        %v3148 = vld [vmem:[%s3147] sm:$0xf]
        %v3149 = vsel %vm356, %v3144, 0
        %v3151 = vsel %vm356, %v3146, 0
        %v3154 = vsel %vm845, %v3148, 0
        %3156 = vmatprep.subr.mxu0 0.0
        %3157 = vmatpush1.msra.mxu0 %v3154
        %3158 = vmatprep.subr.mxu0 0.0
        %3159 = vmatpush1.msra.mxu0 0.0
        %3160 = vmatprep.subr.mxu0 0.0
        %3161 = vmatpush1.msra.mxu0 0.0
        %3162 = vmatprep.subr.mxu0 0.0
        %3163 = vmatpush1.msra.mxu0 0.0
        %3164 = vmatprep.subr.mxu0 0.0
        %3165 = vmatpush1.msra.mxu0 0.0
        %3166 = vmatprep.subr.mxu0 0.0
        %3167 = vmatpush1.msra.mxu0 0.0
        %3168 = vmatprep.subr.mxu0 0.0
        %3169 = vmatpush1.msra.mxu0 0.0
        %3170 = vmatprep.subr.mxu0 0.0
        %3171 = vmatpush1.msra.mxu0 0.0
        %3172 = vmatprep.subr.mxu0 0.0
        %3173 = vmatpush1.msra.mxu0 0.0
        %3174 = vmatprep.subr.mxu0 0.0
        %3175 = vmatpush1.msra.mxu0 0.0
        %3176 = vmatprep.subr.mxu0 0.0
        %3177 = vmatpush1.msra.mxu0 0.0
        %3178 = vmatprep.subr.mxu0 0.0
        %3179 = vmatpush1.msra.mxu0 0.0
        %3180 = vmatprep.subr.mxu0 0.0
        %3181 = vmatpush1.msra.mxu0 0.0
        %3182 = vmatprep.subr.mxu0 0.0
        %3183 = vmatpush1.msra.mxu0 0.0
        %3184 = vmatprep.subr.mxu0 0.0
        %3185 = vmatpush1.msra.mxu0 0.0
        %3186 = vmatprep.subr.mxu0 0.0
        %3187 = vmatpush1.msra.mxu0 0.0
        %3188 = vmatprep.subr.mxu0 0.0
        %3189 = vmatpush1.msra.mxu0 0.0
        %3190 = vmatprep.subr.mxu0 0.0
        %3191 = vmatpush1.msra.mxu0 0.0
        %3192 = vmatprep.subr.mxu0 0.0
        %3193 = vmatpush1.msra.mxu0 0.0
        %3194 = vmatprep.subr.mxu0 0.0
        %3195 = vmatpush1.msra.mxu0 0.0
        %3196 = vmatprep.subr.mxu0 0.0
        %3197 = vmatpush1.msra.mxu0 0.0
        %3198 = vmatprep.subr.mxu0 0.0
        %3199 = vmatpush1.msra.mxu0 0.0
        %3200 = vmatprep.subr.mxu0 0.0
        %3201 = vmatpush1.msra.mxu0 0.0
        %3202 = vmatprep.subr.mxu0 0.0
        %3203 = vmatpush1.msra.mxu0 0.0
        %3204 = vmatprep.subr.mxu0 0.0
        %3205 = vmatpush1.msra.mxu0 0.0
        %3206 = vmatprep.subr.mxu0 0.0
        %3207 = vmatpush1.msra.mxu0 0.0
        %3208 = vmatprep.subr.mxu0 0.0
        %3209 = vmatpush1.msra.mxu0 0.0
        %3210 = vmatprep.subr.mxu0 0.0
        %3211 = vmatpush1.msra.mxu0 0.0
        %3212 = vmatprep.subr.mxu0 0.0
        %3213 = vmatpush1.msra.mxu0 0.0
        %3214 = vmatprep.subr.mxu0 0.0
        %3215 = vmatpush1.msra.mxu0 0.0
        %3216 = vmatprep.subr.mxu0 0.0
        %3217 = vmatpush1.msra.mxu0 0.0
        %3218 = vmatprep.subr.mxu0 0.0
        %3219 = vmatpush1.msra.mxu0 0.0
        %3220 = vmatprep.mubr.f32.mxu0 0.0
        %3221 = vmatmul.mubr.f32.gmra.mrb[0].mxu0 %v1473
        %v3222 = vpop.f32.mrb[0].mxu0
        %v3223 = vadd.f32 0.0, %v3222
        %v3224 = vpop.f32.mrb[0].mxu0
        %3225 = vmatprep.mubr.f32.mxu0 0.0
        %3226 = vmatmul.mubr.f32.gmra.mrb[0].mxu0 %v1475
        %v3227 = vpop.f32.mrb[0].mxu0
        %v3228 = vadd.f32 0.0, %v3227
        %v3229 = vpop.f32.mrb[0].mxu0
        %3230 = vmatprep.mubr.f32.mxu0 0.0
        %3231 = vmatmul.mubr.f32.gmra.mrb[0].mxu0 %v1477
        %v3232 = vpop.f32.mrb[0].mxu0
        %v3233 = vadd.f32 0.0, %v3232
        %v3234 = vpop.f32.mrb[0].mxu0
        %3235 = vmatprep.mubr.f32.mxu0 0.0
        %3236 = vmatmul.mubr.f32.gmra.mrb[0].mxu0 %v1479
        %v3237 = vpop.f32.mrb[0].mxu0
        %v3238 = vadd.f32 0.0, %v3237
        %v3239 = vpop.f32.mrb[0].mxu0
        %3240 = vmatprep.mubr.f32.mxu0 0.0
        %3241 = vmatmul.mubr.f32.gmra.mrb[0].mxu0 %v1481
        %v3242 = vpop.f32.mrb[0].mxu0
        %v3243 = vadd.f32 0.0, %v3242
        %v3244 = vpop.f32.mrb[0].mxu0
        %3245 = vmatprep.mubr.f32.mxu0 0.0
        %3246 = vmatmul.mubr.f32.gmra.mrb[0].mxu0 %v1483
        %v3247 = vpop.f32.mrb[0].mxu0
        %v3248 = vadd.f32 0.0, %v3247
        %v3249 = vpop.f32.mrb[0].mxu0
        %3250 = vmatprep.mubr.f32.mxu0 0.0
        %3251 = vmatmul.mubr.f32.gmra.mrb[0].mxu0 %v1485
        %v3252 = vpop.f32.mrb[0].mxu0
        %v3253 = vadd.f32 0.0, %v3252
        %v3254 = vpop.f32.mrb[0].mxu0
        %3255 = vmatprep.mubr.f32.mxu0 0.0
        %3256 = vmatmul.mubr.f32.gmra.mrb[0].mxu0 %v1487
        %v3257 = vpop.f32.mrb[0].mxu0
        %v3258 = vadd.f32 0.0, %v3257
        %v3259 = vpop.f32.mrb[0].mxu0
        %3260 = vmatprep.mubr.f32.mxu0 0.0
        %3261 = vmatmul.mubr.f32.gmra.mrb[0].mxu0 %v1489
        %v3262 = vpop.f32.mrb[0].mxu0
        %v3263 = vadd.f32 0.0, %v3262
        %v3264 = vpop.f32.mrb[0].mxu0
        %3265 = vmatprep.mubr.f32.mxu0 0.0
        %3266 = vmatmul.mubr.f32.gmra.mrb[0].mxu0 %v1491
        %v3267 = vpop.f32.mrb[0].mxu0
        %v3268 = vadd.f32 0.0, %v3267
        %v3269 = vpop.f32.mrb[0].mxu0
        %3270 = vmatprep.mubr.f32.mxu0 0.0
        %3271 = vmatmul.mubr.f32.gmra.mrb[0].mxu0 %v1493
        %v3272 = vpop.f32.mrb[0].mxu0
        %v3273 = vadd.f32 0.0, %v3272
        %v3274 = vpop.f32.mrb[0].mxu0
        %3275 = vmatprep.mubr.f32.mxu0 0.0
        %3276 = vmatmul.mubr.f32.gmra.mrb[0].mxu0 %v1495
        %v3277 = vpop.f32.mrb[0].mxu0
        %v3278 = vadd.f32 0.0, %v3277
        %v3279 = vpop.f32.mrb[0].mxu0
        %3280 = vmatprep.mubr.f32.mxu0 0.0
        %3281 = vmatmul.mubr.f32.gmra.mrb[0].mxu0 %v1497
        %v3282 = vpop.f32.mrb[0].mxu0
        %v3283 = vadd.f32 0.0, %v3282
        %v3284 = vpop.f32.mrb[0].mxu0
        %3285 = vmatprep.mubr.f32.mxu0 0.0
        %3286 = vmatmul.mubr.f32.gmra.mrb[0].mxu0 %v1499
        %v3287 = vpop.f32.mrb[0].mxu0
        %v3288 = vadd.f32 0.0, %v3287
        %v3289 = vpop.f32.mrb[0].mxu0
        %3290 = vmatprep.mubr.f32.mxu0 0.0
        %3291 = vmatmul.mubr.f32.gmra.mrb[0].mxu0 %v1501
        %v3292 = vpop.f32.mrb[0].mxu0
        %v3293 = vadd.f32 0.0, %v3292
        %v3294 = vpop.f32.mrb[0].mxu0
        %3295 = vmatprep.mubr.f32.mxu0 0.0
        %3296 = vmatmul.mubr.f32.gmra.mrb[0].mxu0 %v1503
        %v3297 = vpop.f32.mrb[0].mxu0
        %v3298 = vadd.f32 0.0, %v3297
        %v3299 = vpop.f32.mrb[0].mxu0
        %3300 = vmatprep.mubr.f32.mxu0 0.0
        %3301 = vmatmul.mubr.f32.gmra.mrb[0].mxu0 %v1505
        %v3302 = vpop.f32.mrb[0].mxu0
        %v3303 = vadd.f32 0.0, %v3302
        %v3304 = vpop.f32.mrb[0].mxu0
        %3305 = vmatprep.mubr.f32.mxu0 0.0
        %3306 = vmatmul.mubr.f32.gmra.mrb[0].mxu0 %v1507
        %v3307 = vpop.f32.mrb[0].mxu0
        %v3308 = vadd.f32 0.0, %v3307
        %v3309 = vpop.f32.mrb[0].mxu0
        %3310 = vmatprep.mubr.f32.mxu0 0.0
        %3311 = vmatmul.mubr.f32.gmra.mrb[0].mxu0 %v1509
        %v3312 = vpop.f32.mrb[0].mxu0
        %v3313 = vadd.f32 0.0, %v3312
        %v3314 = vpop.f32.mrb[0].mxu0
        %3315 = vmatprep.mubr.f32.mxu0 0.0
        %3316 = vmatmul.mubr.f32.gmra.mrb[0].mxu0 %v1511
        %v3317 = vpop.f32.mrb[0].mxu0
        %v3318 = vadd.f32 0.0, %v3317
        %v3319 = vpop.f32.mrb[0].mxu0
        %3320 = vmatprep.mubr.f32.mxu0 0.0
        %3321 = vmatmul.mubr.f32.gmra.mrb[0].mxu0 %v1513
        %v3322 = vpop.f32.mrb[0].mxu0
        %v3323 = vadd.f32 0.0, %v3322
        %v3324 = vpop.f32.mrb[0].mxu0
        %3325 = vmatprep.mubr.f32.mxu0 0.0
        %3326 = vmatmul.mubr.f32.gmra.mrb[0].mxu0 %v1515
        %v3327 = vpop.f32.mrb[0].mxu0
        %v3328 = vadd.f32 0.0, %v3327
        %v3329 = vpop.f32.mrb[0].mxu0
        %3330 = vmatprep.mubr.f32.mxu0 0.0
        %3331 = vmatmul.mubr.f32.gmra.mrb[0].mxu0 %v1517
        %v3332 = vpop.f32.mrb[0].mxu0
        %v3333 = vadd.f32 0.0, %v3332
        %v3334 = vpop.f32.mrb[0].mxu0
        %3335 = vmatprep.mubr.f32.mxu0 0.0
        %3336 = vmatmul.mubr.f32.gmra.mrb[0].mxu0 %v1519
        %v3337 = vpop.f32.mrb[0].mxu0
        %v3338 = vadd.f32 0.0, %v3337
        %v3339 = vpop.f32.mrb[0].mxu0
        %3340 = vmatprep.mubr.f32.mxu0 0.0
        %3341 = vmatmul.mubr.f32.gmra.mrb[0].mxu0 %v1521
        %v3342 = vpop.f32.mrb[0].mxu0
        %v3343 = vadd.f32 0.0, %v3342
        %v3344 = vpop.f32.mrb[0].mxu0
        %3345 = vmatprep.mubr.f32.mxu0 0.0
        %3346 = vmatmul.mubr.f32.gmra.mrb[0].mxu0 %v1523
        %v3347 = vpop.f32.mrb[0].mxu0
        %v3348 = vadd.f32 0.0, %v3347
        %v3349 = vpop.f32.mrb[0].mxu0
        %3350 = vmatprep.mubr.f32.mxu0 0.0
        %3351 = vmatmul.mubr.f32.gmra.mrb[0].mxu0 %v1525
        %v3352 = vpop.f32.mrb[0].mxu0
        %v3353 = vadd.f32 0.0, %v3352
        %v3354 = vpop.f32.mrb[0].mxu0
        %3355 = vmatprep.mubr.f32.mxu0 0.0
        %3356 = vmatmul.mubr.f32.gmra.mrb[0].mxu0 %v1527
        %v3357 = vpop.f32.mrb[0].mxu0
        %v3358 = vadd.f32 0.0, %v3357
        %v3359 = vpop.f32.mrb[0].mxu0
        %3360 = vmatprep.mubr.f32.mxu0 0.0
        %3361 = vmatmul.mubr.f32.gmra.mrb[0].mxu0 %v2337
        %v3362 = vpop.f32.mrb[0].mxu0
        %v3363 = vadd.f32 0.0, %v3362
        %v3364 = vpop.f32.mrb[0].mxu0
        %3365 = vmatprep.mubr.f32.mxu0 0.0
        %3366 = vmatmul.mubr.f32.gmra.mrb[0].mxu0 %v2339
        %v3367 = vpop.f32.mrb[0].mxu0
        %v3368 = vadd.f32 0.0, %v3367
        %v3369 = vpop.f32.mrb[0].mxu0
        %3370 = vmatprep.mubr.f32.mxu0 0.0
        %3371 = vmatmul.mubr.f32.gmra.mrb[0].mxu0 %v3149
        %v3372 = vpop.f32.mrb[0].mxu0
        %v3373 = vadd.f32 0.0, %v3372
        %v3374 = vpop.f32.mrb[0].mxu0
        %3375 = vmatprep.mubr.f32.mxu0 0.0
        %3376 = vmatmul.mubr.f32.gmra.mrb[0].mxu0 %v3151
        %v3377 = vpop.f32.mrb[0].mxu0
        %v3378 = vadd.f32 0.0, %v3377
        %v3379 = vpop.f32.mrb[0].mxu0
        %3380 = vdwg.mxu0
        %v3381 = vadd.f32 %v3109, %v3223
        %v3382 = vadd.f32 %v3110, %v3228
        %v3383 = vadd.f32 %v3111, %v3233
        %v3384 = vadd.f32 %v3112, %v3238
        %v3385 = vadd.f32 %v3113, %v3243
        %v3386 = vadd.f32 %v3114, %v3248
        %v3387 = vadd.f32 %v3115, %v3253
        %v3388 = vadd.f32 %v3116, %v3258
        %v3389 = vadd.f32 %v3117, %v3263
        %v3390 = vadd.f32 %v3118, %v3268
        %v3391 = vadd.f32 %v3119, %v3273
        %v3392 = vadd.f32 %v3120, %v3278
        %v3393 = vadd.f32 %v3121, %v3283
        %v3394 = vadd.f32 %v3122, %v3288
        %v3395 = vadd.f32 %v3123, %v3293
        %v3396 = vadd.f32 %v3124, %v3298
        %v3397 = vadd.f32 %v3125, %v3303
        %v3398 = vadd.f32 %v3126, %v3308
        %v3399 = vadd.f32 %v3127, %v3313
        %v3400 = vadd.f32 %v3128, %v3318
        %v3401 = vadd.f32 %v3129, %v3323
        %v3402 = vadd.f32 %v3130, %v3328
        %v3403 = vadd.f32 %v3131, %v3333
        %v3404 = vadd.f32 %v3132, %v3338
        %v3405 = vadd.f32 %v3133, %v3343
        %v3406 = vadd.f32 %v3134, %v3348
        %v3407 = vadd.f32 %v3135, %v3353
        %v3408 = vadd.f32 %v3136, %v3358
        %v3409 = vadd.f32 %v3137, %v3363
        %v3410 = vadd.f32 %v3138, %v3368
        %v3411 = vadd.f32 %v3139, %v3373
        %v3412 = vadd.f32 %v3140, %v3378
        %v3413 = vld [vmem:[%s2] sm:$0x1]
        %v3415 = vlaneseq
        %v3416 = vshrl.u32 %v3415, 7
        %v3417 = vsub.s32 0, %v3416
        %v3418 = vrot.slane %v3413, %v3417
        %v3420 = vadd.f32 %v3381, %v3418
        %v3421 = vadd.f32 %v3382, %v3418
        %v3422 = vadd.f32 %v3383, %v3418
        %v3423 = vadd.f32 %v3384, %v3418
        %v3424 = vadd.f32 %v3385, %v3418
        %v3425 = vadd.f32 %v3386, %v3418
        %v3426 = vadd.f32 %v3387, %v3418
        %v3427 = vadd.f32 %v3388, %v3418
        %v3428 = vadd.f32 %v3389, %v3418
        %v3429 = vadd.f32 %v3390, %v3418
        %v3430 = vadd.f32 %v3391, %v3418
        %v3431 = vadd.f32 %v3392, %v3418
        %v3432 = vadd.f32 %v3393, %v3418
        %v3433 = vadd.f32 %v3394, %v3418
        %v3434 = vadd.f32 %v3395, %v3418
        %v3435 = vadd.f32 %v3396, %v3418
        %v3436 = vadd.f32 %v3397, %v3418
        %v3437 = vadd.f32 %v3398, %v3418
        %v3438 = vadd.f32 %v3399, %v3418
        %v3439 = vadd.f32 %v3400, %v3418
        %v3440 = vadd.f32 %v3401, %v3418
        %v3441 = vadd.f32 %v3402, %v3418
        %v3442 = vadd.f32 %v3403, %v3418
        %v3443 = vadd.f32 %v3404, %v3418
        %v3444 = vadd.f32 %v3405, %v3418
        %v3445 = vadd.f32 %v3406, %v3418
        %v3446 = vadd.f32 %v3407, %v3418
        %v3447 = vadd.f32 %v3408, %v3418
        %v3448 = vadd.f32 %v3409, %v3418
        %v3449 = vadd.f32 %v3410, %v3418
        %v3450 = vadd.f32 %v3411, %v3418
        %v3451 = vadd.f32 %v3412, %v3418
        %vm3452 = vcmp.gt.f32.partialorder %v3420, 0.0
        %vm3453 = vcmp.gt.f32.partialorder %v3421, 0.0
        %vm3454 = vcmp.gt.f32.partialorder %v3422, 0.0
        %vm3455 = vcmp.gt.f32.partialorder %v3423, 0.0
        %vm3456 = vcmp.gt.f32.partialorder %v3424, 0.0
        %vm3457 = vcmp.gt.f32.partialorder %v3425, 0.0
        %vm3458 = vcmp.gt.f32.partialorder %v3426, 0.0
        %vm3459 = vcmp.gt.f32.partialorder %v3427, 0.0
        %vm3460 = vcmp.gt.f32.partialorder %v3428, 0.0
        %vm3461 = vcmp.gt.f32.partialorder %v3429, 0.0
        %vm3462 = vcmp.gt.f32.partialorder %v3430, 0.0
        %vm3463 = vcmp.gt.f32.partialorder %v3431, 0.0
        %vm3464 = vcmp.gt.f32.partialorder %v3432, 0.0
        %vm3465 = vcmp.gt.f32.partialorder %v3433, 0.0
        %vm3466 = vcmp.gt.f32.partialorder %v3434, 0.0
        %vm3467 = vcmp.gt.f32.partialorder %v3435, 0.0
        %vm3468 = vcmp.gt.f32.partialorder %v3436, 0.0
        %vm3469 = vcmp.gt.f32.partialorder %v3437, 0.0
        %vm3470 = vcmp.gt.f32.partialorder %v3438, 0.0
        %vm3471 = vcmp.gt.f32.partialorder %v3439, 0.0
        %vm3472 = vcmp.gt.f32.partialorder %v3440, 0.0
        %vm3473 = vcmp.gt.f32.partialorder %v3441, 0.0
        %vm3474 = vcmp.gt.f32.partialorder %v3442, 0.0
        %vm3475 = vcmp.gt.f32.partialorder %v3443, 0.0
        %vm3476 = vcmp.gt.f32.partialorder %v3444, 0.0
        %vm3477 = vcmp.gt.f32.partialorder %v3445, 0.0
        %vm3478 = vcmp.gt.f32.partialorder %v3446, 0.0
        %vm3479 = vcmp.gt.f32.partialorder %v3447, 0.0
        %vm3480 = vcmp.gt.f32.partialorder %v3448, 0.0
        %vm3481 = vcmp.gt.f32.partialorder %v3449, 0.0
        %vm3482 = vcmp.gt.f32.partialorder %v3450, 0.0
        %vm3483 = vcmp.gt.f32.partialorder %v3451, 0.0
        %v3484 = vmul.f32 %v3420, 0.01
        %v3485 = vmul.f32 %v3421, 0.01
        %v3486 = vmul.f32 %v3422, 0.01
        %v3487 = vmul.f32 %v3423, 0.01
        %v3488 = vmul.f32 %v3424, 0.01
        %v3489 = vmul.f32 %v3425, 0.01
        %v3490 = vmul.f32 %v3426, 0.01
        %v3491 = vmul.f32 %v3427, 0.01
        %v3492 = vmul.f32 %v3428, 0.01
        %v3493 = vmul.f32 %v3429, 0.01
        %v3494 = vmul.f32 %v3430, 0.01
        %v3495 = vmul.f32 %v3431, 0.01
        %v3496 = vmul.f32 %v3432, 0.01
        %v3497 = vmul.f32 %v3433, 0.01
        %v3498 = vmul.f32 %v3434, 0.01
        %v3499 = vmul.f32 %v3435, 0.01
        %v3500 = vmul.f32 %v3436, 0.01
        %v3501 = vmul.f32 %v3437, 0.01
        %v3502 = vmul.f32 %v3438, 0.01
        %v3503 = vmul.f32 %v3439, 0.01
        %v3504 = vmul.f32 %v3440, 0.01
        %v3505 = vmul.f32 %v3441, 0.01
        %v3506 = vmul.f32 %v3442, 0.01
        %v3507 = vmul.f32 %v3443, 0.01
        %v3508 = vmul.f32 %v3444, 0.01
        %v3509 = vmul.f32 %v3445, 0.01
        %v3510 = vmul.f32 %v3446, 0.01
        %v3511 = vmul.f32 %v3447, 0.01
        %v3512 = vmul.f32 %v3448, 0.01
        %v3513 = vmul.f32 %v3449, 0.01
        %v3514 = vmul.f32 %v3450, 0.01
        %v3515 = vmul.f32 %v3451, 0.01
        %v3516 = vsel %vm3452, %v3420, %v3484
        %v3517 = vsel %vm3453, %v3421, %v3485
        %v3518 = vsel %vm3454, %v3422, %v3486
        %v3519 = vsel %vm3455, %v3423, %v3487
        %v3520 = vsel %vm3456, %v3424, %v3488
        %v3521 = vsel %vm3457, %v3425, %v3489
        %v3522 = vsel %vm3458, %v3426, %v3490
        %v3523 = vsel %vm3459, %v3427, %v3491
        %v3524 = vsel %vm3460, %v3428, %v3492
        %v3525 = vsel %vm3461, %v3429, %v3493
        %v3526 = vsel %vm3462, %v3430, %v3494
        %v3527 = vsel %vm3463, %v3431, %v3495
        %v3528 = vsel %vm3464, %v3432, %v3496
        %v3529 = vsel %vm3465, %v3433, %v3497
        %v3530 = vsel %vm3466, %v3434, %v3498
        %v3531 = vsel %vm3467, %v3435, %v3499
        %v3532 = vsel %vm3468, %v3436, %v3500
        %v3533 = vsel %vm3469, %v3437, %v3501
        %v3534 = vsel %vm3470, %v3438, %v3502
        %v3535 = vsel %vm3471, %v3439, %v3503
        %v3536 = vsel %vm3472, %v3440, %v3504
        %v3537 = vsel %vm3473, %v3441, %v3505
        %v3538 = vsel %vm3474, %v3442, %v3506
        %v3539 = vsel %vm3475, %v3443, %v3507
        %v3540 = vsel %vm3476, %v3444, %v3508
        %v3541 = vsel %vm3477, %v3445, %v3509
        %v3542 = vsel %vm3478, %v3446, %v3510
        %v3543 = vsel %vm3479, %v3447, %v3511
        %v3544 = vsel %vm3480, %v3448, %v3512
        %v3545 = vsel %vm3481, %v3449, %v3513
        %v3546 = vsel %vm3482, %v3450, %v3514
        %v3547 = vsel %vm3483, %v3451, %v3515
        %s3548 = scalar_lea.vmem [#allocation3], 64
        %3549 = vst.msk [vmem:[%s3548 + $0x8] sm:$0xff] %vm430, %v3516
        %3550 = vst.msk [vmem:[%s3548 + $0x10] sm:$0xff] %vm430, %v3517
        %3551 = vst.msk [vmem:[%s3548 + $0x28] sm:$0xff] %vm430, %v3518
        %3552 = vst.msk [vmem:[%s3548 + $0x30] sm:$0xff] %vm430, %v3519
        %3553 = vst.msk [vmem:[%s3548 + $0x48] sm:$0xff] %vm430, %v3520
        %3554 = vst.msk [vmem:[%s3548 + $0x50] sm:$0xff] %vm430, %v3521
        %3555 = vst.msk [vmem:[%s3548 + $0x68] sm:$0xff] %vm430, %v3522
        %3556 = vst.msk [vmem:[%s3548 + $0x70] sm:$0xff] %vm430, %v3523
        %3557 = vst.msk [vmem:[%s3548 + $0x88] sm:$0xff] %vm430, %v3524
        %3558 = vst.msk [vmem:[%s3548 + $0x90] sm:$0xff] %vm430, %v3525
        %3559 = vst.msk [vmem:[%s3548 + $0xa8] sm:$0xff] %vm430, %v3526
        %3560 = vst.msk [vmem:[%s3548 + $0xb0] sm:$0xff] %vm430, %v3527
        %3561 = vst.msk [vmem:[%s3548 + $0xc8] sm:$0xff] %vm430, %v3528
        %3562 = vst.msk [vmem:[%s3548 + $0xd0] sm:$0xff] %vm430, %v3529
        %3563 = vst.msk [vmem:[%s3548 + $0xe8] sm:$0xff] %vm430, %v3530
        %3564 = vst.msk [vmem:[%s3548 + $0xf0] sm:$0xff] %vm430, %v3531
        %3565 = vst.msk [vmem:[%s3548 + $0x108] sm:$0xff] %vm430, %v3532
        %3566 = vst.msk [vmem:[%s3548 + $0x110] sm:$0xff] %vm430, %v3533
        %3567 = vst.msk [vmem:[%s3548 + $0x128] sm:$0xff] %vm430, %v3534
        %3568 = vst.msk [vmem:[%s3548 + $0x130] sm:$0xff] %vm430, %v3535
        %3569 = vst.msk [vmem:[%s3548 + $0x148] sm:$0xff] %vm430, %v3536
        %3570 = vst.msk [vmem:[%s3548 + $0x150] sm:$0xff] %vm430, %v3537
        %3571 = vst.msk [vmem:[%s3548 + $0x168] sm:$0xff] %vm430, %v3538
        %3572 = vst.msk [vmem:[%s3548 + $0x170] sm:$0xff] %vm430, %v3539
        %3573 = vst.msk [vmem:[%s3548 + $0x188] sm:$0xff] %vm430, %v3540
        %3574 = vst.msk [vmem:[%s3548 + $0x190] sm:$0xff] %vm430, %v3541
        %3575 = vst.msk [vmem:[%s3548 + $0x1a8] sm:$0xff] %vm430, %v3542
        %3576 = vst.msk [vmem:[%s3548 + $0x1b0] sm:$0xff] %vm430, %v3543
        %3577 = vst.msk [vmem:[%s3548 + $0x1c8] sm:$0xff] %vm430, %v3544
        %3578 = vst.msk [vmem:[%s3548 + $0x1d0] sm:$0xff] %vm430, %v3545
        %3579 = vst.msk [vmem:[%s3548 + $0x1e8] sm:$0xff] %vm430, %v3546
        %3580 = vst.msk [vmem:[%s3548 + $0x1f0] sm:$0xff] %vm430, %v3547
        %s3581 = scalar_lea.vmem [#allocation3], 6
        %v3582 = vld [vmem:[%s3581] ss:$2 sm:$0xff]
        %s3583 = scalar_lea.vmem [#allocation3], 70
        %v3584 = vld [vmem:[%s3583] ss:$2 sm:$0xff]
        %s3585 = scalar_lea.vmem [#allocation3], 134
        %v3586 = vld [vmem:[%s3585] ss:$2 sm:$0xff]
        %s3587 = scalar_lea.vmem [#allocation3], 198
        %v3588 = vld [vmem:[%s3587] ss:$2 sm:$0xff]
        %s3589 = scalar_lea.vmem [#allocation3], 262
        %v3590 = vld [vmem:[%s3589] ss:$2 sm:$0xff]
        %s3591 = scalar_lea.vmem [#allocation3], 326
        %v3592 = vld [vmem:[%s3591] ss:$2 sm:$0xff]
        %s3593 = scalar_lea.vmem [#allocation3], 390
        %v3594 = vld [vmem:[%s3593] ss:$2 sm:$0xff]
        %s3595 = scalar_lea.vmem [#allocation3], 454
        %v3596 = vld [vmem:[%s3595] ss:$2 sm:$0xff]
        %v3597 = vld [vmem:[%s3] sm:$0xff]
        %s3598 = scalar_lea.vmem [#allocation3], 7
        %v3599 = vld [vmem:[%s3598] ss:$2 sm:$0xff]
        %s3600 = scalar_lea.vmem [#allocation3], 71
        %v3601 = vld [vmem:[%s3600] ss:$2 sm:$0xff]
        %s3602 = scalar_lea.vmem [#allocation3], 135
        %v3603 = vld [vmem:[%s3602] ss:$2 sm:$0xff]
        %s3604 = scalar_lea.vmem [#allocation3], 199
        %v3605 = vld [vmem:[%s3604] ss:$2 sm:$0xff]
        %s3606 = scalar_lea.vmem [#allocation3], 263
        %v3607 = vld [vmem:[%s3606] ss:$2 sm:$0xff]
        %s3608 = scalar_lea.vmem [#allocation3], 327
        %v3609 = vld [vmem:[%s3608] ss:$2 sm:$0xff]
        %s3610 = scalar_lea.vmem [#allocation3], 391
        %v3611 = vld [vmem:[%s3610] ss:$2 sm:$0xff]
        %s3612 = scalar_lea.vmem [#allocation3], 455
        %v3613 = vld [vmem:[%s3612] ss:$2 sm:$0xff]
        %s3614 = scalar_lea.vmem %s3, 8
        %v3615 = vld [vmem:[%s3614] sm:$0xff]
        %v3617 = vsel %vm430, %v3599, 0
        %v3620 = vsel %vm430, %v3601, 0
        %v3623 = vsel %vm430, %v3603, 0
        %v3626 = vsel %vm430, %v3605, 0
        %v3629 = vsel %vm430, %v3607, 0
        %v3632 = vsel %vm430, %v3609, 0
        %v3635 = vsel %vm430, %v3611, 0
        %v3638 = vsel %vm430, %v3613, 0
        %3640 = vmatprep.subr.mxu0 0.0
        %3641 = vmatpush1.msra.mxu0 %v3615
        %3642 = vmatprep.subr.mxu0 0.0
        %3643 = vmatpush1.msra.mxu0 0.0
        %3644 = vmatprep.subr.mxu0 0.0
        %3645 = vmatpush1.msra.mxu0 0.0
        %3646 = vmatprep.subr.mxu0 0.0
        %3647 = vmatpush1.msra.mxu0 0.0
        %3648 = vmatprep.subr.mxu0 0.0
        %3649 = vmatpush1.msra.mxu0 0.0
        %3650 = vmatprep.subr.mxu0 0.0
        %3651 = vmatpush1.msra.mxu0 0.0
        %3652 = vmatprep.subr.mxu0 0.0
        %3653 = vmatpush1.msra.mxu0 0.0
        %3654 = vmatprep.subr.mxu0 0.0
        %3655 = vmatpush1.msra.mxu0 0.0
        %3656 = vmatprep.subr.mxu0 0.0
        %3657 = vmatpush1.msra.mxu0 0.0
        %3658 = vmatprep.subr.mxu0 0.0
        %3659 = vmatpush1.msra.mxu0 0.0
        %3660 = vmatprep.subr.mxu0 0.0
        %3661 = vmatpush1.msra.mxu0 0.0
        %3662 = vmatprep.subr.mxu0 0.0
        %3663 = vmatpush1.msra.mxu0 0.0
        %3664 = vmatprep.subr.mxu0 0.0
        %3665 = vmatpush1.msra.mxu0 0.0
        %3666 = vmatprep.subr.mxu0 0.0
        %3667 = vmatpush1.msra.mxu0 0.0
        %3668 = vmatprep.subr.mxu0 0.0
        %3669 = vmatpush1.msra.mxu0 0.0
        %3670 = vmatprep.subr.mxu0 0.0
        %3671 = vmatpush1.msra.mxu0 0.0
        %3672 = vmatprep.subr.mxu0 0.0
        %3673 = vmatpush1.msra.mxu0 0.0
        %3674 = vmatprep.subr.mxu0 0.0
        %3675 = vmatpush1.msra.mxu0 0.0
        %3676 = vmatprep.subr.mxu0 0.0
        %3677 = vmatpush1.msra.mxu0 0.0
        %3678 = vmatprep.subr.mxu0 0.0
        %3679 = vmatpush1.msra.mxu0 0.0
        %3680 = vmatprep.subr.mxu0 0.0
        %3681 = vmatpush1.msra.mxu0 0.0
        %3682 = vmatprep.subr.mxu0 0.0
        %3683 = vmatpush1.msra.mxu0 0.0
        %3684 = vmatprep.subr.mxu0 0.0
        %3685 = vmatpush1.msra.mxu0 0.0
        %3686 = vmatprep.subr.mxu0 0.0
        %3687 = vmatpush1.msra.mxu0 0.0
        %3688 = vmatprep.subr.mxu0 0.0
        %3689 = vmatpush1.msra.mxu0 0.0
        %3690 = vmatprep.subr.mxu0 0.0
        %3691 = vmatpush1.msra.mxu0 0.0
        %3692 = vmatprep.subr.mxu0 0.0
        %3693 = vmatpush1.msra.mxu0 0.0
        %3694 = vmatprep.subr.mxu0 0.0
        %3695 = vmatpush1.msra.mxu0 0.0
        %3696 = vmatprep.subr.mxu0 0.0
        %3697 = vmatpush1.msra.mxu0 0.0
        %3698 = vmatprep.subr.mxu0 0.0
        %3699 = vmatpush1.msra.mxu0 0.0
        %3700 = vmatprep.subr.mxu0 0.0
        %3701 = vmatpush1.msra.mxu0 0.0
        %3702 = vmatprep.subr.mxu0 0.0
        %3703 = vmatpush1.msra.mxu0 0.0
        %3704 = vmatprep.mubr.f32.mxu0 0.0
        %3705 = vmatmul.mubr.f32.gmra.mrb[0].mxu0 %v3617
        %v3706 = vpop.f32.mrb[0].mxu0
        %v3707 = vadd.f32 0.0, %v3706
        %v3708 = vpop.f32.mrb[0].mxu0
        %3709 = vmatprep.mubr.f32.mxu0 0.0
        %3710 = vmatmul.mubr.f32.gmra.mrb[0].mxu0 %v3620
        %v3711 = vpop.f32.mrb[0].mxu0
        %v3712 = vadd.f32 0.0, %v3711
        %v3713 = vpop.f32.mrb[0].mxu0
        %3714 = vmatprep.mubr.f32.mxu0 0.0
        %3715 = vmatmul.mubr.f32.gmra.mrb[0].mxu0 %v3623
        %v3716 = vpop.f32.mrb[0].mxu0
        %v3717 = vadd.f32 0.0, %v3716
        %v3718 = vpop.f32.mrb[0].mxu0
        %3719 = vmatprep.mubr.f32.mxu0 0.0
        %3720 = vmatmul.mubr.f32.gmra.mrb[0].mxu0 %v3626
        %v3721 = vpop.f32.mrb[0].mxu0
        %v3722 = vadd.f32 0.0, %v3721
        %v3723 = vpop.f32.mrb[0].mxu0
        %3724 = vmatprep.mubr.f32.mxu0 0.0
        %3725 = vmatmul.mubr.f32.gmra.mrb[0].mxu0 %v3629
        %v3726 = vpop.f32.mrb[0].mxu0
        %v3727 = vadd.f32 0.0, %v3726
        %v3728 = vpop.f32.mrb[0].mxu0
        %3729 = vmatprep.mubr.f32.mxu0 0.0
        %3730 = vmatmul.mubr.f32.gmra.mrb[0].mxu0 %v3632
        %v3731 = vpop.f32.mrb[0].mxu0
        %v3732 = vadd.f32 0.0, %v3731
        %v3733 = vpop.f32.mrb[0].mxu0
        %3734 = vmatprep.mubr.f32.mxu0 0.0
        %3735 = vmatmul.mubr.f32.gmra.mrb[0].mxu0 %v3635
        %v3736 = vpop.f32.mrb[0].mxu0
        %v3737 = vadd.f32 0.0, %v3736
        %v3738 = vpop.f32.mrb[0].mxu0
        %3739 = vmatprep.mubr.f32.mxu0 0.0
        %3740 = vmatmul.mubr.f32.gmra.mrb[0].mxu0 %v3638
        %v3741 = vpop.f32.mrb[0].mxu0
        %v3742 = vadd.f32 0.0, %v3741
        %v3743 = vpop.f32.mrb[0].mxu0
        %3744 = vdwg.mxu0
        %v3746 = vsel %vm430, %v3582, 0
        %v3749 = vsel %vm430, %v3584, 0
        %v3752 = vsel %vm430, %v3586, 0
        %v3755 = vsel %vm430, %v3588, 0
        %v3758 = vsel %vm430, %v3590, 0
        %v3761 = vsel %vm430, %v3592, 0
        %v3764 = vsel %vm430, %v3594, 0
        %v3767 = vsel %vm430, %v3596, 0
        %3769 = vmatprep.subr.mxu0 0.0
        %3770 = vmatpush1.msra.mxu0 %v3597
        %3771 = vmatprep.subr.mxu0 0.0
        %3772 = vmatpush1.msra.mxu0 0.0
        %3773 = vmatprep.subr.mxu0 0.0
        %3774 = vmatpush1.msra.mxu0 0.0
        %3775 = vmatprep.subr.mxu0 0.0
        %3776 = vmatpush1.msra.mxu0 0.0
        %3777 = vmatprep.subr.mxu0 0.0
        %3778 = vmatpush1.msra.mxu0 0.0
        %3779 = vmatprep.subr.mxu0 0.0
        %3780 = vmatpush1.msra.mxu0 0.0
        %3781 = vmatprep.subr.mxu0 0.0
        %3782 = vmatpush1.msra.mxu0 0.0
        %3783 = vmatprep.subr.mxu0 0.0
        %3784 = vmatpush1.msra.mxu0 0.0
        %3785 = vmatprep.subr.mxu0 0.0
        %3786 = vmatpush1.msra.mxu0 0.0
        %3787 = vmatprep.subr.mxu0 0.0
        %3788 = vmatpush1.msra.mxu0 0.0
        %3789 = vmatprep.subr.mxu0 0.0
        %3790 = vmatpush1.msra.mxu0 0.0
        %3791 = vmatprep.subr.mxu0 0.0
        %3792 = vmatpush1.msra.mxu0 0.0
        %3793 = vmatprep.subr.mxu0 0.0
        %3794 = vmatpush1.msra.mxu0 0.0
        %3795 = vmatprep.subr.mxu0 0.0
        %3796 = vmatpush1.msra.mxu0 0.0
        %3797 = vmatprep.subr.mxu0 0.0
        %3798 = vmatpush1.msra.mxu0 0.0
        %3799 = vmatprep.subr.mxu0 0.0
        %3800 = vmatpush1.msra.mxu0 0.0
        %3801 = vmatprep.subr.mxu0 0.0
        %3802 = vmatpush1.msra.mxu0 0.0
        %3803 = vmatprep.subr.mxu0 0.0
        %3804 = vmatpush1.msra.mxu0 0.0
        %3805 = vmatprep.subr.mxu0 0.0
        %3806 = vmatpush1.msra.mxu0 0.0
        %3807 = vmatprep.subr.mxu0 0.0
        %3808 = vmatpush1.msra.mxu0 0.0
        %3809 = vmatprep.subr.mxu0 0.0
        %3810 = vmatpush1.msra.mxu0 0.0
        %3811 = vmatprep.subr.mxu0 0.0
        %3812 = vmatpush1.msra.mxu0 0.0
        %3813 = vmatprep.subr.mxu0 0.0
        %3814 = vmatpush1.msra.mxu0 0.0
        %3815 = vmatprep.subr.mxu0 0.0
        %3816 = vmatpush1.msra.mxu0 0.0
        %3817 = vmatprep.subr.mxu0 0.0
        %3818 = vmatpush1.msra.mxu0 0.0
        %3819 = vmatprep.subr.mxu0 0.0
        %3820 = vmatpush1.msra.mxu0 0.0
        %3821 = vmatprep.subr.mxu0 0.0
        %3822 = vmatpush1.msra.mxu0 0.0
        %3823 = vmatprep.subr.mxu0 0.0
        %3824 = vmatpush1.msra.mxu0 0.0
        %3825 = vmatprep.subr.mxu0 0.0
        %3826 = vmatpush1.msra.mxu0 0.0
        %3827 = vmatprep.subr.mxu0 0.0
        %3828 = vmatpush1.msra.mxu0 0.0
        %3829 = vmatprep.subr.mxu0 0.0
        %3830 = vmatpush1.msra.mxu0 0.0
        %3831 = vmatprep.subr.mxu0 0.0
        %3832 = vmatpush1.msra.mxu0 0.0
        %3833 = vmatprep.mubr.f32.mxu0 0.0
        %3834 = vmatmul.mubr.f32.gmra.mrb[0].mxu0 %v3746
        %v3835 = vpop.f32.mrb[0].mxu0
        %v3836 = vadd.f32 %v3707, %v3835
        %v3837 = vpop.f32.mrb[0].mxu0
        %3838 = vmatprep.mubr.f32.mxu0 0.0
        %3839 = vmatmul.mubr.f32.gmra.mrb[0].mxu0 %v3749
        %v3840 = vpop.f32.mrb[0].mxu0
        %v3841 = vadd.f32 %v3712, %v3840
        %v3842 = vpop.f32.mrb[0].mxu0
        %3843 = vmatprep.mubr.f32.mxu0 0.0
        %3844 = vmatmul.mubr.f32.gmra.mrb[0].mxu0 %v3752
        %v3845 = vpop.f32.mrb[0].mxu0
        %v3846 = vadd.f32 %v3717, %v3845
        %v3847 = vpop.f32.mrb[0].mxu0
        %3848 = vmatprep.mubr.f32.mxu0 0.0
        %3849 = vmatmul.mubr.f32.gmra.mrb[0].mxu0 %v3755
        %v3850 = vpop.f32.mrb[0].mxu0
        %v3851 = vadd.f32 %v3722, %v3850
        %v3852 = vpop.f32.mrb[0].mxu0
        %3853 = vmatprep.mubr.f32.mxu0 0.0
        %3854 = vmatmul.mubr.f32.gmra.mrb[0].mxu0 %v3758
        %v3855 = vpop.f32.mrb[0].mxu0
        %v3856 = vadd.f32 %v3727, %v3855
        %v3857 = vpop.f32.mrb[0].mxu0
        %3858 = vmatprep.mubr.f32.mxu0 0.0
        %3859 = vmatmul.mubr.f32.gmra.mrb[0].mxu0 %v3761
        %v3860 = vpop.f32.mrb[0].mxu0
        %v3861 = vadd.f32 %v3732, %v3860
        %v3862 = vpop.f32.mrb[0].mxu0
        %3863 = vmatprep.mubr.f32.mxu0 0.0
        %3864 = vmatmul.mubr.f32.gmra.mrb[0].mxu0 %v3764
        %v3865 = vpop.f32.mrb[0].mxu0
        %v3866 = vadd.f32 %v3737, %v3865
        %v3867 = vpop.f32.mrb[0].mxu0
        %3868 = vmatprep.mubr.f32.mxu0 0.0
        %3869 = vmatmul.mubr.f32.gmra.mrb[0].mxu0 %v3767
        %v3870 = vpop.f32.mrb[0].mxu0
        %v3871 = vadd.f32 %v3742, %v3870
        %v3872 = vpop.f32.mrb[0].mxu0
        %3873 = vdwg.mxu0
        %s3874 = scalar_lea.vmem [#allocation3], 8
        %v3875 = vld [vmem:[%s3874] ss:$2 sm:$0xff]
        %s3876 = scalar_lea.vmem [#allocation3], 72
        %v3877 = vld [vmem:[%s3876] ss:$2 sm:$0xff]
        %s3878 = scalar_lea.vmem [#allocation3], 136
        %v3879 = vld [vmem:[%s3878] ss:$2 sm:$0xff]
        %s3880 = scalar_lea.vmem [#allocation3], 200
        %v3881 = vld [vmem:[%s3880] ss:$2 sm:$0xff]
        %s3882 = scalar_lea.vmem [#allocation3], 264
        %v3883 = vld [vmem:[%s3882] ss:$2 sm:$0xff]
        %s3884 = scalar_lea.vmem [#allocation3], 328
        %v3885 = vld [vmem:[%s3884] ss:$2 sm:$0xff]
        %s3886 = scalar_lea.vmem [#allocation3], 392
        %v3887 = vld [vmem:[%s3886] ss:$2 sm:$0xff]
        %s3888 = scalar_lea.vmem [#allocation3], 456
        %v3889 = vld [vmem:[%s3888] ss:$2 sm:$0xff]
        %s3890 = scalar_lea.vmem %s3, 16
        %v3891 = vld [vmem:[%s3890] sm:$0xff]
        %v3893 = vsel %vm430, %v3875, 0
        %v3896 = vsel %vm430, %v3877, 0
        %v3899 = vsel %vm430, %v3879, 0
        %v3902 = vsel %vm430, %v3881, 0
        %v3905 = vsel %vm430, %v3883, 0
        %v3908 = vsel %vm430, %v3885, 0
        %v3911 = vsel %vm430, %v3887, 0
        %v3914 = vsel %vm430, %v3889, 0
        %3916 = vmatprep.subr.mxu0 0.0
        %3917 = vmatpush1.msra.mxu0 %v3891
        %3918 = vmatprep.subr.mxu0 0.0
        %3919 = vmatpush1.msra.mxu0 0.0
        %3920 = vmatprep.subr.mxu0 0.0
        %3921 = vmatpush1.msra.mxu0 0.0
        %3922 = vmatprep.subr.mxu0 0.0
        %3923 = vmatpush1.msra.mxu0 0.0
        %3924 = vmatprep.subr.mxu0 0.0
        %3925 = vmatpush1.msra.mxu0 0.0
        %3926 = vmatprep.subr.mxu0 0.0
        %3927 = vmatpush1.msra.mxu0 0.0
        %3928 = vmatprep.subr.mxu0 0.0
        %3929 = vmatpush1.msra.mxu0 0.0
        %3930 = vmatprep.subr.mxu0 0.0
        %3931 = vmatpush1.msra.mxu0 0.0
        %3932 = vmatprep.subr.mxu0 0.0
        %3933 = vmatpush1.msra.mxu0 0.0
        %3934 = vmatprep.subr.mxu0 0.0
        %3935 = vmatpush1.msra.mxu0 0.0
        %3936 = vmatprep.subr.mxu0 0.0
        %3937 = vmatpush1.msra.mxu0 0.0
        %3938 = vmatprep.subr.mxu0 0.0
        %3939 = vmatpush1.msra.mxu0 0.0
        %3940 = vmatprep.subr.mxu0 0.0
        %3941 = vmatpush1.msra.mxu0 0.0
        %3942 = vmatprep.subr.mxu0 0.0
        %3943 = vmatpush1.msra.mxu0 0.0
        %3944 = vmatprep.subr.mxu0 0.0
        %3945 = vmatpush1.msra.mxu0 0.0
        %3946 = vmatprep.subr.mxu0 0.0
        %3947 = vmatpush1.msra.mxu0 0.0
        %3948 = vmatprep.subr.mxu0 0.0
        %3949 = vmatpush1.msra.mxu0 0.0
        %3950 = vmatprep.subr.mxu0 0.0
        %3951 = vmatpush1.msra.mxu0 0.0
        %3952 = vmatprep.subr.mxu0 0.0
        %3953 = vmatpush1.msra.mxu0 0.0
        %3954 = vmatprep.subr.mxu0 0.0
        %3955 = vmatpush1.msra.mxu0 0.0
        %3956 = vmatprep.subr.mxu0 0.0
        %3957 = vmatpush1.msra.mxu0 0.0
        %3958 = vmatprep.subr.mxu0 0.0
        %3959 = vmatpush1.msra.mxu0 0.0
        %3960 = vmatprep.subr.mxu0 0.0
        %3961 = vmatpush1.msra.mxu0 0.0
        %3962 = vmatprep.subr.mxu0 0.0
        %3963 = vmatpush1.msra.mxu0 0.0
        %3964 = vmatprep.subr.mxu0 0.0
        %3965 = vmatpush1.msra.mxu0 0.0
        %3966 = vmatprep.subr.mxu0 0.0
        %3967 = vmatpush1.msra.mxu0 0.0
        %3968 = vmatprep.subr.mxu0 0.0
        %3969 = vmatpush1.msra.mxu0 0.0
        %3970 = vmatprep.subr.mxu0 0.0
        %3971 = vmatpush1.msra.mxu0 0.0
        %3972 = vmatprep.subr.mxu0 0.0
        %3973 = vmatpush1.msra.mxu0 0.0
        %3974 = vmatprep.subr.mxu0 0.0
        %3975 = vmatpush1.msra.mxu0 0.0
        %3976 = vmatprep.subr.mxu0 0.0
        %3977 = vmatpush1.msra.mxu0 0.0
        %3978 = vmatprep.subr.mxu0 0.0
        %3979 = vmatpush1.msra.mxu0 0.0
        %3980 = vmatprep.mubr.f32.mxu0 0.0
        %3981 = vmatmul.mubr.f32.gmra.mrb[0].mxu0 %v3893
        %v3982 = vpop.f32.mrb[0].mxu0
        %v3983 = vadd.f32 0.0, %v3982
        %v3984 = vpop.f32.mrb[0].mxu0
        %3985 = vmatprep.mubr.f32.mxu0 0.0
        %3986 = vmatmul.mubr.f32.gmra.mrb[0].mxu0 %v3896
        %v3987 = vpop.f32.mrb[0].mxu0
        %v3988 = vadd.f32 0.0, %v3987
        %v3989 = vpop.f32.mrb[0].mxu0
        %3990 = vmatprep.mubr.f32.mxu0 0.0
        %3991 = vmatmul.mubr.f32.gmra.mrb[0].mxu0 %v3899
        %v3992 = vpop.f32.mrb[0].mxu0
        %v3993 = vadd.f32 0.0, %v3992
        %v3994 = vpop.f32.mrb[0].mxu0
        %3995 = vmatprep.mubr.f32.mxu0 0.0
        %3996 = vmatmul.mubr.f32.gmra.mrb[0].mxu0 %v3902
        %v3997 = vpop.f32.mrb[0].mxu0
        %v3998 = vadd.f32 0.0, %v3997
        %v3999 = vpop.f32.mrb[0].mxu0
        %4000 = vmatprep.mubr.f32.mxu0 0.0
        %4001 = vmatmul.mubr.f32.gmra.mrb[0].mxu0 %v3905
        %v4002 = vpop.f32.mrb[0].mxu0
        %v4003 = vadd.f32 0.0, %v4002
        %v4004 = vpop.f32.mrb[0].mxu0
        %4005 = vmatprep.mubr.f32.mxu0 0.0
        %4006 = vmatmul.mubr.f32.gmra.mrb[0].mxu0 %v3908
        %v4007 = vpop.f32.mrb[0].mxu0
        %v4008 = vadd.f32 0.0, %v4007
        %v4009 = vpop.f32.mrb[0].mxu0
        %4010 = vmatprep.mubr.f32.mxu0 0.0
        %4011 = vmatmul.mubr.f32.gmra.mrb[0].mxu0 %v3911
        %v4012 = vpop.f32.mrb[0].mxu0
        %v4013 = vadd.f32 0.0, %v4012
        %v4014 = vpop.f32.mrb[0].mxu0
        %4015 = vmatprep.mubr.f32.mxu0 0.0
        %4016 = vmatmul.mubr.f32.gmra.mrb[0].mxu0 %v3914
        %v4017 = vpop.f32.mrb[0].mxu0
        %v4018 = vadd.f32 0.0, %v4017
        %v4019 = vpop.f32.mrb[0].mxu0
        %4020 = vdwg.mxu0
        %v4021 = vadd.f32 %v3836, %v3983
        %v4022 = vadd.f32 %v3841, %v3988
        %v4023 = vadd.f32 %v3846, %v3993
        %v4024 = vadd.f32 %v3851, %v3998
        %v4025 = vadd.f32 %v3856, %v4003
        %v4026 = vadd.f32 %v3861, %v4008
        %v4027 = vadd.f32 %v3866, %v4013
        %v4028 = vadd.f32 %v3871, %v4018
        %s4029 = scalar_lea.vmem [#allocation3], 9
        %v4030 = vld [vmem:[%s4029] ss:$2 sm:$0xff]
        %s4031 = scalar_lea.vmem [#allocation3], 73
        %v4032 = vld [vmem:[%s4031] ss:$2 sm:$0xff]
        %s4033 = scalar_lea.vmem [#allocation3], 137
        %v4034 = vld [vmem:[%s4033] ss:$2 sm:$0xff]
        %s4035 = scalar_lea.vmem [#allocation3], 201
        %v4036 = vld [vmem:[%s4035] ss:$2 sm:$0xff]
        %s4037 = scalar_lea.vmem [#allocation3], 265
        %v4038 = vld [vmem:[%s4037] ss:$2 sm:$0xff]
        %s4039 = scalar_lea.vmem [#allocation3], 329
        %v4040 = vld [vmem:[%s4039] ss:$2 sm:$0xff]
        %s4041 = scalar_lea.vmem [#allocation3], 393
        %v4042 = vld [vmem:[%s4041] ss:$2 sm:$0xff]
        %s4043 = scalar_lea.vmem [#allocation3], 457
        %v4044 = vld [vmem:[%s4043] ss:$2 sm:$0xff]
        %s4045 = scalar_lea.vmem %s3, 24
        %v4046 = vld [vmem:[%s4045] sm:$0xff]
        %v4048 = vsel %vm430, %v4030, 0
        %v4051 = vsel %vm430, %v4032, 0
        %v4054 = vsel %vm430, %v4034, 0
        %v4057 = vsel %vm430, %v4036, 0
        %v4060 = vsel %vm430, %v4038, 0
        %v4063 = vsel %vm430, %v4040, 0
        %v4066 = vsel %vm430, %v4042, 0
        %v4069 = vsel %vm430, %v4044, 0
        %4071 = vmatprep.subr.mxu0 0.0
        %4072 = vmatpush1.msra.mxu0 %v4046
        %4073 = vmatprep.subr.mxu0 0.0
        %4074 = vmatpush1.msra.mxu0 0.0
        %4075 = vmatprep.subr.mxu0 0.0
        %4076 = vmatpush1.msra.mxu0 0.0
        %4077 = vmatprep.subr.mxu0 0.0
        %4078 = vmatpush1.msra.mxu0 0.0
        %4079 = vmatprep.subr.mxu0 0.0
        %4080 = vmatpush1.msra.mxu0 0.0
        %4081 = vmatprep.subr.mxu0 0.0
        %4082 = vmatpush1.msra.mxu0 0.0
        %4083 = vmatprep.subr.mxu0 0.0
        %4084 = vmatpush1.msra.mxu0 0.0
        %4085 = vmatprep.subr.mxu0 0.0
        %4086 = vmatpush1.msra.mxu0 0.0
        %4087 = vmatprep.subr.mxu0 0.0
        %4088 = vmatpush1.msra.mxu0 0.0
        %4089 = vmatprep.subr.mxu0 0.0
        %4090 = vmatpush1.msra.mxu0 0.0
        %4091 = vmatprep.subr.mxu0 0.0
        %4092 = vmatpush1.msra.mxu0 0.0
        %4093 = vmatprep.subr.mxu0 0.0
        %4094 = vmatpush1.msra.mxu0 0.0
        %4095 = vmatprep.subr.mxu0 0.0
        %4096 = vmatpush1.msra.mxu0 0.0
        %4097 = vmatprep.subr.mxu0 0.0
        %4098 = vmatpush1.msra.mxu0 0.0
        %4099 = vmatprep.subr.mxu0 0.0
        %4100 = vmatpush1.msra.mxu0 0.0
        %4101 = vmatprep.subr.mxu0 0.0
        %4102 = vmatpush1.msra.mxu0 0.0
        %4103 = vmatprep.subr.mxu0 0.0
        %4104 = vmatpush1.msra.mxu0 0.0
        %4105 = vmatprep.subr.mxu0 0.0
        %4106 = vmatpush1.msra.mxu0 0.0
        %4107 = vmatprep.subr.mxu0 0.0
        %4108 = vmatpush1.msra.mxu0 0.0
        %4109 = vmatprep.subr.mxu0 0.0
        %4110 = vmatpush1.msra.mxu0 0.0
        %4111 = vmatprep.subr.mxu0 0.0
        %4112 = vmatpush1.msra.mxu0 0.0
        %4113 = vmatprep.subr.mxu0 0.0
        %4114 = vmatpush1.msra.mxu0 0.0
        %4115 = vmatprep.subr.mxu0 0.0
        %4116 = vmatpush1.msra.mxu0 0.0
        %4117 = vmatprep.subr.mxu0 0.0
        %4118 = vmatpush1.msra.mxu0 0.0
        %4119 = vmatprep.subr.mxu0 0.0
        %4120 = vmatpush1.msra.mxu0 0.0
        %4121 = vmatprep.subr.mxu0 0.0
        %4122 = vmatpush1.msra.mxu0 0.0
        %4123 = vmatprep.subr.mxu0 0.0
        %4124 = vmatpush1.msra.mxu0 0.0
        %4125 = vmatprep.subr.mxu0 0.0
        %4126 = vmatpush1.msra.mxu0 0.0
        %4127 = vmatprep.subr.mxu0 0.0
        %4128 = vmatpush1.msra.mxu0 0.0
        %4129 = vmatprep.subr.mxu0 0.0
        %4130 = vmatpush1.msra.mxu0 0.0
        %4131 = vmatprep.subr.mxu0 0.0
        %4132 = vmatpush1.msra.mxu0 0.0
        %4133 = vmatprep.subr.mxu0 0.0
        %4134 = vmatpush1.msra.mxu0 0.0
        %4135 = vmatprep.mubr.f32.mxu0 0.0
        %4136 = vmatmul.mubr.f32.gmra.mrb[0].mxu0 %v4048
        %v4137 = vpop.f32.mrb[0].mxu0
        %v4138 = vadd.f32 0.0, %v4137
        %v4139 = vpop.f32.mrb[0].mxu0
        %4140 = vmatprep.mubr.f32.mxu0 0.0
        %4141 = vmatmul.mubr.f32.gmra.mrb[0].mxu0 %v4051
        %v4142 = vpop.f32.mrb[0].mxu0
        %v4143 = vadd.f32 0.0, %v4142
        %v4144 = vpop.f32.mrb[0].mxu0
        %4145 = vmatprep.mubr.f32.mxu0 0.0
        %4146 = vmatmul.mubr.f32.gmra.mrb[0].mxu0 %v4054
        %v4147 = vpop.f32.mrb[0].mxu0
        %v4148 = vadd.f32 0.0, %v4147
        %v4149 = vpop.f32.mrb[0].mxu0
        %4150 = vmatprep.mubr.f32.mxu0 0.0
        %4151 = vmatmul.mubr.f32.gmra.mrb[0].mxu0 %v4057
        %v4152 = vpop.f32.mrb[0].mxu0
        %v4153 = vadd.f32 0.0, %v4152
        %v4154 = vpop.f32.mrb[0].mxu0
        %4155 = vmatprep.mubr.f32.mxu0 0.0
        %4156 = vmatmul.mubr.f32.gmra.mrb[0].mxu0 %v4060
        %v4157 = vpop.f32.mrb[0].mxu0
        %v4158 = vadd.f32 0.0, %v4157
        %v4159 = vpop.f32.mrb[0].mxu0
        %4160 = vmatprep.mubr.f32.mxu0 0.0
        %4161 = vmatmul.mubr.f32.gmra.mrb[0].mxu0 %v4063
        %v4162 = vpop.f32.mrb[0].mxu0
        %v4163 = vadd.f32 0.0, %v4162
        %v4164 = vpop.f32.mrb[0].mxu0
        %4165 = vmatprep.mubr.f32.mxu0 0.0
        %4166 = vmatmul.mubr.f32.gmra.mrb[0].mxu0 %v4066
        %v4167 = vpop.f32.mrb[0].mxu0
        %v4168 = vadd.f32 0.0, %v4167
        %v4169 = vpop.f32.mrb[0].mxu0
        %4170 = vmatprep.mubr.f32.mxu0 0.0
        %4171 = vmatmul.mubr.f32.gmra.mrb[0].mxu0 %v4069
        %v4172 = vpop.f32.mrb[0].mxu0
        %v4173 = vadd.f32 0.0, %v4172
        %v4174 = vpop.f32.mrb[0].mxu0
        %4175 = vdwg.mxu0
        %v4176 = vadd.f32 %v4021, %v4138
        %v4177 = vadd.f32 %v4022, %v4143
        %v4178 = vadd.f32 %v4023, %v4148
        %v4179 = vadd.f32 %v4024, %v4153
        %v4180 = vadd.f32 %v4025, %v4158
        %v4181 = vadd.f32 %v4026, %v4163
        %v4182 = vadd.f32 %v4027, %v4168
        %v4183 = vadd.f32 %v4028, %v4173
        %s4184 = scalar_lea.vmem [#allocation3], 10
        %v4185 = vld [vmem:[%s4184] ss:$2 sm:$0xff]
        %s4186 = scalar_lea.vmem [#allocation3], 74
        %v4187 = vld [vmem:[%s4186] ss:$2 sm:$0xff]
        %s4188 = scalar_lea.vmem [#allocation3], 138
        %v4189 = vld [vmem:[%s4188] ss:$2 sm:$0xff]
        %s4190 = scalar_lea.vmem [#allocation3], 202
        %v4191 = vld [vmem:[%s4190] ss:$2 sm:$0xff]
        %s4192 = scalar_lea.vmem [#allocation3], 266
        %v4193 = vld [vmem:[%s4192] ss:$2 sm:$0xff]
        %s4194 = scalar_lea.vmem [#allocation3], 330
        %v4195 = vld [vmem:[%s4194] ss:$2 sm:$0xff]
        %s4196 = scalar_lea.vmem [#allocation3], 394
        %v4197 = vld [vmem:[%s4196] ss:$2 sm:$0xff]
        %s4198 = scalar_lea.vmem [#allocation3], 458
        %v4199 = vld [vmem:[%s4198] ss:$2 sm:$0xff]
        %s4200 = scalar_lea.vmem %s3, 32
        %v4201 = vld [vmem:[%s4200] sm:$0xff]
        %v4203 = vsel %vm430, %v4185, 0
        %v4206 = vsel %vm430, %v4187, 0
        %v4209 = vsel %vm430, %v4189, 0
        %v4212 = vsel %vm430, %v4191, 0
        %v4215 = vsel %vm430, %v4193, 0
        %v4218 = vsel %vm430, %v4195, 0
        %v4221 = vsel %vm430, %v4197, 0
        %v4224 = vsel %vm430, %v4199, 0
        %4226 = vmatprep.subr.mxu0 0.0
        %4227 = vmatpush1.msra.mxu0 %v4201
        %4228 = vmatprep.subr.mxu0 0.0
        %4229 = vmatpush1.msra.mxu0 0.0
        %4230 = vmatprep.subr.mxu0 0.0
        %4231 = vmatpush1.msra.mxu0 0.0
        %4232 = vmatprep.subr.mxu0 0.0
        %4233 = vmatpush1.msra.mxu0 0.0
        %4234 = vmatprep.subr.mxu0 0.0
        %4235 = vmatpush1.msra.mxu0 0.0
        %4236 = vmatprep.subr.mxu0 0.0
        %4237 = vmatpush1.msra.mxu0 0.0
        %4238 = vmatprep.subr.mxu0 0.0
        %4239 = vmatpush1.msra.mxu0 0.0
        %4240 = vmatprep.subr.mxu0 0.0
        %4241 = vmatpush1.msra.mxu0 0.0
        %4242 = vmatprep.subr.mxu0 0.0
        %4243 = vmatpush1.msra.mxu0 0.0
        %4244 = vmatprep.subr.mxu0 0.0
        %4245 = vmatpush1.msra.mxu0 0.0
        %4246 = vmatprep.subr.mxu0 0.0
        %4247 = vmatpush1.msra.mxu0 0.0
        %4248 = vmatprep.subr.mxu0 0.0
        %4249 = vmatpush1.msra.mxu0 0.0
        %4250 = vmatprep.subr.mxu0 0.0
        %4251 = vmatpush1.msra.mxu0 0.0
        %4252 = vmatprep.subr.mxu0 0.0
        %4253 = vmatpush1.msra.mxu0 0.0
        %4254 = vmatprep.subr.mxu0 0.0
        %4255 = vmatpush1.msra.mxu0 0.0
        %4256 = vmatprep.subr.mxu0 0.0
        %4257 = vmatpush1.msra.mxu0 0.0
        %4258 = vmatprep.subr.mxu0 0.0
        %4259 = vmatpush1.msra.mxu0 0.0
        %4260 = vmatprep.subr.mxu0 0.0
        %4261 = vmatpush1.msra.mxu0 0.0
        %4262 = vmatprep.subr.mxu0 0.0
        %4263 = vmatpush1.msra.mxu0 0.0
        %4264 = vmatprep.subr.mxu0 0.0
        %4265 = vmatpush1.msra.mxu0 0.0
        %4266 = vmatprep.subr.mxu0 0.0
        %4267 = vmatpush1.msra.mxu0 0.0
        %4268 = vmatprep.subr.mxu0 0.0
        %4269 = vmatpush1.msra.mxu0 0.0
        %4270 = vmatprep.subr.mxu0 0.0
        %4271 = vmatpush1.msra.mxu0 0.0
        %4272 = vmatprep.subr.mxu0 0.0
        %4273 = vmatpush1.msra.mxu0 0.0
        %4274 = vmatprep.subr.mxu0 0.0
        %4275 = vmatpush1.msra.mxu0 0.0
        %4276 = vmatprep.subr.mxu0 0.0
        %4277 = vmatpush1.msra.mxu0 0.0
        %4278 = vmatprep.subr.mxu0 0.0
        %4279 = vmatpush1.msra.mxu0 0.0
        %4280 = vmatprep.subr.mxu0 0.0
        %4281 = vmatpush1.msra.mxu0 0.0
        %4282 = vmatprep.subr.mxu0 0.0
        %4283 = vmatpush1.msra.mxu0 0.0
        %4284 = vmatprep.subr.mxu0 0.0
        %4285 = vmatpush1.msra.mxu0 0.0
        %4286 = vmatprep.subr.mxu0 0.0
        %4287 = vmatpush1.msra.mxu0 0.0
        %4288 = vmatprep.subr.mxu0 0.0
        %4289 = vmatpush1.msra.mxu0 0.0
        %4290 = vmatprep.mubr.f32.mxu0 0.0
        %4291 = vmatmul.mubr.f32.gmra.mrb[0].mxu0 %v4203
        %v4292 = vpop.f32.mrb[0].mxu0
        %v4293 = vadd.f32 0.0, %v4292
        %v4294 = vpop.f32.mrb[0].mxu0
        %4295 = vmatprep.mubr.f32.mxu0 0.0
        %4296 = vmatmul.mubr.f32.gmra.mrb[0].mxu0 %v4206
        %v4297 = vpop.f32.mrb[0].mxu0
        %v4298 = vadd.f32 0.0, %v4297
        %v4299 = vpop.f32.mrb[0].mxu0
        %4300 = vmatprep.mubr.f32.mxu0 0.0
        %4301 = vmatmul.mubr.f32.gmra.mrb[0].mxu0 %v4209
        %v4302 = vpop.f32.mrb[0].mxu0
        %v4303 = vadd.f32 0.0, %v4302
        %v4304 = vpop.f32.mrb[0].mxu0
        %4305 = vmatprep.mubr.f32.mxu0 0.0
        %4306 = vmatmul.mubr.f32.gmra.mrb[0].mxu0 %v4212
        %v4307 = vpop.f32.mrb[0].mxu0
        %v4308 = vadd.f32 0.0, %v4307
        %v4309 = vpop.f32.mrb[0].mxu0
        %4310 = vmatprep.mubr.f32.mxu0 0.0
        %4311 = vmatmul.mubr.f32.gmra.mrb[0].mxu0 %v4215
        %v4312 = vpop.f32.mrb[0].mxu0
        %v4313 = vadd.f32 0.0, %v4312
        %v4314 = vpop.f32.mrb[0].mxu0
        %4315 = vmatprep.mubr.f32.mxu0 0.0
        %4316 = vmatmul.mubr.f32.gmra.mrb[0].mxu0 %v4218
        %v4317 = vpop.f32.mrb[0].mxu0
        %v4318 = vadd.f32 0.0, %v4317
        %v4319 = vpop.f32.mrb[0].mxu0
        %4320 = vmatprep.mubr.f32.mxu0 0.0
        %4321 = vmatmul.mubr.f32.gmra.mrb[0].mxu0 %v4221
        %v4322 = vpop.f32.mrb[0].mxu0
        %v4323 = vadd.f32 0.0, %v4322
        %v4324 = vpop.f32.mrb[0].mxu0
        %4325 = vmatprep.mubr.f32.mxu0 0.0
        %4326 = vmatmul.mubr.f32.gmra.mrb[0].mxu0 %v4224
        %v4327 = vpop.f32.mrb[0].mxu0
        %v4328 = vadd.f32 0.0, %v4327
        %v4329 = vpop.f32.mrb[0].mxu0
        %4330 = vdwg.mxu0
        %v4331 = vadd.f32 %v4176, %v4293
        %v4332 = vadd.f32 %v4177, %v4298
        %v4333 = vadd.f32 %v4178, %v4303
        %v4334 = vadd.f32 %v4179, %v4308
        %v4335 = vadd.f32 %v4180, %v4313
        %v4336 = vadd.f32 %v4181, %v4318
        %v4337 = vadd.f32 %v4182, %v4323
        %v4338 = vadd.f32 %v4183, %v4328
        %s4339 = scalar_lea.vmem [#allocation3], 32
        %s4340 = scalar_lea.vmem %s4339, 6 [#allocation3]
        %v4341 = vld [vmem:[%s4340] ss:$2 sm:$0xff]
        %s4342 = scalar_lea.vmem %s4339, 70 [#allocation3]
        %v4343 = vld [vmem:[%s4342] ss:$2 sm:$0xff]
        %s4344 = scalar_lea.vmem %s4339, 134 [#allocation3]
        %v4345 = vld [vmem:[%s4344] ss:$2 sm:$0xff]
        %s4346 = scalar_lea.vmem %s4339, 198 [#allocation3]
        %v4347 = vld [vmem:[%s4346] ss:$2 sm:$0xff]
        %s4348 = scalar_lea.vmem %s4339, 262 [#allocation3]
        %v4349 = vld [vmem:[%s4348] ss:$2 sm:$0xff]
        %s4350 = scalar_lea.vmem %s4339, 326 [#allocation3]
        %v4351 = vld [vmem:[%s4350] ss:$2 sm:$0xff]
        %s4352 = scalar_lea.vmem %s4339, 390 [#allocation3]
        %v4353 = vld [vmem:[%s4352] ss:$2 sm:$0xff]
        %s4354 = scalar_lea.vmem %s4339, 454 [#allocation3]
        %v4355 = vld [vmem:[%s4354] ss:$2 sm:$0xff]
        %s4356 = scalar_lea.vmem %s3, 40
        %v4357 = vld [vmem:[%s4356] sm:$0xff]
        %v4359 = vsel %vm430, %v4341, 0
        %v4362 = vsel %vm430, %v4343, 0
        %v4365 = vsel %vm430, %v4345, 0
        %v4368 = vsel %vm430, %v4347, 0
        %v4371 = vsel %vm430, %v4349, 0
        %v4374 = vsel %vm430, %v4351, 0
        %v4377 = vsel %vm430, %v4353, 0
        %v4380 = vsel %vm430, %v4355, 0
        %4382 = vmatprep.subr.mxu0 0.0
        %4383 = vmatpush1.msra.mxu0 %v4357
        %4384 = vmatprep.subr.mxu0 0.0
        %4385 = vmatpush1.msra.mxu0 0.0
        %4386 = vmatprep.subr.mxu0 0.0
        %4387 = vmatpush1.msra.mxu0 0.0
        %4388 = vmatprep.subr.mxu0 0.0
        %4389 = vmatpush1.msra.mxu0 0.0
        %4390 = vmatprep.subr.mxu0 0.0
        %4391 = vmatpush1.msra.mxu0 0.0
        %4392 = vmatprep.subr.mxu0 0.0
        %4393 = vmatpush1.msra.mxu0 0.0
        %4394 = vmatprep.subr.mxu0 0.0
        %4395 = vmatpush1.msra.mxu0 0.0
        %4396 = vmatprep.subr.mxu0 0.0
        %4397 = vmatpush1.msra.mxu0 0.0
        %4398 = vmatprep.subr.mxu0 0.0
        %4399 = vmatpush1.msra.mxu0 0.0
        %4400 = vmatprep.subr.mxu0 0.0
        %4401 = vmatpush1.msra.mxu0 0.0
        %4402 = vmatprep.subr.mxu0 0.0
        %4403 = vmatpush1.msra.mxu0 0.0
        %4404 = vmatprep.subr.mxu0 0.0
        %4405 = vmatpush1.msra.mxu0 0.0
        %4406 = vmatprep.subr.mxu0 0.0
        %4407 = vmatpush1.msra.mxu0 0.0
        %4408 = vmatprep.subr.mxu0 0.0
        %4409 = vmatpush1.msra.mxu0 0.0
        %4410 = vmatprep.subr.mxu0 0.0
        %4411 = vmatpush1.msra.mxu0 0.0
        %4412 = vmatprep.subr.mxu0 0.0
        %4413 = vmatpush1.msra.mxu0 0.0
        %4414 = vmatprep.subr.mxu0 0.0
        %4415 = vmatpush1.msra.mxu0 0.0
        %4416 = vmatprep.subr.mxu0 0.0
        %4417 = vmatpush1.msra.mxu0 0.0
        %4418 = vmatprep.subr.mxu0 0.0
        %4419 = vmatpush1.msra.mxu0 0.0
        %4420 = vmatprep.subr.mxu0 0.0
        %4421 = vmatpush1.msra.mxu0 0.0
        %4422 = vmatprep.subr.mxu0 0.0
        %4423 = vmatpush1.msra.mxu0 0.0
        %4424 = vmatprep.subr.mxu0 0.0
        %4425 = vmatpush1.msra.mxu0 0.0
        %4426 = vmatprep.subr.mxu0 0.0
        %4427 = vmatpush1.msra.mxu0 0.0
        %4428 = vmatprep.subr.mxu0 0.0
        %4429 = vmatpush1.msra.mxu0 0.0
        %4430 = vmatprep.subr.mxu0 0.0
        %4431 = vmatpush1.msra.mxu0 0.0
        %4432 = vmatprep.subr.mxu0 0.0
        %4433 = vmatpush1.msra.mxu0 0.0
        %4434 = vmatprep.subr.mxu0 0.0
        %4435 = vmatpush1.msra.mxu0 0.0
        %4436 = vmatprep.subr.mxu0 0.0
        %4437 = vmatpush1.msra.mxu0 0.0
        %4438 = vmatprep.subr.mxu0 0.0
        %4439 = vmatpush1.msra.mxu0 0.0
        %4440 = vmatprep.subr.mxu0 0.0
        %4441 = vmatpush1.msra.mxu0 0.0
        %4442 = vmatprep.subr.mxu0 0.0
        %4443 = vmatpush1.msra.mxu0 0.0
        %4444 = vmatprep.subr.mxu0 0.0
        %4445 = vmatpush1.msra.mxu0 0.0
        %4446 = vmatprep.mubr.f32.mxu0 0.0
        %4447 = vmatmul.mubr.f32.gmra.mrb[0].mxu0 %v4359
        %v4448 = vpop.f32.mrb[0].mxu0
        %v4449 = vadd.f32 0.0, %v4448
        %v4450 = vpop.f32.mrb[0].mxu0
        %4451 = vmatprep.mubr.f32.mxu0 0.0
        %4452 = vmatmul.mubr.f32.gmra.mrb[0].mxu0 %v4362
        %v4453 = vpop.f32.mrb[0].mxu0
        %v4454 = vadd.f32 0.0, %v4453
        %v4455 = vpop.f32.mrb[0].mxu0
        %4456 = vmatprep.mubr.f32.mxu0 0.0
        %4457 = vmatmul.mubr.f32.gmra.mrb[0].mxu0 %v4365
        %v4458 = vpop.f32.mrb[0].mxu0
        %v4459 = vadd.f32 0.0, %v4458
        %v4460 = vpop.f32.mrb[0].mxu0
        %4461 = vmatprep.mubr.f32.mxu0 0.0
        %4462 = vmatmul.mubr.f32.gmra.mrb[0].mxu0 %v4368
        %v4463 = vpop.f32.mrb[0].mxu0
        %v4464 = vadd.f32 0.0, %v4463
        %v4465 = vpop.f32.mrb[0].mxu0
        %4466 = vmatprep.mubr.f32.mxu0 0.0
        %4467 = vmatmul.mubr.f32.gmra.mrb[0].mxu0 %v4371
        %v4468 = vpop.f32.mrb[0].mxu0
        %v4469 = vadd.f32 0.0, %v4468
        %v4470 = vpop.f32.mrb[0].mxu0
        %4471 = vmatprep.mubr.f32.mxu0 0.0
        %4472 = vmatmul.mubr.f32.gmra.mrb[0].mxu0 %v4374
        %v4473 = vpop.f32.mrb[0].mxu0
        %v4474 = vadd.f32 0.0, %v4473
        %v4475 = vpop.f32.mrb[0].mxu0
        %4476 = vmatprep.mubr.f32.mxu0 0.0
        %4477 = vmatmul.mubr.f32.gmra.mrb[0].mxu0 %v4377
        %v4478 = vpop.f32.mrb[0].mxu0
        %v4479 = vadd.f32 0.0, %v4478
        %v4480 = vpop.f32.mrb[0].mxu0
        %4481 = vmatprep.mubr.f32.mxu0 0.0
        %4482 = vmatmul.mubr.f32.gmra.mrb[0].mxu0 %v4380
        %v4483 = vpop.f32.mrb[0].mxu0
        %v4484 = vadd.f32 0.0, %v4483
        %v4485 = vpop.f32.mrb[0].mxu0
        %4486 = vdwg.mxu0
        %v4487 = vadd.f32 %v4331, %v4449
        %v4488 = vadd.f32 %v4332, %v4454
        %v4489 = vadd.f32 %v4333, %v4459
        %v4490 = vadd.f32 %v4334, %v4464
        %v4491 = vadd.f32 %v4335, %v4469
        %v4492 = vadd.f32 %v4336, %v4474
        %v4493 = vadd.f32 %v4337, %v4479
        %v4494 = vadd.f32 %v4338, %v4484
        %s4495 = scalar_lea.vmem %s4339, 7 [#allocation3]
        %v4496 = vld [vmem:[%s4495] ss:$2 sm:$0xff]
        %s4497 = scalar_lea.vmem %s4339, 71 [#allocation3]
        %v4498 = vld [vmem:[%s4497] ss:$2 sm:$0xff]
        %s4499 = scalar_lea.vmem %s4339, 135 [#allocation3]
        %v4500 = vld [vmem:[%s4499] ss:$2 sm:$0xff]
        %s4501 = scalar_lea.vmem %s4339, 199 [#allocation3]
        %v4502 = vld [vmem:[%s4501] ss:$2 sm:$0xff]
        %s4503 = scalar_lea.vmem %s4339, 263 [#allocation3]
        %v4504 = vld [vmem:[%s4503] ss:$2 sm:$0xff]
        %s4505 = scalar_lea.vmem %s4339, 327 [#allocation3]
        %v4506 = vld [vmem:[%s4505] ss:$2 sm:$0xff]
        %s4507 = scalar_lea.vmem %s4339, 391 [#allocation3]
        %v4508 = vld [vmem:[%s4507] ss:$2 sm:$0xff]
        %s4509 = scalar_lea.vmem %s4339, 455 [#allocation3]
        %v4510 = vld [vmem:[%s4509] ss:$2 sm:$0xff]
        %s4511 = scalar_lea.vmem %s3, 48
        %v4512 = vld [vmem:[%s4511] sm:$0xff]
        %v4514 = vsel %vm430, %v4496, 0
        %v4517 = vsel %vm430, %v4498, 0
        %v4520 = vsel %vm430, %v4500, 0
        %v4523 = vsel %vm430, %v4502, 0
        %v4526 = vsel %vm430, %v4504, 0
        %v4529 = vsel %vm430, %v4506, 0
        %v4532 = vsel %vm430, %v4508, 0
        %v4535 = vsel %vm430, %v4510, 0
        %4537 = vmatprep.subr.mxu0 0.0
        %4538 = vmatpush1.msra.mxu0 %v4512
        %4539 = vmatprep.subr.mxu0 0.0
        %4540 = vmatpush1.msra.mxu0 0.0
        %4541 = vmatprep.subr.mxu0 0.0
        %4542 = vmatpush1.msra.mxu0 0.0
        %4543 = vmatprep.subr.mxu0 0.0
        %4544 = vmatpush1.msra.mxu0 0.0
        %4545 = vmatprep.subr.mxu0 0.0
        %4546 = vmatpush1.msra.mxu0 0.0
        %4547 = vmatprep.subr.mxu0 0.0
        %4548 = vmatpush1.msra.mxu0 0.0
        %4549 = vmatprep.subr.mxu0 0.0
        %4550 = vmatpush1.msra.mxu0 0.0
        %4551 = vmatprep.subr.mxu0 0.0
        %4552 = vmatpush1.msra.mxu0 0.0
        %4553 = vmatprep.subr.mxu0 0.0
        %4554 = vmatpush1.msra.mxu0 0.0
        %4555 = vmatprep.subr.mxu0 0.0
        %4556 = vmatpush1.msra.mxu0 0.0
        %4557 = vmatprep.subr.mxu0 0.0
        %4558 = vmatpush1.msra.mxu0 0.0
        %4559 = vmatprep.subr.mxu0 0.0
        %4560 = vmatpush1.msra.mxu0 0.0
        %4561 = vmatprep.subr.mxu0 0.0
        %4562 = vmatpush1.msra.mxu0 0.0
        %4563 = vmatprep.subr.mxu0 0.0
        %4564 = vmatpush1.msra.mxu0 0.0
        %4565 = vmatprep.subr.mxu0 0.0
        %4566 = vmatpush1.msra.mxu0 0.0
        %4567 = vmatprep.subr.mxu0 0.0
        %4568 = vmatpush1.msra.mxu0 0.0
        %4569 = vmatprep.subr.mxu0 0.0
        %4570 = vmatpush1.msra.mxu0 0.0
        %4571 = vmatprep.subr.mxu0 0.0
        %4572 = vmatpush1.msra.mxu0 0.0
        %4573 = vmatprep.subr.mxu0 0.0
        %4574 = vmatpush1.msra.mxu0 0.0
        %4575 = vmatprep.subr.mxu0 0.0
        %4576 = vmatpush1.msra.mxu0 0.0
        %4577 = vmatprep.subr.mxu0 0.0
        %4578 = vmatpush1.msra.mxu0 0.0
        %4579 = vmatprep.subr.mxu0 0.0
        %4580 = vmatpush1.msra.mxu0 0.0
        %4581 = vmatprep.subr.mxu0 0.0
        %4582 = vmatpush1.msra.mxu0 0.0
        %4583 = vmatprep.subr.mxu0 0.0
        %4584 = vmatpush1.msra.mxu0 0.0
        %4585 = vmatprep.subr.mxu0 0.0
        %4586 = vmatpush1.msra.mxu0 0.0
        %4587 = vmatprep.subr.mxu0 0.0
        %4588 = vmatpush1.msra.mxu0 0.0
        %4589 = vmatprep.subr.mxu0 0.0
        %4590 = vmatpush1.msra.mxu0 0.0
        %4591 = vmatprep.subr.mxu0 0.0
        %4592 = vmatpush1.msra.mxu0 0.0
        %4593 = vmatprep.subr.mxu0 0.0
        %4594 = vmatpush1.msra.mxu0 0.0
        %4595 = vmatprep.subr.mxu0 0.0
        %4596 = vmatpush1.msra.mxu0 0.0
        %4597 = vmatprep.subr.mxu0 0.0
        %4598 = vmatpush1.msra.mxu0 0.0
        %4599 = vmatprep.subr.mxu0 0.0
        %4600 = vmatpush1.msra.mxu0 0.0
        %4601 = vmatprep.mubr.f32.mxu0 0.0
        %4602 = vmatmul.mubr.f32.gmra.mrb[0].mxu0 %v4514
        %v4603 = vpop.f32.mrb[0].mxu0
        %v4604 = vadd.f32 0.0, %v4603
        %v4605 = vpop.f32.mrb[0].mxu0
        %4606 = vmatprep.mubr.f32.mxu0 0.0
        %4607 = vmatmul.mubr.f32.gmra.mrb[0].mxu0 %v4517
        %v4608 = vpop.f32.mrb[0].mxu0
        %v4609 = vadd.f32 0.0, %v4608
        %v4610 = vpop.f32.mrb[0].mxu0
        %4611 = vmatprep.mubr.f32.mxu0 0.0
        %4612 = vmatmul.mubr.f32.gmra.mrb[0].mxu0 %v4520
        %v4613 = vpop.f32.mrb[0].mxu0
        %v4614 = vadd.f32 0.0, %v4613
        %v4615 = vpop.f32.mrb[0].mxu0
        %4616 = vmatprep.mubr.f32.mxu0 0.0
        %4617 = vmatmul.mubr.f32.gmra.mrb[0].mxu0 %v4523
        %v4618 = vpop.f32.mrb[0].mxu0
        %v4619 = vadd.f32 0.0, %v4618
        %v4620 = vpop.f32.mrb[0].mxu0
        %4621 = vmatprep.mubr.f32.mxu0 0.0
        %4622 = vmatmul.mubr.f32.gmra.mrb[0].mxu0 %v4526
        %v4623 = vpop.f32.mrb[0].mxu0
        %v4624 = vadd.f32 0.0, %v4623
        %v4625 = vpop.f32.mrb[0].mxu0
        %4626 = vmatprep.mubr.f32.mxu0 0.0
        %4627 = vmatmul.mubr.f32.gmra.mrb[0].mxu0 %v4529
        %v4628 = vpop.f32.mrb[0].mxu0
        %v4629 = vadd.f32 0.0, %v4628
        %v4630 = vpop.f32.mrb[0].mxu0
        %4631 = vmatprep.mubr.f32.mxu0 0.0
        %4632 = vmatmul.mubr.f32.gmra.mrb[0].mxu0 %v4532
        %v4633 = vpop.f32.mrb[0].mxu0
        %v4634 = vadd.f32 0.0, %v4633
        %v4635 = vpop.f32.mrb[0].mxu0
        %4636 = vmatprep.mubr.f32.mxu0 0.0
        %4637 = vmatmul.mubr.f32.gmra.mrb[0].mxu0 %v4535
        %v4638 = vpop.f32.mrb[0].mxu0
        %v4639 = vadd.f32 0.0, %v4638
        %v4640 = vpop.f32.mrb[0].mxu0
        %4641 = vdwg.mxu0
        %v4642 = vadd.f32 %v4487, %v4604
        %v4643 = vadd.f32 %v4488, %v4609
        %v4644 = vadd.f32 %v4489, %v4614
        %v4645 = vadd.f32 %v4490, %v4619
        %v4646 = vadd.f32 %v4491, %v4624
        %v4647 = vadd.f32 %v4492, %v4629
        %v4648 = vadd.f32 %v4493, %v4634
        %v4649 = vadd.f32 %v4494, %v4639
        %s4650 = scalar_lea.vmem %s4339, 8 [#allocation3]
        %v4651 = vld [vmem:[%s4650] ss:$2 sm:$0xff]
        %s4652 = scalar_lea.vmem %s4339, 72 [#allocation3]
        %v4653 = vld [vmem:[%s4652] ss:$2 sm:$0xff]
        %s4654 = scalar_lea.vmem %s4339, 136 [#allocation3]
        %v4655 = vld [vmem:[%s4654] ss:$2 sm:$0xff]
        %s4656 = scalar_lea.vmem %s4339, 200 [#allocation3]
        %v4657 = vld [vmem:[%s4656] ss:$2 sm:$0xff]
        %s4658 = scalar_lea.vmem %s4339, 264 [#allocation3]
        %v4659 = vld [vmem:[%s4658] ss:$2 sm:$0xff]
        %s4660 = scalar_lea.vmem %s4339, 328 [#allocation3]
        %v4661 = vld [vmem:[%s4660] ss:$2 sm:$0xff]
        %s4662 = scalar_lea.vmem %s4339, 392 [#allocation3]
        %v4663 = vld [vmem:[%s4662] ss:$2 sm:$0xff]
        %s4664 = scalar_lea.vmem %s4339, 456 [#allocation3]
        %v4665 = vld [vmem:[%s4664] ss:$2 sm:$0xff]
        %s4666 = scalar_lea.vmem %s3, 56
        %v4667 = vld [vmem:[%s4666] sm:$0xff]
        %v4669 = vsel %vm430, %v4651, 0
        %v4672 = vsel %vm430, %v4653, 0
        %v4675 = vsel %vm430, %v4655, 0
        %v4678 = vsel %vm430, %v4657, 0
        %v4681 = vsel %vm430, %v4659, 0
        %v4684 = vsel %vm430, %v4661, 0
        %v4687 = vsel %vm430, %v4663, 0
        %v4690 = vsel %vm430, %v4665, 0
        %4692 = vmatprep.subr.mxu0 0.0
        %4693 = vmatpush1.msra.mxu0 %v4667
        %4694 = vmatprep.subr.mxu0 0.0
        %4695 = vmatpush1.msra.mxu0 0.0
        %4696 = vmatprep.subr.mxu0 0.0
        %4697 = vmatpush1.msra.mxu0 0.0
        %4698 = vmatprep.subr.mxu0 0.0
        %4699 = vmatpush1.msra.mxu0 0.0
        %4700 = vmatprep.subr.mxu0 0.0
        %4701 = vmatpush1.msra.mxu0 0.0
        %4702 = vmatprep.subr.mxu0 0.0
        %4703 = vmatpush1.msra.mxu0 0.0
        %4704 = vmatprep.subr.mxu0 0.0
        %4705 = vmatpush1.msra.mxu0 0.0
        %4706 = vmatprep.subr.mxu0 0.0
        %4707 = vmatpush1.msra.mxu0 0.0
        %4708 = vmatprep.subr.mxu0 0.0
        %4709 = vmatpush1.msra.mxu0 0.0
        %4710 = vmatprep.subr.mxu0 0.0
        %4711 = vmatpush1.msra.mxu0 0.0
        %4712 = vmatprep.subr.mxu0 0.0
        %4713 = vmatpush1.msra.mxu0 0.0
        %4714 = vmatprep.subr.mxu0 0.0
        %4715 = vmatpush1.msra.mxu0 0.0
        %4716 = vmatprep.subr.mxu0 0.0
        %4717 = vmatpush1.msra.mxu0 0.0
        %4718 = vmatprep.subr.mxu0 0.0
        %4719 = vmatpush1.msra.mxu0 0.0
        %4720 = vmatprep.subr.mxu0 0.0
        %4721 = vmatpush1.msra.mxu0 0.0
        %4722 = vmatprep.subr.mxu0 0.0
        %4723 = vmatpush1.msra.mxu0 0.0
        %4724 = vmatprep.subr.mxu0 0.0
        %4725 = vmatpush1.msra.mxu0 0.0
        %4726 = vmatprep.subr.mxu0 0.0
        %4727 = vmatpush1.msra.mxu0 0.0
        %4728 = vmatprep.subr.mxu0 0.0
        %4729 = vmatpush1.msra.mxu0 0.0
        %4730 = vmatprep.subr.mxu0 0.0
        %4731 = vmatpush1.msra.mxu0 0.0
        %4732 = vmatprep.subr.mxu0 0.0
        %4733 = vmatpush1.msra.mxu0 0.0
        %4734 = vmatprep.subr.mxu0 0.0
        %4735 = vmatpush1.msra.mxu0 0.0
        %4736 = vmatprep.subr.mxu0 0.0
        %4737 = vmatpush1.msra.mxu0 0.0
        %4738 = vmatprep.subr.mxu0 0.0
        %4739 = vmatpush1.msra.mxu0 0.0
        %4740 = vmatprep.subr.mxu0 0.0
        %4741 = vmatpush1.msra.mxu0 0.0
        %4742 = vmatprep.subr.mxu0 0.0
        %4743 = vmatpush1.msra.mxu0 0.0
        %4744 = vmatprep.subr.mxu0 0.0
        %4745 = vmatpush1.msra.mxu0 0.0
        %4746 = vmatprep.subr.mxu0 0.0
        %4747 = vmatpush1.msra.mxu0 0.0
        %4748 = vmatprep.subr.mxu0 0.0
        %4749 = vmatpush1.msra.mxu0 0.0
        %4750 = vmatprep.subr.mxu0 0.0
        %4751 = vmatpush1.msra.mxu0 0.0
        %4752 = vmatprep.subr.mxu0 0.0
        %4753 = vmatpush1.msra.mxu0 0.0
        %4754 = vmatprep.subr.mxu0 0.0
        %4755 = vmatpush1.msra.mxu0 0.0
        %4756 = vmatprep.mubr.f32.mxu0 0.0
        %4757 = vmatmul.mubr.f32.gmra.mrb[0].mxu0 %v4669
        %v4758 = vpop.f32.mrb[0].mxu0
        %v4759 = vadd.f32 0.0, %v4758
        %v4760 = vpop.f32.mrb[0].mxu0
        %4761 = vmatprep.mubr.f32.mxu0 0.0
        %4762 = vmatmul.mubr.f32.gmra.mrb[0].mxu0 %v4672
        %v4763 = vpop.f32.mrb[0].mxu0
        %v4764 = vadd.f32 0.0, %v4763
        %v4765 = vpop.f32.mrb[0].mxu0
        %4766 = vmatprep.mubr.f32.mxu0 0.0
        %4767 = vmatmul.mubr.f32.gmra.mrb[0].mxu0 %v4675
        %v4768 = vpop.f32.mrb[0].mxu0
        %v4769 = vadd.f32 0.0, %v4768
        %v4770 = vpop.f32.mrb[0].mxu0
        %4771 = vmatprep.mubr.f32.mxu0 0.0
        %4772 = vmatmul.mubr.f32.gmra.mrb[0].mxu0 %v4678
        %v4773 = vpop.f32.mrb[0].mxu0
        %v4774 = vadd.f32 0.0, %v4773
        %v4775 = vpop.f32.mrb[0].mxu0
        %4776 = vmatprep.mubr.f32.mxu0 0.0
        %4777 = vmatmul.mubr.f32.gmra.mrb[0].mxu0 %v4681
        %v4778 = vpop.f32.mrb[0].mxu0
        %v4779 = vadd.f32 0.0, %v4778
        %v4780 = vpop.f32.mrb[0].mxu0
        %4781 = vmatprep.mubr.f32.mxu0 0.0
        %4782 = vmatmul.mubr.f32.gmra.mrb[0].mxu0 %v4684
        %v4783 = vpop.f32.mrb[0].mxu0
        %v4784 = vadd.f32 0.0, %v4783
        %v4785 = vpop.f32.mrb[0].mxu0
        %4786 = vmatprep.mubr.f32.mxu0 0.0
        %4787 = vmatmul.mubr.f32.gmra.mrb[0].mxu0 %v4687
        %v4788 = vpop.f32.mrb[0].mxu0
        %v4789 = vadd.f32 0.0, %v4788
        %v4790 = vpop.f32.mrb[0].mxu0
        %4791 = vmatprep.mubr.f32.mxu0 0.0
        %4792 = vmatmul.mubr.f32.gmra.mrb[0].mxu0 %v4690
        %v4793 = vpop.f32.mrb[0].mxu0
        %v4794 = vadd.f32 0.0, %v4793
        %v4795 = vpop.f32.mrb[0].mxu0
        %4796 = vdwg.mxu0
        %v4797 = vadd.f32 %v4642, %v4759
        %v4798 = vadd.f32 %v4643, %v4764
        %v4799 = vadd.f32 %v4644, %v4769
        %v4800 = vadd.f32 %v4645, %v4774
        %v4801 = vadd.f32 %v4646, %v4779
        %v4802 = vadd.f32 %v4647, %v4784
        %v4803 = vadd.f32 %v4648, %v4789
        %v4804 = vadd.f32 %v4649, %v4794
        %s4805 = scalar_lea.vmem %s4339, 9 [#allocation3]
        %v4806 = vld [vmem:[%s4805] ss:$2 sm:$0xff]
        %s4807 = scalar_lea.vmem %s4339, 73 [#allocation3]
        %v4808 = vld [vmem:[%s4807] ss:$2 sm:$0xff]
        %s4809 = scalar_lea.vmem %s4339, 137 [#allocation3]
        %v4810 = vld [vmem:[%s4809] ss:$2 sm:$0xff]
        %s4811 = scalar_lea.vmem %s4339, 201 [#allocation3]
        %v4812 = vld [vmem:[%s4811] ss:$2 sm:$0xff]
        %s4813 = scalar_lea.vmem %s4339, 265 [#allocation3]
        %v4814 = vld [vmem:[%s4813] ss:$2 sm:$0xff]
        %s4815 = scalar_lea.vmem %s4339, 329 [#allocation3]
        %v4816 = vld [vmem:[%s4815] ss:$2 sm:$0xff]
        %s4817 = scalar_lea.vmem %s4339, 393 [#allocation3]
        %v4818 = vld [vmem:[%s4817] ss:$2 sm:$0xff]
        %s4819 = scalar_lea.vmem %s4339, 457 [#allocation3]
        %v4820 = vld [vmem:[%s4819] ss:$2 sm:$0xff]
        %s4821 = scalar_lea.vmem %s3, 64
        %v4822 = vld [vmem:[%s4821] sm:$0xff]
        %v4824 = vsel %vm430, %v4806, 0
        %v4827 = vsel %vm430, %v4808, 0
        %v4830 = vsel %vm430, %v4810, 0
        %v4833 = vsel %vm430, %v4812, 0
        %v4836 = vsel %vm430, %v4814, 0
        %v4839 = vsel %vm430, %v4816, 0
        %v4842 = vsel %vm430, %v4818, 0
        %v4845 = vsel %vm430, %v4820, 0
        %4847 = vmatprep.subr.mxu0 0.0
        %4848 = vmatpush1.msra.mxu0 %v4822
        %4849 = vmatprep.subr.mxu0 0.0
        %4850 = vmatpush1.msra.mxu0 0.0
        %4851 = vmatprep.subr.mxu0 0.0
        %4852 = vmatpush1.msra.mxu0 0.0
        %4853 = vmatprep.subr.mxu0 0.0
        %4854 = vmatpush1.msra.mxu0 0.0
        %4855 = vmatprep.subr.mxu0 0.0
        %4856 = vmatpush1.msra.mxu0 0.0
        %4857 = vmatprep.subr.mxu0 0.0
        %4858 = vmatpush1.msra.mxu0 0.0
        %4859 = vmatprep.subr.mxu0 0.0
        %4860 = vmatpush1.msra.mxu0 0.0
        %4861 = vmatprep.subr.mxu0 0.0
        %4862 = vmatpush1.msra.mxu0 0.0
        %4863 = vmatprep.subr.mxu0 0.0
        %4864 = vmatpush1.msra.mxu0 0.0
        %4865 = vmatprep.subr.mxu0 0.0
        %4866 = vmatpush1.msra.mxu0 0.0
        %4867 = vmatprep.subr.mxu0 0.0
        %4868 = vmatpush1.msra.mxu0 0.0
        %4869 = vmatprep.subr.mxu0 0.0
        %4870 = vmatpush1.msra.mxu0 0.0
        %4871 = vmatprep.subr.mxu0 0.0
        %4872 = vmatpush1.msra.mxu0 0.0
        %4873 = vmatprep.subr.mxu0 0.0
        %4874 = vmatpush1.msra.mxu0 0.0
        %4875 = vmatprep.subr.mxu0 0.0
        %4876 = vmatpush1.msra.mxu0 0.0
        %4877 = vmatprep.subr.mxu0 0.0
        %4878 = vmatpush1.msra.mxu0 0.0
        %4879 = vmatprep.subr.mxu0 0.0
        %4880 = vmatpush1.msra.mxu0 0.0
        %4881 = vmatprep.subr.mxu0 0.0
        %4882 = vmatpush1.msra.mxu0 0.0
        %4883 = vmatprep.subr.mxu0 0.0
        %4884 = vmatpush1.msra.mxu0 0.0
        %4885 = vmatprep.subr.mxu0 0.0
        %4886 = vmatpush1.msra.mxu0 0.0
        %4887 = vmatprep.subr.mxu0 0.0
        %4888 = vmatpush1.msra.mxu0 0.0
        %4889 = vmatprep.subr.mxu0 0.0
        %4890 = vmatpush1.msra.mxu0 0.0
        %4891 = vmatprep.subr.mxu0 0.0
        %4892 = vmatpush1.msra.mxu0 0.0
        %4893 = vmatprep.subr.mxu0 0.0
        %4894 = vmatpush1.msra.mxu0 0.0
        %4895 = vmatprep.subr.mxu0 0.0
        %4896 = vmatpush1.msra.mxu0 0.0
        %4897 = vmatprep.subr.mxu0 0.0
        %4898 = vmatpush1.msra.mxu0 0.0
        %4899 = vmatprep.subr.mxu0 0.0
        %4900 = vmatpush1.msra.mxu0 0.0
        %4901 = vmatprep.subr.mxu0 0.0
        %4902 = vmatpush1.msra.mxu0 0.0
        %4903 = vmatprep.subr.mxu0 0.0
        %4904 = vmatpush1.msra.mxu0 0.0
        %4905 = vmatprep.subr.mxu0 0.0
        %4906 = vmatpush1.msra.mxu0 0.0
        %4907 = vmatprep.subr.mxu0 0.0
        %4908 = vmatpush1.msra.mxu0 0.0
        %4909 = vmatprep.subr.mxu0 0.0
        %4910 = vmatpush1.msra.mxu0 0.0
        %4911 = vmatprep.mubr.f32.mxu0 0.0
        %4912 = vmatmul.mubr.f32.gmra.mrb[0].mxu0 %v4824
        %v4913 = vpop.f32.mrb[0].mxu0
        %v4914 = vadd.f32 0.0, %v4913
        %v4915 = vpop.f32.mrb[0].mxu0
        %4916 = vmatprep.mubr.f32.mxu0 0.0
        %4917 = vmatmul.mubr.f32.gmra.mrb[0].mxu0 %v4827
        %v4918 = vpop.f32.mrb[0].mxu0
        %v4919 = vadd.f32 0.0, %v4918
        %v4920 = vpop.f32.mrb[0].mxu0
        %4921 = vmatprep.mubr.f32.mxu0 0.0
        %4922 = vmatmul.mubr.f32.gmra.mrb[0].mxu0 %v4830
        %v4923 = vpop.f32.mrb[0].mxu0
        %v4924 = vadd.f32 0.0, %v4923
        %v4925 = vpop.f32.mrb[0].mxu0
        %4926 = vmatprep.mubr.f32.mxu0 0.0
        %4927 = vmatmul.mubr.f32.gmra.mrb[0].mxu0 %v4833
        %v4928 = vpop.f32.mrb[0].mxu0
        %v4929 = vadd.f32 0.0, %v4928
        %v4930 = vpop.f32.mrb[0].mxu0
        %4931 = vmatprep.mubr.f32.mxu0 0.0
        %4932 = vmatmul.mubr.f32.gmra.mrb[0].mxu0 %v4836
        %v4933 = vpop.f32.mrb[0].mxu0
        %v4934 = vadd.f32 0.0, %v4933
        %v4935 = vpop.f32.mrb[0].mxu0
        %4936 = vmatprep.mubr.f32.mxu0 0.0
        %4937 = vmatmul.mubr.f32.gmra.mrb[0].mxu0 %v4839
        %v4938 = vpop.f32.mrb[0].mxu0
        %v4939 = vadd.f32 0.0, %v4938
        %v4940 = vpop.f32.mrb[0].mxu0
        %4941 = vmatprep.mubr.f32.mxu0 0.0
        %4942 = vmatmul.mubr.f32.gmra.mrb[0].mxu0 %v4842
        %v4943 = vpop.f32.mrb[0].mxu0
        %v4944 = vadd.f32 0.0, %v4943
        %v4945 = vpop.f32.mrb[0].mxu0
        %4946 = vmatprep.mubr.f32.mxu0 0.0
        %4947 = vmatmul.mubr.f32.gmra.mrb[0].mxu0 %v4845
        %v4948 = vpop.f32.mrb[0].mxu0
        %v4949 = vadd.f32 0.0, %v4948
        %v4950 = vpop.f32.mrb[0].mxu0
        %4951 = vdwg.mxu0
        %v4952 = vadd.f32 %v4797, %v4914
        %v4953 = vadd.f32 %v4798, %v4919
        %v4954 = vadd.f32 %v4799, %v4924
        %v4955 = vadd.f32 %v4800, %v4929
        %v4956 = vadd.f32 %v4801, %v4934
        %v4957 = vadd.f32 %v4802, %v4939
        %v4958 = vadd.f32 %v4803, %v4944
        %v4959 = vadd.f32 %v4804, %v4949
        %s4960 = scalar_lea.vmem %s4339, 10 [#allocation3]
        %v4961 = vld [vmem:[%s4960] ss:$2 sm:$0xff]
        %s4962 = scalar_lea.vmem %s4339, 74 [#allocation3]
        %v4963 = vld [vmem:[%s4962] ss:$2 sm:$0xff]
        %s4964 = scalar_lea.vmem %s4339, 138 [#allocation3]
        %v4965 = vld [vmem:[%s4964] ss:$2 sm:$0xff]
        %s4966 = scalar_lea.vmem %s4339, 202 [#allocation3]
        %v4967 = vld [vmem:[%s4966] ss:$2 sm:$0xff]
        %s4968 = scalar_lea.vmem %s4339, 266 [#allocation3]
        %v4969 = vld [vmem:[%s4968] ss:$2 sm:$0xff]
        %s4970 = scalar_lea.vmem %s4339, 330 [#allocation3]
        %v4971 = vld [vmem:[%s4970] ss:$2 sm:$0xff]
        %s4972 = scalar_lea.vmem %s4339, 394 [#allocation3]
        %v4973 = vld [vmem:[%s4972] ss:$2 sm:$0xff]
        %s4974 = scalar_lea.vmem %s4339, 458 [#allocation3]
        %v4975 = vld [vmem:[%s4974] ss:$2 sm:$0xff]
        %s4976 = scalar_lea.vmem %s3, 72
        %v4977 = vld [vmem:[%s4976] sm:$0xff]
        %v4979 = vsel %vm430, %v4961, 0
        %v4982 = vsel %vm430, %v4963, 0
        %v4985 = vsel %vm430, %v4965, 0
        %v4988 = vsel %vm430, %v4967, 0
        %v4991 = vsel %vm430, %v4969, 0
        %v4994 = vsel %vm430, %v4971, 0
        %v4997 = vsel %vm430, %v4973, 0
        %v5000 = vsel %vm430, %v4975, 0
        %5002 = vmatprep.subr.mxu0 0.0
        %5003 = vmatpush1.msra.mxu0 %v4977
        %5004 = vmatprep.subr.mxu0 0.0
        %5005 = vmatpush1.msra.mxu0 0.0
        %5006 = vmatprep.subr.mxu0 0.0
        %5007 = vmatpush1.msra.mxu0 0.0
        %5008 = vmatprep.subr.mxu0 0.0
        %5009 = vmatpush1.msra.mxu0 0.0
        %5010 = vmatprep.subr.mxu0 0.0
        %5011 = vmatpush1.msra.mxu0 0.0
        %5012 = vmatprep.subr.mxu0 0.0
        %5013 = vmatpush1.msra.mxu0 0.0
        %5014 = vmatprep.subr.mxu0 0.0
        %5015 = vmatpush1.msra.mxu0 0.0
        %5016 = vmatprep.subr.mxu0 0.0
        %5017 = vmatpush1.msra.mxu0 0.0
        %5018 = vmatprep.subr.mxu0 0.0
        %5019 = vmatpush1.msra.mxu0 0.0
        %5020 = vmatprep.subr.mxu0 0.0
        %5021 = vmatpush1.msra.mxu0 0.0
        %5022 = vmatprep.subr.mxu0 0.0
        %5023 = vmatpush1.msra.mxu0 0.0
        %5024 = vmatprep.subr.mxu0 0.0
        %5025 = vmatpush1.msra.mxu0 0.0
        %5026 = vmatprep.subr.mxu0 0.0
        %5027 = vmatpush1.msra.mxu0 0.0
        %5028 = vmatprep.subr.mxu0 0.0
        %5029 = vmatpush1.msra.mxu0 0.0
        %5030 = vmatprep.subr.mxu0 0.0
        %5031 = vmatpush1.msra.mxu0 0.0
        %5032 = vmatprep.subr.mxu0 0.0
        %5033 = vmatpush1.msra.mxu0 0.0
        %5034 = vmatprep.subr.mxu0 0.0
        %5035 = vmatpush1.msra.mxu0 0.0
        %5036 = vmatprep.subr.mxu0 0.0
        %5037 = vmatpush1.msra.mxu0 0.0
        %5038 = vmatprep.subr.mxu0 0.0
        %5039 = vmatpush1.msra.mxu0 0.0
        %5040 = vmatprep.subr.mxu0 0.0
        %5041 = vmatpush1.msra.mxu0 0.0
        %5042 = vmatprep.subr.mxu0 0.0
        %5043 = vmatpush1.msra.mxu0 0.0
        %5044 = vmatprep.subr.mxu0 0.0
        %5045 = vmatpush1.msra.mxu0 0.0
        %5046 = vmatprep.subr.mxu0 0.0
        %5047 = vmatpush1.msra.mxu0 0.0
        %5048 = vmatprep.subr.mxu0 0.0
        %5049 = vmatpush1.msra.mxu0 0.0
        %5050 = vmatprep.subr.mxu0 0.0
        %5051 = vmatpush1.msra.mxu0 0.0
        %5052 = vmatprep.subr.mxu0 0.0
        %5053 = vmatpush1.msra.mxu0 0.0
        %5054 = vmatprep.subr.mxu0 0.0
        %5055 = vmatpush1.msra.mxu0 0.0
        %5056 = vmatprep.subr.mxu0 0.0
        %5057 = vmatpush1.msra.mxu0 0.0
        %5058 = vmatprep.subr.mxu0 0.0
        %5059 = vmatpush1.msra.mxu0 0.0
        %5060 = vmatprep.subr.mxu0 0.0
        %5061 = vmatpush1.msra.mxu0 0.0
        %5062 = vmatprep.subr.mxu0 0.0
        %5063 = vmatpush1.msra.mxu0 0.0
        %5064 = vmatprep.subr.mxu0 0.0
        %5065 = vmatpush1.msra.mxu0 0.0
        %5066 = vmatprep.mubr.f32.mxu0 0.0
        %5067 = vmatmul.mubr.f32.gmra.mrb[0].mxu0 %v4979
        %v5068 = vpop.f32.mrb[0].mxu0
        %v5069 = vadd.f32 0.0, %v5068
        %v5070 = vpop.f32.mrb[0].mxu0
        %5071 = vmatprep.mubr.f32.mxu0 0.0
        %5072 = vmatmul.mubr.f32.gmra.mrb[0].mxu0 %v4982
        %v5073 = vpop.f32.mrb[0].mxu0
        %v5074 = vadd.f32 0.0, %v5073
        %v5075 = vpop.f32.mrb[0].mxu0
        %5076 = vmatprep.mubr.f32.mxu0 0.0
        %5077 = vmatmul.mubr.f32.gmra.mrb[0].mxu0 %v4985
        %v5078 = vpop.f32.mrb[0].mxu0
        %v5079 = vadd.f32 0.0, %v5078
        %v5080 = vpop.f32.mrb[0].mxu0
        %5081 = vmatprep.mubr.f32.mxu0 0.0
        %5082 = vmatmul.mubr.f32.gmra.mrb[0].mxu0 %v4988
        %v5083 = vpop.f32.mrb[0].mxu0
        %v5084 = vadd.f32 0.0, %v5083
        %v5085 = vpop.f32.mrb[0].mxu0
        %5086 = vmatprep.mubr.f32.mxu0 0.0
        %5087 = vmatmul.mubr.f32.gmra.mrb[0].mxu0 %v4991
        %v5088 = vpop.f32.mrb[0].mxu0
        %v5089 = vadd.f32 0.0, %v5088
        %v5090 = vpop.f32.mrb[0].mxu0
        %5091 = vmatprep.mubr.f32.mxu0 0.0
        %5092 = vmatmul.mubr.f32.gmra.mrb[0].mxu0 %v4994
        %v5093 = vpop.f32.mrb[0].mxu0
        %v5094 = vadd.f32 0.0, %v5093
        %v5095 = vpop.f32.mrb[0].mxu0
        %5096 = vmatprep.mubr.f32.mxu0 0.0
        %5097 = vmatmul.mubr.f32.gmra.mrb[0].mxu0 %v4997
        %v5098 = vpop.f32.mrb[0].mxu0
        %v5099 = vadd.f32 0.0, %v5098
        %v5100 = vpop.f32.mrb[0].mxu0
        %5101 = vmatprep.mubr.f32.mxu0 0.0
        %5102 = vmatmul.mubr.f32.gmra.mrb[0].mxu0 %v5000
        %v5103 = vpop.f32.mrb[0].mxu0
        %v5104 = vadd.f32 0.0, %v5103
        %v5105 = vpop.f32.mrb[0].mxu0
        %5106 = vdwg.mxu0
        %v5107 = vadd.f32 %v4952, %v5069
        %v5108 = vadd.f32 %v4953, %v5074
        %v5109 = vadd.f32 %v4954, %v5079
        %v5110 = vadd.f32 %v4955, %v5084
        %v5111 = vadd.f32 %v4956, %v5089
        %v5112 = vadd.f32 %v4957, %v5094
        %v5113 = vadd.f32 %v4958, %v5099
        %v5114 = vadd.f32 %v4959, %v5104
        %s5115 = scalar_lea.vmem %s3548, 6 [#allocation3]
        %v5116 = vld [vmem:[%s5115] ss:$2 sm:$0xff]
        %s5117 = scalar_lea.vmem %s3548, 70 [#allocation3]
        %v5118 = vld [vmem:[%s5117] ss:$2 sm:$0xff]
        %s5119 = scalar_lea.vmem %s3548, 134 [#allocation3]
        %v5120 = vld [vmem:[%s5119] ss:$2 sm:$0xff]
        %s5121 = scalar_lea.vmem %s3548, 198 [#allocation3]
        %v5122 = vld [vmem:[%s5121] ss:$2 sm:$0xff]
        %s5123 = scalar_lea.vmem %s3548, 262 [#allocation3]
        %v5124 = vld [vmem:[%s5123] ss:$2 sm:$0xff]
        %s5125 = scalar_lea.vmem %s3548, 326 [#allocation3]
        %v5126 = vld [vmem:[%s5125] ss:$2 sm:$0xff]
        %s5127 = scalar_lea.vmem %s3548, 390 [#allocation3]
        %v5128 = vld [vmem:[%s5127] ss:$2 sm:$0xff]
        %s5129 = scalar_lea.vmem %s3548, 454 [#allocation3]
        %v5130 = vld [vmem:[%s5129] ss:$2 sm:$0xff]
        %s5131 = scalar_lea.vmem %s3, 80
        %v5132 = vld [vmem:[%s5131] sm:$0xff]
        %v5134 = vsel %vm430, %v5116, 0
        %v5137 = vsel %vm430, %v5118, 0
        %v5140 = vsel %vm430, %v5120, 0
        %v5143 = vsel %vm430, %v5122, 0
        %v5146 = vsel %vm430, %v5124, 0
        %v5149 = vsel %vm430, %v5126, 0
        %v5152 = vsel %vm430, %v5128, 0
        %v5155 = vsel %vm430, %v5130, 0
        %5157 = vmatprep.subr.mxu0 0.0
        %5158 = vmatpush1.msra.mxu0 %v5132
        %5159 = vmatprep.subr.mxu0 0.0
        %5160 = vmatpush1.msra.mxu0 0.0
        %5161 = vmatprep.subr.mxu0 0.0
        %5162 = vmatpush1.msra.mxu0 0.0
        %5163 = vmatprep.subr.mxu0 0.0
        %5164 = vmatpush1.msra.mxu0 0.0
        %5165 = vmatprep.subr.mxu0 0.0
        %5166 = vmatpush1.msra.mxu0 0.0
        %5167 = vmatprep.subr.mxu0 0.0
        %5168 = vmatpush1.msra.mxu0 0.0
        %5169 = vmatprep.subr.mxu0 0.0
        %5170 = vmatpush1.msra.mxu0 0.0
        %5171 = vmatprep.subr.mxu0 0.0
        %5172 = vmatpush1.msra.mxu0 0.0
        %5173 = vmatprep.subr.mxu0 0.0
        %5174 = vmatpush1.msra.mxu0 0.0
        %5175 = vmatprep.subr.mxu0 0.0
        %5176 = vmatpush1.msra.mxu0 0.0
        %5177 = vmatprep.subr.mxu0 0.0
        %5178 = vmatpush1.msra.mxu0 0.0
        %5179 = vmatprep.subr.mxu0 0.0
        %5180 = vmatpush1.msra.mxu0 0.0
        %5181 = vmatprep.subr.mxu0 0.0
        %5182 = vmatpush1.msra.mxu0 0.0
        %5183 = vmatprep.subr.mxu0 0.0
        %5184 = vmatpush1.msra.mxu0 0.0
        %5185 = vmatprep.subr.mxu0 0.0
        %5186 = vmatpush1.msra.mxu0 0.0
        %5187 = vmatprep.subr.mxu0 0.0
        %5188 = vmatpush1.msra.mxu0 0.0
        %5189 = vmatprep.subr.mxu0 0.0
        %5190 = vmatpush1.msra.mxu0 0.0
        %5191 = vmatprep.subr.mxu0 0.0
        %5192 = vmatpush1.msra.mxu0 0.0
        %5193 = vmatprep.subr.mxu0 0.0
        %5194 = vmatpush1.msra.mxu0 0.0
        %5195 = vmatprep.subr.mxu0 0.0
        %5196 = vmatpush1.msra.mxu0 0.0
        %5197 = vmatprep.subr.mxu0 0.0
        %5198 = vmatpush1.msra.mxu0 0.0
        %5199 = vmatprep.subr.mxu0 0.0
        %5200 = vmatpush1.msra.mxu0 0.0
        %5201 = vmatprep.subr.mxu0 0.0
        %5202 = vmatpush1.msra.mxu0 0.0
        %5203 = vmatprep.subr.mxu0 0.0
        %5204 = vmatpush1.msra.mxu0 0.0
        %5205 = vmatprep.subr.mxu0 0.0
        %5206 = vmatpush1.msra.mxu0 0.0
        %5207 = vmatprep.subr.mxu0 0.0
        %5208 = vmatpush1.msra.mxu0 0.0
        %5209 = vmatprep.subr.mxu0 0.0
        %5210 = vmatpush1.msra.mxu0 0.0
        %5211 = vmatprep.subr.mxu0 0.0
        %5212 = vmatpush1.msra.mxu0 0.0
        %5213 = vmatprep.subr.mxu0 0.0
        %5214 = vmatpush1.msra.mxu0 0.0
        %5215 = vmatprep.subr.mxu0 0.0
        %5216 = vmatpush1.msra.mxu0 0.0
        %5217 = vmatprep.subr.mxu0 0.0
        %5218 = vmatpush1.msra.mxu0 0.0
        %5219 = vmatprep.subr.mxu0 0.0
        %5220 = vmatpush1.msra.mxu0 0.0
        %5221 = vmatprep.mubr.f32.mxu0 0.0
        %5222 = vmatmul.mubr.f32.gmra.mrb[0].mxu0 %v5134
        %v5223 = vpop.f32.mrb[0].mxu0
        %v5224 = vadd.f32 0.0, %v5223
        %v5225 = vpop.f32.mrb[0].mxu0
        %5226 = vmatprep.mubr.f32.mxu0 0.0
        %5227 = vmatmul.mubr.f32.gmra.mrb[0].mxu0 %v5137
        %v5228 = vpop.f32.mrb[0].mxu0
        %v5229 = vadd.f32 0.0, %v5228
        %v5230 = vpop.f32.mrb[0].mxu0
        %5231 = vmatprep.mubr.f32.mxu0 0.0
        %5232 = vmatmul.mubr.f32.gmra.mrb[0].mxu0 %v5140
        %v5233 = vpop.f32.mrb[0].mxu0
        %v5234 = vadd.f32 0.0, %v5233
        %v5235 = vpop.f32.mrb[0].mxu0
        %5236 = vmatprep.mubr.f32.mxu0 0.0
        %5237 = vmatmul.mubr.f32.gmra.mrb[0].mxu0 %v5143
        %v5238 = vpop.f32.mrb[0].mxu0
        %v5239 = vadd.f32 0.0, %v5238
        %v5240 = vpop.f32.mrb[0].mxu0
        %5241 = vmatprep.mubr.f32.mxu0 0.0
        %5242 = vmatmul.mubr.f32.gmra.mrb[0].mxu0 %v5146
        %v5243 = vpop.f32.mrb[0].mxu0
        %v5244 = vadd.f32 0.0, %v5243
        %v5245 = vpop.f32.mrb[0].mxu0
        %5246 = vmatprep.mubr.f32.mxu0 0.0
        %5247 = vmatmul.mubr.f32.gmra.mrb[0].mxu0 %v5149
        %v5248 = vpop.f32.mrb[0].mxu0
        %v5249 = vadd.f32 0.0, %v5248
        %v5250 = vpop.f32.mrb[0].mxu0
        %5251 = vmatprep.mubr.f32.mxu0 0.0
        %5252 = vmatmul.mubr.f32.gmra.mrb[0].mxu0 %v5152
        %v5253 = vpop.f32.mrb[0].mxu0
        %v5254 = vadd.f32 0.0, %v5253
        %v5255 = vpop.f32.mrb[0].mxu0
        %5256 = vmatprep.mubr.f32.mxu0 0.0
        %5257 = vmatmul.mubr.f32.gmra.mrb[0].mxu0 %v5155
        %v5258 = vpop.f32.mrb[0].mxu0
        %v5259 = vadd.f32 0.0, %v5258
        %v5260 = vpop.f32.mrb[0].mxu0
        %5261 = vdwg.mxu0
        %v5262 = vadd.f32 %v5107, %v5224
        %v5263 = vadd.f32 %v5108, %v5229
        %v5264 = vadd.f32 %v5109, %v5234
        %v5265 = vadd.f32 %v5110, %v5239
        %v5266 = vadd.f32 %v5111, %v5244
        %v5267 = vadd.f32 %v5112, %v5249
        %v5268 = vadd.f32 %v5113, %v5254
        %v5269 = vadd.f32 %v5114, %v5259
        %s5270 = scalar_lea.vmem %s3548, 7 [#allocation3]
        %v5271 = vld [vmem:[%s5270] ss:$2 sm:$0xff]
        %s5272 = scalar_lea.vmem %s3548, 71 [#allocation3]
        %v5273 = vld [vmem:[%s5272] ss:$2 sm:$0xff]
        %s5274 = scalar_lea.vmem %s3548, 135 [#allocation3]
        %v5275 = vld [vmem:[%s5274] ss:$2 sm:$0xff]
        %s5276 = scalar_lea.vmem %s3548, 199 [#allocation3]
        %v5277 = vld [vmem:[%s5276] ss:$2 sm:$0xff]
        %s5278 = scalar_lea.vmem %s3548, 263 [#allocation3]
        %v5279 = vld [vmem:[%s5278] ss:$2 sm:$0xff]
        %s5280 = scalar_lea.vmem %s3548, 327 [#allocation3]
        %v5281 = vld [vmem:[%s5280] ss:$2 sm:$0xff]
        %s5282 = scalar_lea.vmem %s3548, 391 [#allocation3]
        %v5283 = vld [vmem:[%s5282] ss:$2 sm:$0xff]
        %s5284 = scalar_lea.vmem %s3548, 455 [#allocation3]
        %v5285 = vld [vmem:[%s5284] ss:$2 sm:$0xff]
        %s5286 = scalar_lea.vmem %s3, 88
        %v5287 = vld [vmem:[%s5286] sm:$0xff]
        %v5289 = vsel %vm430, %v5271, 0
        %v5292 = vsel %vm430, %v5273, 0
        %v5295 = vsel %vm430, %v5275, 0
        %v5298 = vsel %vm430, %v5277, 0
        %v5301 = vsel %vm430, %v5279, 0
        %v5304 = vsel %vm430, %v5281, 0
        %v5307 = vsel %vm430, %v5283, 0
        %v5310 = vsel %vm430, %v5285, 0
        %5312 = vmatprep.subr.mxu0 0.0
        %5313 = vmatpush1.msra.mxu0 %v5287
        %5314 = vmatprep.subr.mxu0 0.0
        %5315 = vmatpush1.msra.mxu0 0.0
        %5316 = vmatprep.subr.mxu0 0.0
        %5317 = vmatpush1.msra.mxu0 0.0
        %5318 = vmatprep.subr.mxu0 0.0
        %5319 = vmatpush1.msra.mxu0 0.0
        %5320 = vmatprep.subr.mxu0 0.0
        %5321 = vmatpush1.msra.mxu0 0.0
        %5322 = vmatprep.subr.mxu0 0.0
        %5323 = vmatpush1.msra.mxu0 0.0
        %5324 = vmatprep.subr.mxu0 0.0
        %5325 = vmatpush1.msra.mxu0 0.0
        %5326 = vmatprep.subr.mxu0 0.0
        %5327 = vmatpush1.msra.mxu0 0.0
        %5328 = vmatprep.subr.mxu0 0.0
        %5329 = vmatpush1.msra.mxu0 0.0
        %5330 = vmatprep.subr.mxu0 0.0
        %5331 = vmatpush1.msra.mxu0 0.0
        %5332 = vmatprep.subr.mxu0 0.0
        %5333 = vmatpush1.msra.mxu0 0.0
        %5334 = vmatprep.subr.mxu0 0.0
        %5335 = vmatpush1.msra.mxu0 0.0
        %5336 = vmatprep.subr.mxu0 0.0
        %5337 = vmatpush1.msra.mxu0 0.0
        %5338 = vmatprep.subr.mxu0 0.0
        %5339 = vmatpush1.msra.mxu0 0.0
        %5340 = vmatprep.subr.mxu0 0.0
        %5341 = vmatpush1.msra.mxu0 0.0
        %5342 = vmatprep.subr.mxu0 0.0
        %5343 = vmatpush1.msra.mxu0 0.0
        %5344 = vmatprep.subr.mxu0 0.0
        %5345 = vmatpush1.msra.mxu0 0.0
        %5346 = vmatprep.subr.mxu0 0.0
        %5347 = vmatpush1.msra.mxu0 0.0
        %5348 = vmatprep.subr.mxu0 0.0
        %5349 = vmatpush1.msra.mxu0 0.0
        %5350 = vmatprep.subr.mxu0 0.0
        %5351 = vmatpush1.msra.mxu0 0.0
        %5352 = vmatprep.subr.mxu0 0.0
        %5353 = vmatpush1.msra.mxu0 0.0
        %5354 = vmatprep.subr.mxu0 0.0
        %5355 = vmatpush1.msra.mxu0 0.0
        %5356 = vmatprep.subr.mxu0 0.0
        %5357 = vmatpush1.msra.mxu0 0.0
        %5358 = vmatprep.subr.mxu0 0.0
        %5359 = vmatpush1.msra.mxu0 0.0
        %5360 = vmatprep.subr.mxu0 0.0
        %5361 = vmatpush1.msra.mxu0 0.0
        %5362 = vmatprep.subr.mxu0 0.0
        %5363 = vmatpush1.msra.mxu0 0.0
        %5364 = vmatprep.subr.mxu0 0.0
        %5365 = vmatpush1.msra.mxu0 0.0
        %5366 = vmatprep.subr.mxu0 0.0
        %5367 = vmatpush1.msra.mxu0 0.0
        %5368 = vmatprep.subr.mxu0 0.0
        %5369 = vmatpush1.msra.mxu0 0.0
        %5370 = vmatprep.subr.mxu0 0.0
        %5371 = vmatpush1.msra.mxu0 0.0
        %5372 = vmatprep.subr.mxu0 0.0
        %5373 = vmatpush1.msra.mxu0 0.0
        %5374 = vmatprep.subr.mxu0 0.0
        %5375 = vmatpush1.msra.mxu0 0.0
        %5376 = vmatprep.mubr.f32.mxu0 0.0
        %5377 = vmatmul.mubr.f32.gmra.mrb[0].mxu0 %v5289
        %v5378 = vpop.f32.mrb[0].mxu0
        %v5379 = vadd.f32 0.0, %v5378
        %v5380 = vpop.f32.mrb[0].mxu0
        %5381 = vmatprep.mubr.f32.mxu0 0.0
        %5382 = vmatmul.mubr.f32.gmra.mrb[0].mxu0 %v5292
        %v5383 = vpop.f32.mrb[0].mxu0
        %v5384 = vadd.f32 0.0, %v5383
        %v5385 = vpop.f32.mrb[0].mxu0
        %5386 = vmatprep.mubr.f32.mxu0 0.0
        %5387 = vmatmul.mubr.f32.gmra.mrb[0].mxu0 %v5295
        %v5388 = vpop.f32.mrb[0].mxu0
        %v5389 = vadd.f32 0.0, %v5388
        %v5390 = vpop.f32.mrb[0].mxu0
        %5391 = vmatprep.mubr.f32.mxu0 0.0
        %5392 = vmatmul.mubr.f32.gmra.mrb[0].mxu0 %v5298
        %v5393 = vpop.f32.mrb[0].mxu0
        %v5394 = vadd.f32 0.0, %v5393
        %v5395 = vpop.f32.mrb[0].mxu0
        %5396 = vmatprep.mubr.f32.mxu0 0.0
        %5397 = vmatmul.mubr.f32.gmra.mrb[0].mxu0 %v5301
        %v5398 = vpop.f32.mrb[0].mxu0
        %v5399 = vadd.f32 0.0, %v5398
        %v5400 = vpop.f32.mrb[0].mxu0
        %5401 = vmatprep.mubr.f32.mxu0 0.0
        %5402 = vmatmul.mubr.f32.gmra.mrb[0].mxu0 %v5304
        %v5403 = vpop.f32.mrb[0].mxu0
        %v5404 = vadd.f32 0.0, %v5403
        %v5405 = vpop.f32.mrb[0].mxu0
        %5406 = vmatprep.mubr.f32.mxu0 0.0
        %5407 = vmatmul.mubr.f32.gmra.mrb[0].mxu0 %v5307
        %v5408 = vpop.f32.mrb[0].mxu0
        %v5409 = vadd.f32 0.0, %v5408
        %v5410 = vpop.f32.mrb[0].mxu0
        %5411 = vmatprep.mubr.f32.mxu0 0.0
        %5412 = vmatmul.mubr.f32.gmra.mrb[0].mxu0 %v5310
        %v5413 = vpop.f32.mrb[0].mxu0
        %v5414 = vadd.f32 0.0, %v5413
        %v5415 = vpop.f32.mrb[0].mxu0
        %5416 = vdwg.mxu0
        %v5417 = vadd.f32 %v5262, %v5379
        %v5418 = vadd.f32 %v5263, %v5384
        %v5419 = vadd.f32 %v5264, %v5389
        %v5420 = vadd.f32 %v5265, %v5394
        %v5421 = vadd.f32 %v5266, %v5399
        %v5422 = vadd.f32 %v5267, %v5404
        %v5423 = vadd.f32 %v5268, %v5409
        %v5424 = vadd.f32 %v5269, %v5414
        %s5425 = scalar_lea.vmem %s3548, 8 [#allocation3]
        %v5426 = vld [vmem:[%s5425] ss:$2 sm:$0xff]
        %s5427 = scalar_lea.vmem %s3548, 72 [#allocation3]
        %v5428 = vld [vmem:[%s5427] ss:$2 sm:$0xff]
        %s5429 = scalar_lea.vmem %s3548, 136 [#allocation3]
        %v5430 = vld [vmem:[%s5429] ss:$2 sm:$0xff]
        %s5431 = scalar_lea.vmem %s3548, 200 [#allocation3]
        %v5432 = vld [vmem:[%s5431] ss:$2 sm:$0xff]
        %s5433 = scalar_lea.vmem %s3548, 264 [#allocation3]
        %v5434 = vld [vmem:[%s5433] ss:$2 sm:$0xff]
        %s5435 = scalar_lea.vmem %s3548, 328 [#allocation3]
        %v5436 = vld [vmem:[%s5435] ss:$2 sm:$0xff]
        %s5437 = scalar_lea.vmem %s3548, 392 [#allocation3]
        %v5438 = vld [vmem:[%s5437] ss:$2 sm:$0xff]
        %s5439 = scalar_lea.vmem %s3548, 456 [#allocation3]
        %v5440 = vld [vmem:[%s5439] ss:$2 sm:$0xff]
        %s5441 = scalar_lea.vmem %s3, 96
        %v5442 = vld [vmem:[%s5441] sm:$0xff]
        %v5444 = vsel %vm430, %v5426, 0
        %v5447 = vsel %vm430, %v5428, 0
        %v5450 = vsel %vm430, %v5430, 0
        %v5453 = vsel %vm430, %v5432, 0
        %v5456 = vsel %vm430, %v5434, 0
        %v5459 = vsel %vm430, %v5436, 0
        %v5462 = vsel %vm430, %v5438, 0
        %v5465 = vsel %vm430, %v5440, 0
        %5467 = vmatprep.subr.mxu0 0.0
        %5468 = vmatpush1.msra.mxu0 %v5442
        %5469 = vmatprep.subr.mxu0 0.0
        %5470 = vmatpush1.msra.mxu0 0.0
        %5471 = vmatprep.subr.mxu0 0.0
        %5472 = vmatpush1.msra.mxu0 0.0
        %5473 = vmatprep.subr.mxu0 0.0
        %5474 = vmatpush1.msra.mxu0 0.0
        %5475 = vmatprep.subr.mxu0 0.0
        %5476 = vmatpush1.msra.mxu0 0.0
        %5477 = vmatprep.subr.mxu0 0.0
        %5478 = vmatpush1.msra.mxu0 0.0
        %5479 = vmatprep.subr.mxu0 0.0
        %5480 = vmatpush1.msra.mxu0 0.0
        %5481 = vmatprep.subr.mxu0 0.0
        %5482 = vmatpush1.msra.mxu0 0.0
        %5483 = vmatprep.subr.mxu0 0.0
        %5484 = vmatpush1.msra.mxu0 0.0
        %5485 = vmatprep.subr.mxu0 0.0
        %5486 = vmatpush1.msra.mxu0 0.0
        %5487 = vmatprep.subr.mxu0 0.0
        %5488 = vmatpush1.msra.mxu0 0.0
        %5489 = vmatprep.subr.mxu0 0.0
        %5490 = vmatpush1.msra.mxu0 0.0
        %5491 = vmatprep.subr.mxu0 0.0
        %5492 = vmatpush1.msra.mxu0 0.0
        %5493 = vmatprep.subr.mxu0 0.0
        %5494 = vmatpush1.msra.mxu0 0.0
        %5495 = vmatprep.subr.mxu0 0.0
        %5496 = vmatpush1.msra.mxu0 0.0
        %5497 = vmatprep.subr.mxu0 0.0
        %5498 = vmatpush1.msra.mxu0 0.0
        %5499 = vmatprep.subr.mxu0 0.0
        %5500 = vmatpush1.msra.mxu0 0.0
        %5501 = vmatprep.subr.mxu0 0.0
        %5502 = vmatpush1.msra.mxu0 0.0
        %5503 = vmatprep.subr.mxu0 0.0
        %5504 = vmatpush1.msra.mxu0 0.0
        %5505 = vmatprep.subr.mxu0 0.0
        %5506 = vmatpush1.msra.mxu0 0.0
        %5507 = vmatprep.subr.mxu0 0.0
        %5508 = vmatpush1.msra.mxu0 0.0
        %5509 = vmatprep.subr.mxu0 0.0
        %5510 = vmatpush1.msra.mxu0 0.0
        %5511 = vmatprep.subr.mxu0 0.0
        %5512 = vmatpush1.msra.mxu0 0.0
        %5513 = vmatprep.subr.mxu0 0.0
        %5514 = vmatpush1.msra.mxu0 0.0
        %5515 = vmatprep.subr.mxu0 0.0
        %5516 = vmatpush1.msra.mxu0 0.0
        %5517 = vmatprep.subr.mxu0 0.0
        %5518 = vmatpush1.msra.mxu0 0.0
        %5519 = vmatprep.subr.mxu0 0.0
        %5520 = vmatpush1.msra.mxu0 0.0
        %5521 = vmatprep.subr.mxu0 0.0
        %5522 = vmatpush1.msra.mxu0 0.0
        %5523 = vmatprep.subr.mxu0 0.0
        %5524 = vmatpush1.msra.mxu0 0.0
        %5525 = vmatprep.subr.mxu0 0.0
        %5526 = vmatpush1.msra.mxu0 0.0
        %5527 = vmatprep.subr.mxu0 0.0
        %5528 = vmatpush1.msra.mxu0 0.0
        %5529 = vmatprep.subr.mxu0 0.0
        %5530 = vmatpush1.msra.mxu0 0.0
        %5531 = vmatprep.mubr.f32.mxu0 0.0
        %5532 = vmatmul.mubr.f32.gmra.mrb[0].mxu0 %v5444
        %v5533 = vpop.f32.mrb[0].mxu0
        %v5534 = vadd.f32 0.0, %v5533
        %v5535 = vpop.f32.mrb[0].mxu0
        %5536 = vmatprep.mubr.f32.mxu0 0.0
        %5537 = vmatmul.mubr.f32.gmra.mrb[0].mxu0 %v5447
        %v5538 = vpop.f32.mrb[0].mxu0
        %v5539 = vadd.f32 0.0, %v5538
        %v5540 = vpop.f32.mrb[0].mxu0
        %5541 = vmatprep.mubr.f32.mxu0 0.0
        %5542 = vmatmul.mubr.f32.gmra.mrb[0].mxu0 %v5450
        %v5543 = vpop.f32.mrb[0].mxu0
        %v5544 = vadd.f32 0.0, %v5543
        %v5545 = vpop.f32.mrb[0].mxu0
        %5546 = vmatprep.mubr.f32.mxu0 0.0
        %5547 = vmatmul.mubr.f32.gmra.mrb[0].mxu0 %v5453
        %v5548 = vpop.f32.mrb[0].mxu0
        %v5549 = vadd.f32 0.0, %v5548
        %v5550 = vpop.f32.mrb[0].mxu0
        %5551 = vmatprep.mubr.f32.mxu0 0.0
        %5552 = vmatmul.mubr.f32.gmra.mrb[0].mxu0 %v5456
        %v5553 = vpop.f32.mrb[0].mxu0
        %v5554 = vadd.f32 0.0, %v5553
        %v5555 = vpop.f32.mrb[0].mxu0
        %5556 = vmatprep.mubr.f32.mxu0 0.0
        %5557 = vmatmul.mubr.f32.gmra.mrb[0].mxu0 %v5459
        %v5558 = vpop.f32.mrb[0].mxu0
        %v5559 = vadd.f32 0.0, %v5558
        %v5560 = vpop.f32.mrb[0].mxu0
        %5561 = vmatprep.mubr.f32.mxu0 0.0
        %5562 = vmatmul.mubr.f32.gmra.mrb[0].mxu0 %v5462
        %v5563 = vpop.f32.mrb[0].mxu0
        %v5564 = vadd.f32 0.0, %v5563
        %v5565 = vpop.f32.mrb[0].mxu0
        %5566 = vmatprep.mubr.f32.mxu0 0.0
        %5567 = vmatmul.mubr.f32.gmra.mrb[0].mxu0 %v5465
        %v5568 = vpop.f32.mrb[0].mxu0
        %v5569 = vadd.f32 0.0, %v5568
        %v5570 = vpop.f32.mrb[0].mxu0
        %5571 = vdwg.mxu0
        %v5572 = vadd.f32 %v5417, %v5534
        %v5573 = vadd.f32 %v5418, %v5539
        %v5574 = vadd.f32 %v5419, %v5544
        %v5575 = vadd.f32 %v5420, %v5549
        %v5576 = vadd.f32 %v5421, %v5554
        %v5577 = vadd.f32 %v5422, %v5559
        %v5578 = vadd.f32 %v5423, %v5564
        %v5579 = vadd.f32 %v5424, %v5569
        %s5580 = scalar_lea.vmem %s3548, 9 [#allocation3]
        %v5581 = vld [vmem:[%s5580] ss:$2 sm:$0xff]
        %s5582 = scalar_lea.vmem %s3548, 73 [#allocation3]
        %v5583 = vld [vmem:[%s5582] ss:$2 sm:$0xff]
        %s5584 = scalar_lea.vmem %s3548, 137 [#allocation3]
        %v5585 = vld [vmem:[%s5584] ss:$2 sm:$0xff]
        %s5586 = scalar_lea.vmem %s3548, 201 [#allocation3]
        %v5587 = vld [vmem:[%s5586] ss:$2 sm:$0xff]
        %s5588 = scalar_lea.vmem %s3548, 265 [#allocation3]
        %v5589 = vld [vmem:[%s5588] ss:$2 sm:$0xff]
        %s5590 = scalar_lea.vmem %s3548, 329 [#allocation3]
        %v5591 = vld [vmem:[%s5590] ss:$2 sm:$0xff]
        %s5592 = scalar_lea.vmem %s3548, 393 [#allocation3]
        %v5593 = vld [vmem:[%s5592] ss:$2 sm:$0xff]
        %s5594 = scalar_lea.vmem %s3548, 457 [#allocation3]
        %v5595 = vld [vmem:[%s5594] ss:$2 sm:$0xff]
        %s5596 = scalar_lea.vmem %s3, 104
        %v5597 = vld [vmem:[%s5596] sm:$0xff]
        %v5599 = vsel %vm430, %v5581, 0
        %v5602 = vsel %vm430, %v5583, 0
        %v5605 = vsel %vm430, %v5585, 0
        %v5608 = vsel %vm430, %v5587, 0
        %v5611 = vsel %vm430, %v5589, 0
        %v5614 = vsel %vm430, %v5591, 0
        %v5617 = vsel %vm430, %v5593, 0
        %v5620 = vsel %vm430, %v5595, 0
        %5622 = vmatprep.subr.mxu0 0.0
        %5623 = vmatpush1.msra.mxu0 %v5597
        %5624 = vmatprep.subr.mxu0 0.0
        %5625 = vmatpush1.msra.mxu0 0.0
        %5626 = vmatprep.subr.mxu0 0.0
        %5627 = vmatpush1.msra.mxu0 0.0
        %5628 = vmatprep.subr.mxu0 0.0
        %5629 = vmatpush1.msra.mxu0 0.0
        %5630 = vmatprep.subr.mxu0 0.0
        %5631 = vmatpush1.msra.mxu0 0.0
        %5632 = vmatprep.subr.mxu0 0.0
        %5633 = vmatpush1.msra.mxu0 0.0
        %5634 = vmatprep.subr.mxu0 0.0
        %5635 = vmatpush1.msra.mxu0 0.0
        %5636 = vmatprep.subr.mxu0 0.0
        %5637 = vmatpush1.msra.mxu0 0.0
        %5638 = vmatprep.subr.mxu0 0.0
        %5639 = vmatpush1.msra.mxu0 0.0
        %5640 = vmatprep.subr.mxu0 0.0
        %5641 = vmatpush1.msra.mxu0 0.0
        %5642 = vmatprep.subr.mxu0 0.0
        %5643 = vmatpush1.msra.mxu0 0.0
        %5644 = vmatprep.subr.mxu0 0.0
        %5645 = vmatpush1.msra.mxu0 0.0
        %5646 = vmatprep.subr.mxu0 0.0
        %5647 = vmatpush1.msra.mxu0 0.0
        %5648 = vmatprep.subr.mxu0 0.0
        %5649 = vmatpush1.msra.mxu0 0.0
        %5650 = vmatprep.subr.mxu0 0.0
        %5651 = vmatpush1.msra.mxu0 0.0
        %5652 = vmatprep.subr.mxu0 0.0
        %5653 = vmatpush1.msra.mxu0 0.0
        %5654 = vmatprep.subr.mxu0 0.0
        %5655 = vmatpush1.msra.mxu0 0.0
        %5656 = vmatprep.subr.mxu0 0.0
        %5657 = vmatpush1.msra.mxu0 0.0
        %5658 = vmatprep.subr.mxu0 0.0
        %5659 = vmatpush1.msra.mxu0 0.0
        %5660 = vmatprep.subr.mxu0 0.0
        %5661 = vmatpush1.msra.mxu0 0.0
        %5662 = vmatprep.subr.mxu0 0.0
        %5663 = vmatpush1.msra.mxu0 0.0
        %5664 = vmatprep.subr.mxu0 0.0
        %5665 = vmatpush1.msra.mxu0 0.0
        %5666 = vmatprep.subr.mxu0 0.0
        %5667 = vmatpush1.msra.mxu0 0.0
        %5668 = vmatprep.subr.mxu0 0.0
        %5669 = vmatpush1.msra.mxu0 0.0
        %5670 = vmatprep.subr.mxu0 0.0
        %5671 = vmatpush1.msra.mxu0 0.0
        %5672 = vmatprep.subr.mxu0 0.0
        %5673 = vmatpush1.msra.mxu0 0.0
        %5674 = vmatprep.subr.mxu0 0.0
        %5675 = vmatpush1.msra.mxu0 0.0
        %5676 = vmatprep.subr.mxu0 0.0
        %5677 = vmatpush1.msra.mxu0 0.0
        %5678 = vmatprep.subr.mxu0 0.0
        %5679 = vmatpush1.msra.mxu0 0.0
        %5680 = vmatprep.subr.mxu0 0.0
        %5681 = vmatpush1.msra.mxu0 0.0
        %5682 = vmatprep.subr.mxu0 0.0
        %5683 = vmatpush1.msra.mxu0 0.0
        %5684 = vmatprep.subr.mxu0 0.0
        %5685 = vmatpush1.msra.mxu0 0.0
        %5686 = vmatprep.mubr.f32.mxu0 0.0
        %5687 = vmatmul.mubr.f32.gmra.mrb[0].mxu0 %v5599
        %v5688 = vpop.f32.mrb[0].mxu0
        %v5689 = vadd.f32 0.0, %v5688
        %v5690 = vpop.f32.mrb[0].mxu0
        %5691 = vmatprep.mubr.f32.mxu0 0.0
        %5692 = vmatmul.mubr.f32.gmra.mrb[0].mxu0 %v5602
        %v5693 = vpop.f32.mrb[0].mxu0
        %v5694 = vadd.f32 0.0, %v5693
        %v5695 = vpop.f32.mrb[0].mxu0
        %5696 = vmatprep.mubr.f32.mxu0 0.0
        %5697 = vmatmul.mubr.f32.gmra.mrb[0].mxu0 %v5605
        %v5698 = vpop.f32.mrb[0].mxu0
        %v5699 = vadd.f32 0.0, %v5698
        %v5700 = vpop.f32.mrb[0].mxu0
        %5701 = vmatprep.mubr.f32.mxu0 0.0
        %5702 = vmatmul.mubr.f32.gmra.mrb[0].mxu0 %v5608
        %v5703 = vpop.f32.mrb[0].mxu0
        %v5704 = vadd.f32 0.0, %v5703
        %v5705 = vpop.f32.mrb[0].mxu0
        %5706 = vmatprep.mubr.f32.mxu0 0.0
        %5707 = vmatmul.mubr.f32.gmra.mrb[0].mxu0 %v5611
        %v5708 = vpop.f32.mrb[0].mxu0
        %v5709 = vadd.f32 0.0, %v5708
        %v5710 = vpop.f32.mrb[0].mxu0
        %5711 = vmatprep.mubr.f32.mxu0 0.0
        %5712 = vmatmul.mubr.f32.gmra.mrb[0].mxu0 %v5614
        %v5713 = vpop.f32.mrb[0].mxu0
        %v5714 = vadd.f32 0.0, %v5713
        %v5715 = vpop.f32.mrb[0].mxu0
        %5716 = vmatprep.mubr.f32.mxu0 0.0
        %5717 = vmatmul.mubr.f32.gmra.mrb[0].mxu0 %v5617
        %v5718 = vpop.f32.mrb[0].mxu0
        %v5719 = vadd.f32 0.0, %v5718
        %v5720 = vpop.f32.mrb[0].mxu0
        %5721 = vmatprep.mubr.f32.mxu0 0.0
        %5722 = vmatmul.mubr.f32.gmra.mrb[0].mxu0 %v5620
        %v5723 = vpop.f32.mrb[0].mxu0
        %v5724 = vadd.f32 0.0, %v5723
        %v5725 = vpop.f32.mrb[0].mxu0
        %5726 = vdwg.mxu0
        %v5727 = vadd.f32 %v5572, %v5689
        %v5728 = vadd.f32 %v5573, %v5694
        %v5729 = vadd.f32 %v5574, %v5699
        %v5730 = vadd.f32 %v5575, %v5704
        %v5731 = vadd.f32 %v5576, %v5709
        %v5732 = vadd.f32 %v5577, %v5714
        %v5733 = vadd.f32 %v5578, %v5719
        %v5734 = vadd.f32 %v5579, %v5724
        %s5735 = scalar_lea.vmem %s3548, 10 [#allocation3]
        %v5736 = vld [vmem:[%s5735] ss:$2 sm:$0xff]
        %s5737 = scalar_lea.vmem %s3548, 74 [#allocation3]
        %v5738 = vld [vmem:[%s5737] ss:$2 sm:$0xff]
        %s5739 = scalar_lea.vmem %s3548, 138 [#allocation3]
        %v5740 = vld [vmem:[%s5739] ss:$2 sm:$0xff]
        %s5741 = scalar_lea.vmem %s3548, 202 [#allocation3]
        %v5742 = vld [vmem:[%s5741] ss:$2 sm:$0xff]
        %s5743 = scalar_lea.vmem %s3548, 266 [#allocation3]
        %v5744 = vld [vmem:[%s5743] ss:$2 sm:$0xff]
        %s5745 = scalar_lea.vmem %s3548, 330 [#allocation3]
        %v5746 = vld [vmem:[%s5745] ss:$2 sm:$0xff]
        %s5747 = scalar_lea.vmem %s3548, 394 [#allocation3]
        %v5748 = vld [vmem:[%s5747] ss:$2 sm:$0xff]
        %s5749 = scalar_lea.vmem %s3548, 458 [#allocation3]
        %v5750 = vld [vmem:[%s5749] ss:$2 sm:$0xff]
        %s5751 = scalar_lea.vmem %s3, 112
        %v5752 = vld [vmem:[%s5751] sm:$0xff]
        %v5754 = vsel %vm430, %v5736, 0
        %v5757 = vsel %vm430, %v5738, 0
        %v5760 = vsel %vm430, %v5740, 0
        %v5763 = vsel %vm430, %v5742, 0
        %v5766 = vsel %vm430, %v5744, 0
        %v5769 = vsel %vm430, %v5746, 0
        %v5772 = vsel %vm430, %v5748, 0
        %v5775 = vsel %vm430, %v5750, 0
        %5777 = vmatprep.subr.mxu0 0.0
        %5778 = vmatpush1.msra.mxu0 %v5752
        %5779 = vmatprep.subr.mxu0 0.0
        %5780 = vmatpush1.msra.mxu0 0.0
        %5781 = vmatprep.subr.mxu0 0.0
        %5782 = vmatpush1.msra.mxu0 0.0
        %5783 = vmatprep.subr.mxu0 0.0
        %5784 = vmatpush1.msra.mxu0 0.0
        %5785 = vmatprep.subr.mxu0 0.0
        %5786 = vmatpush1.msra.mxu0 0.0
        %5787 = vmatprep.subr.mxu0 0.0
        %5788 = vmatpush1.msra.mxu0 0.0
        %5789 = vmatprep.subr.mxu0 0.0
        %5790 = vmatpush1.msra.mxu0 0.0
        %5791 = vmatprep.subr.mxu0 0.0
        %5792 = vmatpush1.msra.mxu0 0.0
        %5793 = vmatprep.subr.mxu0 0.0
        %5794 = vmatpush1.msra.mxu0 0.0
        %5795 = vmatprep.subr.mxu0 0.0
        %5796 = vmatpush1.msra.mxu0 0.0
        %5797 = vmatprep.subr.mxu0 0.0
        %5798 = vmatpush1.msra.mxu0 0.0
        %5799 = vmatprep.subr.mxu0 0.0
        %5800 = vmatpush1.msra.mxu0 0.0
        %5801 = vmatprep.subr.mxu0 0.0
        %5802 = vmatpush1.msra.mxu0 0.0
        %5803 = vmatprep.subr.mxu0 0.0
        %5804 = vmatpush1.msra.mxu0 0.0
        %5805 = vmatprep.subr.mxu0 0.0
        %5806 = vmatpush1.msra.mxu0 0.0
        %5807 = vmatprep.subr.mxu0 0.0
        %5808 = vmatpush1.msra.mxu0 0.0
        %5809 = vmatprep.subr.mxu0 0.0
        %5810 = vmatpush1.msra.mxu0 0.0
        %5811 = vmatprep.subr.mxu0 0.0
        %5812 = vmatpush1.msra.mxu0 0.0
        %5813 = vmatprep.subr.mxu0 0.0
        %5814 = vmatpush1.msra.mxu0 0.0
        %5815 = vmatprep.subr.mxu0 0.0
        %5816 = vmatpush1.msra.mxu0 0.0
        %5817 = vmatprep.subr.mxu0 0.0
        %5818 = vmatpush1.msra.mxu0 0.0
        %5819 = vmatprep.subr.mxu0 0.0
        %5820 = vmatpush1.msra.mxu0 0.0
        %5821 = vmatprep.subr.mxu0 0.0
        %5822 = vmatpush1.msra.mxu0 0.0
        %5823 = vmatprep.subr.mxu0 0.0
        %5824 = vmatpush1.msra.mxu0 0.0
        %5825 = vmatprep.subr.mxu0 0.0
        %5826 = vmatpush1.msra.mxu0 0.0
        %5827 = vmatprep.subr.mxu0 0.0
        %5828 = vmatpush1.msra.mxu0 0.0
        %5829 = vmatprep.subr.mxu0 0.0
        %5830 = vmatpush1.msra.mxu0 0.0
        %5831 = vmatprep.subr.mxu0 0.0
        %5832 = vmatpush1.msra.mxu0 0.0
        %5833 = vmatprep.subr.mxu0 0.0
        %5834 = vmatpush1.msra.mxu0 0.0
        %5835 = vmatprep.subr.mxu0 0.0
        %5836 = vmatpush1.msra.mxu0 0.0
        %5837 = vmatprep.subr.mxu0 0.0
        %5838 = vmatpush1.msra.mxu0 0.0
        %5839 = vmatprep.subr.mxu0 0.0
        %5840 = vmatpush1.msra.mxu0 0.0
        %5841 = vmatprep.mubr.f32.mxu0 0.0
        %5842 = vmatmul.mubr.f32.gmra.mrb[0].mxu0 %v5754
        %v5843 = vpop.f32.mrb[0].mxu0
        %v5844 = vadd.f32 0.0, %v5843
        %v5845 = vpop.f32.mrb[0].mxu0
        %5846 = vmatprep.mubr.f32.mxu0 0.0
        %5847 = vmatmul.mubr.f32.gmra.mrb[0].mxu0 %v5757
        %v5848 = vpop.f32.mrb[0].mxu0
        %v5849 = vadd.f32 0.0, %v5848
        %v5850 = vpop.f32.mrb[0].mxu0
        %5851 = vmatprep.mubr.f32.mxu0 0.0
        %5852 = vmatmul.mubr.f32.gmra.mrb[0].mxu0 %v5760
        %v5853 = vpop.f32.mrb[0].mxu0
        %v5854 = vadd.f32 0.0, %v5853
        %v5855 = vpop.f32.mrb[0].mxu0
        %5856 = vmatprep.mubr.f32.mxu0 0.0
        %5857 = vmatmul.mubr.f32.gmra.mrb[0].mxu0 %v5763
        %v5858 = vpop.f32.mrb[0].mxu0
        %v5859 = vadd.f32 0.0, %v5858
        %v5860 = vpop.f32.mrb[0].mxu0
        %5861 = vmatprep.mubr.f32.mxu0 0.0
        %5862 = vmatmul.mubr.f32.gmra.mrb[0].mxu0 %v5766
        %v5863 = vpop.f32.mrb[0].mxu0
        %v5864 = vadd.f32 0.0, %v5863
        %v5865 = vpop.f32.mrb[0].mxu0
        %5866 = vmatprep.mubr.f32.mxu0 0.0
        %5867 = vmatmul.mubr.f32.gmra.mrb[0].mxu0 %v5769
        %v5868 = vpop.f32.mrb[0].mxu0
        %v5869 = vadd.f32 0.0, %v5868
        %v5870 = vpop.f32.mrb[0].mxu0
        %5871 = vmatprep.mubr.f32.mxu0 0.0
        %5872 = vmatmul.mubr.f32.gmra.mrb[0].mxu0 %v5772
        %v5873 = vpop.f32.mrb[0].mxu0
        %v5874 = vadd.f32 0.0, %v5873
        %v5875 = vpop.f32.mrb[0].mxu0
        %5876 = vmatprep.mubr.f32.mxu0 0.0
        %5877 = vmatmul.mubr.f32.gmra.mrb[0].mxu0 %v5775
        %v5878 = vpop.f32.mrb[0].mxu0
        %v5879 = vadd.f32 0.0, %v5878
        %v5880 = vpop.f32.mrb[0].mxu0
        %5881 = vdwg.mxu0
        %v5882 = vadd.f32 %v5727, %v5844
        %v5883 = vadd.f32 %v5728, %v5849
        %v5884 = vadd.f32 %v5729, %v5854
        %v5885 = vadd.f32 %v5730, %v5859
        %v5886 = vadd.f32 %v5731, %v5864
        %v5887 = vadd.f32 %v5732, %v5869
        %v5888 = vadd.f32 %v5733, %v5874
        %v5889 = vadd.f32 %v5734, %v5879
        %s5890 = scalar_lea.vmem [#allocation3], 96
        %s5891 = scalar_lea.vmem %s5890, 6 [#allocation3]
        %v5892 = vld [vmem:[%s5891] ss:$2 sm:$0xff]
        %s5893 = scalar_lea.vmem %s5890, 70 [#allocation3]
        %v5894 = vld [vmem:[%s5893] ss:$2 sm:$0xff]
        %s5895 = scalar_lea.vmem %s5890, 134 [#allocation3]
        %v5896 = vld [vmem:[%s5895] ss:$2 sm:$0xff]
        %s5897 = scalar_lea.vmem %s5890, 198 [#allocation3]
        %v5898 = vld [vmem:[%s5897] ss:$2 sm:$0xff]
        %s5899 = scalar_lea.vmem %s5890, 262 [#allocation3]
        %v5900 = vld [vmem:[%s5899] ss:$2 sm:$0xff]
        %s5901 = scalar_lea.vmem %s5890, 326 [#allocation3]
        %v5902 = vld [vmem:[%s5901] ss:$2 sm:$0xff]
        %s5903 = scalar_lea.vmem %s5890, 390 [#allocation3]
        %v5904 = vld [vmem:[%s5903] ss:$2 sm:$0xff]
        %s5905 = scalar_lea.vmem %s5890, 454 [#allocation3]
        %v5906 = vld [vmem:[%s5905] ss:$2 sm:$0xff]
        %s5907 = scalar_lea.vmem %s3, 120
        %v5908 = vld [vmem:[%s5907] sm:$0xff]
        %v5910 = vsel %vm430, %v5892, 0
        %v5913 = vsel %vm430, %v5894, 0
        %v5916 = vsel %vm430, %v5896, 0
        %v5919 = vsel %vm430, %v5898, 0
        %v5922 = vsel %vm430, %v5900, 0
        %v5925 = vsel %vm430, %v5902, 0
        %v5928 = vsel %vm430, %v5904, 0
        %v5931 = vsel %vm430, %v5906, 0
        %5933 = vmatprep.subr.mxu0 0.0
        %5934 = vmatpush1.msra.mxu0 %v5908
        %5935 = vmatprep.subr.mxu0 0.0
        %5936 = vmatpush1.msra.mxu0 0.0
        %5937 = vmatprep.subr.mxu0 0.0
        %5938 = vmatpush1.msra.mxu0 0.0
        %5939 = vmatprep.subr.mxu0 0.0
        %5940 = vmatpush1.msra.mxu0 0.0
        %5941 = vmatprep.subr.mxu0 0.0
        %5942 = vmatpush1.msra.mxu0 0.0
        %5943 = vmatprep.subr.mxu0 0.0
        %5944 = vmatpush1.msra.mxu0 0.0
        %5945 = vmatprep.subr.mxu0 0.0
        %5946 = vmatpush1.msra.mxu0 0.0
        %5947 = vmatprep.subr.mxu0 0.0
        %5948 = vmatpush1.msra.mxu0 0.0
        %5949 = vmatprep.subr.mxu0 0.0
        %5950 = vmatpush1.msra.mxu0 0.0
        %5951 = vmatprep.subr.mxu0 0.0
        %5952 = vmatpush1.msra.mxu0 0.0
        %5953 = vmatprep.subr.mxu0 0.0
        %5954 = vmatpush1.msra.mxu0 0.0
        %5955 = vmatprep.subr.mxu0 0.0
        %5956 = vmatpush1.msra.mxu0 0.0
        %5957 = vmatprep.subr.mxu0 0.0
        %5958 = vmatpush1.msra.mxu0 0.0
        %5959 = vmatprep.subr.mxu0 0.0
        %5960 = vmatpush1.msra.mxu0 0.0
        %5961 = vmatprep.subr.mxu0 0.0
        %5962 = vmatpush1.msra.mxu0 0.0
        %5963 = vmatprep.subr.mxu0 0.0
        %5964 = vmatpush1.msra.mxu0 0.0
        %5965 = vmatprep.subr.mxu0 0.0
        %5966 = vmatpush1.msra.mxu0 0.0
        %5967 = vmatprep.subr.mxu0 0.0
        %5968 = vmatpush1.msra.mxu0 0.0
        %5969 = vmatprep.subr.mxu0 0.0
        %5970 = vmatpush1.msra.mxu0 0.0
        %5971 = vmatprep.subr.mxu0 0.0
        %5972 = vmatpush1.msra.mxu0 0.0
        %5973 = vmatprep.subr.mxu0 0.0
        %5974 = vmatpush1.msra.mxu0 0.0
        %5975 = vmatprep.subr.mxu0 0.0
        %5976 = vmatpush1.msra.mxu0 0.0
        %5977 = vmatprep.subr.mxu0 0.0
        %5978 = vmatpush1.msra.mxu0 0.0
        %5979 = vmatprep.subr.mxu0 0.0
        %5980 = vmatpush1.msra.mxu0 0.0
        %5981 = vmatprep.subr.mxu0 0.0
        %5982 = vmatpush1.msra.mxu0 0.0
        %5983 = vmatprep.subr.mxu0 0.0
        %5984 = vmatpush1.msra.mxu0 0.0
        %5985 = vmatprep.subr.mxu0 0.0
        %5986 = vmatpush1.msra.mxu0 0.0
        %5987 = vmatprep.subr.mxu0 0.0
        %5988 = vmatpush1.msra.mxu0 0.0
        %5989 = vmatprep.subr.mxu0 0.0
        %5990 = vmatpush1.msra.mxu0 0.0
        %5991 = vmatprep.subr.mxu0 0.0
        %5992 = vmatpush1.msra.mxu0 0.0
        %5993 = vmatprep.subr.mxu0 0.0
        %5994 = vmatpush1.msra.mxu0 0.0
        %5995 = vmatprep.subr.mxu0 0.0
        %5996 = vmatpush1.msra.mxu0 0.0
        %5997 = vmatprep.mubr.f32.mxu0 0.0
        %5998 = vmatmul.mubr.f32.gmra.mrb[0].mxu0 %v5910
        %v5999 = vpop.f32.mrb[0].mxu0
        %v6000 = vadd.f32 0.0, %v5999
        %v6001 = vpop.f32.mrb[0].mxu0
        %6002 = vmatprep.mubr.f32.mxu0 0.0
        %6003 = vmatmul.mubr.f32.gmra.mrb[0].mxu0 %v5913
        %v6004 = vpop.f32.mrb[0].mxu0
        %v6005 = vadd.f32 0.0, %v6004
        %v6006 = vpop.f32.mrb[0].mxu0
        %6007 = vmatprep.mubr.f32.mxu0 0.0
        %6008 = vmatmul.mubr.f32.gmra.mrb[0].mxu0 %v5916
        %v6009 = vpop.f32.mrb[0].mxu0
        %v6010 = vadd.f32 0.0, %v6009
        %v6011 = vpop.f32.mrb[0].mxu0
        %6012 = vmatprep.mubr.f32.mxu0 0.0
        %6013 = vmatmul.mubr.f32.gmra.mrb[0].mxu0 %v5919
        %v6014 = vpop.f32.mrb[0].mxu0
        %v6015 = vadd.f32 0.0, %v6014
        %v6016 = vpop.f32.mrb[0].mxu0
        %6017 = vmatprep.mubr.f32.mxu0 0.0
        %6018 = vmatmul.mubr.f32.gmra.mrb[0].mxu0 %v5922
        %v6019 = vpop.f32.mrb[0].mxu0
        %v6020 = vadd.f32 0.0, %v6019
        %v6021 = vpop.f32.mrb[0].mxu0
        %6022 = vmatprep.mubr.f32.mxu0 0.0
        %6023 = vmatmul.mubr.f32.gmra.mrb[0].mxu0 %v5925
        %v6024 = vpop.f32.mrb[0].mxu0
        %v6025 = vadd.f32 0.0, %v6024
        %v6026 = vpop.f32.mrb[0].mxu0
        %6027 = vmatprep.mubr.f32.mxu0 0.0
        %6028 = vmatmul.mubr.f32.gmra.mrb[0].mxu0 %v5928
        %v6029 = vpop.f32.mrb[0].mxu0
        %v6030 = vadd.f32 0.0, %v6029
        %v6031 = vpop.f32.mrb[0].mxu0
        %6032 = vmatprep.mubr.f32.mxu0 0.0
        %6033 = vmatmul.mubr.f32.gmra.mrb[0].mxu0 %v5931
        %v6034 = vpop.f32.mrb[0].mxu0
        %v6035 = vadd.f32 0.0, %v6034
        %v6036 = vpop.f32.mrb[0].mxu0
        %6037 = vdwg.mxu0
        %v6038 = vadd.f32 %v5882, %v6000
        %v6039 = vadd.f32 %v5883, %v6005
        %v6040 = vadd.f32 %v5884, %v6010
        %v6041 = vadd.f32 %v5885, %v6015
        %v6042 = vadd.f32 %v5886, %v6020
        %v6043 = vadd.f32 %v5887, %v6025
        %v6044 = vadd.f32 %v5888, %v6030
        %v6045 = vadd.f32 %v5889, %v6035
        %s6046 = scalar_lea.vmem %s5890, 7 [#allocation3]
        %v6047 = vld [vmem:[%s6046] ss:$2 sm:$0xff]
        %s6048 = scalar_lea.vmem %s5890, 71 [#allocation3]
        %v6049 = vld [vmem:[%s6048] ss:$2 sm:$0xff]
        %s6050 = scalar_lea.vmem %s5890, 135 [#allocation3]
        %v6051 = vld [vmem:[%s6050] ss:$2 sm:$0xff]
        %s6052 = scalar_lea.vmem %s5890, 199 [#allocation3]
        %v6053 = vld [vmem:[%s6052] ss:$2 sm:$0xff]
        %s6054 = scalar_lea.vmem %s5890, 263 [#allocation3]
        %v6055 = vld [vmem:[%s6054] ss:$2 sm:$0xff]
        %s6056 = scalar_lea.vmem %s5890, 327 [#allocation3]
        %v6057 = vld [vmem:[%s6056] ss:$2 sm:$0xff]
        %s6058 = scalar_lea.vmem %s5890, 391 [#allocation3]
        %v6059 = vld [vmem:[%s6058] ss:$2 sm:$0xff]
        %s6060 = scalar_lea.vmem %s5890, 455 [#allocation3]
        %v6061 = vld [vmem:[%s6060] ss:$2 sm:$0xff]
        %s6062 = scalar_lea.vmem %s3, 128
        %v6063 = vld [vmem:[%s6062] sm:$0xff]
        %v6065 = vsel %vm430, %v6047, 0
        %v6068 = vsel %vm430, %v6049, 0
        %v6071 = vsel %vm430, %v6051, 0
        %v6074 = vsel %vm430, %v6053, 0
        %v6077 = vsel %vm430, %v6055, 0
        %v6080 = vsel %vm430, %v6057, 0
        %v6083 = vsel %vm430, %v6059, 0
        %v6086 = vsel %vm430, %v6061, 0
        %6088 = vmatprep.subr.mxu0 0.0
        %6089 = vmatpush1.msra.mxu0 %v6063
        %6090 = vmatprep.subr.mxu0 0.0
        %6091 = vmatpush1.msra.mxu0 0.0
        %6092 = vmatprep.subr.mxu0 0.0
        %6093 = vmatpush1.msra.mxu0 0.0
        %6094 = vmatprep.subr.mxu0 0.0
        %6095 = vmatpush1.msra.mxu0 0.0
        %6096 = vmatprep.subr.mxu0 0.0
        %6097 = vmatpush1.msra.mxu0 0.0
        %6098 = vmatprep.subr.mxu0 0.0
        %6099 = vmatpush1.msra.mxu0 0.0
        %6100 = vmatprep.subr.mxu0 0.0
        %6101 = vmatpush1.msra.mxu0 0.0
        %6102 = vmatprep.subr.mxu0 0.0
        %6103 = vmatpush1.msra.mxu0 0.0
        %6104 = vmatprep.subr.mxu0 0.0
        %6105 = vmatpush1.msra.mxu0 0.0
        %6106 = vmatprep.subr.mxu0 0.0
        %6107 = vmatpush1.msra.mxu0 0.0
        %6108 = vmatprep.subr.mxu0 0.0
        %6109 = vmatpush1.msra.mxu0 0.0
        %6110 = vmatprep.subr.mxu0 0.0
        %6111 = vmatpush1.msra.mxu0 0.0
        %6112 = vmatprep.subr.mxu0 0.0
        %6113 = vmatpush1.msra.mxu0 0.0
        %6114 = vmatprep.subr.mxu0 0.0
        %6115 = vmatpush1.msra.mxu0 0.0
        %6116 = vmatprep.subr.mxu0 0.0
        %6117 = vmatpush1.msra.mxu0 0.0
        %6118 = vmatprep.subr.mxu0 0.0
        %6119 = vmatpush1.msra.mxu0 0.0
        %6120 = vmatprep.subr.mxu0 0.0
        %6121 = vmatpush1.msra.mxu0 0.0
        %6122 = vmatprep.subr.mxu0 0.0
        %6123 = vmatpush1.msra.mxu0 0.0
        %6124 = vmatprep.subr.mxu0 0.0
        %6125 = vmatpush1.msra.mxu0 0.0
        %6126 = vmatprep.subr.mxu0 0.0
        %6127 = vmatpush1.msra.mxu0 0.0
        %6128 = vmatprep.subr.mxu0 0.0
        %6129 = vmatpush1.msra.mxu0 0.0
        %6130 = vmatprep.subr.mxu0 0.0
        %6131 = vmatpush1.msra.mxu0 0.0
        %6132 = vmatprep.subr.mxu0 0.0
        %6133 = vmatpush1.msra.mxu0 0.0
        %6134 = vmatprep.subr.mxu0 0.0
        %6135 = vmatpush1.msra.mxu0 0.0
        %6136 = vmatprep.subr.mxu0 0.0
        %6137 = vmatpush1.msra.mxu0 0.0
        %6138 = vmatprep.subr.mxu0 0.0
        %6139 = vmatpush1.msra.mxu0 0.0
        %6140 = vmatprep.subr.mxu0 0.0
        %6141 = vmatpush1.msra.mxu0 0.0
        %6142 = vmatprep.subr.mxu0 0.0
        %6143 = vmatpush1.msra.mxu0 0.0
        %6144 = vmatprep.subr.mxu0 0.0
        %6145 = vmatpush1.msra.mxu0 0.0
        %6146 = vmatprep.subr.mxu0 0.0
        %6147 = vmatpush1.msra.mxu0 0.0
        %6148 = vmatprep.subr.mxu0 0.0
        %6149 = vmatpush1.msra.mxu0 0.0
        %6150 = vmatprep.subr.mxu0 0.0
        %6151 = vmatpush1.msra.mxu0 0.0
        %6152 = vmatprep.mubr.f32.mxu0 0.0
        %6153 = vmatmul.mubr.f32.gmra.mrb[0].mxu0 %v6065
        %v6154 = vpop.f32.mrb[0].mxu0
        %v6155 = vadd.f32 0.0, %v6154
        %v6156 = vpop.f32.mrb[0].mxu0
        %6157 = vmatprep.mubr.f32.mxu0 0.0
        %6158 = vmatmul.mubr.f32.gmra.mrb[0].mxu0 %v6068
        %v6159 = vpop.f32.mrb[0].mxu0
        %v6160 = vadd.f32 0.0, %v6159
        %v6161 = vpop.f32.mrb[0].mxu0
        %6162 = vmatprep.mubr.f32.mxu0 0.0
        %6163 = vmatmul.mubr.f32.gmra.mrb[0].mxu0 %v6071
        %v6164 = vpop.f32.mrb[0].mxu0
        %v6165 = vadd.f32 0.0, %v6164
        %v6166 = vpop.f32.mrb[0].mxu0
        %6167 = vmatprep.mubr.f32.mxu0 0.0
        %6168 = vmatmul.mubr.f32.gmra.mrb[0].mxu0 %v6074
        %v6169 = vpop.f32.mrb[0].mxu0
        %v6170 = vadd.f32 0.0, %v6169
        %v6171 = vpop.f32.mrb[0].mxu0
        %6172 = vmatprep.mubr.f32.mxu0 0.0
        %6173 = vmatmul.mubr.f32.gmra.mrb[0].mxu0 %v6077
        %v6174 = vpop.f32.mrb[0].mxu0
        %v6175 = vadd.f32 0.0, %v6174
        %v6176 = vpop.f32.mrb[0].mxu0
        %6177 = vmatprep.mubr.f32.mxu0 0.0
        %6178 = vmatmul.mubr.f32.gmra.mrb[0].mxu0 %v6080
        %v6179 = vpop.f32.mrb[0].mxu0
        %v6180 = vadd.f32 0.0, %v6179
        %v6181 = vpop.f32.mrb[0].mxu0
        %6182 = vmatprep.mubr.f32.mxu0 0.0
        %6183 = vmatmul.mubr.f32.gmra.mrb[0].mxu0 %v6083
        %v6184 = vpop.f32.mrb[0].mxu0
        %v6185 = vadd.f32 0.0, %v6184
        %v6186 = vpop.f32.mrb[0].mxu0
        %6187 = vmatprep.mubr.f32.mxu0 0.0
        %6188 = vmatmul.mubr.f32.gmra.mrb[0].mxu0 %v6086
        %v6189 = vpop.f32.mrb[0].mxu0
        %v6190 = vadd.f32 0.0, %v6189
        %v6191 = vpop.f32.mrb[0].mxu0
        %6192 = vdwg.mxu0
        %v6193 = vadd.f32 %v6038, %v6155
        %v6194 = vadd.f32 %v6039, %v6160
        %v6195 = vadd.f32 %v6040, %v6165
        %v6196 = vadd.f32 %v6041, %v6170
        %v6197 = vadd.f32 %v6042, %v6175
        %v6198 = vadd.f32 %v6043, %v6180
        %v6199 = vadd.f32 %v6044, %v6185
        %v6200 = vadd.f32 %v6045, %v6190
        %s6201 = scalar_lea.vmem %s5890, 8 [#allocation3]
        %v6202 = vld [vmem:[%s6201] ss:$2 sm:$0xff]
        %s6203 = scalar_lea.vmem %s5890, 72 [#allocation3]
        %v6204 = vld [vmem:[%s6203] ss:$2 sm:$0xff]
        %s6205 = scalar_lea.vmem %s5890, 136 [#allocation3]
        %v6206 = vld [vmem:[%s6205] ss:$2 sm:$0xff]
        %s6207 = scalar_lea.vmem %s5890, 200 [#allocation3]
        %v6208 = vld [vmem:[%s6207] ss:$2 sm:$0xff]
        %s6209 = scalar_lea.vmem %s5890, 264 [#allocation3]
        %v6210 = vld [vmem:[%s6209] ss:$2 sm:$0xff]
        %s6211 = scalar_lea.vmem %s5890, 328 [#allocation3]
        %v6212 = vld [vmem:[%s6211] ss:$2 sm:$0xff]
        %s6213 = scalar_lea.vmem %s5890, 392 [#allocation3]
        %v6214 = vld [vmem:[%s6213] ss:$2 sm:$0xff]
        %s6215 = scalar_lea.vmem %s5890, 456 [#allocation3]
        %v6216 = vld [vmem:[%s6215] ss:$2 sm:$0xff]
        %s6217 = scalar_lea.vmem %s3, 136
        %v6218 = vld [vmem:[%s6217] sm:$0xff]
        %v6220 = vsel %vm430, %v6202, 0
        %v6223 = vsel %vm430, %v6204, 0
        %v6226 = vsel %vm430, %v6206, 0
        %v6229 = vsel %vm430, %v6208, 0
        %v6232 = vsel %vm430, %v6210, 0
        %v6235 = vsel %vm430, %v6212, 0
        %v6238 = vsel %vm430, %v6214, 0
        %v6241 = vsel %vm430, %v6216, 0
        %6243 = vmatprep.subr.mxu0 0.0
        %6244 = vmatpush1.msra.mxu0 %v6218
        %6245 = vmatprep.subr.mxu0 0.0
        %6246 = vmatpush1.msra.mxu0 0.0
        %6247 = vmatprep.subr.mxu0 0.0
        %6248 = vmatpush1.msra.mxu0 0.0
        %6249 = vmatprep.subr.mxu0 0.0
        %6250 = vmatpush1.msra.mxu0 0.0
        %6251 = vmatprep.subr.mxu0 0.0
        %6252 = vmatpush1.msra.mxu0 0.0
        %6253 = vmatprep.subr.mxu0 0.0
        %6254 = vmatpush1.msra.mxu0 0.0
        %6255 = vmatprep.subr.mxu0 0.0
        %6256 = vmatpush1.msra.mxu0 0.0
        %6257 = vmatprep.subr.mxu0 0.0
        %6258 = vmatpush1.msra.mxu0 0.0
        %6259 = vmatprep.subr.mxu0 0.0
        %6260 = vmatpush1.msra.mxu0 0.0
        %6261 = vmatprep.subr.mxu0 0.0
        %6262 = vmatpush1.msra.mxu0 0.0
        %6263 = vmatprep.subr.mxu0 0.0
        %6264 = vmatpush1.msra.mxu0 0.0
        %6265 = vmatprep.subr.mxu0 0.0
        %6266 = vmatpush1.msra.mxu0 0.0
        %6267 = vmatprep.subr.mxu0 0.0
        %6268 = vmatpush1.msra.mxu0 0.0
        %6269 = vmatprep.subr.mxu0 0.0
        %6270 = vmatpush1.msra.mxu0 0.0
        %6271 = vmatprep.subr.mxu0 0.0
        %6272 = vmatpush1.msra.mxu0 0.0
        %6273 = vmatprep.subr.mxu0 0.0
        %6274 = vmatpush1.msra.mxu0 0.0
        %6275 = vmatprep.subr.mxu0 0.0
        %6276 = vmatpush1.msra.mxu0 0.0
        %6277 = vmatprep.subr.mxu0 0.0
        %6278 = vmatpush1.msra.mxu0 0.0
        %6279 = vmatprep.subr.mxu0 0.0
        %6280 = vmatpush1.msra.mxu0 0.0
        %6281 = vmatprep.subr.mxu0 0.0
        %6282 = vmatpush1.msra.mxu0 0.0
        %6283 = vmatprep.subr.mxu0 0.0
        %6284 = vmatpush1.msra.mxu0 0.0
        %6285 = vmatprep.subr.mxu0 0.0
        %6286 = vmatpush1.msra.mxu0 0.0
        %6287 = vmatprep.subr.mxu0 0.0
        %6288 = vmatpush1.msra.mxu0 0.0
        %6289 = vmatprep.subr.mxu0 0.0
        %6290 = vmatpush1.msra.mxu0 0.0
        %6291 = vmatprep.subr.mxu0 0.0
        %6292 = vmatpush1.msra.mxu0 0.0
        %6293 = vmatprep.subr.mxu0 0.0
        %6294 = vmatpush1.msra.mxu0 0.0
        %6295 = vmatprep.subr.mxu0 0.0
        %6296 = vmatpush1.msra.mxu0 0.0
        %6297 = vmatprep.subr.mxu0 0.0
        %6298 = vmatpush1.msra.mxu0 0.0
        %6299 = vmatprep.subr.mxu0 0.0
        %6300 = vmatpush1.msra.mxu0 0.0
        %6301 = vmatprep.subr.mxu0 0.0
        %6302 = vmatpush1.msra.mxu0 0.0
        %6303 = vmatprep.subr.mxu0 0.0
        %6304 = vmatpush1.msra.mxu0 0.0
        %6305 = vmatprep.subr.mxu0 0.0
        %6306 = vmatpush1.msra.mxu0 0.0
        %6307 = vmatprep.mubr.f32.mxu0 0.0
        %6308 = vmatmul.mubr.f32.gmra.mrb[0].mxu0 %v6220
        %v6309 = vpop.f32.mrb[0].mxu0
        %v6310 = vadd.f32 0.0, %v6309
        %v6311 = vpop.f32.mrb[0].mxu0
        %6312 = vmatprep.mubr.f32.mxu0 0.0
        %6313 = vmatmul.mubr.f32.gmra.mrb[0].mxu0 %v6223
        %v6314 = vpop.f32.mrb[0].mxu0
        %v6315 = vadd.f32 0.0, %v6314
        %v6316 = vpop.f32.mrb[0].mxu0
        %6317 = vmatprep.mubr.f32.mxu0 0.0
        %6318 = vmatmul.mubr.f32.gmra.mrb[0].mxu0 %v6226
        %v6319 = vpop.f32.mrb[0].mxu0
        %v6320 = vadd.f32 0.0, %v6319
        %v6321 = vpop.f32.mrb[0].mxu0
        %6322 = vmatprep.mubr.f32.mxu0 0.0
        %6323 = vmatmul.mubr.f32.gmra.mrb[0].mxu0 %v6229
        %v6324 = vpop.f32.mrb[0].mxu0
        %v6325 = vadd.f32 0.0, %v6324
        %v6326 = vpop.f32.mrb[0].mxu0
        %6327 = vmatprep.mubr.f32.mxu0 0.0
        %6328 = vmatmul.mubr.f32.gmra.mrb[0].mxu0 %v6232
        %v6329 = vpop.f32.mrb[0].mxu0
        %v6330 = vadd.f32 0.0, %v6329
        %v6331 = vpop.f32.mrb[0].mxu0
        %6332 = vmatprep.mubr.f32.mxu0 0.0
        %6333 = vmatmul.mubr.f32.gmra.mrb[0].mxu0 %v6235
        %v6334 = vpop.f32.mrb[0].mxu0
        %v6335 = vadd.f32 0.0, %v6334
        %v6336 = vpop.f32.mrb[0].mxu0
        %6337 = vmatprep.mubr.f32.mxu0 0.0
        %6338 = vmatmul.mubr.f32.gmra.mrb[0].mxu0 %v6238
        %v6339 = vpop.f32.mrb[0].mxu0
        %v6340 = vadd.f32 0.0, %v6339
        %v6341 = vpop.f32.mrb[0].mxu0
        %6342 = vmatprep.mubr.f32.mxu0 0.0
        %6343 = vmatmul.mubr.f32.gmra.mrb[0].mxu0 %v6241
        %v6344 = vpop.f32.mrb[0].mxu0
        %v6345 = vadd.f32 0.0, %v6344
        %v6346 = vpop.f32.mrb[0].mxu0
        %6347 = vdwg.mxu0
        %v6348 = vadd.f32 %v6193, %v6310
        %v6349 = vadd.f32 %v6194, %v6315
        %v6350 = vadd.f32 %v6195, %v6320
        %v6351 = vadd.f32 %v6196, %v6325
        %v6352 = vadd.f32 %v6197, %v6330
        %v6353 = vadd.f32 %v6198, %v6335
        %v6354 = vadd.f32 %v6199, %v6340
        %v6355 = vadd.f32 %v6200, %v6345
        %s6356 = scalar_lea.vmem %s5890, 9 [#allocation3]
        %v6357 = vld [vmem:[%s6356] ss:$2 sm:$0xff]
        %s6358 = scalar_lea.vmem %s5890, 73 [#allocation3]
        %v6359 = vld [vmem:[%s6358] ss:$2 sm:$0xff]
        %s6360 = scalar_lea.vmem %s5890, 137 [#allocation3]
        %v6361 = vld [vmem:[%s6360] ss:$2 sm:$0xff]
        %s6362 = scalar_lea.vmem %s5890, 201 [#allocation3]
        %v6363 = vld [vmem:[%s6362] ss:$2 sm:$0xff]
        %s6364 = scalar_lea.vmem %s5890, 265 [#allocation3]
        %v6365 = vld [vmem:[%s6364] ss:$2 sm:$0xff]
        %s6366 = scalar_lea.vmem %s5890, 329 [#allocation3]
        %v6367 = vld [vmem:[%s6366] ss:$2 sm:$0xff]
        %s6368 = scalar_lea.vmem %s5890, 393 [#allocation3]
        %v6369 = vld [vmem:[%s6368] ss:$2 sm:$0xff]
        %s6370 = scalar_lea.vmem %s5890, 457 [#allocation3]
        %v6371 = vld [vmem:[%s6370] ss:$2 sm:$0xff]
        %s6372 = scalar_lea.vmem %s3, 144
        %v6373 = vld [vmem:[%s6372] sm:$0xff]
        %v6375 = vsel %vm430, %v6357, 0
        %v6378 = vsel %vm430, %v6359, 0
        %v6381 = vsel %vm430, %v6361, 0
        %v6384 = vsel %vm430, %v6363, 0
        %v6387 = vsel %vm430, %v6365, 0
        %v6390 = vsel %vm430, %v6367, 0
        %v6393 = vsel %vm430, %v6369, 0
        %v6396 = vsel %vm430, %v6371, 0
        %6398 = vmatprep.subr.mxu0 0.0
        %6399 = vmatpush1.msra.mxu0 %v6373
        %6400 = vmatprep.subr.mxu0 0.0
        %6401 = vmatpush1.msra.mxu0 0.0
        %6402 = vmatprep.subr.mxu0 0.0
        %6403 = vmatpush1.msra.mxu0 0.0
        %6404 = vmatprep.subr.mxu0 0.0
        %6405 = vmatpush1.msra.mxu0 0.0
        %6406 = vmatprep.subr.mxu0 0.0
        %6407 = vmatpush1.msra.mxu0 0.0
        %6408 = vmatprep.subr.mxu0 0.0
        %6409 = vmatpush1.msra.mxu0 0.0
        %6410 = vmatprep.subr.mxu0 0.0
        %6411 = vmatpush1.msra.mxu0 0.0
        %6412 = vmatprep.subr.mxu0 0.0
        %6413 = vmatpush1.msra.mxu0 0.0
        %6414 = vmatprep.subr.mxu0 0.0
        %6415 = vmatpush1.msra.mxu0 0.0
        %6416 = vmatprep.subr.mxu0 0.0
        %6417 = vmatpush1.msra.mxu0 0.0
        %6418 = vmatprep.subr.mxu0 0.0
        %6419 = vmatpush1.msra.mxu0 0.0
        %6420 = vmatprep.subr.mxu0 0.0
        %6421 = vmatpush1.msra.mxu0 0.0
        %6422 = vmatprep.subr.mxu0 0.0
        %6423 = vmatpush1.msra.mxu0 0.0
        %6424 = vmatprep.subr.mxu0 0.0
        %6425 = vmatpush1.msra.mxu0 0.0
        %6426 = vmatprep.subr.mxu0 0.0
        %6427 = vmatpush1.msra.mxu0 0.0
        %6428 = vmatprep.subr.mxu0 0.0
        %6429 = vmatpush1.msra.mxu0 0.0
        %6430 = vmatprep.subr.mxu0 0.0
        %6431 = vmatpush1.msra.mxu0 0.0
        %6432 = vmatprep.subr.mxu0 0.0
        %6433 = vmatpush1.msra.mxu0 0.0
        %6434 = vmatprep.subr.mxu0 0.0
        %6435 = vmatpush1.msra.mxu0 0.0
        %6436 = vmatprep.subr.mxu0 0.0
        %6437 = vmatpush1.msra.mxu0 0.0
        %6438 = vmatprep.subr.mxu0 0.0
        %6439 = vmatpush1.msra.mxu0 0.0
        %6440 = vmatprep.subr.mxu0 0.0
        %6441 = vmatpush1.msra.mxu0 0.0
        %6442 = vmatprep.subr.mxu0 0.0
        %6443 = vmatpush1.msra.mxu0 0.0
        %6444 = vmatprep.subr.mxu0 0.0
        %6445 = vmatpush1.msra.mxu0 0.0
        %6446 = vmatprep.subr.mxu0 0.0
        %6447 = vmatpush1.msra.mxu0 0.0
        %6448 = vmatprep.subr.mxu0 0.0
        %6449 = vmatpush1.msra.mxu0 0.0
        %6450 = vmatprep.subr.mxu0 0.0
        %6451 = vmatpush1.msra.mxu0 0.0
        %6452 = vmatprep.subr.mxu0 0.0
        %6453 = vmatpush1.msra.mxu0 0.0
        %6454 = vmatprep.subr.mxu0 0.0
        %6455 = vmatpush1.msra.mxu0 0.0
        %6456 = vmatprep.subr.mxu0 0.0
        %6457 = vmatpush1.msra.mxu0 0.0
        %6458 = vmatprep.subr.mxu0 0.0
        %6459 = vmatpush1.msra.mxu0 0.0
        %6460 = vmatprep.subr.mxu0 0.0
        %6461 = vmatpush1.msra.mxu0 0.0
        %6462 = vmatprep.mubr.f32.mxu0 0.0
        %6463 = vmatmul.mubr.f32.gmra.mrb[0].mxu0 %v6375
        %v6464 = vpop.f32.mrb[0].mxu0
        %v6465 = vadd.f32 0.0, %v6464
        %v6466 = vpop.f32.mrb[0].mxu0
        %6467 = vmatprep.mubr.f32.mxu0 0.0
        %6468 = vmatmul.mubr.f32.gmra.mrb[0].mxu0 %v6378
        %v6469 = vpop.f32.mrb[0].mxu0
        %v6470 = vadd.f32 0.0, %v6469
        %v6471 = vpop.f32.mrb[0].mxu0
        %6472 = vmatprep.mubr.f32.mxu0 0.0
        %6473 = vmatmul.mubr.f32.gmra.mrb[0].mxu0 %v6381
        %v6474 = vpop.f32.mrb[0].mxu0
        %v6475 = vadd.f32 0.0, %v6474
        %v6476 = vpop.f32.mrb[0].mxu0
        %6477 = vmatprep.mubr.f32.mxu0 0.0
        %6478 = vmatmul.mubr.f32.gmra.mrb[0].mxu0 %v6384
        %v6479 = vpop.f32.mrb[0].mxu0
        %v6480 = vadd.f32 0.0, %v6479
        %v6481 = vpop.f32.mrb[0].mxu0
        %6482 = vmatprep.mubr.f32.mxu0 0.0
        %6483 = vmatmul.mubr.f32.gmra.mrb[0].mxu0 %v6387
        %v6484 = vpop.f32.mrb[0].mxu0
        %v6485 = vadd.f32 0.0, %v6484
        %v6486 = vpop.f32.mrb[0].mxu0
        %6487 = vmatprep.mubr.f32.mxu0 0.0
        %6488 = vmatmul.mubr.f32.gmra.mrb[0].mxu0 %v6390
        %v6489 = vpop.f32.mrb[0].mxu0
        %v6490 = vadd.f32 0.0, %v6489
        %v6491 = vpop.f32.mrb[0].mxu0
        %6492 = vmatprep.mubr.f32.mxu0 0.0
        %6493 = vmatmul.mubr.f32.gmra.mrb[0].mxu0 %v6393
        %v6494 = vpop.f32.mrb[0].mxu0
        %v6495 = vadd.f32 0.0, %v6494
        %v6496 = vpop.f32.mrb[0].mxu0
        %6497 = vmatprep.mubr.f32.mxu0 0.0
        %6498 = vmatmul.mubr.f32.gmra.mrb[0].mxu0 %v6396
        %v6499 = vpop.f32.mrb[0].mxu0
        %v6500 = vadd.f32 0.0, %v6499
        %v6501 = vpop.f32.mrb[0].mxu0
        %6502 = vdwg.mxu0
        %v6503 = vadd.f32 %v6348, %v6465
        %v6504 = vadd.f32 %v6349, %v6470
        %v6505 = vadd.f32 %v6350, %v6475
        %v6506 = vadd.f32 %v6351, %v6480
        %v6507 = vadd.f32 %v6352, %v6485
        %v6508 = vadd.f32 %v6353, %v6490
        %v6509 = vadd.f32 %v6354, %v6495
        %v6510 = vadd.f32 %v6355, %v6500
        %s6511 = scalar_lea.vmem %s5890, 10 [#allocation3]
        %v6512 = vld [vmem:[%s6511] ss:$2 sm:$0xff]
        %s6513 = scalar_lea.vmem %s5890, 74 [#allocation3]
        %v6514 = vld [vmem:[%s6513] ss:$2 sm:$0xff]
        %s6515 = scalar_lea.vmem %s5890, 138 [#allocation3]
        %v6516 = vld [vmem:[%s6515] ss:$2 sm:$0xff]
        %s6517 = scalar_lea.vmem %s5890, 202 [#allocation3]
        %v6518 = vld [vmem:[%s6517] ss:$2 sm:$0xff]
        %s6519 = scalar_lea.vmem %s5890, 266 [#allocation3]
        %v6520 = vld [vmem:[%s6519] ss:$2 sm:$0xff]
        %s6521 = scalar_lea.vmem %s5890, 330 [#allocation3]
        %v6522 = vld [vmem:[%s6521] ss:$2 sm:$0xff]
        %s6523 = scalar_lea.vmem %s5890, 394 [#allocation3]
        %v6524 = vld [vmem:[%s6523] ss:$2 sm:$0xff]
        %s6525 = scalar_lea.vmem %s5890, 458 [#allocation3]
        %v6526 = vld [vmem:[%s6525] ss:$2 sm:$0xff]
        %s6527 = scalar_lea.vmem %s3, 152
        %v6528 = vld [vmem:[%s6527] sm:$0xff]
        %v6530 = vsel %vm430, %v6512, 0
        %v6533 = vsel %vm430, %v6514, 0
        %v6536 = vsel %vm430, %v6516, 0
        %v6539 = vsel %vm430, %v6518, 0
        %v6542 = vsel %vm430, %v6520, 0
        %v6545 = vsel %vm430, %v6522, 0
        %v6548 = vsel %vm430, %v6524, 0
        %v6551 = vsel %vm430, %v6526, 0
        %6553 = vmatprep.subr.mxu0 0.0
        %6554 = vmatpush1.msra.mxu0 %v6528
        %6555 = vmatprep.subr.mxu0 0.0
        %6556 = vmatpush1.msra.mxu0 0.0
        %6557 = vmatprep.subr.mxu0 0.0
        %6558 = vmatpush1.msra.mxu0 0.0
        %6559 = vmatprep.subr.mxu0 0.0
        %6560 = vmatpush1.msra.mxu0 0.0
        %6561 = vmatprep.subr.mxu0 0.0
        %6562 = vmatpush1.msra.mxu0 0.0
        %6563 = vmatprep.subr.mxu0 0.0
        %6564 = vmatpush1.msra.mxu0 0.0
        %6565 = vmatprep.subr.mxu0 0.0
        %6566 = vmatpush1.msra.mxu0 0.0
        %6567 = vmatprep.subr.mxu0 0.0
        %6568 = vmatpush1.msra.mxu0 0.0
        %6569 = vmatprep.subr.mxu0 0.0
        %6570 = vmatpush1.msra.mxu0 0.0
        %6571 = vmatprep.subr.mxu0 0.0
        %6572 = vmatpush1.msra.mxu0 0.0
        %6573 = vmatprep.subr.mxu0 0.0
        %6574 = vmatpush1.msra.mxu0 0.0
        %6575 = vmatprep.subr.mxu0 0.0
        %6576 = vmatpush1.msra.mxu0 0.0
        %6577 = vmatprep.subr.mxu0 0.0
        %6578 = vmatpush1.msra.mxu0 0.0
        %6579 = vmatprep.subr.mxu0 0.0
        %6580 = vmatpush1.msra.mxu0 0.0
        %6581 = vmatprep.subr.mxu0 0.0
        %6582 = vmatpush1.msra.mxu0 0.0
        %6583 = vmatprep.subr.mxu0 0.0
        %6584 = vmatpush1.msra.mxu0 0.0
        %6585 = vmatprep.subr.mxu0 0.0
        %6586 = vmatpush1.msra.mxu0 0.0
        %6587 = vmatprep.subr.mxu0 0.0
        %6588 = vmatpush1.msra.mxu0 0.0
        %6589 = vmatprep.subr.mxu0 0.0
        %6590 = vmatpush1.msra.mxu0 0.0
        %6591 = vmatprep.subr.mxu0 0.0
        %6592 = vmatpush1.msra.mxu0 0.0
        %6593 = vmatprep.subr.mxu0 0.0
        %6594 = vmatpush1.msra.mxu0 0.0
        %6595 = vmatprep.subr.mxu0 0.0
        %6596 = vmatpush1.msra.mxu0 0.0
        %6597 = vmatprep.subr.mxu0 0.0
        %6598 = vmatpush1.msra.mxu0 0.0
        %6599 = vmatprep.subr.mxu0 0.0
        %6600 = vmatpush1.msra.mxu0 0.0
        %6601 = vmatprep.subr.mxu0 0.0
        %6602 = vmatpush1.msra.mxu0 0.0
        %6603 = vmatprep.subr.mxu0 0.0
        %6604 = vmatpush1.msra.mxu0 0.0
        %6605 = vmatprep.subr.mxu0 0.0
        %6606 = vmatpush1.msra.mxu0 0.0
        %6607 = vmatprep.subr.mxu0 0.0
        %6608 = vmatpush1.msra.mxu0 0.0
        %6609 = vmatprep.subr.mxu0 0.0
        %6610 = vmatpush1.msra.mxu0 0.0
        %6611 = vmatprep.subr.mxu0 0.0
        %6612 = vmatpush1.msra.mxu0 0.0
        %6613 = vmatprep.subr.mxu0 0.0
        %6614 = vmatpush1.msra.mxu0 0.0
        %6615 = vmatprep.subr.mxu0 0.0
        %6616 = vmatpush1.msra.mxu0 0.0
        %6617 = vmatprep.mubr.f32.mxu0 0.0
        %6618 = vmatmul.mubr.f32.gmra.mrb[0].mxu0 %v6530
        %v6619 = vpop.f32.mrb[0].mxu0
        %v6620 = vadd.f32 0.0, %v6619
        %v6621 = vpop.f32.mrb[0].mxu0
        %6622 = vmatprep.mubr.f32.mxu0 0.0
        %6623 = vmatmul.mubr.f32.gmra.mrb[0].mxu0 %v6533
        %v6624 = vpop.f32.mrb[0].mxu0
        %v6625 = vadd.f32 0.0, %v6624
        %v6626 = vpop.f32.mrb[0].mxu0
        %6627 = vmatprep.mubr.f32.mxu0 0.0
        %6628 = vmatmul.mubr.f32.gmra.mrb[0].mxu0 %v6536
        %v6629 = vpop.f32.mrb[0].mxu0
        %v6630 = vadd.f32 0.0, %v6629
        %v6631 = vpop.f32.mrb[0].mxu0
        %6632 = vmatprep.mubr.f32.mxu0 0.0
        %6633 = vmatmul.mubr.f32.gmra.mrb[0].mxu0 %v6539
        %v6634 = vpop.f32.mrb[0].mxu0
        %v6635 = vadd.f32 0.0, %v6634
        %v6636 = vpop.f32.mrb[0].mxu0
        %6637 = vmatprep.mubr.f32.mxu0 0.0
        %6638 = vmatmul.mubr.f32.gmra.mrb[0].mxu0 %v6542
        %v6639 = vpop.f32.mrb[0].mxu0
        %v6640 = vadd.f32 0.0, %v6639
        %v6641 = vpop.f32.mrb[0].mxu0
        %6642 = vmatprep.mubr.f32.mxu0 0.0
        %6643 = vmatmul.mubr.f32.gmra.mrb[0].mxu0 %v6545
        %v6644 = vpop.f32.mrb[0].mxu0
        %v6645 = vadd.f32 0.0, %v6644
        %v6646 = vpop.f32.mrb[0].mxu0
        %6647 = vmatprep.mubr.f32.mxu0 0.0
        %6648 = vmatmul.mubr.f32.gmra.mrb[0].mxu0 %v6548
        %v6649 = vpop.f32.mrb[0].mxu0
        %v6650 = vadd.f32 0.0, %v6649
        %v6651 = vpop.f32.mrb[0].mxu0
        %6652 = vmatprep.mubr.f32.mxu0 0.0
        %6653 = vmatmul.mubr.f32.gmra.mrb[0].mxu0 %v6551
        %v6654 = vpop.f32.mrb[0].mxu0
        %v6655 = vadd.f32 0.0, %v6654
        %v6656 = vpop.f32.mrb[0].mxu0
        %6657 = vdwg.mxu0
        %v6658 = vadd.f32 %v6503, %v6620
        %v6659 = vadd.f32 %v6504, %v6625
        %v6660 = vadd.f32 %v6505, %v6630
        %v6661 = vadd.f32 %v6506, %v6635
        %v6662 = vadd.f32 %v6507, %v6640
        %v6663 = vadd.f32 %v6508, %v6645
        %v6664 = vadd.f32 %v6509, %v6650
        %v6665 = vadd.f32 %v6510, %v6655
        %s6666 = scalar_lea.vmem [#allocation3], 128
        %s6667 = scalar_lea.vmem %s6666, 6 [#allocation3]
        %v6668 = vld [vmem:[%s6667] ss:$2 sm:$0xff]
        %s6669 = scalar_lea.vmem %s6666, 70 [#allocation3]
        %v6670 = vld [vmem:[%s6669] ss:$2 sm:$0xff]
        %s6671 = scalar_lea.vmem %s6666, 134 [#allocation3]
        %v6672 = vld [vmem:[%s6671] ss:$2 sm:$0xff]
        %s6673 = scalar_lea.vmem %s6666, 198 [#allocation3]
        %v6674 = vld [vmem:[%s6673] ss:$2 sm:$0xff]
        %s6675 = scalar_lea.vmem %s6666, 262 [#allocation3]
        %v6676 = vld [vmem:[%s6675] ss:$2 sm:$0xff]
        %s6677 = scalar_lea.vmem %s6666, 326 [#allocation3]
        %v6678 = vld [vmem:[%s6677] ss:$2 sm:$0xff]
        %s6679 = scalar_lea.vmem %s6666, 390 [#allocation3]
        %v6680 = vld [vmem:[%s6679] ss:$2 sm:$0xff]
        %s6681 = scalar_lea.vmem %s6666, 454 [#allocation3]
        %v6682 = vld [vmem:[%s6681] ss:$2 sm:$0xff]
        %s6683 = scalar_lea.vmem %s3, 160
        %v6684 = vld [vmem:[%s6683] sm:$0xff]
        %v6686 = vsel %vm430, %v6668, 0
        %v6689 = vsel %vm430, %v6670, 0
        %v6692 = vsel %vm430, %v6672, 0
        %v6695 = vsel %vm430, %v6674, 0
        %v6698 = vsel %vm430, %v6676, 0
        %v6701 = vsel %vm430, %v6678, 0
        %v6704 = vsel %vm430, %v6680, 0
        %v6707 = vsel %vm430, %v6682, 0
        %6709 = vmatprep.subr.mxu0 0.0
        %6710 = vmatpush1.msra.mxu0 %v6684
        %6711 = vmatprep.subr.mxu0 0.0
        %6712 = vmatpush1.msra.mxu0 0.0
        %6713 = vmatprep.subr.mxu0 0.0
        %6714 = vmatpush1.msra.mxu0 0.0
        %6715 = vmatprep.subr.mxu0 0.0
        %6716 = vmatpush1.msra.mxu0 0.0
        %6717 = vmatprep.subr.mxu0 0.0
        %6718 = vmatpush1.msra.mxu0 0.0
        %6719 = vmatprep.subr.mxu0 0.0
        %6720 = vmatpush1.msra.mxu0 0.0
        %6721 = vmatprep.subr.mxu0 0.0
        %6722 = vmatpush1.msra.mxu0 0.0
        %6723 = vmatprep.subr.mxu0 0.0
        %6724 = vmatpush1.msra.mxu0 0.0
        %6725 = vmatprep.subr.mxu0 0.0
        %6726 = vmatpush1.msra.mxu0 0.0
        %6727 = vmatprep.subr.mxu0 0.0
        %6728 = vmatpush1.msra.mxu0 0.0
        %6729 = vmatprep.subr.mxu0 0.0
        %6730 = vmatpush1.msra.mxu0 0.0
        %6731 = vmatprep.subr.mxu0 0.0
        %6732 = vmatpush1.msra.mxu0 0.0
        %6733 = vmatprep.subr.mxu0 0.0
        %6734 = vmatpush1.msra.mxu0 0.0
        %6735 = vmatprep.subr.mxu0 0.0
        %6736 = vmatpush1.msra.mxu0 0.0
        %6737 = vmatprep.subr.mxu0 0.0
        %6738 = vmatpush1.msra.mxu0 0.0
        %6739 = vmatprep.subr.mxu0 0.0
        %6740 = vmatpush1.msra.mxu0 0.0
        %6741 = vmatprep.subr.mxu0 0.0
        %6742 = vmatpush1.msra.mxu0 0.0
        %6743 = vmatprep.subr.mxu0 0.0
        %6744 = vmatpush1.msra.mxu0 0.0
        %6745 = vmatprep.subr.mxu0 0.0
        %6746 = vmatpush1.msra.mxu0 0.0
        %6747 = vmatprep.subr.mxu0 0.0
        %6748 = vmatpush1.msra.mxu0 0.0
        %6749 = vmatprep.subr.mxu0 0.0
        %6750 = vmatpush1.msra.mxu0 0.0
        %6751 = vmatprep.subr.mxu0 0.0
        %6752 = vmatpush1.msra.mxu0 0.0
        %6753 = vmatprep.subr.mxu0 0.0
        %6754 = vmatpush1.msra.mxu0 0.0
        %6755 = vmatprep.subr.mxu0 0.0
        %6756 = vmatpush1.msra.mxu0 0.0
        %6757 = vmatprep.subr.mxu0 0.0
        %6758 = vmatpush1.msra.mxu0 0.0
        %6759 = vmatprep.subr.mxu0 0.0
        %6760 = vmatpush1.msra.mxu0 0.0
        %6761 = vmatprep.subr.mxu0 0.0
        %6762 = vmatpush1.msra.mxu0 0.0
        %6763 = vmatprep.subr.mxu0 0.0
        %6764 = vmatpush1.msra.mxu0 0.0
        %6765 = vmatprep.subr.mxu0 0.0
        %6766 = vmatpush1.msra.mxu0 0.0
        %6767 = vmatprep.subr.mxu0 0.0
        %6768 = vmatpush1.msra.mxu0 0.0
        %6769 = vmatprep.subr.mxu0 0.0
        %6770 = vmatpush1.msra.mxu0 0.0
        %6771 = vmatprep.subr.mxu0 0.0
        %6772 = vmatpush1.msra.mxu0 0.0
        %6773 = vmatprep.mubr.f32.mxu0 0.0
        %6774 = vmatmul.mubr.f32.gmra.mrb[0].mxu0 %v6686
        %v6775 = vpop.f32.mrb[0].mxu0
        %v6776 = vadd.f32 0.0, %v6775
        %v6777 = vpop.f32.mrb[0].mxu0
        %6778 = vmatprep.mubr.f32.mxu0 0.0
        %6779 = vmatmul.mubr.f32.gmra.mrb[0].mxu0 %v6689
        %v6780 = vpop.f32.mrb[0].mxu0
        %v6781 = vadd.f32 0.0, %v6780
        %v6782 = vpop.f32.mrb[0].mxu0
        %6783 = vmatprep.mubr.f32.mxu0 0.0
        %6784 = vmatmul.mubr.f32.gmra.mrb[0].mxu0 %v6692
        %v6785 = vpop.f32.mrb[0].mxu0
        %v6786 = vadd.f32 0.0, %v6785
        %v6787 = vpop.f32.mrb[0].mxu0
        %6788 = vmatprep.mubr.f32.mxu0 0.0
        %6789 = vmatmul.mubr.f32.gmra.mrb[0].mxu0 %v6695
        %v6790 = vpop.f32.mrb[0].mxu0
        %v6791 = vadd.f32 0.0, %v6790
        %v6792 = vpop.f32.mrb[0].mxu0
        %6793 = vmatprep.mubr.f32.mxu0 0.0
        %6794 = vmatmul.mubr.f32.gmra.mrb[0].mxu0 %v6698
        %v6795 = vpop.f32.mrb[0].mxu0
        %v6796 = vadd.f32 0.0, %v6795
        %v6797 = vpop.f32.mrb[0].mxu0
        %6798 = vmatprep.mubr.f32.mxu0 0.0
        %6799 = vmatmul.mubr.f32.gmra.mrb[0].mxu0 %v6701
        %v6800 = vpop.f32.mrb[0].mxu0
        %v6801 = vadd.f32 0.0, %v6800
        %v6802 = vpop.f32.mrb[0].mxu0
        %6803 = vmatprep.mubr.f32.mxu0 0.0
        %6804 = vmatmul.mubr.f32.gmra.mrb[0].mxu0 %v6704
        %v6805 = vpop.f32.mrb[0].mxu0
        %v6806 = vadd.f32 0.0, %v6805
        %v6807 = vpop.f32.mrb[0].mxu0
        %6808 = vmatprep.mubr.f32.mxu0 0.0
        %6809 = vmatmul.mubr.f32.gmra.mrb[0].mxu0 %v6707
        %v6810 = vpop.f32.mrb[0].mxu0
        %v6811 = vadd.f32 0.0, %v6810
        %v6812 = vpop.f32.mrb[0].mxu0
        %6813 = vdwg.mxu0
        %v6814 = vadd.f32 %v6658, %v6776
        %v6815 = vadd.f32 %v6659, %v6781
        %v6816 = vadd.f32 %v6660, %v6786
        %v6817 = vadd.f32 %v6661, %v6791
        %v6818 = vadd.f32 %v6662, %v6796
        %v6819 = vadd.f32 %v6663, %v6801
        %v6820 = vadd.f32 %v6664, %v6806
        %v6821 = vadd.f32 %v6665, %v6811
        %s6822 = scalar_lea.vmem %s6666, 7 [#allocation3]
        %v6823 = vld [vmem:[%s6822] ss:$2 sm:$0xff]
        %s6824 = scalar_lea.vmem %s6666, 71 [#allocation3]
        %v6825 = vld [vmem:[%s6824] ss:$2 sm:$0xff]
        %s6826 = scalar_lea.vmem %s6666, 135 [#allocation3]
        %v6827 = vld [vmem:[%s6826] ss:$2 sm:$0xff]
        %s6828 = scalar_lea.vmem %s6666, 199 [#allocation3]
        %v6829 = vld [vmem:[%s6828] ss:$2 sm:$0xff]
        %s6830 = scalar_lea.vmem %s6666, 263 [#allocation3]
        %v6831 = vld [vmem:[%s6830] ss:$2 sm:$0xff]
        %s6832 = scalar_lea.vmem %s6666, 327 [#allocation3]
        %v6833 = vld [vmem:[%s6832] ss:$2 sm:$0xff]
        %s6834 = scalar_lea.vmem %s6666, 391 [#allocation3]
        %v6835 = vld [vmem:[%s6834] ss:$2 sm:$0xff]
        %s6836 = scalar_lea.vmem %s6666, 455 [#allocation3]
        %v6837 = vld [vmem:[%s6836] ss:$2 sm:$0xff]
        %s6838 = scalar_lea.vmem %s3, 168
        %v6839 = vld [vmem:[%s6838] sm:$0xff]
        %v6841 = vsel %vm430, %v6823, 0
        %v6844 = vsel %vm430, %v6825, 0
        %v6847 = vsel %vm430, %v6827, 0
        %v6850 = vsel %vm430, %v6829, 0
        %v6853 = vsel %vm430, %v6831, 0
        %v6856 = vsel %vm430, %v6833, 0
        %v6859 = vsel %vm430, %v6835, 0
        %v6862 = vsel %vm430, %v6837, 0
        %6864 = vmatprep.subr.mxu0 0.0
        %6865 = vmatpush1.msra.mxu0 %v6839
        %6866 = vmatprep.subr.mxu0 0.0
        %6867 = vmatpush1.msra.mxu0 0.0
        %6868 = vmatprep.subr.mxu0 0.0
        %6869 = vmatpush1.msra.mxu0 0.0
        %6870 = vmatprep.subr.mxu0 0.0
        %6871 = vmatpush1.msra.mxu0 0.0
        %6872 = vmatprep.subr.mxu0 0.0
        %6873 = vmatpush1.msra.mxu0 0.0
        %6874 = vmatprep.subr.mxu0 0.0
        %6875 = vmatpush1.msra.mxu0 0.0
        %6876 = vmatprep.subr.mxu0 0.0
        %6877 = vmatpush1.msra.mxu0 0.0
        %6878 = vmatprep.subr.mxu0 0.0
        %6879 = vmatpush1.msra.mxu0 0.0
        %6880 = vmatprep.subr.mxu0 0.0
        %6881 = vmatpush1.msra.mxu0 0.0
        %6882 = vmatprep.subr.mxu0 0.0
        %6883 = vmatpush1.msra.mxu0 0.0
        %6884 = vmatprep.subr.mxu0 0.0
        %6885 = vmatpush1.msra.mxu0 0.0
        %6886 = vmatprep.subr.mxu0 0.0
        %6887 = vmatpush1.msra.mxu0 0.0
        %6888 = vmatprep.subr.mxu0 0.0
        %6889 = vmatpush1.msra.mxu0 0.0
        %6890 = vmatprep.subr.mxu0 0.0
        %6891 = vmatpush1.msra.mxu0 0.0
        %6892 = vmatprep.subr.mxu0 0.0
        %6893 = vmatpush1.msra.mxu0 0.0
        %6894 = vmatprep.subr.mxu0 0.0
        %6895 = vmatpush1.msra.mxu0 0.0
        %6896 = vmatprep.subr.mxu0 0.0
        %6897 = vmatpush1.msra.mxu0 0.0
        %6898 = vmatprep.subr.mxu0 0.0
        %6899 = vmatpush1.msra.mxu0 0.0
        %6900 = vmatprep.subr.mxu0 0.0
        %6901 = vmatpush1.msra.mxu0 0.0
        %6902 = vmatprep.subr.mxu0 0.0
        %6903 = vmatpush1.msra.mxu0 0.0
        %6904 = vmatprep.subr.mxu0 0.0
        %6905 = vmatpush1.msra.mxu0 0.0
        %6906 = vmatprep.subr.mxu0 0.0
        %6907 = vmatpush1.msra.mxu0 0.0
        %6908 = vmatprep.subr.mxu0 0.0
        %6909 = vmatpush1.msra.mxu0 0.0
        %6910 = vmatprep.subr.mxu0 0.0
        %6911 = vmatpush1.msra.mxu0 0.0
        %6912 = vmatprep.subr.mxu0 0.0
        %6913 = vmatpush1.msra.mxu0 0.0
        %6914 = vmatprep.subr.mxu0 0.0
        %6915 = vmatpush1.msra.mxu0 0.0
        %6916 = vmatprep.subr.mxu0 0.0
        %6917 = vmatpush1.msra.mxu0 0.0
        %6918 = vmatprep.subr.mxu0 0.0
        %6919 = vmatpush1.msra.mxu0 0.0
        %6920 = vmatprep.subr.mxu0 0.0
        %6921 = vmatpush1.msra.mxu0 0.0
        %6922 = vmatprep.subr.mxu0 0.0
        %6923 = vmatpush1.msra.mxu0 0.0
        %6924 = vmatprep.subr.mxu0 0.0
        %6925 = vmatpush1.msra.mxu0 0.0
        %6926 = vmatprep.subr.mxu0 0.0
        %6927 = vmatpush1.msra.mxu0 0.0
        %6928 = vmatprep.mubr.f32.mxu0 0.0
        %6929 = vmatmul.mubr.f32.gmra.mrb[0].mxu0 %v6841
        %v6930 = vpop.f32.mrb[0].mxu0
        %v6931 = vadd.f32 0.0, %v6930
        %v6932 = vpop.f32.mrb[0].mxu0
        %6933 = vmatprep.mubr.f32.mxu0 0.0
        %6934 = vmatmul.mubr.f32.gmra.mrb[0].mxu0 %v6844
        %v6935 = vpop.f32.mrb[0].mxu0
        %v6936 = vadd.f32 0.0, %v6935
        %v6937 = vpop.f32.mrb[0].mxu0
        %6938 = vmatprep.mubr.f32.mxu0 0.0
        %6939 = vmatmul.mubr.f32.gmra.mrb[0].mxu0 %v6847
        %v6940 = vpop.f32.mrb[0].mxu0
        %v6941 = vadd.f32 0.0, %v6940
        %v6942 = vpop.f32.mrb[0].mxu0
        %6943 = vmatprep.mubr.f32.mxu0 0.0
        %6944 = vmatmul.mubr.f32.gmra.mrb[0].mxu0 %v6850
        %v6945 = vpop.f32.mrb[0].mxu0
        %v6946 = vadd.f32 0.0, %v6945
        %v6947 = vpop.f32.mrb[0].mxu0
        %6948 = vmatprep.mubr.f32.mxu0 0.0
        %6949 = vmatmul.mubr.f32.gmra.mrb[0].mxu0 %v6853
        %v6950 = vpop.f32.mrb[0].mxu0
        %v6951 = vadd.f32 0.0, %v6950
        %v6952 = vpop.f32.mrb[0].mxu0
        %6953 = vmatprep.mubr.f32.mxu0 0.0
        %6954 = vmatmul.mubr.f32.gmra.mrb[0].mxu0 %v6856
        %v6955 = vpop.f32.mrb[0].mxu0
        %v6956 = vadd.f32 0.0, %v6955
        %v6957 = vpop.f32.mrb[0].mxu0
        %6958 = vmatprep.mubr.f32.mxu0 0.0
        %6959 = vmatmul.mubr.f32.gmra.mrb[0].mxu0 %v6859
        %v6960 = vpop.f32.mrb[0].mxu0
        %v6961 = vadd.f32 0.0, %v6960
        %v6962 = vpop.f32.mrb[0].mxu0
        %6963 = vmatprep.mubr.f32.mxu0 0.0
        %6964 = vmatmul.mubr.f32.gmra.mrb[0].mxu0 %v6862
        %v6965 = vpop.f32.mrb[0].mxu0
        %v6966 = vadd.f32 0.0, %v6965
        %v6967 = vpop.f32.mrb[0].mxu0
        %6968 = vdwg.mxu0
        %v6969 = vadd.f32 %v6814, %v6931
        %v6970 = vadd.f32 %v6815, %v6936
        %v6971 = vadd.f32 %v6816, %v6941
        %v6972 = vadd.f32 %v6817, %v6946
        %v6973 = vadd.f32 %v6818, %v6951
        %v6974 = vadd.f32 %v6819, %v6956
        %v6975 = vadd.f32 %v6820, %v6961
        %v6976 = vadd.f32 %v6821, %v6966
        %s6977 = scalar_lea.vmem %s6666, 8 [#allocation3]
        %v6978 = vld [vmem:[%s6977] ss:$2 sm:$0xff]
        %s6979 = scalar_lea.vmem %s6666, 72 [#allocation3]
        %v6980 = vld [vmem:[%s6979] ss:$2 sm:$0xff]
        %s6981 = scalar_lea.vmem %s6666, 136 [#allocation3]
        %v6982 = vld [vmem:[%s6981] ss:$2 sm:$0xff]
        %s6983 = scalar_lea.vmem %s6666, 200 [#allocation3]
        %v6984 = vld [vmem:[%s6983] ss:$2 sm:$0xff]
        %s6985 = scalar_lea.vmem %s6666, 264 [#allocation3]
        %v6986 = vld [vmem:[%s6985] ss:$2 sm:$0xff]
        %s6987 = scalar_lea.vmem %s6666, 328 [#allocation3]
        %v6988 = vld [vmem:[%s6987] ss:$2 sm:$0xff]
        %s6989 = scalar_lea.vmem %s6666, 392 [#allocation3]
        %v6990 = vld [vmem:[%s6989] ss:$2 sm:$0xff]
        %s6991 = scalar_lea.vmem %s6666, 456 [#allocation3]
        %v6992 = vld [vmem:[%s6991] ss:$2 sm:$0xff]
        %s6993 = scalar_lea.vmem %s3, 176
        %v6994 = vld [vmem:[%s6993] sm:$0xff]
        %v6996 = vsel %vm430, %v6978, 0
        %v6999 = vsel %vm430, %v6980, 0
        %v7002 = vsel %vm430, %v6982, 0
        %v7005 = vsel %vm430, %v6984, 0
        %v7008 = vsel %vm430, %v6986, 0
        %v7011 = vsel %vm430, %v6988, 0
        %v7014 = vsel %vm430, %v6990, 0
        %v7017 = vsel %vm430, %v6992, 0
        %7019 = vmatprep.subr.mxu0 0.0
        %7020 = vmatpush1.msra.mxu0 %v6994
        %7021 = vmatprep.subr.mxu0 0.0
        %7022 = vmatpush1.msra.mxu0 0.0
        %7023 = vmatprep.subr.mxu0 0.0
        %7024 = vmatpush1.msra.mxu0 0.0
        %7025 = vmatprep.subr.mxu0 0.0
        %7026 = vmatpush1.msra.mxu0 0.0
        %7027 = vmatprep.subr.mxu0 0.0
        %7028 = vmatpush1.msra.mxu0 0.0
        %7029 = vmatprep.subr.mxu0 0.0
        %7030 = vmatpush1.msra.mxu0 0.0
        %7031 = vmatprep.subr.mxu0 0.0
        %7032 = vmatpush1.msra.mxu0 0.0
        %7033 = vmatprep.subr.mxu0 0.0
        %7034 = vmatpush1.msra.mxu0 0.0
        %7035 = vmatprep.subr.mxu0 0.0
        %7036 = vmatpush1.msra.mxu0 0.0
        %7037 = vmatprep.subr.mxu0 0.0
        %7038 = vmatpush1.msra.mxu0 0.0
        %7039 = vmatprep.subr.mxu0 0.0
        %7040 = vmatpush1.msra.mxu0 0.0
        %7041 = vmatprep.subr.mxu0 0.0
        %7042 = vmatpush1.msra.mxu0 0.0
        %7043 = vmatprep.subr.mxu0 0.0
        %7044 = vmatpush1.msra.mxu0 0.0
        %7045 = vmatprep.subr.mxu0 0.0
        %7046 = vmatpush1.msra.mxu0 0.0
        %7047 = vmatprep.subr.mxu0 0.0
        %7048 = vmatpush1.msra.mxu0 0.0
        %7049 = vmatprep.subr.mxu0 0.0
        %7050 = vmatpush1.msra.mxu0 0.0
        %7051 = vmatprep.subr.mxu0 0.0
        %7052 = vmatpush1.msra.mxu0 0.0
        %7053 = vmatprep.subr.mxu0 0.0
        %7054 = vmatpush1.msra.mxu0 0.0
        %7055 = vmatprep.subr.mxu0 0.0
        %7056 = vmatpush1.msra.mxu0 0.0
        %7057 = vmatprep.subr.mxu0 0.0
        %7058 = vmatpush1.msra.mxu0 0.0
        %7059 = vmatprep.subr.mxu0 0.0
        %7060 = vmatpush1.msra.mxu0 0.0
        %7061 = vmatprep.subr.mxu0 0.0
        %7062 = vmatpush1.msra.mxu0 0.0
        %7063 = vmatprep.subr.mxu0 0.0
        %7064 = vmatpush1.msra.mxu0 0.0
        %7065 = vmatprep.subr.mxu0 0.0
        %7066 = vmatpush1.msra.mxu0 0.0
        %7067 = vmatprep.subr.mxu0 0.0
        %7068 = vmatpush1.msra.mxu0 0.0
        %7069 = vmatprep.subr.mxu0 0.0
        %7070 = vmatpush1.msra.mxu0 0.0
        %7071 = vmatprep.subr.mxu0 0.0
        %7072 = vmatpush1.msra.mxu0 0.0
        %7073 = vmatprep.subr.mxu0 0.0
        %7074 = vmatpush1.msra.mxu0 0.0
        %7075 = vmatprep.subr.mxu0 0.0
        %7076 = vmatpush1.msra.mxu0 0.0
        %7077 = vmatprep.subr.mxu0 0.0
        %7078 = vmatpush1.msra.mxu0 0.0
        %7079 = vmatprep.subr.mxu0 0.0
        %7080 = vmatpush1.msra.mxu0 0.0
        %7081 = vmatprep.subr.mxu0 0.0
        %7082 = vmatpush1.msra.mxu0 0.0
        %7083 = vmatprep.mubr.f32.mxu0 0.0
        %7084 = vmatmul.mubr.f32.gmra.mrb[0].mxu0 %v6996
        %v7085 = vpop.f32.mrb[0].mxu0
        %v7086 = vadd.f32 0.0, %v7085
        %v7087 = vpop.f32.mrb[0].mxu0
        %7088 = vmatprep.mubr.f32.mxu0 0.0
        %7089 = vmatmul.mubr.f32.gmra.mrb[0].mxu0 %v6999
        %v7090 = vpop.f32.mrb[0].mxu0
        %v7091 = vadd.f32 0.0, %v7090
        %v7092 = vpop.f32.mrb[0].mxu0
        %7093 = vmatprep.mubr.f32.mxu0 0.0
        %7094 = vmatmul.mubr.f32.gmra.mrb[0].mxu0 %v7002
        %v7095 = vpop.f32.mrb[0].mxu0
        %v7096 = vadd.f32 0.0, %v7095
        %v7097 = vpop.f32.mrb[0].mxu0
        %7098 = vmatprep.mubr.f32.mxu0 0.0
        %7099 = vmatmul.mubr.f32.gmra.mrb[0].mxu0 %v7005
        %v7100 = vpop.f32.mrb[0].mxu0
        %v7101 = vadd.f32 0.0, %v7100
        %v7102 = vpop.f32.mrb[0].mxu0
        %7103 = vmatprep.mubr.f32.mxu0 0.0
        %7104 = vmatmul.mubr.f32.gmra.mrb[0].mxu0 %v7008
        %v7105 = vpop.f32.mrb[0].mxu0
        %v7106 = vadd.f32 0.0, %v7105
        %v7107 = vpop.f32.mrb[0].mxu0
        %7108 = vmatprep.mubr.f32.mxu0 0.0
        %7109 = vmatmul.mubr.f32.gmra.mrb[0].mxu0 %v7011
        %v7110 = vpop.f32.mrb[0].mxu0
        %v7111 = vadd.f32 0.0, %v7110
        %v7112 = vpop.f32.mrb[0].mxu0
        %7113 = vmatprep.mubr.f32.mxu0 0.0
        %7114 = vmatmul.mubr.f32.gmra.mrb[0].mxu0 %v7014
        %v7115 = vpop.f32.mrb[0].mxu0
        %v7116 = vadd.f32 0.0, %v7115
        %v7117 = vpop.f32.mrb[0].mxu0
        %7118 = vmatprep.mubr.f32.mxu0 0.0
        %7119 = vmatmul.mubr.f32.gmra.mrb[0].mxu0 %v7017
        %v7120 = vpop.f32.mrb[0].mxu0
        %v7121 = vadd.f32 0.0, %v7120
        %v7122 = vpop.f32.mrb[0].mxu0
        %7123 = vdwg.mxu0
        %v7124 = vadd.f32 %v6969, %v7086
        %v7125 = vadd.f32 %v6970, %v7091
        %v7126 = vadd.f32 %v6971, %v7096
        %v7127 = vadd.f32 %v6972, %v7101
        %v7128 = vadd.f32 %v6973, %v7106
        %v7129 = vadd.f32 %v6974, %v7111
        %v7130 = vadd.f32 %v6975, %v7116
        %v7131 = vadd.f32 %v6976, %v7121
        %s7132 = scalar_lea.vmem %s6666, 9 [#allocation3]
        %v7133 = vld [vmem:[%s7132] ss:$2 sm:$0xff]
        %s7134 = scalar_lea.vmem %s6666, 73 [#allocation3]
        %v7135 = vld [vmem:[%s7134] ss:$2 sm:$0xff]
        %s7136 = scalar_lea.vmem %s6666, 137 [#allocation3]
        %v7137 = vld [vmem:[%s7136] ss:$2 sm:$0xff]
        %s7138 = scalar_lea.vmem %s6666, 201 [#allocation3]
        %v7139 = vld [vmem:[%s7138] ss:$2 sm:$0xff]
        %s7140 = scalar_lea.vmem %s6666, 265 [#allocation3]
        %v7141 = vld [vmem:[%s7140] ss:$2 sm:$0xff]
        %s7142 = scalar_lea.vmem %s6666, 329 [#allocation3]
        %v7143 = vld [vmem:[%s7142] ss:$2 sm:$0xff]
        %s7144 = scalar_lea.vmem %s6666, 393 [#allocation3]
        %v7145 = vld [vmem:[%s7144] ss:$2 sm:$0xff]
        %s7146 = scalar_lea.vmem %s6666, 457 [#allocation3]
        %v7147 = vld [vmem:[%s7146] ss:$2 sm:$0xff]
        %s7148 = scalar_lea.vmem %s3, 184
        %v7149 = vld [vmem:[%s7148] sm:$0xff]
        %v7151 = vsel %vm430, %v7133, 0
        %v7154 = vsel %vm430, %v7135, 0
        %v7157 = vsel %vm430, %v7137, 0
        %v7160 = vsel %vm430, %v7139, 0
        %v7163 = vsel %vm430, %v7141, 0
        %v7166 = vsel %vm430, %v7143, 0
        %v7169 = vsel %vm430, %v7145, 0
        %v7172 = vsel %vm430, %v7147, 0
        %7174 = vmatprep.subr.mxu0 0.0
        %7175 = vmatpush1.msra.mxu0 %v7149
        %7176 = vmatprep.subr.mxu0 0.0
        %7177 = vmatpush1.msra.mxu0 0.0
        %7178 = vmatprep.subr.mxu0 0.0
        %7179 = vmatpush1.msra.mxu0 0.0
        %7180 = vmatprep.subr.mxu0 0.0
        %7181 = vmatpush1.msra.mxu0 0.0
        %7182 = vmatprep.subr.mxu0 0.0
        %7183 = vmatpush1.msra.mxu0 0.0
        %7184 = vmatprep.subr.mxu0 0.0
        %7185 = vmatpush1.msra.mxu0 0.0
        %7186 = vmatprep.subr.mxu0 0.0
        %7187 = vmatpush1.msra.mxu0 0.0
        %7188 = vmatprep.subr.mxu0 0.0
        %7189 = vmatpush1.msra.mxu0 0.0
        %7190 = vmatprep.subr.mxu0 0.0
        %7191 = vmatpush1.msra.mxu0 0.0
        %7192 = vmatprep.subr.mxu0 0.0
        %7193 = vmatpush1.msra.mxu0 0.0
        %7194 = vmatprep.subr.mxu0 0.0
        %7195 = vmatpush1.msra.mxu0 0.0
        %7196 = vmatprep.subr.mxu0 0.0
        %7197 = vmatpush1.msra.mxu0 0.0
        %7198 = vmatprep.subr.mxu0 0.0
        %7199 = vmatpush1.msra.mxu0 0.0
        %7200 = vmatprep.subr.mxu0 0.0
        %7201 = vmatpush1.msra.mxu0 0.0
        %7202 = vmatprep.subr.mxu0 0.0
        %7203 = vmatpush1.msra.mxu0 0.0
        %7204 = vmatprep.subr.mxu0 0.0
        %7205 = vmatpush1.msra.mxu0 0.0
        %7206 = vmatprep.subr.mxu0 0.0
        %7207 = vmatpush1.msra.mxu0 0.0
        %7208 = vmatprep.subr.mxu0 0.0
        %7209 = vmatpush1.msra.mxu0 0.0
        %7210 = vmatprep.subr.mxu0 0.0
        %7211 = vmatpush1.msra.mxu0 0.0
        %7212 = vmatprep.subr.mxu0 0.0
        %7213 = vmatpush1.msra.mxu0 0.0
        %7214 = vmatprep.subr.mxu0 0.0
        %7215 = vmatpush1.msra.mxu0 0.0
        %7216 = vmatprep.subr.mxu0 0.0
        %7217 = vmatpush1.msra.mxu0 0.0
        %7218 = vmatprep.subr.mxu0 0.0
        %7219 = vmatpush1.msra.mxu0 0.0
        %7220 = vmatprep.subr.mxu0 0.0
        %7221 = vmatpush1.msra.mxu0 0.0
        %7222 = vmatprep.subr.mxu0 0.0
        %7223 = vmatpush1.msra.mxu0 0.0
        %7224 = vmatprep.subr.mxu0 0.0
        %7225 = vmatpush1.msra.mxu0 0.0
        %7226 = vmatprep.subr.mxu0 0.0
        %7227 = vmatpush1.msra.mxu0 0.0
        %7228 = vmatprep.subr.mxu0 0.0
        %7229 = vmatpush1.msra.mxu0 0.0
        %7230 = vmatprep.subr.mxu0 0.0
        %7231 = vmatpush1.msra.mxu0 0.0
        %7232 = vmatprep.subr.mxu0 0.0
        %7233 = vmatpush1.msra.mxu0 0.0
        %7234 = vmatprep.subr.mxu0 0.0
        %7235 = vmatpush1.msra.mxu0 0.0
        %7236 = vmatprep.subr.mxu0 0.0
        %7237 = vmatpush1.msra.mxu0 0.0
        %7238 = vmatprep.mubr.f32.mxu0 0.0
        %7239 = vmatmul.mubr.f32.gmra.mrb[0].mxu0 %v7151
        %v7240 = vpop.f32.mrb[0].mxu0
        %v7241 = vadd.f32 0.0, %v7240
        %v7242 = vpop.f32.mrb[0].mxu0
        %7243 = vmatprep.mubr.f32.mxu0 0.0
        %7244 = vmatmul.mubr.f32.gmra.mrb[0].mxu0 %v7154
        %v7245 = vpop.f32.mrb[0].mxu0
        %v7246 = vadd.f32 0.0, %v7245
        %v7247 = vpop.f32.mrb[0].mxu0
        %7248 = vmatprep.mubr.f32.mxu0 0.0
        %7249 = vmatmul.mubr.f32.gmra.mrb[0].mxu0 %v7157
        %v7250 = vpop.f32.mrb[0].mxu0
        %v7251 = vadd.f32 0.0, %v7250
        %v7252 = vpop.f32.mrb[0].mxu0
        %7253 = vmatprep.mubr.f32.mxu0 0.0
        %7254 = vmatmul.mubr.f32.gmra.mrb[0].mxu0 %v7160
        %v7255 = vpop.f32.mrb[0].mxu0
        %v7256 = vadd.f32 0.0, %v7255
        %v7257 = vpop.f32.mrb[0].mxu0
        %7258 = vmatprep.mubr.f32.mxu0 0.0
        %7259 = vmatmul.mubr.f32.gmra.mrb[0].mxu0 %v7163
        %v7260 = vpop.f32.mrb[0].mxu0
        %v7261 = vadd.f32 0.0, %v7260
        %v7262 = vpop.f32.mrb[0].mxu0
        %7263 = vmatprep.mubr.f32.mxu0 0.0
        %7264 = vmatmul.mubr.f32.gmra.mrb[0].mxu0 %v7166
        %v7265 = vpop.f32.mrb[0].mxu0
        %v7266 = vadd.f32 0.0, %v7265
        %v7267 = vpop.f32.mrb[0].mxu0
        %7268 = vmatprep.mubr.f32.mxu0 0.0
        %7269 = vmatmul.mubr.f32.gmra.mrb[0].mxu0 %v7169
        %v7270 = vpop.f32.mrb[0].mxu0
        %v7271 = vadd.f32 0.0, %v7270
        %v7272 = vpop.f32.mrb[0].mxu0
        %7273 = vmatprep.mubr.f32.mxu0 0.0
        %7274 = vmatmul.mubr.f32.gmra.mrb[0].mxu0 %v7172
        %v7275 = vpop.f32.mrb[0].mxu0
        %v7276 = vadd.f32 0.0, %v7275
        %v7277 = vpop.f32.mrb[0].mxu0
        %7278 = vdwg.mxu0
        %v7279 = vadd.f32 %v7124, %v7241
        %v7280 = vadd.f32 %v7125, %v7246
        %v7281 = vadd.f32 %v7126, %v7251
        %v7282 = vadd.f32 %v7127, %v7256
        %v7283 = vadd.f32 %v7128, %v7261
        %v7284 = vadd.f32 %v7129, %v7266
        %v7285 = vadd.f32 %v7130, %v7271
        %v7286 = vadd.f32 %v7131, %v7276
        %s7287 = scalar_lea.vmem %s6666, 10 [#allocation3]
        %v7288 = vld [vmem:[%s7287] ss:$2 sm:$0xff]
        %s7289 = scalar_lea.vmem %s6666, 74 [#allocation3]
        %v7290 = vld [vmem:[%s7289] ss:$2 sm:$0xff]
        %s7291 = scalar_lea.vmem %s6666, 138 [#allocation3]
        %v7292 = vld [vmem:[%s7291] ss:$2 sm:$0xff]
        %s7293 = scalar_lea.vmem %s6666, 202 [#allocation3]
        %v7294 = vld [vmem:[%s7293] ss:$2 sm:$0xff]
        %s7295 = scalar_lea.vmem %s6666, 266 [#allocation3]
        %v7296 = vld [vmem:[%s7295] ss:$2 sm:$0xff]
        %s7297 = scalar_lea.vmem %s6666, 330 [#allocation3]
        %v7298 = vld [vmem:[%s7297] ss:$2 sm:$0xff]
        %s7299 = scalar_lea.vmem %s6666, 394 [#allocation3]
        %v7300 = vld [vmem:[%s7299] ss:$2 sm:$0xff]
        %s7301 = scalar_lea.vmem %s6666, 458 [#allocation3]
        %v7302 = vld [vmem:[%s7301] ss:$2 sm:$0xff]
        %s7303 = scalar_lea.vmem %s3, 192
        %v7304 = vld [vmem:[%s7303] sm:$0xff]
        %v7306 = vsel %vm430, %v7288, 0
        %v7309 = vsel %vm430, %v7290, 0
        %v7312 = vsel %vm430, %v7292, 0
        %v7315 = vsel %vm430, %v7294, 0
        %v7318 = vsel %vm430, %v7296, 0
        %v7321 = vsel %vm430, %v7298, 0
        %v7324 = vsel %vm430, %v7300, 0
        %v7327 = vsel %vm430, %v7302, 0
        %7329 = vmatprep.subr.mxu0 0.0
        %7330 = vmatpush1.msra.mxu0 %v7304
        %7331 = vmatprep.subr.mxu0 0.0
        %7332 = vmatpush1.msra.mxu0 0.0
        %7333 = vmatprep.subr.mxu0 0.0
        %7334 = vmatpush1.msra.mxu0 0.0
        %7335 = vmatprep.subr.mxu0 0.0
        %7336 = vmatpush1.msra.mxu0 0.0
        %7337 = vmatprep.subr.mxu0 0.0
        %7338 = vmatpush1.msra.mxu0 0.0
        %7339 = vmatprep.subr.mxu0 0.0
        %7340 = vmatpush1.msra.mxu0 0.0
        %7341 = vmatprep.subr.mxu0 0.0
        %7342 = vmatpush1.msra.mxu0 0.0
        %7343 = vmatprep.subr.mxu0 0.0
        %7344 = vmatpush1.msra.mxu0 0.0
        %7345 = vmatprep.subr.mxu0 0.0
        %7346 = vmatpush1.msra.mxu0 0.0
        %7347 = vmatprep.subr.mxu0 0.0
        %7348 = vmatpush1.msra.mxu0 0.0
        %7349 = vmatprep.subr.mxu0 0.0
        %7350 = vmatpush1.msra.mxu0 0.0
        %7351 = vmatprep.subr.mxu0 0.0
        %7352 = vmatpush1.msra.mxu0 0.0
        %7353 = vmatprep.subr.mxu0 0.0
        %7354 = vmatpush1.msra.mxu0 0.0
        %7355 = vmatprep.subr.mxu0 0.0
        %7356 = vmatpush1.msra.mxu0 0.0
        %7357 = vmatprep.subr.mxu0 0.0
        %7358 = vmatpush1.msra.mxu0 0.0
        %7359 = vmatprep.subr.mxu0 0.0
        %7360 = vmatpush1.msra.mxu0 0.0
        %7361 = vmatprep.subr.mxu0 0.0
        %7362 = vmatpush1.msra.mxu0 0.0
        %7363 = vmatprep.subr.mxu0 0.0
        %7364 = vmatpush1.msra.mxu0 0.0
        %7365 = vmatprep.subr.mxu0 0.0
        %7366 = vmatpush1.msra.mxu0 0.0
        %7367 = vmatprep.subr.mxu0 0.0
        %7368 = vmatpush1.msra.mxu0 0.0
        %7369 = vmatprep.subr.mxu0 0.0
        %7370 = vmatpush1.msra.mxu0 0.0
        %7371 = vmatprep.subr.mxu0 0.0
        %7372 = vmatpush1.msra.mxu0 0.0
        %7373 = vmatprep.subr.mxu0 0.0
        %7374 = vmatpush1.msra.mxu0 0.0
        %7375 = vmatprep.subr.mxu0 0.0
        %7376 = vmatpush1.msra.mxu0 0.0
        %7377 = vmatprep.subr.mxu0 0.0
        %7378 = vmatpush1.msra.mxu0 0.0
        %7379 = vmatprep.subr.mxu0 0.0
        %7380 = vmatpush1.msra.mxu0 0.0
        %7381 = vmatprep.subr.mxu0 0.0
        %7382 = vmatpush1.msra.mxu0 0.0
        %7383 = vmatprep.subr.mxu0 0.0
        %7384 = vmatpush1.msra.mxu0 0.0
        %7385 = vmatprep.subr.mxu0 0.0
        %7386 = vmatpush1.msra.mxu0 0.0
        %7387 = vmatprep.subr.mxu0 0.0
        %7388 = vmatpush1.msra.mxu0 0.0
        %7389 = vmatprep.subr.mxu0 0.0
        %7390 = vmatpush1.msra.mxu0 0.0
        %7391 = vmatprep.subr.mxu0 0.0
        %7392 = vmatpush1.msra.mxu0 0.0
        %7393 = vmatprep.mubr.f32.mxu0 0.0
        %7394 = vmatmul.mubr.f32.gmra.mrb[0].mxu0 %v7306
        %v7395 = vpop.f32.mrb[0].mxu0
        %v7396 = vadd.f32 0.0, %v7395
        %v7397 = vpop.f32.mrb[0].mxu0
        %7398 = vmatprep.mubr.f32.mxu0 0.0
        %7399 = vmatmul.mubr.f32.gmra.mrb[0].mxu0 %v7309
        %v7400 = vpop.f32.mrb[0].mxu0
        %v7401 = vadd.f32 0.0, %v7400
        %v7402 = vpop.f32.mrb[0].mxu0
        %7403 = vmatprep.mubr.f32.mxu0 0.0
        %7404 = vmatmul.mubr.f32.gmra.mrb[0].mxu0 %v7312
        %v7405 = vpop.f32.mrb[0].mxu0
        %v7406 = vadd.f32 0.0, %v7405
        %v7407 = vpop.f32.mrb[0].mxu0
        %7408 = vmatprep.mubr.f32.mxu0 0.0
        %7409 = vmatmul.mubr.f32.gmra.mrb[0].mxu0 %v7315
        %v7410 = vpop.f32.mrb[0].mxu0
        %v7411 = vadd.f32 0.0, %v7410
        %v7412 = vpop.f32.mrb[0].mxu0
        %7413 = vmatprep.mubr.f32.mxu0 0.0
        %7414 = vmatmul.mubr.f32.gmra.mrb[0].mxu0 %v7318
        %v7415 = vpop.f32.mrb[0].mxu0
        %v7416 = vadd.f32 0.0, %v7415
        %v7417 = vpop.f32.mrb[0].mxu0
        %7418 = vmatprep.mubr.f32.mxu0 0.0
        %7419 = vmatmul.mubr.f32.gmra.mrb[0].mxu0 %v7321
        %v7420 = vpop.f32.mrb[0].mxu0
        %v7421 = vadd.f32 0.0, %v7420
        %v7422 = vpop.f32.mrb[0].mxu0
        %7423 = vmatprep.mubr.f32.mxu0 0.0
        %7424 = vmatmul.mubr.f32.gmra.mrb[0].mxu0 %v7324
        %v7425 = vpop.f32.mrb[0].mxu0
        %v7426 = vadd.f32 0.0, %v7425
        %v7427 = vpop.f32.mrb[0].mxu0
        %7428 = vmatprep.mubr.f32.mxu0 0.0
        %7429 = vmatmul.mubr.f32.gmra.mrb[0].mxu0 %v7327
        %v7430 = vpop.f32.mrb[0].mxu0
        %v7431 = vadd.f32 0.0, %v7430
        %v7432 = vpop.f32.mrb[0].mxu0
        %7433 = vdwg.mxu0
        %v7434 = vadd.f32 %v7279, %v7396
        %v7435 = vadd.f32 %v7280, %v7401
        %v7436 = vadd.f32 %v7281, %v7406
        %v7437 = vadd.f32 %v7282, %v7411
        %v7438 = vadd.f32 %v7283, %v7416
        %v7439 = vadd.f32 %v7284, %v7421
        %v7440 = vadd.f32 %v7285, %v7426
        %v7441 = vadd.f32 %v7286, %v7431
        %v7442 = vld [vmem:[%s4] sm:$0x1]
        %v7444 = vlaneseq
        %v7445 = vshrl.u32 %v7444, 7
        %v7446 = vsub.s32 0, %v7445
        %v7447 = vrot.slane %v7442, %v7446
        %v7449 = vadd.f32 %v7434, %v7447
        %v7450 = vadd.f32 %v7435, %v7447
        %v7451 = vadd.f32 %v7436, %v7447
        %v7452 = vadd.f32 %v7437, %v7447
        %v7453 = vadd.f32 %v7438, %v7447
        %v7454 = vadd.f32 %v7439, %v7447
        %v7455 = vadd.f32 %v7440, %v7447
        %v7456 = vadd.f32 %v7441, %v7447
        %s7457 = scalar_lea.vmem %s544, 8 [#allocation2]
        %v7458 = vld [vmem:[%s7457] ss:$2 sm:$0xff]
        %s7459 = scalar_lea.vmem %s544, 72 [#allocation2]
        %v7460 = vld [vmem:[%s7459] ss:$2 sm:$0xff]
        %s7461 = scalar_lea.vmem %s544, 136 [#allocation2]
        %v7462 = vld [vmem:[%s7461] ss:$2 sm:$0xff]
        %s7463 = scalar_lea.vmem %s544, 200 [#allocation2]
        %v7464 = vld [vmem:[%s7463] ss:$2 sm:$0xff]
        %s7465 = scalar_lea.vmem %s544, 264 [#allocation2]
        %v7466 = vld [vmem:[%s7465] ss:$2 sm:$0xff]
        %s7467 = scalar_lea.vmem %s544, 328 [#allocation2]
        %v7468 = vld [vmem:[%s7467] ss:$2 sm:$0xff]
        %s7469 = scalar_lea.vmem %s544, 392 [#allocation2]
        %v7470 = vld [vmem:[%s7469] ss:$2 sm:$0xff]
        %s7471 = scalar_lea.vmem %s544, 456 [#allocation2]
        %v7472 = vld [vmem:[%s7471] ss:$2 sm:$0xff]
        %v7473 = vld [vmem:[%s5] sm:$0xf]
        %v7474 = vld [vmem:[%s6] sm:$0x1]
        %v7476 = vlaneseq
        %v7477 = vshrl.u32 %v7476, 7
        %v7478 = vsub.s32 0, %v7477
        %v7479 = vrot.slane %v7474, %v7478
        %v7482 = vsel %vm356, %v7458, 0
        %v7485 = vsel %vm356, %v7460, 0
        %v7488 = vsel %vm356, %v7462, 0
        %v7491 = vsel %vm356, %v7464, 0
        %v7494 = vsel %vm356, %v7466, 0
        %v7497 = vsel %vm356, %v7468, 0
        %v7500 = vsel %vm356, %v7470, 0
        %v7503 = vsel %vm356, %v7472, 0
        %v7506 = vsel %vm845, %v7473, 0
        %7508 = vmatprep.subr.mxu0 0.0
        %7509 = vmatpush1.msra.mxu0 %v7506
        %7510 = vmatprep.subr.mxu0 0.0
        %7511 = vmatpush1.msra.mxu0 0.0
        %7512 = vmatprep.subr.mxu0 0.0
        %7513 = vmatpush1.msra.mxu0 0.0
        %7514 = vmatprep.subr.mxu0 0.0
        %7515 = vmatpush1.msra.mxu0 0.0
        %7516 = vmatprep.subr.mxu0 0.0
        %7517 = vmatpush1.msra.mxu0 0.0
        %7518 = vmatprep.subr.mxu0 0.0
        %7519 = vmatpush1.msra.mxu0 0.0
        %7520 = vmatprep.subr.mxu0 0.0
        %7521 = vmatpush1.msra.mxu0 0.0
        %7522 = vmatprep.subr.mxu0 0.0
        %7523 = vmatpush1.msra.mxu0 0.0
        %7524 = vmatprep.subr.mxu0 0.0
        %7525 = vmatpush1.msra.mxu0 0.0
        %7526 = vmatprep.subr.mxu0 0.0
        %7527 = vmatpush1.msra.mxu0 0.0
        %7528 = vmatprep.subr.mxu0 0.0
        %7529 = vmatpush1.msra.mxu0 0.0
        %7530 = vmatprep.subr.mxu0 0.0
        %7531 = vmatpush1.msra.mxu0 0.0
        %7532 = vmatprep.subr.mxu0 0.0
        %7533 = vmatpush1.msra.mxu0 0.0
        %7534 = vmatprep.subr.mxu0 0.0
        %7535 = vmatpush1.msra.mxu0 0.0
        %7536 = vmatprep.subr.mxu0 0.0
        %7537 = vmatpush1.msra.mxu0 0.0
        %7538 = vmatprep.subr.mxu0 0.0
        %7539 = vmatpush1.msra.mxu0 0.0
        %7540 = vmatprep.subr.mxu0 0.0
        %7541 = vmatpush1.msra.mxu0 0.0
        %7542 = vmatprep.subr.mxu0 0.0
        %7543 = vmatpush1.msra.mxu0 0.0
        %7544 = vmatprep.subr.mxu0 0.0
        %7545 = vmatpush1.msra.mxu0 0.0
        %7546 = vmatprep.subr.mxu0 0.0
        %7547 = vmatpush1.msra.mxu0 0.0
        %7548 = vmatprep.subr.mxu0 0.0
        %7549 = vmatpush1.msra.mxu0 0.0
        %7550 = vmatprep.subr.mxu0 0.0
        %7551 = vmatpush1.msra.mxu0 0.0
        %7552 = vmatprep.subr.mxu0 0.0
        %7553 = vmatpush1.msra.mxu0 0.0
        %7554 = vmatprep.subr.mxu0 0.0
        %7555 = vmatpush1.msra.mxu0 0.0
        %7556 = vmatprep.subr.mxu0 0.0
        %7557 = vmatpush1.msra.mxu0 0.0
        %7558 = vmatprep.subr.mxu0 0.0
        %7559 = vmatpush1.msra.mxu0 0.0
        %7560 = vmatprep.subr.mxu0 0.0
        %7561 = vmatpush1.msra.mxu0 0.0
        %7562 = vmatprep.subr.mxu0 0.0
        %7563 = vmatpush1.msra.mxu0 0.0
        %7564 = vmatprep.subr.mxu0 0.0
        %7565 = vmatpush1.msra.mxu0 0.0
        %7566 = vmatprep.subr.mxu0 0.0
        %7567 = vmatpush1.msra.mxu0 0.0
        %7568 = vmatprep.subr.mxu0 0.0
        %7569 = vmatpush1.msra.mxu0 0.0
        %7570 = vmatprep.subr.mxu0 0.0
        %7571 = vmatpush1.msra.mxu0 0.0
        %7572 = vmatprep.mubr.f32.mxu0 0.0
        %7573 = vmatmul.mubr.f32.gmra.mrb[0].mxu0 %v7482
        %v7574 = vpop.f32.mrb[0].mxu0
        %v7575 = vadd.f32 %v7479, %v7574
        %v7576 = vpop.f32.mrb[0].mxu0
        %7577 = vmatprep.mubr.f32.mxu0 0.0
        %7578 = vmatmul.mubr.f32.gmra.mrb[0].mxu0 %v7485
        %v7579 = vpop.f32.mrb[0].mxu0
        %v7580 = vadd.f32 %v7479, %v7579
        %v7581 = vpop.f32.mrb[0].mxu0
        %7582 = vmatprep.mubr.f32.mxu0 0.0
        %7583 = vmatmul.mubr.f32.gmra.mrb[0].mxu0 %v7488
        %v7584 = vpop.f32.mrb[0].mxu0
        %v7585 = vadd.f32 %v7479, %v7584
        %v7586 = vpop.f32.mrb[0].mxu0
        %7587 = vmatprep.mubr.f32.mxu0 0.0
        %7588 = vmatmul.mubr.f32.gmra.mrb[0].mxu0 %v7491
        %v7589 = vpop.f32.mrb[0].mxu0
        %v7590 = vadd.f32 %v7479, %v7589
        %v7591 = vpop.f32.mrb[0].mxu0
        %7592 = vmatprep.mubr.f32.mxu0 0.0
        %7593 = vmatmul.mubr.f32.gmra.mrb[0].mxu0 %v7494
        %v7594 = vpop.f32.mrb[0].mxu0
        %v7595 = vadd.f32 %v7479, %v7594
        %v7596 = vpop.f32.mrb[0].mxu0
        %7597 = vmatprep.mubr.f32.mxu0 0.0
        %7598 = vmatmul.mubr.f32.gmra.mrb[0].mxu0 %v7497
        %v7599 = vpop.f32.mrb[0].mxu0
        %v7600 = vadd.f32 %v7479, %v7599
        %v7601 = vpop.f32.mrb[0].mxu0
        %7602 = vmatprep.mubr.f32.mxu0 0.0
        %7603 = vmatmul.mubr.f32.gmra.mrb[0].mxu0 %v7500
        %v7604 = vpop.f32.mrb[0].mxu0
        %v7605 = vadd.f32 %v7479, %v7604
        %v7606 = vpop.f32.mrb[0].mxu0
        %7607 = vmatprep.mubr.f32.mxu0 0.0
        %7608 = vmatmul.mubr.f32.gmra.mrb[0].mxu0 %v7503
        %v7609 = vpop.f32.mrb[0].mxu0
        %v7610 = vadd.f32 %v7479, %v7609
        %v7611 = vpop.f32.mrb[0].mxu0
        %7612 = vdwg.mxu0
        %v7613 = vsel %vm430, %v7449, 0.0
        %v7614 = vsel %vm430, %v7450, 0.0
        %v7615 = vadd.f32 %v7613, %v7614
        %v7616 = vsel %vm430, %v7451, 0.0
        %v7617 = vadd.f32 %v7615, %v7616
        %v7618 = vsel %vm430, %v7452, 0.0
        %v7619 = vadd.f32 %v7617, %v7618
        %v7620 = vsel %vm430, %v7453, 0.0
        %v7621 = vadd.f32 %v7619, %v7620
        %v7622 = vsel %vm430, %v7454, 0.0
        %v7623 = vadd.f32 %v7621, %v7622
        %v7624 = vsel %vm430, %v7455, 0.0
        %v7625 = vadd.f32 %v7623, %v7624
        %v7626 = vsel %vm430, %v7456, 0.0
        %v7627 = vadd.f32 %v7625, %v7626
        %v7628 = vrot.slane %v7627, 4
        %v7629 = vadd.f32 %v7627, %v7628
        %v7630 = vrot.slane %v7629, 2
        %v7631 = vadd.f32 %v7629, %v7630
        %v7632 = vrot.slane %v7631, 1
        %v7633 = vadd.f32 %v7631, %v7632
        %vm7634 = vcmask 57344
        %7635 = vst.msk [vmem:[%s340] sm:$0x1] %vm7634, %v7633
        %v7636 = vmul.f32 %v7449, %v7449
        %v7637 = vmul.f32 %v7450, %v7450
        %v7638 = vmul.f32 %v7451, %v7451
        %v7639 = vmul.f32 %v7452, %v7452
        %v7640 = vmul.f32 %v7453, %v7453
        %v7641 = vmul.f32 %v7454, %v7454
        %v7642 = vmul.f32 %v7455, %v7455
        %v7643 = vmul.f32 %v7456, %v7456
        %v7644 = vsel %vm430, %v7636, 0.0
        %v7645 = vsel %vm430, %v7637, 0.0
        %v7646 = vadd.f32 %v7644, %v7645
        %v7647 = vsel %vm430, %v7638, 0.0
        %v7648 = vadd.f32 %v7646, %v7647
        %v7649 = vsel %vm430, %v7639, 0.0
        %v7650 = vadd.f32 %v7648, %v7649
        %v7651 = vsel %vm430, %v7640, 0.0
        %v7652 = vadd.f32 %v7650, %v7651
        %v7653 = vsel %vm430, %v7641, 0.0
        %v7654 = vadd.f32 %v7652, %v7653
        %v7655 = vsel %vm430, %v7642, 0.0
        %v7656 = vadd.f32 %v7654, %v7655
        %v7657 = vsel %vm430, %v7643, 0.0
        %v7658 = vadd.f32 %v7656, %v7657
        %v7659 = vrot.slane %v7658, 4
        %v7660 = vadd.f32 %v7658, %v7659
        %v7661 = vrot.slane %v7660, 2
        %v7662 = vadd.f32 %v7660, %v7661
        %v7663 = vrot.slane %v7662, 1
        %v7664 = vadd.f32 %v7662, %v7663
        %7665 = vst.msk [vmem:[%s340 + $0x1] sm:$0x1] %vm7634, %v7664
        %7666 = vst.msk [vmem:[%s350] sm:$0xff] %vm430, %v7449
        %7667 = vst.msk [vmem:[%s350 + $0x8] sm:$0xff] %vm430, %v7450
        %7668 = vst.msk [vmem:[%s350 + $0x10] sm:$0xff] %vm430, %v7451
        %7669 = vst.msk [vmem:[%s350 + $0x18] sm:$0xff] %vm430, %v7452
        %7670 = vst.msk [vmem:[%s350 + $0x20] sm:$0xff] %vm430, %v7453
        %7671 = vst.msk [vmem:[%s350 + $0x28] sm:$0xff] %vm430, %v7454
        %7672 = vst.msk [vmem:[%s350 + $0x30] sm:$0xff] %vm430, %v7455
        %7673 = vst.msk [vmem:[%s350 + $0x38] sm:$0xff] %vm430, %v7456
        %7674 = vst.msk [vmem:[%s355] sm:$0xff] %vm430, %v7575
        %7675 = vst.msk [vmem:[%s355 + $0x8] sm:$0xff] %vm430, %v7580
        %7676 = vst.msk [vmem:[%s355 + $0x10] sm:$0xff] %vm430, %v7585
        %7677 = vst.msk [vmem:[%s355 + $0x18] sm:$0xff] %vm430, %v7590
        %7678 = vst.msk [vmem:[%s355 + $0x20] sm:$0xff] %vm430, %v7595
        %7679 = vst.msk [vmem:[%s355 + $0x28] sm:$0xff] %vm430, %v7600
        %7680 = vst.msk [vmem:[%s355 + $0x30] sm:$0xff] %vm430, %v7605
        %7681 = vst.msk [vmem:[%s355 + $0x38] sm:$0xff] %vm430, %v7610
        %p7682 = scmp.lt.s32.totalorder %s24, 1
        %s7683 = scalar_select %p7682, %s24, 1
        %s7684 = smul.addr %s7683, 8
        %s7685 = smul.addr %s7684, 8
        %s7686 = scalar_lea.vmem %s7, %s7685
        %p7687 = scmp.lt.s32.totalorder %s24, 1
        %s7688 = scalar_select %p7687, %s24, 1
        %s7689 = smul.addr %s7688, 8
        %s7690 = smul.addr %s7689, 8
        %s7691 = scalar_lea.vmem %s8, %s7690
        %s7692 = sand.u32 %s236, 1
        %s7693 = scalar_lea.sflag [#allocation5], %s7692
        %s7694 = sand.u32 %s236, 1
        %s7695 = smul.addr %s7694, 2
        %s7696 = scalar_lea.vmem [#allocation4], %s7695
        // Predicated region
        $region49: #{tpu_custom_call.1} parent=47 // pred_check
          %p7697 = pneg %p194
        $region50: #{tpu_custom_call.1} parent=47 // pred_check_branch
          %7699 = sbr.rel (%p7697) target = $region52
        $region51: #{tpu_custom_call.1} parent=47 // pred_region
          _
        $region52: #{tpu_custom_call.1} parent=47 // pred_fallthru
          _
        // Predicated region
        $region53: #{tpu_custom_call.1} parent=47 // pred_check
          %p7700 = pneg %p220
        $region54: #{tpu_custom_call.1} parent=47 // pred_check_branch
          %7702 = sbr.rel (%p7700) target = $region56
        $region55: #{tpu_custom_call.1} parent=47 // pred_region
          _
        $region56: #{tpu_custom_call.1} parent=47 // pred_fallthru
          _
        // Predicated region
        $region57: #{tpu_custom_call.1} parent=47 // pred_check
          %p7703 = pneg %p246
        $region58: #{tpu_custom_call.1} parent=47 // pred_check_branch
          %7705 = sbr.rel (%p7703) target = $region60
        $region59: #{tpu_custom_call.1} parent=47 // pred_region
          %s7707 = ssub.s32 32, 32
          %7708 = vsyncadd %s7693, %s7707
          %s7709 = smul.addr %s24, 32
          %s7710 = scalar_lea.hbm %s9, %s7709
          %s7712 = sshll.u32 %s7696, 4
          %s7713 = int_to_ptr.vmem [resolvable:$true] %s7712
          %7715 = dma.vmem_to_hbm [thread:$0]  %s7713, 32, %s7710, %s7693
        $region60: #{tpu_custom_call.1} parent=47 // pred_fallthru
          _
      $region48: #{tpu_custom_call.1} parent=5 // pred_fallthru
        _
      %p7716 = scmp.le.s32.totalorder 2, %s19
      // Predicated region
      $region61: #{tpu_custom_call.1} parent=5 // pred_check
        %p7717 = pneg %p7716
      $region62: #{tpu_custom_call.1} parent=5 // pred_check_branch
        %7719 = sbr.rel (%p7717) target = $region64
      $region63: #{tpu_custom_call.1} parent=5 // pred_region
        %s7720 = ssub.s32 %s19, 2
        // Predicated region
        $region65: #{tpu_custom_call.1} parent=63 // pred_check
          %p7721 = pneg %p200
        $region66: #{tpu_custom_call.1} parent=63 // pred_check_branch
          %7723 = sbr.rel (%p7721) target = $region68
        $region67: #{tpu_custom_call.1} parent=63 // pred_region
          %p7724 = scmp.lt.s32.totalorder %s25, 1
          %s7725 = scalar_select %p7724, %s25, 1
          %s7726 = smul.addr %s7725, 8
          %s7727 = smul.addr %s7726, 8
          %s7728 = scalar_lea.vmem %s7, %s7727
        $region68: #{tpu_custom_call.1} parent=63 // pred_fallthru
          _
        // Predicated region
        $region69: #{tpu_custom_call.1} parent=63 // pred_check
          %p7729 = pneg %p226
        $region70: #{tpu_custom_call.1} parent=63 // pred_check_branch
          %7731 = sbr.rel (%p7729) target = $region72
        $region71: #{tpu_custom_call.1} parent=63 // pred_region
          %p7732 = scmp.lt.s32.totalorder %s25, 1
          %s7733 = scalar_select %p7732, %s25, 1
          %s7734 = smul.addr %s7733, 8
          %s7735 = smul.addr %s7734, 8
          %s7736 = scalar_lea.vmem %s8, %s7735
        $region72: #{tpu_custom_call.1} parent=63 // pred_fallthru
          _
        // Predicated region
        $region73: #{tpu_custom_call.1} parent=63 // pred_check
          %p7737 = pneg %p252
        $region74: #{tpu_custom_call.1} parent=63 // pred_check_branch
          %7739 = sbr.rel (%p7737) target = $region76
        $region75: #{tpu_custom_call.1} parent=63 // pred_region
          %s7740 = sand.u32 %s237, 1
          %s7741 = scalar_lea.sflag [#allocation5], %s7740
          %s7742 = sand.u32 %s237, 1
          %s7743 = smul.addr %s7742, 2
          %s7744 = scalar_lea.vmem [#allocation4], %s7743
          %7745 = dma.done %s7741, 32
        $region76: #{tpu_custom_call.1} parent=63 // pred_fallthru
          _
      $region64: #{tpu_custom_call.1} parent=5 // pred_fallthru
        _
    $region6: #{tpu_custom_call.1} parent=1 // loop_footer
      %s23 = sadd.s32 1, %s19
    $region7: #{tpu_custom_call.1} parent=1 // loop_footer_branch
      %18 = sbr.rel target = $region3
    $region8: #{tpu_custom_call.1} parent=1 // loop_exit
      _
    %7746 = vsyncpa [#allocation5], 1
    %s7747 = scalar_lea.sflag [#allocation5], 1
    %7748 = vsyncpa %s7747, 1

</llo_original>
